<compile_context>
chip_gen: v6e
topology: v6e:2x2x1
jax: 0.10.0
libtpu: 0.0.40
codegen_flags: <defaults>
</compile_context>

<pallas_src>
import functools
import math

import jax
import jax.numpy as jnp
from jax.experimental import pallas as pl
from jax.experimental.pallas import tpu as pltpu

BN_EPS = 1e-5

# Set to jnp.bfloat16 on v6e/v7x for ~2x MXU throughput and half the DMA bytes
# if the accuracy budget allows; float32 keeps parity with the f32 reference.
MATMUL_DTYPE = jnp.float32

_FC_TOKEN_TILE = 4096   # (Cin+Cout)*tile*4B*2(double-buffer) stays << VMEM (v7x-safe)
_ATTN_MAX_ROWS = 128    # (group, batch) rows batched per attention grid step


def _largest_divisor_leq(n, cap):
    cap = max(1, min(n, cap))
    for t in range(cap, 0, -1):
        if n % t == 0:
            return t
    return 1


def _pick_token_tile(n, cap):
    if n <= cap:
        return n                       # full extent: always a legal block
    for t in range(cap, 127, -1):      # prefer lane-aligned divisors
        if n % t == 0 and t % 128 == 0:
            return t
    return _largest_divisor_leq(n, cap)


# ---------------------------------------------------------------------------
# Kernel 1a: 1x1 conv ("FC") + BatchNorm + ReLU, single-pass (N fits one tile).
# ---------------------------------------------------------------------------
def _fc_bn_relu_single_kernel(x_ref, wT_ref, b_ref, o_ref, *, n_tokens):
    # y = W^T x + b : (Cout, Cin) @ (Cin, N) -> (Cout, N)
    y = jnp.dot(wT_ref[...].astype(MATMUL_DTYPE), x_ref[...].astype(MATMUL_DTYPE),
                preferred_element_type=jnp.float32) + b_ref[...]
    inv_n = 1.0 / float(n_tokens)
    mean = jnp.sum(y, axis=1, keepdims=True) * inv_n
    yc = y - mean
    var = jnp.sum(yc * yc, axis=1, keepdims=True) * inv_n   # biased (BN training)
    o_ref[...] = jnp.maximum(yc * jax.lax.rsqrt(var + BN_EPS), 0.0)


# ---------------------------------------------------------------------------
# Kernel 1b: same op, two-phase tiled variant for large token counts.
# Channel-major layout: x (Cin, N), output (Cout, N); grid = (phase, token tile).
# ---------------------------------------------------------------------------
def _fc_bn_relu_tiled_kernel(x_ref, wT_ref, b_ref, o_ref, sum_ref, ssq_ref, *,
                             n_tokens):
    phase = pl.program_id(0)   # 0: accumulate BN stats, 1: normalize + ReLU
    t = pl.program_id(1)       # token tile

    @pl.when(jnp.logical_and(phase == 0, t == 0))
    def _init():
        sum_ref[...] = jnp.zeros_like(sum_ref)
        ssq_ref[...] = jnp.zeros_like(ssq_ref)

    # y = W^T x + b for this token tile: (Cout, Cin) @ (Cin, tile) -> (Cout, tile)
    y = jnp.dot(wT_ref[...].astype(MATMUL_DTYPE), x_ref[...].astype(MATMUL_DTYPE),
                preferred_element_type=jnp.float32) + b_ref[...]

    @pl.when(phase == 0)
    def _accumulate():
        sum_ref[...] += jnp.sum(y, axis=1, keepdims=True)
        ssq_ref[...] += jnp.sum(y * y, axis=1, keepdims=True)

    @pl.when(phase == 1)
    def _normalize():
        inv_n = 1.0 / float(n_tokens)
        mean = sum_ref[...] * inv_n
        # Biased variance (PyTorch BatchNorm2d training forward).  E[y^2]-E[y]^2
        # is fine at these magnitudes; the single-pass path uses centered sums.
        var = ssq_ref[...] * inv_n - mean * mean
        y_n = (y - mean) * jax.lax.rsqrt(var + BN_EPS)
        o_ref[...] = jnp.maximum(y_n, 0.0)


def fc_bn_relu(x_cm, w, b):
    """x_cm: (Cin, N), w: (Cin, Cout), b: (1, Cout) -> (Cout, N) float32."""
    c_in, n = x_cm.shape
    c_out = w.shape[1]
    wT = jnp.transpose(w)                 # (Cout, Cin)
    b_col = jnp.reshape(b, (c_out, 1))    # (Cout, 1), broadcasts over lanes

    if n <= _FC_TOKEN_TILE:
        # Whole token axis fits in one VMEM block: one pass, no recompute.
        kernel = functools.partial(_fc_bn_relu_single_kernel, n_tokens=n)
        return pl.pallas_call(
            kernel,
            out_shape=jax.ShapeDtypeStruct((c_out, n), jnp.float32),
            grid=(1,),
            in_specs=[
                pl.BlockSpec((c_in, n), lambda i: (0, 0)),
                pl.BlockSpec((c_out, c_in), lambda i: (0, 0)),
                pl.BlockSpec((c_out, 1), lambda i: (0, 0)),
            ],
            out_specs=pl.BlockSpec((c_out, n), lambda i: (0, 0)),
        )(x_cm, wT, b_col)

    # Large N: two-phase tiled global BatchNorm.
    tile_n = _pick_token_tile(n, _FC_TOKEN_TILE)
    num_tiles = n // tile_n
    kernel = functools.partial(_fc_bn_relu_tiled_kernel, n_tokens=n)
    return pl.pallas_call(
        kernel,
        out_shape=jax.ShapeDtypeStruct((c_out, n), jnp.float32),
        grid=(2, num_tiles),              # (phase, token tile)
        in_specs=[
            pl.BlockSpec((c_in, tile_n), lambda p, t: (0, t)),
            pl.BlockSpec((c_out, c_in), lambda p, t: (0, 0)),
            pl.BlockSpec((c_out, 1), lambda p, t: (0, 0)),
        ],
        # Phase 0 parks the (unwritten) output block at tile 0; each tile is
        # written exactly once, during its phase-1 visit (no garbage writeback).
        out_specs=pl.BlockSpec((c_out, tile_n), lambda p, t: (0, t * p)),
        scratch_shapes=[pltpu.VMEM((c_out, 1), jnp.float32),
                        pltpu.VMEM((c_out, 1), jnp.float32)],
        compiler_params=pltpu.CompilerParams(
            dimension_semantics=("arbitrary", "arbitrary")),
    )(x_cm, wT, b_col)


# ---------------------------------------------------------------------------
# Kernel 2: grouped attention.  Rows are (channel, batch) pairs, r = c*B + b
# with c = g*K + k, so a row block of mt*K*B rows holds mt complete groups for
# all batches.  Softmax runs over the K axis (PyTorch dim=1).
# ---------------------------------------------------------------------------
def _attention_kernel(q_ref, k_ref, v_ref, o_ref, *, mt, K, batch, scale):
    rt, H, W = q_ref.shape                      # rt = mt * K * batch
    q = q_ref[...].astype(MATMUL_DTYPE)
    k = k_ref[...].astype(MATMUL_DTYPE)
    v = v_ref[...].astype(MATMUL_DTYPE)
    # s[r, i, j] = sum_w q[r, i, w] * k[r, j, w]   (matmul(q, k^T) per row)
    s = jnp.einsum('riw,rjw->rij', q, k,
                   preferred_element_type=jnp.float32) * scale
    # softmax over the K axis: row r = (g*K + k)*batch + b  -> leading-dim split
    # (leading-dim reshape only; trailing (H, H) layout untouched -> no copy).
    s5 = s.reshape(mt, K, batch, H, H)
    m = jnp.max(s5, axis=1, keepdims=True)
    e = jnp.exp(s5 - m)
    denom = jnp.sum(e, axis=1, keepdims=True)
    a = (e * pl.reciprocal(denom, approx=True)).reshape(rt, H, H)
    # out[r, i, w] = sum_j a[r, i, j] * v[r, j, w]  (matmul(a, v) per row)
    o_ref[...] = jnp.einsum('rij,rjw->riw', a.astype(MATMUL_DTYPE), v,
                            preferred_element_type=jnp.float32)


def grouped_attention(qkv_cm, *, batch, K, d, H, W, max_rows=_ATTN_MAX_ROWS):
    """qkv_cm: (6D, N); channels 0:2D = q, 2D:4D = k, 4D:6D = v. Returns (2D, N)."""
    six_d, n_tok = qkv_cm.shape                 # 6D, N = B*H*W
    two_d = six_d // 3
    n_groups = two_d // K                       # 2d channel groups
    rows_per_group = K * batch
    # (C, N) -> (C*B, H, W): row = c*B + b (free, row-major-compatible reshape)
    qkv3 = qkv_cm.reshape(-1, H, W)             # (6D*B, H, W)
    mt = _largest_divisor_leq(n_groups, max(1, max_rows // rows_per_group))
    n_tiles = n_groups // mt
    rt = mt * rows_per_group                    # rows per grid step
    kernel = functools.partial(_attention_kernel, mt=mt, K=K, batch=batch,
                               scale=1.0 / math.sqrt(d))
    out3 = pl.pallas_call(
        kernel,
        out_shape=jax.ShapeDtypeStruct((two_d * batch, H, W), jnp.float32),
        grid=(n_tiles,),
        in_specs=[
            pl.BlockSpec((rt, H, W), lambda i: (i, 0, 0)),                # q rows
            pl.BlockSpec((rt, H, W), lambda i: (i + n_tiles, 0, 0)),      # k rows
            pl.BlockSpec((rt, H, W), lambda i: (i + 2 * n_tiles, 0, 0)),  # v rows
        ],
        out_specs=pl.BlockSpec((rt, H, W), lambda i: (i, 0, 0)),
        compiler_params=pltpu.CompilerParams(dimension_semantics=("parallel",)),
    )(qkv3, qkv3, qkv3)
    return out3.reshape(two_d, n_tok)           # back to channel-major (2D, N)


# ---------------------------------------------------------------------------
# Full forward (glue: one transpose in, one transpose out, free reshapes).
# ---------------------------------------------------------------------------
def st_attention_forward(x0, x1, params, *, K, d):
    B, c_in, H, W = x0.shape
    two_d = params['wq'].shape[1]

    def to_cm(x):   # (B, C, H, W) -> (C, B*H*W), token t = b*H*W + i*W + w
        return jnp.transpose(x, (1, 0, 2, 3)).reshape(x.shape[1], -1)

    x0_cm = to_cm(x0)
    x1_cm = to_cm(x1)

    # Fused q|k|v projection: stack [x0; x1] rows, block-diagonal weight.
    # q/v columns read the x0 rows, k columns read the x1 rows; the zero blocks
    # cost negligible extra MXU work (contraction dim is tiny) and BatchNorm
    # statistics are per output channel, so fused == separate.
    zeros_w = jnp.zeros_like(params['wq'])                                # (Cin, 2D)
    w_top = jnp.concatenate([params['wq'], zeros_w, params['wv']], axis=1)  # x0 rows
    w_bot = jnp.concatenate([zeros_w, params['wk'], zeros_w], axis=1)       # x1 rows
    w_qkv = jnp.concatenate([w_top, w_bot], axis=0)                       # (2Cin, 6D)
    b_qkv = jnp.concatenate([params['bq'], params['bk'], params['bv']], axis=1)
    x01_cm = jnp.concatenate([x0_cm, x1_cm], axis=0)                      # (2Cin, N)

    qkv_cm = fc_bn_relu(x01_cm, w_qkv, b_qkv)                             # (6D, N)

    attn_cm = grouped_attention(qkv_cm, batch=B, K=K, d=d, H=H, W=W)      # (2D, N)

    out_cm = fc_bn_relu(attn_cm, params['wo'], params['bo'])              # (Cin, N)
    return jnp.transpose(out_cm.reshape(c_in, B, H, W), (1, 0, 2, 3))


# ---------------------------------------------------------------------------
# Pure-JAX reference (mirrors the PyTorch module) for a sanity check.
# ---------------------------------------------------------------------------
def _reference_forward(x0, x1, params, *, K, d):
    hp = jax.lax.Precision.HIGHEST

    def fc(x, w, b):
        y = jnp.einsum('bchw,co->bohw', x, w, precision=hp) + b.reshape(1, -1, 1, 1)
        mean = y.mean(axis=(0, 2, 3), keepdims=True)
        var = ((y - mean) ** 2).mean(axis=(0, 2, 3), keepdims=True)
        return jnp.maximum((y - mean) * jax.lax.rsqrt(var + BN_EPS), 0.0)

    B, _, H, W = x0.shape
    q = fc(x0, params['wq'], params['bq'])
    k = fc(x1, params['wk'], params['bk'])
    v = fc(x0, params['wv'], params['bv'])

    def group(t):   # torch.cat(torch.split(t, K, dim=1), dim=0)
        Bb, C = t.shape[0], t.shape[1]
        return t.reshape(Bb, C // K, K, H, W).transpose(1, 0, 2, 3, 4).reshape(-1, K, H, W)

    qg, kg, vg = group(q), group(k), group(v)
    s = jnp.einsum('nkiw,nkjw->nkij', qg, kg, precision=hp) / math.sqrt(d)
    a = jax.nn.softmax(s, axis=1)
    og = jnp.einsum('nkij,nkjw->nkiw', a, vg, precision=hp)
    o = og.reshape(-1, B, K, H, W).transpose(1, 0, 2, 3, 4).reshape(B, -1, H, W)
    return fc(o, params['wo'], params['bo'])


# ---------------------------------------------------------------------------
# Deterministic parameter init (xavier_uniform_ 1x1-conv weights, zero biases).
# ---------------------------------------------------------------------------
def _xavier_uniform(key, c_in, c_out):
    bound = math.sqrt(6.0 / (c_in + c_out))
    return jax.random.uniform(key, (c_in, c_out), jnp.float32, -bound, bound)


def init_params(key, c_in, K, d):
    two_d = 2 * K * d
    kq, kk, kv, ko = jax.random.split(key, 4)
    return {
        'wq': _xavier_uniform(kq, c_in, two_d), 'bq': jnp.zeros((1, two_d), jnp.float32),
        'wk': _xavier_uniform(kk, c_in, two_d), 'bk': jnp.zeros((1, two_d), jnp.float32),
        'wv': _xavier_uniform(kv, c_in, two_d), 'bv': jnp.zeros((1, two_d), jnp.float32),
        'wo': _xavier_uniform(ko, two_d, c_in), 'bo': jnp.zeros((1, c_in), jnp.float32),
    }


if __name__ == "__main__":
    B, c_in, H, W = 2, 4, 16, 16
    K, d = 2, 4                       # D = K*d = 8, 2D = 16 channels

    key = jax.random.PRNGKey(0)
    kx0, kx1, kp = jax.random.split(key, 3)
    x0 = jax.random.normal(kx0, (B, c_in, H, W), jnp.float32)
    x1 = jax.random.normal(kx1, (B, c_in, H, W), jnp.float32)
    params = init_params(kp, c_in, K, d)

    fwd = jax.jit(functools.partial(st_attention_forward, K=K, d=d))
    out = fwd(x0, x1, params)
    jax.block_until_ready(out)
    assert out.shape == (B, c_in, H, W) and out.dtype == jnp.float32

    # Sanity check against the pure-JAX reference (loose tol covers the
    # approximate EUP reciprocal and MXU accumulation-order differences).
    ref = _reference_forward(x0, x1, params, K=K, d=d)
    max_err = float(jnp.max(jnp.abs(out - ref)))
    assert jnp.allclose(out, ref, rtol=5e-2, atol=5e-2), max_err

    print("KERNEL_OK")
</pallas_src>

<mosaic_0001>
module attributes {stable_mosaic.version = 11 : i64} {
  func.func @_attention_kernel(%arg0: i32, %arg1: memref<32x16x16xf32, #tpu.memory_space<vmem>>, %arg2: memref<32x16x16xf32, #tpu.memory_space<vmem>>, %arg3: memref<32x16x16xf32, #tpu.memory_space<vmem>>, %arg4: memref<32x16x16xf32, #tpu.memory_space<vmem>>) attributes {dimension_semantics = [#tpu.dimension_semantics<parallel>], iteration_bounds = array<i64: 1>, scalar_prefetch = 0 : i64, scratch_operands = 0 : i64, tpu.core_type = #tpu.core_type<tc>, window_params = [{transform_indices = @transform_0, window_bounds = array<i64: 32, 16, 16>}, {transform_indices = @transform_1, window_bounds = array<i64: 32, 16, 16>}, {transform_indices = @transform_2, window_bounds = array<i64: 32, 16, 16>}, {transform_indices = @transform_3, window_bounds = array<i64: 32, 16, 16>}]} {
    %c0 = arith.constant 0 : index
    %c0_0 = arith.constant 0 : index
    %c0_1 = arith.constant 0 : index
    %0 = vector.load %arg1[%c0, %c0_0, %c0_1] : memref<32x16x16xf32, #tpu.memory_space<vmem>>, vector<32x16x16xf32>
    %c0_2 = arith.constant 0 : index
    %c0_3 = arith.constant 0 : index
    %c0_4 = arith.constant 0 : index
    %1 = vector.load %arg2[%c0_2, %c0_3, %c0_4] : memref<32x16x16xf32, #tpu.memory_space<vmem>>, vector<32x16x16xf32>
    %c0_5 = arith.constant 0 : index
    %c0_6 = arith.constant 0 : index
    %c0_7 = arith.constant 0 : index
    %2 = vector.load %arg3[%c0_5, %c0_6, %c0_7] : memref<32x16x16xf32, #tpu.memory_space<vmem>>, vector<32x16x16xf32>
    "tpu.trace_start"() <{level = 10 : i32, message = "riw,rjw->rij"}> : () -> ()
    %cst = arith.constant dense<0.000000e+00> : vector<32x16x16xf32>
    %3 = tpu.matmul %0, %1, %cst {dimension_numbers = #tpu.dot_dimension_numbers<[2], [2], [1], [1], [0, 0, 0, 1, 1, 1], [0], [0]>} : vector<32x16x16xf32>, vector<32x16x16xf32>, vector<32x16x16xf32> -> vector<32x16x16xf32>
    "tpu.trace_stop"() : () -> ()
    %cst_8 = arith.constant 5.000000e-01 : f32
    %4 = vector.broadcast %cst_8 : f32 to vector<32x16x16xf32>
    %5 = arith.mulf %3, %4 : vector<32x16x16xf32>
    %6 = vector.shape_cast %5 : vector<32x16x16xf32> to vector<8x2x2x16x16xf32>
    %cst_9 = arith.constant dense<0xFF800000> : vector<8x2x16x16xf32>
    %7 = vector.multi_reduction <maximumf>, %6, %cst_9 [1] : vector<8x2x2x16x16xf32> to vector<8x2x16x16xf32>
    %8 = vector.shape_cast %7 : vector<8x2x16x16xf32> to vector<8x1x2x16x16xf32>
    %9 = vector.broadcast %8 : vector<8x1x2x16x16xf32> to vector<8x2x2x16x16xf32>
    %10 = arith.subf %6, %9 : vector<8x2x2x16x16xf32>
    %11 = math.exp %10 : vector<8x2x2x16x16xf32>
    %cst_10 = arith.constant dense<0.000000e+00> : vector<8x2x16x16xf32>
    %12 = vector.multi_reduction <add>, %11, %cst_10 [1] : vector<8x2x2x16x16xf32> to vector<8x2x16x16xf32>
    %13 = vector.shape_cast %12 : vector<8x2x16x16xf32> to vector<8x1x2x16x16xf32>
    %14 = tpu.reciprocal %13 {approx = true} : vector<8x1x2x16x16xf32> -> vector<8x1x2x16x16xf32>
    %15 = vector.broadcast %14 : vector<8x1x2x16x16xf32> to vector<8x2x2x16x16xf32>
    %16 = arith.mulf %11, %15 : vector<8x2x2x16x16xf32>
    %17 = vector.shape_cast %16 : vector<8x2x2x16x16xf32> to vector<32x16x16xf32>
    "tpu.trace_start"() <{level = 10 : i32, message = "rij,rjw->riw"}> : () -> ()
    %cst_11 = arith.constant dense<0.000000e+00> : vector<32x16x16xf32>
    %18 = tpu.matmul %17, %2, %cst_11 {dimension_numbers = #tpu.dot_dimension_numbers<[2], [1], [1], [2], [0, 0, 0, 1, 1, 2], [0], [0]>} : vector<32x16x16xf32>, vector<32x16x16xf32>, vector<32x16x16xf32> -> vector<32x16x16xf32>
    "tpu.trace_stop"() : () -> ()
    %c0_12 = arith.constant 0 : index
    %c0_13 = arith.constant 0 : index
    %c0_14 = arith.constant 0 : index
    %19 = vector.load %arg4[%c0_12, %c0_13, %c0_14] : memref<32x16x16xf32, #tpu.memory_space<vmem>>, vector<32x16x16xf32>
    tpu.vector_store %arg4[%c0_12, %c0_13, %c0_14], %18 {strides = array<i32>} : memref<32x16x16xf32, #tpu.memory_space<vmem>>, vector<32x16x16xf32>,
    return
  }
  func.func @transform_0(%arg0: i32) -> (i32, i32, i32) {
    %c0_i32 = arith.constant 0 : i32
    %c0_i32_0 = arith.constant 0 : i32
    %c0_i32_1 = arith.constant 0 : i32
    return %arg0, %c0_i32, %c0_i32_0 : i32, i32, i32
  }
  func.func @transform_1(%arg0: i32) -> (i32, i32, i32) {
    %c1_i32 = arith.constant 1 : i32
    %0 = arith.addi %arg0, %c1_i32 : i32
    %c0_i32 = arith.constant 0 : i32
    %c0_i32_0 = arith.constant 0 : i32
    %c0_i32_1 = arith.constant 0 : i32
    return %0, %c0_i32, %c0_i32_0 : i32, i32, i32
  }
  func.func @transform_2(%arg0: i32) -> (i32, i32, i32) {
    %c2_i32 = arith.constant 2 : i32
    %0 = arith.addi %arg0, %c2_i32 : i32
    %c0_i32 = arith.constant 0 : i32
    %c0_i32_0 = arith.constant 0 : i32
    %c0_i32_1 = arith.constant 0 : i32
    return %0, %c0_i32, %c0_i32_0 : i32, i32, i32
  }
  func.func @transform_3(%arg0: i32) -> (i32, i32, i32) {
    %c0_i32 = arith.constant 0 : i32
    %c0_i32_0 = arith.constant 0 : i32
    %c0_i32_1 = arith.constant 0 : i32
    return %arg0, %c0_i32, %c0_i32_0 : i32, i32, i32
  }
}

module attributes {stable_mosaic.version = 11 : i64} {
  func.func @_fc_bn_relu_single_kernel(%arg0: i32, %arg1: memref<8x512xf32, #tpu.memory_space<vmem>>, %arg2: memref<48x8xf32, #tpu.memory_space<vmem>>, %arg3: memref<48x1xf32, #tpu.memory_space<vmem>>, %arg4: memref<48x512xf32, #tpu.memory_space<vmem>>) attributes {dimension_semantics = [#tpu.dimension_semantics<arbitrary>], iteration_bounds = array<i64: 1>, scalar_prefetch = 0 : i64, scratch_operands = 0 : i64, tpu.core_type = #tpu.core_type<tc>, window_params = [{pipeline_mode = #tpu.pipeline_mode<synchronous>, transform_indices = @transform_0, window_bounds = array<i64: 8, 512>}, {pipeline_mode = #tpu.pipeline_mode<synchronous>, transform_indices = @transform_1, window_bounds = array<i64: 48, 8>}, {pipeline_mode = #tpu.pipeline_mode<synchronous>, transform_indices = @transform_2, window_bounds = array<i64: 48, 1>}, {pipeline_mode = #tpu.pipeline_mode<synchronous>, transform_indices = @transform_3, window_bounds = array<i64: 48, 512>}]} {
    %c0 = arith.constant 0 : index
    %c0_0 = arith.constant 0 : index
    %0 = vector.load %arg2[%c0, %c0_0] : memref<48x8xf32, #tpu.memory_space<vmem>>, vector<48x8xf32>
    %c0_1 = arith.constant 0 : index
    %c0_2 = arith.constant 0 : index
    %1 = vector.load %arg1[%c0_1, %c0_2] : memref<8x512xf32, #tpu.memory_space<vmem>>, vector<8x512xf32>
    %cst = arith.constant dense<0.000000e+00> : vector<48x512xf32>
    %2 = tpu.matmul %0, %1, %cst {dimension_numbers = #tpu.dot_dimension_numbers<[1], [0], [0], [1], [0, 0, 1, 1], [], []>} : vector<48x8xf32>, vector<8x512xf32>, vector<48x512xf32> -> vector<48x512xf32>
    %c0_3 = arith.constant 0 : index
    %c0_4 = arith.constant 0 : index
    %3 = vector.load %arg3[%c0_3, %c0_4] : memref<48x1xf32, #tpu.memory_space<vmem>>, vector<48x1xf32>
    %4 = vector.broadcast %3 : vector<48x1xf32> to vector<48x512xf32>
    %5 = arith.addf %2, %4 : vector<48x512xf32>
    %cst_5 = arith.constant dense<0.000000e+00> : vector<48xf32>
    %6 = vector.multi_reduction <add>, %5, %cst_5 [1] : vector<48x512xf32> to vector<48xf32>
    %7 = vector.shape_cast %6 : vector<48xf32> to vector<48x1xf32>
    %cst_6 = arith.constant 0.001953125 : f32
    %8 = vector.broadcast %cst_6 : f32 to vector<48x1xf32>
    %9 = arith.mulf %7, %8 : vector<48x1xf32>
    %10 = vector.broadcast %9 : vector<48x1xf32> to vector<48x512xf32>
    %11 = arith.subf %5, %10 : vector<48x512xf32>
    %12 = arith.mulf %11, %11 : vector<48x512xf32>
    %cst_7 = arith.constant dense<0.000000e+00> : vector<48xf32>
    %13 = vector.multi_reduction <add>, %12, %cst_7 [1] : vector<48x512xf32> to vector<48xf32>
    %14 = vector.shape_cast %13 : vector<48xf32> to vector<48x1xf32>
    %cst_8 = arith.constant 0.001953125 : f32
    %15 = vector.broadcast %cst_8 : f32 to vector<48x1xf32>
    %16 = arith.mulf %14, %15 : vector<48x1xf32>
    %cst_9 = arith.constant 9.99999974E-6 : f32
    %17 = vector.broadcast %cst_9 : f32 to vector<48x1xf32>
    %18 = arith.addf %16, %17 : vector<48x1xf32>
    %19 = math.rsqrt %18 : vector<48x1xf32>
    %20 = vector.broadcast %19 : vector<48x1xf32> to vector<48x512xf32>
    %21 = arith.mulf %11, %20 : vector<48x512xf32>
    %cst_10 = arith.constant 0.000000e+00 : f32
    %22 = vector.broadcast %cst_10 : f32 to vector<48x512xf32>
    %23 = arith.maximumf %21, %22 : vector<48x512xf32>
    %c0_11 = arith.constant 0 : index
    %c0_12 = arith.constant 0 : index
    %24 = vector.load %arg4[%c0_11, %c0_12] : memref<48x512xf32, #tpu.memory_space<vmem>>, vector<48x512xf32>
    tpu.vector_store %arg4[%c0_11, %c0_12], %23 {strides = array<i32>} : memref<48x512xf32, #tpu.memory_space<vmem>>, vector<48x512xf32>,
    return
  }
  func.func @transform_0(%arg0: i32) -> (i32, i32) {
    %c0_i32 = arith.constant 0 : i32
    %c0_i32_0 = arith.constant 0 : i32
    %c0_i32_1 = arith.constant 0 : i32
    return %c0_i32, %c0_i32_0 : i32, i32
  }
  func.func @transform_1(%arg0: i32) -> (i32, i32) {
    %c0_i32 = arith.constant 0 : i32
    %c0_i32_0 = arith.constant 0 : i32
    %c0_i32_1 = arith.constant 0 : i32
    return %c0_i32, %c0_i32_0 : i32, i32
  }
  func.func @transform_2(%arg0: i32) -> (i32, i32) {
    %c0_i32 = arith.constant 0 : i32
    %c0_i32_0 = arith.constant 0 : i32
    %c0_i32_1 = arith.constant 0 : i32
    return %c0_i32, %c0_i32_0 : i32, i32
  }
  func.func @transform_3(%arg0: i32) -> (i32, i32) {
    %c0_i32 = arith.constant 0 : i32
    %c0_i32_0 = arith.constant 0 : i32
    %c0_i32_1 = arith.constant 0 : i32
    return %c0_i32, %c0_i32_0 : i32, i32
  }
}

module attributes {stable_mosaic.version = 11 : i64} {
  func.func @_fc_bn_relu_single_kernel(%arg0: i32, %arg1: memref<16x512xf32, #tpu.memory_space<vmem>>, %arg2: memref<4x16xf32, #tpu.memory_space<vmem>>, %arg3: memref<4x1xf32, #tpu.memory_space<vmem>>, %arg4: memref<4x512xf32, #tpu.memory_space<vmem>>) attributes {dimension_semantics = [#tpu.dimension_semantics<arbitrary>], iteration_bounds = array<i64: 1>, scalar_prefetch = 0 : i64, scratch_operands = 0 : i64, tpu.core_type = #tpu.core_type<tc>, window_params = [{pipeline_mode = #tpu.pipeline_mode<synchronous>, transform_indices = @transform_0, window_bounds = array<i64: 16, 512>}, {pipeline_mode = #tpu.pipeline_mode<synchronous>, transform_indices = @transform_1, window_bounds = array<i64: 4, 16>}, {pipeline_mode = #tpu.pipeline_mode<synchronous>, transform_indices = @transform_2, window_bounds = array<i64: 4, 1>}, {pipeline_mode = #tpu.pipeline_mode<synchronous>, transform_indices = @transform_3, window_bounds = array<i64: 4, 512>}]} {
    %c0 = arith.constant 0 : index
    %c0_0 = arith.constant 0 : index
    %0 = vector.load %arg2[%c0, %c0_0] : memref<4x16xf32, #tpu.memory_space<vmem>>, vector<4x16xf32>
    %c0_1 = arith.constant 0 : index
    %c0_2 = arith.constant 0 : index
    %1 = vector.load %arg1[%c0_1, %c0_2] : memref<16x512xf32, #tpu.memory_space<vmem>>, vector<16x512xf32>
    %cst = arith.constant dense<0.000000e+00> : vector<4x512xf32>
    %2 = tpu.matmul %0, %1, %cst {dimension_numbers = #tpu.dot_dimension_numbers<[1], [0], [0], [1], [0, 0, 1, 1], [], []>} : vector<4x16xf32>, vector<16x512xf32>, vector<4x512xf32> -> vector<4x512xf32>
    %c0_3 = arith.constant 0 : index
    %c0_4 = arith.constant 0 : index
    %3 = vector.load %arg3[%c0_3, %c0_4] : memref<4x1xf32, #tpu.memory_space<vmem>>, vector<4x1xf32>
    %4 = vector.broadcast %3 : vector<4x1xf32> to vector<4x512xf32>
    %5 = arith.addf %2, %4 : vector<4x512xf32>
    %cst_5 = arith.constant dense<0.000000e+00> : vector<4xf32>
    %6 = vector.multi_reduction <add>, %5, %cst_5 [1] : vector<4x512xf32> to vector<4xf32>
    %7 = vector.shape_cast %6 : vector<4xf32> to vector<4x1xf32>
    %cst_6 = arith.constant 0.001953125 : f32
    %8 = vector.broadcast %cst_6 : f32 to vector<4x1xf32>
    %9 = arith.mulf %7, %8 : vector<4x1xf32>
    %10 = vector.broadcast %9 : vector<4x1xf32> to vector<4x512xf32>
    %11 = arith.subf %5, %10 : vector<4x512xf32>
    %12 = arith.mulf %11, %11 : vector<4x512xf32>
    %cst_7 = arith.constant dense<0.000000e+00> : vector<4xf32>
    %13 = vector.multi_reduction <add>, %12, %cst_7 [1] : vector<4x512xf32> to vector<4xf32>
    %14 = vector.shape_cast %13 : vector<4xf32> to vector<4x1xf32>
    %cst_8 = arith.constant 0.001953125 : f32
    %15 = vector.broadcast %cst_8 : f32 to vector<4x1xf32>
    %16 = arith.mulf %14, %15 : vector<4x1xf32>
    %cst_9 = arith.constant 9.99999974E-6 : f32
    %17 = vector.broadcast %cst_9 : f32 to vector<4x1xf32>
    %18 = arith.addf %16, %17 : vector<4x1xf32>
    %19 = math.rsqrt %18 : vector<4x1xf32>
    %20 = vector.broadcast %19 : vector<4x1xf32> to vector<4x512xf32>
    %21 = arith.mulf %11, %20 : vector<4x512xf32>
    %cst_10 = arith.constant 0.000000e+00 : f32
    %22 = vector.broadcast %cst_10 : f32 to vector<4x512xf32>
    %23 = arith.maximumf %21, %22 : vector<4x512xf32>
    %c0_11 = arith.constant 0 : index
    %c0_12 = arith.constant 0 : index
    %24 = vector.load %arg4[%c0_11, %c0_12] : memref<4x512xf32, #tpu.memory_space<vmem>>, vector<4x512xf32>
    tpu.vector_store %arg4[%c0_11, %c0_12], %23 {strides = array<i32>} : memref<4x512xf32, #tpu.memory_space<vmem>>, vector<4x512xf32>,
    return
  }
  func.func @transform_0(%arg0: i32) -> (i32, i32) {
    %c0_i32 = arith.constant 0 : i32
    %c0_i32_0 = arith.constant 0 : i32
    %c0_i32_1 = arith.constant 0 : i32
    return %c0_i32, %c0_i32_0 : i32, i32
  }
  func.func @transform_1(%arg0: i32) -> (i32, i32) {
    %c0_i32 = arith.constant 0 : i32
    %c0_i32_0 = arith.constant 0 : i32
    %c0_i32_1 = arith.constant 0 : i32
    return %c0_i32, %c0_i32_0 : i32, i32
  }
  func.func @transform_2(%arg0: i32) -> (i32, i32) {
    %c0_i32 = arith.constant 0 : i32
    %c0_i32_0 = arith.constant 0 : i32
    %c0_i32_1 = arith.constant 0 : i32
    return %c0_i32, %c0_i32_0 : i32, i32
  }
  func.func @transform_3(%arg0: i32) -> (i32, i32) {
    %c0_i32 = arith.constant 0 : i32
    %c0_i32_0 = arith.constant 0 : i32
    %c0_i32_1 = arith.constant 0 : i32
    return %c0_i32, %c0_i32_0 : i32, i32
  }
}

</mosaic_0001>

<llo_original>
// kernel: st_attention_forward.3
$region0: #{st_attention_forward.3}
  #allocation0 [shape = 'u32[]', space=smem, size = 0x4, offset = 0x4, fixed_abs, tag = 'smem constant byte address 0x4 - core index']
  #allocation1 [shape = 'u32[144,128]{1,0:T(1,128)}', space=vmem, size = 0x12000, scoped, tag = 'internal scratch']
  %s0 = inlined_call_operand.vmem [shape: f32[8,512], index: 0, kind: input, shape index: {}]
  %s1 = inlined_call_operand.vmem [shape: f32[48,8], index: 1, kind: input, shape index: {}]
  %s2 = inlined_call_operand.vmem [shape: f32[48,1], index: 2, kind: input, shape index: {}]
  %s3 = inlined_call_operand.vmem [shape: f32[48,512], index: 3, kind: output, shape index: {}]
  %s4 = sld [smem:[#allocation0]]
  $region22: #{st_attention_forward.3} parent=0
    _
  %s6 = ssub.s32 1, %s4
  %s7 = scalar_select 0, %s6, %s4
  // Predicated region
  $region2: #{st_attention_forward.3} parent=0 // pred_check
    _
  $region3: #{st_attention_forward.3} parent=0 // pred_check_branch
    %9 = sbr.rel (0) target = $region5
  $region4: #{st_attention_forward.3} parent=0 // pred_region
    _
  $region5: #{st_attention_forward.3} parent=0 // pred_fallthru
    _
  // Predicated region
  $region6: #{st_attention_forward.3} parent=0 // pred_check
    _
  $region7: #{st_attention_forward.3} parent=0 // pred_check_branch
    %11 = sbr.rel (0) target = $region9
  $region8: #{st_attention_forward.3} parent=0 // pred_region
    _
  $region9: #{st_attention_forward.3} parent=0 // pred_fallthru
    _
  // Predicated region
  $region10: #{st_attention_forward.3} parent=0 // pred_check
    _
  $region11: #{st_attention_forward.3} parent=0 // pred_check_branch
    %13 = sbr.rel (0) target = $region13
  $region12: #{st_attention_forward.3} parent=0 // pred_region
    _
  $region13: #{st_attention_forward.3} parent=0 // pred_fallthru
    _
  %v14 = vld [vmem:[%s1] sm:$0xff]
  %v15 = vld [vmem:[%s1 + $0x8] sm:$0xff]
  %v16 = vld [vmem:[%s1 + $0x10] sm:$0xff]
  %v17 = vld [vmem:[%s1 + $0x18] sm:$0xff]
  %v18 = vld [vmem:[%s1 + $0x20] sm:$0xff]
  %v19 = vld [vmem:[%s1 + $0x28] sm:$0xff]
  %v20 = vld [vmem:[%s0] sm:$0xff]
  %v21 = vld [vmem:[%s0 + $0x8] sm:$0xff]
  %v22 = vld [vmem:[%s0 + $0x10] sm:$0xff]
  %v23 = vld [vmem:[%s0 + $0x18] sm:$0xff]
  %v24 = vld [vmem:[%s2] sm:$0xff]
  %v25 = vld [vmem:[%s2 + $0x8] sm:$0xff]
  %v26 = vld [vmem:[%s2 + $0x10] sm:$0xff]
  %v27 = vld [vmem:[%s2 + $0x18] sm:$0xff]
  %v28 = vld [vmem:[%s2 + $0x20] sm:$0xff]
  %v29 = vld [vmem:[%s2 + $0x28] sm:$0xff]
  %31 = vset.pattern.permute.xlu0 0
  %32 = vperm.xlu0 %31, %v24
  %v33 = vpop.permute.xlu0 %32
  %36 = vset.pattern.permute.xlu0 0
  %37 = vperm.xlu0 %36, %v25
  %v38 = vpop.permute.xlu0 %37
  %41 = vset.pattern.permute.xlu0 0
  %42 = vperm.xlu0 %41, %v26
  %v43 = vpop.permute.xlu0 %42
  %46 = vset.pattern.permute.xlu0 0
  %47 = vperm.xlu0 %46, %v27
  %v48 = vpop.permute.xlu0 %47
  %51 = vset.pattern.permute.xlu0 0
  %52 = vperm.xlu0 %51, %v28
  %v53 = vpop.permute.xlu0 %52
  %56 = vset.pattern.permute.xlu0 0
  %57 = vperm.xlu0 %56, %v29
  %v58 = vpop.permute.xlu0 %57
  %vm60 = vcmask 64512
  %v62 = vsel %vm60, %v14, 0
  %v65 = vsel %vm60, %v15, 0
  %v68 = vsel %vm60, %v16, 0
  %v71 = vsel %vm60, %v17, 0
  %v74 = vsel %vm60, %v18, 0
  %v77 = vsel %vm60, %v19, 0
  %79 = vmatprep.subr.mxu0 0.0
  %80 = vmatpush1.msra.mxu0 0.0
  %81 = vmatprep.subr.mxu0 0.0
  %82 = vmatpush1.msra.mxu0 0.0
  %83 = vmatprep.subr.mxu0 0.0
  %84 = vmatpush1.msra.mxu0 0.0
  %85 = vmatprep.subr.mxu0 0.0
  %86 = vmatpush1.msra.mxu0 0.0
  %87 = vmatprep.subr.mxu0 0.0
  %88 = vmatpush1.msra.mxu0 0.0
  %89 = vmatprep.subr.mxu0 0.0
  %90 = vmatpush1.msra.mxu0 0.0
  %91 = vmatprep.subr.mxu0 0.0
  %92 = vmatpush1.msra.mxu0 0.0
  %93 = vmatprep.subr.mxu0 0.0
  %94 = vmatpush1.msra.mxu0 0.0
  %95 = vmatprep.subr.mxu0 0.0
  %96 = vmatpush1.msra.mxu0 0.0
  %97 = vmatprep.subr.mxu0 0.0
  %98 = vmatpush1.msra.mxu0 0.0
  %99 = vmatprep.subr.mxu0 0.0
  %100 = vmatpush1.msra.mxu0 0.0
  %101 = vmatprep.subr.mxu0 0.0
  %102 = vmatpush1.msra.mxu0 0.0
  %103 = vmatprep.subr.mxu0 0.0
  %104 = vmatpush1.msra.mxu0 0.0
  %105 = vmatprep.subr.mxu0 0.0
  %106 = vmatpush1.msra.mxu0 0.0
  %107 = vmatprep.subr.mxu0 0.0
  %108 = vmatpush1.msra.mxu0 0.0
  %109 = vmatprep.subr.mxu0 %v21
  %110 = vmatpush1.msra.mxu0 %v20
  %111 = vmatprep.subr.mxu0 0.0
  %112 = vmatpush2.msra.mxu0 0.0
  %113 = vmatprep.subr.mxu0 0.0
  %114 = vmatpush2.msra.mxu0 0.0
  %115 = vmatprep.subr.mxu0 0.0
  %116 = vmatpush2.msra.mxu0 0.0
  %117 = vmatprep.subr.mxu0 0.0
  %118 = vmatpush2.msra.mxu0 0.0
  %119 = vmatprep.subr.mxu0 0.0
  %120 = vmatpush2.msra.mxu0 0.0
  %121 = vmatprep.subr.mxu0 0.0
  %122 = vmatpush2.msra.mxu0 0.0
  %123 = vmatprep.subr.mxu0 0.0
  %124 = vmatpush2.msra.mxu0 0.0
  %125 = vmatprep.subr.mxu0 0.0
  %126 = vmatpush2.msra.mxu0 0.0
  %127 = vmatprep.subr.mxu0 0.0
  %128 = vmatpush2.msra.mxu0 0.0
  %129 = vmatprep.subr.mxu0 0.0
  %130 = vmatpush2.msra.mxu0 0.0
  %131 = vmatprep.subr.mxu0 0.0
  %132 = vmatpush2.msra.mxu0 0.0
  %133 = vmatprep.subr.mxu0 0.0
  %134 = vmatpush2.msra.mxu0 0.0
  %135 = vmatprep.subr.mxu0 0.0
  %136 = vmatpush2.msra.mxu0 0.0
  %137 = vmatprep.subr.mxu0 0.0
  %138 = vmatpush2.msra.mxu0 0.0
  %139 = vmatprep.subr.mxu0 0.0
  %140 = vmatpush2.msra.mxu0 0.0
  %141 = vmatprep.subr.mxu0 0.0
  %142 = vmatpush2.msra.mxu0 0.0
  %143 = vmatprep.mubr.f32.mxu0 0.0
  %144 = vmatmul.mubr.f32.gmra.mxu0 %v62
  %v145 = vpop.f32.mrf.mxu0
  %v146 = vadd.f32 %v33, %v145
  %v147 = vpop.f32.mrf.mxu0
  %v148 = vadd.f32 %v33, %v147
  %149 = vmatprep.mubr.f32.mxu0 0.0
  %150 = vmatmul.mubr.f32.gmra.mxu0 %v65
  %v151 = vpop.f32.mrf.mxu0
  %v152 = vadd.f32 %v38, %v151
  %v153 = vpop.f32.mrf.mxu0
  %v154 = vadd.f32 %v38, %v153
  %155 = vmatprep.mubr.f32.mxu0 0.0
  %156 = vmatmul.mubr.f32.gmra.mxu0 %v68
  %v157 = vpop.f32.mrf.mxu0
  %v158 = vadd.f32 %v43, %v157
  %v159 = vpop.f32.mrf.mxu0
  %v160 = vadd.f32 %v43, %v159
  %161 = vmatprep.mubr.f32.mxu0 0.0
  %162 = vmatmul.mubr.f32.gmra.mxu0 %v71
  %v163 = vpop.f32.mrf.mxu0
  %v164 = vadd.f32 %v48, %v163
  %v165 = vpop.f32.mrf.mxu0
  %v166 = vadd.f32 %v48, %v165
  %167 = vmatprep.mubr.f32.mxu0 0.0
  %168 = vmatmul.mubr.f32.gmra.mxu0 %v74
  %v169 = vpop.f32.mrf.mxu0
  %v170 = vadd.f32 %v53, %v169
  %v171 = vpop.f32.mrf.mxu0
  %v172 = vadd.f32 %v53, %v171
  %173 = vmatprep.mubr.f32.mxu0 0.0
  %174 = vmatmul.mubr.f32.gmra.mxu0 %v77
  %v175 = vpop.f32.mrf.mxu0
  %v176 = vadd.f32 %v58, %v175
  %v177 = vpop.f32.mrf.mxu0
  %v178 = vadd.f32 %v58, %v177
  %179 = vdwg.mxu0
  %180 = vmatprep.subr.mxu0 0.0
  %181 = vmatpush1.msra.mxu0 0.0
  %182 = vmatprep.subr.mxu0 0.0
  %183 = vmatpush1.msra.mxu0 0.0
  %184 = vmatprep.subr.mxu0 0.0
  %185 = vmatpush1.msra.mxu0 0.0
  %186 = vmatprep.subr.mxu0 0.0
  %187 = vmatpush1.msra.mxu0 0.0
  %188 = vmatprep.subr.mxu0 0.0
  %189 = vmatpush1.msra.mxu0 0.0
  %190 = vmatprep.subr.mxu0 0.0
  %191 = vmatpush1.msra.mxu0 0.0
  %192 = vmatprep.subr.mxu0 0.0
  %193 = vmatpush1.msra.mxu0 0.0
  %194 = vmatprep.subr.mxu0 0.0
  %195 = vmatpush1.msra.mxu0 0.0
  %196 = vmatprep.subr.mxu0 0.0
  %197 = vmatpush1.msra.mxu0 0.0
  %198 = vmatprep.subr.mxu0 0.0
  %199 = vmatpush1.msra.mxu0 0.0
  %200 = vmatprep.subr.mxu0 0.0
  %201 = vmatpush1.msra.mxu0 0.0
  %202 = vmatprep.subr.mxu0 0.0
  %203 = vmatpush1.msra.mxu0 0.0
  %204 = vmatprep.subr.mxu0 0.0
  %205 = vmatpush1.msra.mxu0 0.0
  %206 = vmatprep.subr.mxu0 0.0
  %207 = vmatpush1.msra.mxu0 0.0
  %208 = vmatprep.subr.mxu0 0.0
  %209 = vmatpush1.msra.mxu0 0.0
  %210 = vmatprep.subr.mxu0 %v23
  %211 = vmatpush1.msra.mxu0 %v22
  %212 = vmatprep.subr.mxu0 0.0
  %213 = vmatpush2.msra.mxu0 0.0
  %214 = vmatprep.subr.mxu0 0.0
  %215 = vmatpush2.msra.mxu0 0.0
  %216 = vmatprep.subr.mxu0 0.0
  %217 = vmatpush2.msra.mxu0 0.0
  %218 = vmatprep.subr.mxu0 0.0
  %219 = vmatpush2.msra.mxu0 0.0
  %220 = vmatprep.subr.mxu0 0.0
  %221 = vmatpush2.msra.mxu0 0.0
  %222 = vmatprep.subr.mxu0 0.0
  %223 = vmatpush2.msra.mxu0 0.0
  %224 = vmatprep.subr.mxu0 0.0
  %225 = vmatpush2.msra.mxu0 0.0
  %226 = vmatprep.subr.mxu0 0.0
  %227 = vmatpush2.msra.mxu0 0.0
  %228 = vmatprep.subr.mxu0 0.0
  %229 = vmatpush2.msra.mxu0 0.0
  %230 = vmatprep.subr.mxu0 0.0
  %231 = vmatpush2.msra.mxu0 0.0
  %232 = vmatprep.subr.mxu0 0.0
  %233 = vmatpush2.msra.mxu0 0.0
  %234 = vmatprep.subr.mxu0 0.0
  %235 = vmatpush2.msra.mxu0 0.0
  %236 = vmatprep.subr.mxu0 0.0
  %237 = vmatpush2.msra.mxu0 0.0
  %238 = vmatprep.subr.mxu0 0.0
  %239 = vmatpush2.msra.mxu0 0.0
  %240 = vmatprep.subr.mxu0 0.0
  %241 = vmatpush2.msra.mxu0 0.0
  %242 = vmatprep.subr.mxu0 0.0
  %243 = vmatpush2.msra.mxu0 0.0
  %244 = vmatprep.mubr.f32.mxu0 0.0
  %245 = vmatmul.mubr.f32.gmra.mxu0 %v62
  %v246 = vpop.f32.mrf.mxu0
  %v247 = vadd.f32 %v33, %v246
  %v248 = vpop.f32.mrf.mxu0
  %v249 = vadd.f32 %v33, %v248
  %250 = vmatprep.mubr.f32.mxu0 0.0
  %251 = vmatmul.mubr.f32.gmra.mxu0 %v65
  %v252 = vpop.f32.mrf.mxu0
  %v253 = vadd.f32 %v38, %v252
  %v254 = vpop.f32.mrf.mxu0
  %v255 = vadd.f32 %v38, %v254
  %256 = vmatprep.mubr.f32.mxu0 0.0
  %257 = vmatmul.mubr.f32.gmra.mxu0 %v68
  %v258 = vpop.f32.mrf.mxu0
  %v259 = vadd.f32 %v43, %v258
  %v260 = vpop.f32.mrf.mxu0
  %v261 = vadd.f32 %v43, %v260
  %262 = vmatprep.mubr.f32.mxu0 0.0
  %263 = vmatmul.mubr.f32.gmra.mxu0 %v71
  %v264 = vpop.f32.mrf.mxu0
  %v265 = vadd.f32 %v48, %v264
  %v266 = vpop.f32.mrf.mxu0
  %v267 = vadd.f32 %v48, %v266
  %268 = vmatprep.mubr.f32.mxu0 0.0
  %269 = vmatmul.mubr.f32.gmra.mxu0 %v74
  %v270 = vpop.f32.mrf.mxu0
  %v271 = vadd.f32 %v53, %v270
  %v272 = vpop.f32.mrf.mxu0
  %v273 = vadd.f32 %v53, %v272
  %274 = vmatprep.mubr.f32.mxu0 0.0
  %275 = vmatmul.mubr.f32.gmra.mxu0 %v77
  %v276 = vpop.f32.mrf.mxu0
  %v277 = vadd.f32 %v58, %v276
  %v278 = vpop.f32.mrf.mxu0
  %v279 = vadd.f32 %v58, %v278
  %280 = vdwg.mxu0
  %v281 = vadd.f32 %v146, %v148
  %v282 = vadd.f32 %v281, %v247
  %v283 = vadd.f32 %v282, %v249
  %284 = vadd.xlane.f32.xlu0 %v283
  %v285 = vpop.xlane.xlu0 %284
  %v286 = vadd.f32 %v152, %v154
  %v287 = vadd.f32 %v286, %v253
  %v288 = vadd.f32 %v287, %v255
  %289 = vadd.xlane.f32.xlu0 %v288
  %v290 = vpop.xlane.xlu0 %289
  %v291 = vadd.f32 %v158, %v160
  %v292 = vadd.f32 %v291, %v259
  %v293 = vadd.f32 %v292, %v261
  %294 = vadd.xlane.f32.xlu0 %v293
  %v295 = vpop.xlane.xlu0 %294
  %v296 = vadd.f32 %v164, %v166
  %v297 = vadd.f32 %v296, %v265
  %v298 = vadd.f32 %v297, %v267
  %299 = vadd.xlane.f32.xlu0 %v298
  %v300 = vpop.xlane.xlu0 %299
  %v301 = vadd.f32 %v170, %v172
  %v302 = vadd.f32 %v301, %v271
  %v303 = vadd.f32 %v302, %v273
  %304 = vadd.xlane.f32.xlu0 %v303
  %v305 = vpop.xlane.xlu0 %304
  %v306 = vadd.f32 %v176, %v178
  %v307 = vadd.f32 %v306, %v277
  %v308 = vadd.f32 %v307, %v279
  %309 = vadd.xlane.f32.xlu0 %v308
  %v310 = vpop.xlane.xlu0 %309
  %v311 = vmul.f32 %v285, 0.001953125
  %v312 = vmul.f32 %v290, 0.001953125
  %v313 = vmul.f32 %v295, 0.001953125
  %v314 = vmul.f32 %v300, 0.001953125
  %v315 = vmul.f32 %v305, 0.001953125
  %v316 = vmul.f32 %v310, 0.001953125
  %v317 = vsub.f32 %v146, %v311
  %v318 = vsub.f32 %v148, %v311
  %v319 = vsub.f32 %v247, %v311
  %v320 = vsub.f32 %v249, %v311
  %v321 = vsub.f32 %v152, %v312
  %v322 = vsub.f32 %v154, %v312
  %v323 = vsub.f32 %v253, %v312
  %v324 = vsub.f32 %v255, %v312
  %v325 = vsub.f32 %v158, %v313
  %v326 = vsub.f32 %v160, %v313
  %v327 = vsub.f32 %v259, %v313
  %v328 = vsub.f32 %v261, %v313
  %v329 = vsub.f32 %v164, %v314
  %v330 = vsub.f32 %v166, %v314
  %v331 = vsub.f32 %v265, %v314
  %v332 = vsub.f32 %v267, %v314
  %v333 = vsub.f32 %v170, %v315
  %v334 = vsub.f32 %v172, %v315
  %v335 = vsub.f32 %v271, %v315
  %v336 = vsub.f32 %v273, %v315
  %v337 = vsub.f32 %v176, %v316
  %v338 = vsub.f32 %v178, %v316
  %v339 = vsub.f32 %v277, %v316
  %v340 = vsub.f32 %v279, %v316
  %v341 = vmul.f32 %v317, %v317
  %v342 = vmul.f32 %v318, %v318
  %v343 = vmul.f32 %v319, %v319
  %v344 = vmul.f32 %v320, %v320
  %v345 = vmul.f32 %v321, %v321
  %v346 = vmul.f32 %v322, %v322
  %v347 = vmul.f32 %v323, %v323
  %v348 = vmul.f32 %v324, %v324
  %v349 = vmul.f32 %v325, %v325
  %v350 = vmul.f32 %v326, %v326
  %v351 = vmul.f32 %v327, %v327
  %v352 = vmul.f32 %v328, %v328
  %v353 = vmul.f32 %v329, %v329
  %v354 = vmul.f32 %v330, %v330
  %v355 = vmul.f32 %v331, %v331
  %v356 = vmul.f32 %v332, %v332
  %v357 = vmul.f32 %v333, %v333
  %v358 = vmul.f32 %v334, %v334
  %v359 = vmul.f32 %v335, %v335
  %v360 = vmul.f32 %v336, %v336
  %v361 = vmul.f32 %v337, %v337
  %v362 = vmul.f32 %v338, %v338
  %v363 = vmul.f32 %v339, %v339
  %v364 = vmul.f32 %v340, %v340
  %v365 = vadd.f32 %v341, %v342
  %v366 = vadd.f32 %v365, %v343
  %v367 = vadd.f32 %v366, %v344
  %368 = vadd.xlane.f32.xlu0 %v367
  %v369 = vpop.xlane.xlu0 %368
  %v370 = vadd.f32 %v345, %v346
  %v371 = vadd.f32 %v370, %v347
  %v372 = vadd.f32 %v371, %v348
  %373 = vadd.xlane.f32.xlu0 %v372
  %v374 = vpop.xlane.xlu0 %373
  %v375 = vadd.f32 %v349, %v350
  %v376 = vadd.f32 %v375, %v351
  %v377 = vadd.f32 %v376, %v352
  %378 = vadd.xlane.f32.xlu0 %v377
  %v379 = vpop.xlane.xlu0 %378
  %v380 = vadd.f32 %v353, %v354
  %v381 = vadd.f32 %v380, %v355
  %v382 = vadd.f32 %v381, %v356
  %383 = vadd.xlane.f32.xlu0 %v382
  %v384 = vpop.xlane.xlu0 %383
  %v385 = vadd.f32 %v357, %v358
  %v386 = vadd.f32 %v385, %v359
  %v387 = vadd.f32 %v386, %v360
  %388 = vadd.xlane.f32.xlu0 %v387
  %v389 = vpop.xlane.xlu0 %388
  %v390 = vadd.f32 %v361, %v362
  %v391 = vadd.f32 %v390, %v363
  %v392 = vadd.f32 %v391, %v364
  %393 = vadd.xlane.f32.xlu0 %v392
  %v394 = vpop.xlane.xlu0 %393
  %v395 = vmul.f32 %v369, 0.001953125
  %v396 = vmul.f32 %v374, 0.001953125
  %v397 = vmul.f32 %v379, 0.001953125
  %v398 = vmul.f32 %v384, 0.001953125
  %v399 = vmul.f32 %v389, 0.001953125
  %v400 = vmul.f32 %v394, 0.001953125
  %v401 = vadd.f32 %v395, 1e-05
  %v402 = vadd.f32 %v396, 1e-05
  %v403 = vadd.f32 %v397, 1e-05
  %v404 = vadd.f32 %v398, 1e-05
  %v405 = vadd.f32 %v399, 1e-05
  %v406 = vadd.f32 %v400, 1e-05
  %v407 = vrsqrt.pop %v401
  %v408 = vrsqrt.pop %v402
  %v409 = vrsqrt.pop %v403
  %v410 = vrsqrt.pop %v404
  %v411 = vrsqrt.pop %v405
  %v412 = vrsqrt.pop %v406
  %v413 = vmul.f32 %v317, %v407
  %v414 = vmul.f32 %v318, %v407
  %v415 = vmul.f32 %v319, %v407
  %v416 = vmul.f32 %v320, %v407
  %v417 = vmul.f32 %v321, %v408
  %v418 = vmul.f32 %v322, %v408
  %v419 = vmul.f32 %v323, %v408
  %v420 = vmul.f32 %v324, %v408
  %v421 = vmul.f32 %v325, %v409
  %v422 = vmul.f32 %v326, %v409
  %v423 = vmul.f32 %v327, %v409
  %v424 = vmul.f32 %v328, %v409
  %v425 = vmul.f32 %v329, %v410
  %v426 = vmul.f32 %v330, %v410
  %v427 = vmul.f32 %v331, %v410
  %v428 = vmul.f32 %v332, %v410
  %v429 = vmul.f32 %v333, %v411
  %v430 = vmul.f32 %v334, %v411
  %v431 = vmul.f32 %v335, %v411
  %v432 = vmul.f32 %v336, %v411
  %v433 = vmul.f32 %v337, %v412
  %v434 = vmul.f32 %v338, %v412
  %v435 = vmul.f32 %v339, %v412
  %v436 = vmul.f32 %v340, %v412
  %v437 = vmax.f32 %v413, 0.0
  %v438 = vmax.f32 %v414, 0.0
  %v439 = vmax.f32 %v415, 0.0
  %v440 = vmax.f32 %v416, 0.0
  %v441 = vmax.f32 %v417, 0.0
  %v442 = vmax.f32 %v418, 0.0
  %v443 = vmax.f32 %v419, 0.0
  %v444 = vmax.f32 %v420, 0.0
  %v445 = vmax.f32 %v421, 0.0
  %v446 = vmax.f32 %v422, 0.0
  %v447 = vmax.f32 %v423, 0.0
  %v448 = vmax.f32 %v424, 0.0
  %v449 = vmax.f32 %v425, 0.0
  %v450 = vmax.f32 %v426, 0.0
  %v451 = vmax.f32 %v427, 0.0
  %v452 = vmax.f32 %v428, 0.0
  %v453 = vmax.f32 %v429, 0.0
  %v454 = vmax.f32 %v430, 0.0
  %v455 = vmax.f32 %v431, 0.0
  %v456 = vmax.f32 %v432, 0.0
  %v457 = vmax.f32 %v433, 0.0
  %v458 = vmax.f32 %v434, 0.0
  %v459 = vmax.f32 %v435, 0.0
  %v460 = vmax.f32 %v436, 0.0
  %461 = vst [vmem:[%s3] sm:$0xff] %v437
  %462 = vst [vmem:[%s3 + $0x8] sm:$0xff] %v438
  %463 = vst [vmem:[%s3 + $0x10] sm:$0xff] %v439
  %464 = vst [vmem:[%s3 + $0x18] sm:$0xff] %v440
  %465 = vst [vmem:[%s3 + $0x20] sm:$0xff] %v441
  %466 = vst [vmem:[%s3 + $0x28] sm:$0xff] %v442
  %467 = vst [vmem:[%s3 + $0x30] sm:$0xff] %v443
  %468 = vst [vmem:[%s3 + $0x38] sm:$0xff] %v444
  %469 = vst [vmem:[%s3 + $0x40] sm:$0xff] %v445
  %470 = vst [vmem:[%s3 + $0x48] sm:$0xff] %v446
  %471 = vst [vmem:[%s3 + $0x50] sm:$0xff] %v447
  %472 = vst [vmem:[%s3 + $0x58] sm:$0xff] %v448
  %473 = vst [vmem:[%s3 + $0x60] sm:$0xff] %v449
  %474 = vst [vmem:[%s3 + $0x68] sm:$0xff] %v450
  %475 = vst [vmem:[%s3 + $0x70] sm:$0xff] %v451
  %476 = vst [vmem:[%s3 + $0x78] sm:$0xff] %v452
  %477 = vst [vmem:[%s3 + $0x80] sm:$0xff] %v453
  %478 = vst [vmem:[%s3 + $0x88] sm:$0xff] %v454
  %479 = vst [vmem:[%s3 + $0x90] sm:$0xff] %v455
  %480 = vst [vmem:[%s3 + $0x98] sm:$0xff] %v456
  %481 = vst [vmem:[%s3 + $0xa0] sm:$0xff] %v457
  %482 = vst [vmem:[%s3 + $0xa8] sm:$0xff] %v458
  %483 = vst [vmem:[%s3 + $0xb0] sm:$0xff] %v459
  %484 = vst [vmem:[%s3 + $0xb8] sm:$0xff] %v460
  // Predicated region
  $region14: #{st_attention_forward.3} parent=0 // pred_check
    _
  $region15: #{st_attention_forward.3} parent=0 // pred_check_branch
    %486 = sbr.rel (0) target = $region17
  $region16: #{st_attention_forward.3} parent=0 // pred_region
    _
  $region17: #{st_attention_forward.3} parent=0 // pred_fallthru
    _
  // Predicated region
  $region18: #{st_attention_forward.3} parent=0 // pred_check
    _
  $region19: #{st_attention_forward.3} parent=0 // pred_check_branch
    %488 = sbr.rel (0) target = $region21
  $region20: #{st_attention_forward.3} parent=0 // pred_region
    _
  $region21: #{st_attention_forward.3} parent=0 // pred_fallthru
    _

// kernel: st_attention_forward.5
$region0: #{st_attention_forward.5}
  #allocation0 [shape = 'u32[]', space=smem, size = 0x4, offset = 0x4, fixed_abs, tag = 'smem constant byte address 0x4 - core index']
  #allocation1 [shape = 'u32[144,128]{1,0:T(1,128)}', space=vmem, size = 0x12000, scoped, tag = 'internal scratch']
  %s0 = inlined_call_operand.vmem [shape: f32[16,512], index: 0, kind: input, shape index: {}]
  %s1 = inlined_call_operand.vmem [shape: f32[4,16], index: 1, kind: input, shape index: {}]
  %s2 = inlined_call_operand.vmem [shape: f32[4,1], index: 2, kind: input, shape index: {}]
  %s3 = inlined_call_operand.vmem [shape: f32[4,512], index: 3, kind: output, shape index: {}]
  %s4 = sld [smem:[#allocation0]]
  $region22: #{st_attention_forward.5} parent=0
    _
  %s6 = ssub.s32 1, %s4
  %s7 = scalar_select 0, %s6, %s4
  // Predicated region
  $region2: #{st_attention_forward.5} parent=0 // pred_check
    _
  $region3: #{st_attention_forward.5} parent=0 // pred_check_branch
    %9 = sbr.rel (0) target = $region5
  $region4: #{st_attention_forward.5} parent=0 // pred_region
    _
  $region5: #{st_attention_forward.5} parent=0 // pred_fallthru
    _
  // Predicated region
  $region6: #{st_attention_forward.5} parent=0 // pred_check
    _
  $region7: #{st_attention_forward.5} parent=0 // pred_check_branch
    %11 = sbr.rel (0) target = $region9
  $region8: #{st_attention_forward.5} parent=0 // pred_region
    _
  $region9: #{st_attention_forward.5} parent=0 // pred_fallthru
    _
  // Predicated region
  $region10: #{st_attention_forward.5} parent=0 // pred_check
    _
  $region11: #{st_attention_forward.5} parent=0 // pred_check_branch
    %13 = sbr.rel (0) target = $region13
  $region12: #{st_attention_forward.5} parent=0 // pred_region
    _
  $region13: #{st_attention_forward.5} parent=0 // pred_fallthru
    _
  %v14 = vld [vmem:[%s1] sm:$0xf]
  %v15 = vld [vmem:[%s0] sm:$0xff]
  %v16 = vld [vmem:[%s0 + $0x8] sm:$0xff]
  %v17 = vld [vmem:[%s0 + $0x10] sm:$0xff]
  %v18 = vld [vmem:[%s0 + $0x18] sm:$0xff]
  %v19 = vld [vmem:[%s0 + $0x20] sm:$0xff]
  %v20 = vld [vmem:[%s0 + $0x28] sm:$0xff]
  %v21 = vld [vmem:[%s0 + $0x30] sm:$0xff]
  %v22 = vld [vmem:[%s0 + $0x38] sm:$0xff]
  %v23 = vld [vmem:[%s2] sm:$0xf]
  %25 = vset.pattern.permute.xlu0 0
  %26 = vperm.xlu0 %25, %v23
  %v27 = vpop.permute.xlu0 %26
  %vm29 = vcmask 130048
  %v31 = vsel %vm29, %v14, 0
  %33 = vmatprep.subr.mxu0 0.0
  %34 = vmatpush1.msra.mxu0 0.0
  %35 = vmatprep.subr.mxu0 0.0
  %36 = vmatpush1.msra.mxu0 0.0
  %37 = vmatprep.subr.mxu0 0.0
  %38 = vmatpush1.msra.mxu0 0.0
  %39 = vmatprep.subr.mxu0 0.0
  %40 = vmatpush1.msra.mxu0 0.0
  %41 = vmatprep.subr.mxu0 0.0
  %42 = vmatpush1.msra.mxu0 0.0
  %43 = vmatprep.subr.mxu0 0.0
  %44 = vmatpush1.msra.mxu0 0.0
  %45 = vmatprep.subr.mxu0 0.0
  %46 = vmatpush1.msra.mxu0 0.0
  %47 = vmatprep.subr.mxu0 0.0
  %48 = vmatpush1.msra.mxu0 0.0
  %49 = vmatprep.subr.mxu0 0.0
  %50 = vmatpush1.msra.mxu0 0.0
  %51 = vmatprep.subr.mxu0 0.0
  %52 = vmatpush1.msra.mxu0 0.0
  %53 = vmatprep.subr.mxu0 0.0
  %54 = vmatpush1.msra.mxu0 0.0
  %55 = vmatprep.subr.mxu0 0.0
  %56 = vmatpush1.msra.mxu0 0.0
  %57 = vmatprep.subr.mxu0 0.0
  %58 = vmatpush1.msra.mxu0 0.0
  %59 = vmatprep.subr.mxu0 0.0
  %60 = vmatpush1.msra.mxu0 0.0
  %61 = vmatprep.subr.mxu0 %v20
  %62 = vmatpush1.msra.mxu0 %v19
  %63 = vmatprep.subr.mxu0 %v16
  %64 = vmatpush1.msra.mxu0 %v15
  %65 = vmatprep.subr.mxu0 0.0
  %66 = vmatpush2.msra.mxu0 0.0
  %67 = vmatprep.subr.mxu0 0.0
  %68 = vmatpush2.msra.mxu0 0.0
  %69 = vmatprep.subr.mxu0 0.0
  %70 = vmatpush2.msra.mxu0 0.0
  %71 = vmatprep.subr.mxu0 0.0
  %72 = vmatpush2.msra.mxu0 0.0
  %73 = vmatprep.subr.mxu0 0.0
  %74 = vmatpush2.msra.mxu0 0.0
  %75 = vmatprep.subr.mxu0 0.0
  %76 = vmatpush2.msra.mxu0 0.0
  %77 = vmatprep.subr.mxu0 0.0
  %78 = vmatpush2.msra.mxu0 0.0
  %79 = vmatprep.subr.mxu0 0.0
  %80 = vmatpush2.msra.mxu0 0.0
  %81 = vmatprep.subr.mxu0 0.0
  %82 = vmatpush2.msra.mxu0 0.0
  %83 = vmatprep.subr.mxu0 0.0
  %84 = vmatpush2.msra.mxu0 0.0
  %85 = vmatprep.subr.mxu0 0.0
  %86 = vmatpush2.msra.mxu0 0.0
  %87 = vmatprep.subr.mxu0 0.0
  %88 = vmatpush2.msra.mxu0 0.0
  %89 = vmatprep.subr.mxu0 0.0
  %90 = vmatpush2.msra.mxu0 0.0
  %91 = vmatprep.subr.mxu0 0.0
  %92 = vmatpush2.msra.mxu0 0.0
  %93 = vmatprep.subr.mxu0 0.0
  %94 = vmatpush2.msra.mxu0 0.0
  %95 = vmatprep.subr.mxu0 0.0
  %96 = vmatpush2.msra.mxu0 0.0
  %97 = vmatprep.mubr.f32.mxu0 0.0
  %98 = vmatmul.mubr.f32.gmra.mxu0 %v31
  %v99 = vpop.f32.mrf.mxu0
  %v100 = vadd.f32 %v27, %v99
  %v101 = vpop.f32.mrf.mxu0
  %v102 = vadd.f32 %v27, %v101
  %103 = vdwg.mxu0
  %104 = vmatprep.subr.mxu0 0.0
  %105 = vmatpush1.msra.mxu0 0.0
  %106 = vmatprep.subr.mxu0 0.0
  %107 = vmatpush1.msra.mxu0 0.0
  %108 = vmatprep.subr.mxu0 0.0
  %109 = vmatpush1.msra.mxu0 0.0
  %110 = vmatprep.subr.mxu0 0.0
  %111 = vmatpush1.msra.mxu0 0.0
  %112 = vmatprep.subr.mxu0 0.0
  %113 = vmatpush1.msra.mxu0 0.0
  %114 = vmatprep.subr.mxu0 0.0
  %115 = vmatpush1.msra.mxu0 0.0
  %116 = vmatprep.subr.mxu0 0.0
  %117 = vmatpush1.msra.mxu0 0.0
  %118 = vmatprep.subr.mxu0 0.0
  %119 = vmatpush1.msra.mxu0 0.0
  %120 = vmatprep.subr.mxu0 0.0
  %121 = vmatpush1.msra.mxu0 0.0
  %122 = vmatprep.subr.mxu0 0.0
  %123 = vmatpush1.msra.mxu0 0.0
  %124 = vmatprep.subr.mxu0 0.0
  %125 = vmatpush1.msra.mxu0 0.0
  %126 = vmatprep.subr.mxu0 0.0
  %127 = vmatpush1.msra.mxu0 0.0
  %128 = vmatprep.subr.mxu0 0.0
  %129 = vmatpush1.msra.mxu0 0.0
  %130 = vmatprep.subr.mxu0 0.0
  %131 = vmatpush1.msra.mxu0 0.0
  %132 = vmatprep.subr.mxu0 %v22
  %133 = vmatpush1.msra.mxu0 %v21
  %134 = vmatprep.subr.mxu0 %v18
  %135 = vmatpush1.msra.mxu0 %v17
  %136 = vmatprep.subr.mxu0 0.0
  %137 = vmatpush2.msra.mxu0 0.0
  %138 = vmatprep.subr.mxu0 0.0
  %139 = vmatpush2.msra.mxu0 0.0
  %140 = vmatprep.subr.mxu0 0.0
  %141 = vmatpush2.msra.mxu0 0.0
  %142 = vmatprep.subr.mxu0 0.0
  %143 = vmatpush2.msra.mxu0 0.0
  %144 = vmatprep.subr.mxu0 0.0
  %145 = vmatpush2.msra.mxu0 0.0
  %146 = vmatprep.subr.mxu0 0.0
  %147 = vmatpush2.msra.mxu0 0.0
  %148 = vmatprep.subr.mxu0 0.0
  %149 = vmatpush2.msra.mxu0 0.0
  %150 = vmatprep.subr.mxu0 0.0
  %151 = vmatpush2.msra.mxu0 0.0
  %152 = vmatprep.subr.mxu0 0.0
  %153 = vmatpush2.msra.mxu0 0.0
  %154 = vmatprep.subr.mxu0 0.0
  %155 = vmatpush2.msra.mxu0 0.0
  %156 = vmatprep.subr.mxu0 0.0
  %157 = vmatpush2.msra.mxu0 0.0
  %158 = vmatprep.subr.mxu0 0.0
  %159 = vmatpush2.msra.mxu0 0.0
  %160 = vmatprep.subr.mxu0 0.0
  %161 = vmatpush2.msra.mxu0 0.0
  %162 = vmatprep.subr.mxu0 0.0
  %163 = vmatpush2.msra.mxu0 0.0
  %164 = vmatprep.subr.mxu0 0.0
  %165 = vmatpush2.msra.mxu0 0.0
  %166 = vmatprep.subr.mxu0 0.0
  %167 = vmatpush2.msra.mxu0 0.0
  %168 = vmatprep.mubr.f32.mxu0 0.0
  %169 = vmatmul.mubr.f32.gmra.mxu0 %v31
  %v170 = vpop.f32.mrf.mxu0
  %v171 = vadd.f32 %v27, %v170
  %v172 = vpop.f32.mrf.mxu0
  %v173 = vadd.f32 %v27, %v172
  %174 = vdwg.mxu0
  %vm175 = vcmask 1043456
  %v176 = vsel %vm175, %v100, 0.0
  %v177 = vsel %vm175, %v102, 0.0
  %v178 = vadd.f32 %v176, %v177
  %v179 = vsel %vm175, %v171, 0.0
  %v180 = vadd.f32 %v178, %v179
  %v181 = vsel %vm175, %v173, 0.0
  %v182 = vadd.f32 %v180, %v181
  %183 = vadd.xlane.f32.xlu0 %v182
  %v184 = vpop.xlane.xlu0 %183
  %v185 = vmul.f32 %v184, 0.001953125
  %v186 = vsub.f32 %v100, %v185
  %v187 = vsub.f32 %v102, %v185
  %v188 = vsub.f32 %v171, %v185
  %v189 = vsub.f32 %v173, %v185
  %v190 = vmul.f32 %v186, %v186
  %v191 = vmul.f32 %v187, %v187
  %v192 = vmul.f32 %v188, %v188
  %v193 = vmul.f32 %v189, %v189
  %v194 = vsel %vm175, %v190, 0.0
  %v195 = vsel %vm175, %v191, 0.0
  %v196 = vadd.f32 %v194, %v195
  %v197 = vsel %vm175, %v192, 0.0
  %v198 = vadd.f32 %v196, %v197
  %v199 = vsel %vm175, %v193, 0.0
  %v200 = vadd.f32 %v198, %v199
  %201 = vadd.xlane.f32.xlu0 %v200
  %v202 = vpop.xlane.xlu0 %201
  %v203 = vmul.f32 %v202, 0.001953125
  %v204 = vadd.f32 %v203, 1e-05
  %v205 = vrsqrt.pop %v204
  %v206 = vmul.f32 %v186, %v205
  %v207 = vmul.f32 %v187, %v205
  %v208 = vmul.f32 %v188, %v205
  %v209 = vmul.f32 %v189, %v205
  %v210 = vmax.f32 %v206, 0.0
  %v211 = vmax.f32 %v207, 0.0
  %v212 = vmax.f32 %v208, 0.0
  %v213 = vmax.f32 %v209, 0.0
  %v218 = vcombine.low %v210, %v211
  %v219 = vcombine.low %v212, %v213
  %222 = vst [vmem:[%s3] sm:$0xff] %v218
  %223 = vst [vmem:[%s3 + $0x8] sm:$0xff] %v219
  // Predicated region
  $region14: #{st_attention_forward.5} parent=0 // pred_check
    _
  $region15: #{st_attention_forward.5} parent=0 // pred_check_branch
    %225 = sbr.rel (0) target = $region17
  $region16: #{st_attention_forward.5} parent=0 // pred_region
    _
  $region17: #{st_attention_forward.5} parent=0 // pred_fallthru
    _
  // Predicated region
  $region18: #{st_attention_forward.5} parent=0 // pred_check
    _
  $region19: #{st_attention_forward.5} parent=0 // pred_check_branch
    %227 = sbr.rel (0) target = $region21
  $region20: #{st_attention_forward.5} parent=0 // pred_region
    _
  $region21: #{st_attention_forward.5} parent=0 // pred_fallthru
    _

// kernel: st_attention_forward.4
$region0: #{st_attention_forward.4}
  #allocation0 [shape = 'u32[]', space=smem, size = 0x4, offset = 0x4, fixed_abs, tag = 'smem constant byte address 0x4 - core index']
  #allocation1 [shape = 'u32[144,128]{1,0:T(1,128)}', space=vmem, size = 0x12000, scoped, tag = 'internal scratch']
  %s0 = inlined_call_operand.vmem [shape: f32[96,16,16], index: 0, kind: input, shape index: {}, may-alias: {0,1,2}]
  %s1 = inlined_call_operand.vmem [shape: f32[96,16,16], index: 1, kind: input, shape index: {}, may-alias: {0,1,2}]
  %s2 = inlined_call_operand.vmem [shape: f32[96,16,16], index: 2, kind: input, shape index: {}, may-alias: {0,1,2}]
  %s3 = inlined_call_operand.vmem [shape: f32[32,16,16], index: 3, kind: output, shape index: {}]
  %s4 = sld [smem:[#allocation0]]
  $region22: #{st_attention_forward.4} parent=0
    _
  %s6 = ssub.s32 1, %s4
  %s7 = scalar_select 0, %s6, %s4
  // Predicated region
  $region2: #{st_attention_forward.4} parent=0 // pred_check
    _
  $region3: #{st_attention_forward.4} parent=0 // pred_check_branch
    %9 = sbr.rel (0) target = $region5
  $region4: #{st_attention_forward.4} parent=0 // pred_region
    _
  $region5: #{st_attention_forward.4} parent=0 // pred_fallthru
    _
  // Predicated region
  $region6: #{st_attention_forward.4} parent=0 // pred_check
    _
  $region7: #{st_attention_forward.4} parent=0 // pred_check_branch
    %11 = sbr.rel (0) target = $region9
  $region8: #{st_attention_forward.4} parent=0 // pred_region
    %s12 = sadd.s32 0, 1
    %s13 = smul.u32 32, %s12
    %p14 = scmp.lt.s32.totalorder %s13, 95
    %s15 = scalar_select %p14, %s13, 95
    %s16 = smul.addr %s15, 2
    %s17 = smul.addr %s16, 8
    %s18 = scalar_lea.vmem %s1, %s17
    %s19 = sadd.s32 0, 1
    %s20 = smul.u32 32, %s19
  $region9: #{st_attention_forward.4} parent=0 // pred_fallthru
    _
  // Predicated region
  $region10: #{st_attention_forward.4} parent=0 // pred_check
    _
  $region11: #{st_attention_forward.4} parent=0 // pred_check_branch
    %22 = sbr.rel (0) target = $region13
  $region12: #{st_attention_forward.4} parent=0 // pred_region
    %s23 = sadd.s32 0, 2
    %s24 = smul.u32 32, %s23
    %p25 = scmp.lt.s32.totalorder %s24, 95
    %s26 = scalar_select %p25, %s24, 95
    %s27 = smul.addr %s26, 2
    %s28 = smul.addr %s27, 8
    %s29 = scalar_lea.vmem %s2, %s28
    %s30 = sadd.s32 0, 2
    %s31 = smul.u32 32, %s30
  $region13: #{st_attention_forward.4} parent=0 // pred_fallthru
    _
  %s32 = sadd.s32 0, 1
  %s33 = smul.u32 32, %s32
  %p34 = scmp.lt.s32.totalorder %s33, 95
  %s35 = scalar_select %p34, %s33, 95
  %s36 = smul.addr %s35, 2
  %s37 = smul.addr %s36, 8
  %s38 = scalar_lea.vmem %s1, %s37
  %s39 = sadd.s32 0, 2
  %s40 = smul.u32 32, %s39
  %p41 = scmp.lt.s32.totalorder %s40, 95
  %s42 = scalar_select %p41, %s40, 95
  %s43 = smul.addr %s42, 2
  %s44 = smul.addr %s43, 8
  %s45 = scalar_lea.vmem %s2, %s44
  %s46 = sadd.s32 0, 1
  %s47 = smul.u32 32, %s46
  %p48 = scmp.lt.s32.totalorder %s47, 95
  %s49 = scalar_select %p48, %s47, 95
  %s50 = smul.addr %s49, 2
  %s51 = smul.addr %s50, 8
  %s52 = scalar_lea.vmem %s1, %s51
  %s53 = sadd.s32 0, 1
  %s54 = smul.u32 32, %s53
  %s55 = sadd.s32 0, 2
  %s56 = smul.u32 32, %s55
  %p57 = scmp.lt.s32.totalorder %s56, 95
  %s58 = scalar_select %p57, %s56, 95
  %s59 = smul.addr %s58, 2
  %s60 = smul.addr %s59, 8
  %s61 = scalar_lea.vmem %s2, %s60
  %s62 = sadd.s32 0, 2
  %s63 = smul.u32 32, %s62
  %v64 = vld [vmem:[%s0] sm:$0xff]
  %v65 = vld [vmem:[%s0 + $0x8] sm:$0xff]
  %v66 = vld [vmem:[%s0 + $0x10] sm:$0xff]
  %v67 = vld [vmem:[%s0 + $0x18] sm:$0xff]
  %v68 = vld [vmem:[%s0 + $0x20] sm:$0xff]
  %v69 = vld [vmem:[%s0 + $0x28] sm:$0xff]
  %v70 = vld [vmem:[%s0 + $0x30] sm:$0xff]
  %v71 = vld [vmem:[%s0 + $0x38] sm:$0xff]
  %v72 = vld [vmem:[%s0 + $0x40] sm:$0xff]
  %v73 = vld [vmem:[%s0 + $0x48] sm:$0xff]
  %v74 = vld [vmem:[%s0 + $0x50] sm:$0xff]
  %v75 = vld [vmem:[%s0 + $0x58] sm:$0xff]
  %v76 = vld [vmem:[%s0 + $0x60] sm:$0xff]
  %v77 = vld [vmem:[%s0 + $0x68] sm:$0xff]
  %v78 = vld [vmem:[%s0 + $0x70] sm:$0xff]
  %v79 = vld [vmem:[%s0 + $0x78] sm:$0xff]
  %v80 = vld [vmem:[%s0 + $0x80] sm:$0xff]
  %v81 = vld [vmem:[%s0 + $0x88] sm:$0xff]
  %v82 = vld [vmem:[%s0 + $0x90] sm:$0xff]
  %v83 = vld [vmem:[%s0 + $0x98] sm:$0xff]
  %v84 = vld [vmem:[%s0 + $0xa0] sm:$0xff]
  %v85 = vld [vmem:[%s0 + $0xa8] sm:$0xff]
  %v86 = vld [vmem:[%s0 + $0xb0] sm:$0xff]
  %v87 = vld [vmem:[%s0 + $0xb8] sm:$0xff]
  %v88 = vld [vmem:[%s0 + $0xc0] sm:$0xff]
  %v89 = vld [vmem:[%s0 + $0xc8] sm:$0xff]
  %v90 = vld [vmem:[%s0 + $0xd0] sm:$0xff]
  %v91 = vld [vmem:[%s0 + $0xd8] sm:$0xff]
  %v92 = vld [vmem:[%s0 + $0xe0] sm:$0xff]
  %v93 = vld [vmem:[%s0 + $0xe8] sm:$0xff]
  %v94 = vld [vmem:[%s0 + $0xf0] sm:$0xff]
  %v95 = vld [vmem:[%s0 + $0xf8] sm:$0xff]
  %v96 = vld [vmem:[%s0 + $0x100] sm:$0xff]
  %v97 = vld [vmem:[%s0 + $0x108] sm:$0xff]
  %v98 = vld [vmem:[%s0 + $0x110] sm:$0xff]
  %v99 = vld [vmem:[%s0 + $0x118] sm:$0xff]
  %v100 = vld [vmem:[%s0 + $0x120] sm:$0xff]
  %v101 = vld [vmem:[%s0 + $0x128] sm:$0xff]
  %v102 = vld [vmem:[%s0 + $0x130] sm:$0xff]
  %v103 = vld [vmem:[%s0 + $0x138] sm:$0xff]
  %v104 = vld [vmem:[%s0 + $0x140] sm:$0xff]
  %v105 = vld [vmem:[%s0 + $0x148] sm:$0xff]
  %v106 = vld [vmem:[%s0 + $0x150] sm:$0xff]
  %v107 = vld [vmem:[%s0 + $0x158] sm:$0xff]
  %v108 = vld [vmem:[%s0 + $0x160] sm:$0xff]
  %v109 = vld [vmem:[%s0 + $0x168] sm:$0xff]
  %v110 = vld [vmem:[%s0 + $0x170] sm:$0xff]
  %v111 = vld [vmem:[%s0 + $0x178] sm:$0xff]
  %v112 = vld [vmem:[%s0 + $0x180] sm:$0xff]
  %v113 = vld [vmem:[%s0 + $0x188] sm:$0xff]
  %v114 = vld [vmem:[%s0 + $0x190] sm:$0xff]
  %v115 = vld [vmem:[%s0 + $0x198] sm:$0xff]
  %v116 = vld [vmem:[%s0 + $0x1a0] sm:$0xff]
  %v117 = vld [vmem:[%s0 + $0x1a8] sm:$0xff]
  %v118 = vld [vmem:[%s0 + $0x1b0] sm:$0xff]
  %v119 = vld [vmem:[%s0 + $0x1b8] sm:$0xff]
  %v120 = vld [vmem:[%s0 + $0x1c0] sm:$0xff]
  %v121 = vld [vmem:[%s0 + $0x1c8] sm:$0xff]
  %v122 = vld [vmem:[%s0 + $0x1d0] sm:$0xff]
  %v123 = vld [vmem:[%s0 + $0x1d8] sm:$0xff]
  %v124 = vld [vmem:[%s0 + $0x1e0] sm:$0xff]
  %v125 = vld [vmem:[%s0 + $0x1e8] sm:$0xff]
  %v126 = vld [vmem:[%s0 + $0x1f0] sm:$0xff]
  %v127 = vld [vmem:[%s0 + $0x1f8] sm:$0xff]
  %v128 = vld [vmem:[%s52] sm:$0xff]
  %v129 = vld [vmem:[%s52 + $0x8] sm:$0xff]
  %v130 = vld [vmem:[%s52 + $0x10] sm:$0xff]
  %v131 = vld [vmem:[%s52 + $0x18] sm:$0xff]
  %v132 = vld [vmem:[%s52 + $0x20] sm:$0xff]
  %v133 = vld [vmem:[%s52 + $0x28] sm:$0xff]
  %v134 = vld [vmem:[%s52 + $0x30] sm:$0xff]
  %v135 = vld [vmem:[%s52 + $0x38] sm:$0xff]
  %v136 = vld [vmem:[%s52 + $0x40] sm:$0xff]
  %v137 = vld [vmem:[%s52 + $0x48] sm:$0xff]
  %v138 = vld [vmem:[%s52 + $0x50] sm:$0xff]
  %v139 = vld [vmem:[%s52 + $0x58] sm:$0xff]
  %v140 = vld [vmem:[%s52 + $0x60] sm:$0xff]
  %v141 = vld [vmem:[%s52 + $0x68] sm:$0xff]
  %v142 = vld [vmem:[%s52 + $0x70] sm:$0xff]
  %v143 = vld [vmem:[%s52 + $0x78] sm:$0xff]
  %v144 = vld [vmem:[%s52 + $0x80] sm:$0xff]
  %v145 = vld [vmem:[%s52 + $0x88] sm:$0xff]
  %v146 = vld [vmem:[%s52 + $0x90] sm:$0xff]
  %v147 = vld [vmem:[%s52 + $0x98] sm:$0xff]
  %v148 = vld [vmem:[%s52 + $0xa0] sm:$0xff]
  %v149 = vld [vmem:[%s52 + $0xa8] sm:$0xff]
  %v150 = vld [vmem:[%s52 + $0xb0] sm:$0xff]
  %v151 = vld [vmem:[%s52 + $0xb8] sm:$0xff]
  %v152 = vld [vmem:[%s52 + $0xc0] sm:$0xff]
  %v153 = vld [vmem:[%s52 + $0xc8] sm:$0xff]
  %v154 = vld [vmem:[%s52 + $0xd0] sm:$0xff]
  %v155 = vld [vmem:[%s52 + $0xd8] sm:$0xff]
  %v156 = vld [vmem:[%s52 + $0xe0] sm:$0xff]
  %v157 = vld [vmem:[%s52 + $0xe8] sm:$0xff]
  %v158 = vld [vmem:[%s52 + $0xf0] sm:$0xff]
  %v159 = vld [vmem:[%s52 + $0xf8] sm:$0xff]
  %v160 = vld [vmem:[%s52 + $0x100] sm:$0xff]
  %v161 = vld [vmem:[%s52 + $0x108] sm:$0xff]
  %v162 = vld [vmem:[%s52 + $0x110] sm:$0xff]
  %v163 = vld [vmem:[%s52 + $0x118] sm:$0xff]
  %v164 = vld [vmem:[%s52 + $0x120] sm:$0xff]
  %v165 = vld [vmem:[%s52 + $0x128] sm:$0xff]
  %v166 = vld [vmem:[%s52 + $0x130] sm:$0xff]
  %v167 = vld [vmem:[%s52 + $0x138] sm:$0xff]
  %v168 = vld [vmem:[%s52 + $0x140] sm:$0xff]
  %v169 = vld [vmem:[%s52 + $0x148] sm:$0xff]
  %v170 = vld [vmem:[%s52 + $0x150] sm:$0xff]
  %v171 = vld [vmem:[%s52 + $0x158] sm:$0xff]
  %v172 = vld [vmem:[%s52 + $0x160] sm:$0xff]
  %v173 = vld [vmem:[%s52 + $0x168] sm:$0xff]
  %v174 = vld [vmem:[%s52 + $0x170] sm:$0xff]
  %v175 = vld [vmem:[%s52 + $0x178] sm:$0xff]
  %v176 = vld [vmem:[%s52 + $0x180] sm:$0xff]
  %v177 = vld [vmem:[%s52 + $0x188] sm:$0xff]
  %v178 = vld [vmem:[%s52 + $0x190] sm:$0xff]
  %v179 = vld [vmem:[%s52 + $0x198] sm:$0xff]
  %v180 = vld [vmem:[%s52 + $0x1a0] sm:$0xff]
  %v181 = vld [vmem:[%s52 + $0x1a8] sm:$0xff]
  %v182 = vld [vmem:[%s52 + $0x1b0] sm:$0xff]
  %v183 = vld [vmem:[%s52 + $0x1b8] sm:$0xff]
  %v184 = vld [vmem:[%s52 + $0x1c0] sm:$0xff]
  %v185 = vld [vmem:[%s52 + $0x1c8] sm:$0xff]
  %v186 = vld [vmem:[%s52 + $0x1d0] sm:$0xff]
  %v187 = vld [vmem:[%s52 + $0x1d8] sm:$0xff]
  %v188 = vld [vmem:[%s52 + $0x1e0] sm:$0xff]
  %v189 = vld [vmem:[%s52 + $0x1e8] sm:$0xff]
  %v190 = vld [vmem:[%s52 + $0x1f0] sm:$0xff]
  %v191 = vld [vmem:[%s52 + $0x1f8] sm:$0xff]
  %v192 = vld [vmem:[%s61] sm:$0xff]
  %v193 = vld [vmem:[%s61 + $0x8] sm:$0xff]
  %v194 = vld [vmem:[%s61 + $0x10] sm:$0xff]
  %v195 = vld [vmem:[%s61 + $0x18] sm:$0xff]
  %v196 = vld [vmem:[%s61 + $0x20] sm:$0xff]
  %v197 = vld [vmem:[%s61 + $0x28] sm:$0xff]
  %v198 = vld [vmem:[%s61 + $0x30] sm:$0xff]
  %v199 = vld [vmem:[%s61 + $0x38] sm:$0xff]
  %v200 = vld [vmem:[%s61 + $0x40] sm:$0xff]
  %v201 = vld [vmem:[%s61 + $0x48] sm:$0xff]
  %v202 = vld [vmem:[%s61 + $0x50] sm:$0xff]
  %v203 = vld [vmem:[%s61 + $0x58] sm:$0xff]
  %v204 = vld [vmem:[%s61 + $0x60] sm:$0xff]
  %v205 = vld [vmem:[%s61 + $0x68] sm:$0xff]
  %v206 = vld [vmem:[%s61 + $0x70] sm:$0xff]
  %v207 = vld [vmem:[%s61 + $0x78] sm:$0xff]
  %v208 = vld [vmem:[%s61 + $0x80] sm:$0xff]
  %v209 = vld [vmem:[%s61 + $0x88] sm:$0xff]
  %v210 = vld [vmem:[%s61 + $0x90] sm:$0xff]
  %v211 = vld [vmem:[%s61 + $0x98] sm:$0xff]
  %v212 = vld [vmem:[%s61 + $0xa0] sm:$0xff]
  %v213 = vld [vmem:[%s61 + $0xa8] sm:$0xff]
  %v214 = vld [vmem:[%s61 + $0xb0] sm:$0xff]
  %v215 = vld [vmem:[%s61 + $0xb8] sm:$0xff]
  %v216 = vld [vmem:[%s61 + $0xc0] sm:$0xff]
  %v217 = vld [vmem:[%s61 + $0xc8] sm:$0xff]
  %v218 = vld [vmem:[%s61 + $0xd0] sm:$0xff]
  %v219 = vld [vmem:[%s61 + $0xd8] sm:$0xff]
  %v220 = vld [vmem:[%s61 + $0xe0] sm:$0xff]
  %v221 = vld [vmem:[%s61 + $0xe8] sm:$0xff]
  %v222 = vld [vmem:[%s61 + $0xf0] sm:$0xff]
  %v223 = vld [vmem:[%s61 + $0xf8] sm:$0xff]
  %v224 = vld [vmem:[%s61 + $0x100] sm:$0xff]
  %v225 = vld [vmem:[%s61 + $0x108] sm:$0xff]
  %v226 = vld [vmem:[%s61 + $0x110] sm:$0xff]
  %v227 = vld [vmem:[%s61 + $0x118] sm:$0xff]
  %v228 = vld [vmem:[%s61 + $0x120] sm:$0xff]
  %v229 = vld [vmem:[%s61 + $0x128] sm:$0xff]
  %v230 = vld [vmem:[%s61 + $0x130] sm:$0xff]
  %v231 = vld [vmem:[%s61 + $0x138] sm:$0xff]
  %v232 = vld [vmem:[%s61 + $0x140] sm:$0xff]
  %v233 = vld [vmem:[%s61 + $0x148] sm:$0xff]
  %v234 = vld [vmem:[%s61 + $0x150] sm:$0xff]
  %v235 = vld [vmem:[%s61 + $0x158] sm:$0xff]
  %v236 = vld [vmem:[%s61 + $0x160] sm:$0xff]
  %v237 = vld [vmem:[%s61 + $0x168] sm:$0xff]
  %v238 = vld [vmem:[%s61 + $0x170] sm:$0xff]
  %v239 = vld [vmem:[%s61 + $0x178] sm:$0xff]
  %v240 = vld [vmem:[%s61 + $0x180] sm:$0xff]
  %v241 = vld [vmem:[%s61 + $0x188] sm:$0xff]
  %v242 = vld [vmem:[%s61 + $0x190] sm:$0xff]
  %v243 = vld [vmem:[%s61 + $0x198] sm:$0xff]
  %v244 = vld [vmem:[%s61 + $0x1a0] sm:$0xff]
  %v245 = vld [vmem:[%s61 + $0x1a8] sm:$0xff]
  %v246 = vld [vmem:[%s61 + $0x1b0] sm:$0xff]
  %v247 = vld [vmem:[%s61 + $0x1b8] sm:$0xff]
  %v248 = vld [vmem:[%s61 + $0x1c0] sm:$0xff]
  %v249 = vld [vmem:[%s61 + $0x1c8] sm:$0xff]
  %v250 = vld [vmem:[%s61 + $0x1d0] sm:$0xff]
  %v251 = vld [vmem:[%s61 + $0x1d8] sm:$0xff]
  %v252 = vld [vmem:[%s61 + $0x1e0] sm:$0xff]
  %v253 = vld [vmem:[%s61 + $0x1e8] sm:$0xff]
  %v254 = vld [vmem:[%s61 + $0x1f0] sm:$0xff]
  %v255 = vld [vmem:[%s61 + $0x1f8] sm:$0xff]
  %vm256 = vcmask 130048
  %v258 = vsel %vm256, %v64, 0
  %v261 = vsel %vm256, %v65, 0
  %v264 = vsel %vm256, %v128, 0
  %v267 = vsel %vm256, %v129, 0
  %269 = vmatprep.subr.mxu0 0.0
  %270 = vmatpush1.xpose.msra.mxu0 0.0
  %271 = vmatprep.subr.mxu0 0.0
  %272 = vmatpush1.xpose.msra.mxu0 0.0
  %273 = vmatprep.subr.mxu0 0.0
  %274 = vmatpush1.xpose.msra.mxu0 0.0
  %275 = vmatprep.subr.mxu0 0.0
  %276 = vmatpush1.xpose.msra.mxu0 0.0
  %277 = vmatprep.subr.mxu0 0.0
  %278 = vmatpush1.xpose.msra.mxu0 0.0
  %279 = vmatprep.subr.mxu0 0.0
  %280 = vmatpush1.xpose.msra.mxu0 0.0
  %281 = vmatprep.subr.mxu0 0.0
  %282 = vmatpush1.xpose.msra.mxu0 0.0
  %283 = vmatprep.subr.mxu0 0.0
  %284 = vmatpush1.xpose.msra.mxu0 0.0
  %285 = vmatprep.subr.mxu0 0.0
  %286 = vmatpush1.xpose.msra.mxu0 0.0
  %287 = vmatprep.subr.mxu0 0.0
  %288 = vmatpush1.xpose.msra.mxu0 0.0
  %289 = vmatprep.subr.mxu0 0.0
  %290 = vmatpush1.xpose.msra.mxu0 0.0
  %291 = vmatprep.subr.mxu0 0.0
  %292 = vmatpush1.xpose.msra.mxu0 0.0
  %293 = vmatprep.subr.mxu0 0.0
  %294 = vmatpush1.xpose.msra.mxu0 0.0
  %295 = vmatprep.subr.mxu0 0.0
  %296 = vmatpush1.xpose.msra.mxu0 0.0
  %297 = vmatprep.subr.mxu0 0.0
  %298 = vmatpush1.xpose.msra.mxu0 %v267
  %299 = vmatprep.subr.mxu0 0.0
  %300 = vmatpush1.xpose.msra.mxu0 %v264
  %301 = vmatprep.subr.mxu0 0.0
  %302 = vmatpush2.xpose.msra.mxu0 0.0
  %303 = vmatprep.subr.mxu0 0.0
  %304 = vmatpush2.xpose.msra.mxu0 0.0
  %305 = vmatprep.subr.mxu0 0.0
  %306 = vmatpush2.xpose.msra.mxu0 0.0
  %307 = vmatprep.subr.mxu0 0.0
  %308 = vmatpush2.xpose.msra.mxu0 0.0
  %309 = vmatprep.subr.mxu0 0.0
  %310 = vmatpush2.xpose.msra.mxu0 0.0
  %311 = vmatprep.subr.mxu0 0.0
  %312 = vmatpush2.xpose.msra.mxu0 0.0
  %313 = vmatprep.subr.mxu0 0.0
  %314 = vmatpush2.xpose.msra.mxu0 0.0
  %315 = vmatprep.subr.mxu0 0.0
  %316 = vmatpush2.xpose.msra.mxu0 0.0
  %317 = vmatprep.subr.mxu0 0.0
  %318 = vmatpush2.xpose.msra.mxu0 0.0
  %319 = vmatprep.subr.mxu0 0.0
  %320 = vmatpush2.xpose.msra.mxu0 0.0
  %321 = vmatprep.subr.mxu0 0.0
  %322 = vmatpush2.xpose.msra.mxu0 0.0
  %323 = vmatprep.subr.mxu0 0.0
  %324 = vmatpush2.xpose.msra.mxu0 0.0
  %325 = vmatprep.subr.mxu0 0.0
  %326 = vmatpush2.xpose.msra.mxu0 0.0
  %327 = vmatprep.subr.mxu0 0.0
  %328 = vmatpush2.xpose.msra.mxu0 0.0
  %329 = vmatprep.subr.mxu0 0.0
  %330 = vmatpush2.xpose.msra.mxu0 0.0
  %331 = vmatprep.subr.mxu0 0.0
  %332 = vmatpush2.xpose.msra.mxu0 0.0
  %333 = vmatprep.mubr.f32.mxu0 0.0
  %334 = vmatmul.mubr.f32.gmra.mxu0 %v258
  %v335 = vpop.f32.mrf.mxu0
  %v336 = vadd.f32 0.0, %v335
  %v337 = vpop.f32.mrf.mxu0
  %338 = vmatprep.mubr.f32.mxu0 0.0
  %339 = vmatmul.mubr.f32.gmra.mxu0 %v261
  %v340 = vpop.f32.mrf.mxu0
  %v341 = vadd.f32 0.0, %v340
  %v342 = vpop.f32.mrf.mxu0
  %343 = vdwg.mxu0
  %v345 = vsel %vm256, %v66, 0
  %v348 = vsel %vm256, %v67, 0
  %v351 = vsel %vm256, %v130, 0
  %v354 = vsel %vm256, %v131, 0
  %356 = vmatprep.subr.mxu0 0.0
  %357 = vmatpush1.xpose.msra.mxu0 0.0
  %358 = vmatprep.subr.mxu0 0.0
  %359 = vmatpush1.xpose.msra.mxu0 0.0
  %360 = vmatprep.subr.mxu0 0.0
  %361 = vmatpush1.xpose.msra.mxu0 0.0
  %362 = vmatprep.subr.mxu0 0.0
  %363 = vmatpush1.xpose.msra.mxu0 0.0
  %364 = vmatprep.subr.mxu0 0.0
  %365 = vmatpush1.xpose.msra.mxu0 0.0
  %366 = vmatprep.subr.mxu0 0.0
  %367 = vmatpush1.xpose.msra.mxu0 0.0
  %368 = vmatprep.subr.mxu0 0.0
  %369 = vmatpush1.xpose.msra.mxu0 0.0
  %370 = vmatprep.subr.mxu0 0.0
  %371 = vmatpush1.xpose.msra.mxu0 0.0
  %372 = vmatprep.subr.mxu0 0.0
  %373 = vmatpush1.xpose.msra.mxu0 0.0
  %374 = vmatprep.subr.mxu0 0.0
  %375 = vmatpush1.xpose.msra.mxu0 0.0
  %376 = vmatprep.subr.mxu0 0.0
  %377 = vmatpush1.xpose.msra.mxu0 0.0
  %378 = vmatprep.subr.mxu0 0.0
  %379 = vmatpush1.xpose.msra.mxu0 0.0
  %380 = vmatprep.subr.mxu0 0.0
  %381 = vmatpush1.xpose.msra.mxu0 0.0
  %382 = vmatprep.subr.mxu0 0.0
  %383 = vmatpush1.xpose.msra.mxu0 0.0
  %384 = vmatprep.subr.mxu0 0.0
  %385 = vmatpush1.xpose.msra.mxu0 %v354
  %386 = vmatprep.subr.mxu0 0.0
  %387 = vmatpush1.xpose.msra.mxu0 %v351
  %388 = vmatprep.subr.mxu0 0.0
  %389 = vmatpush2.xpose.msra.mxu0 0.0
  %390 = vmatprep.subr.mxu0 0.0
  %391 = vmatpush2.xpose.msra.mxu0 0.0
  %392 = vmatprep.subr.mxu0 0.0
  %393 = vmatpush2.xpose.msra.mxu0 0.0
  %394 = vmatprep.subr.mxu0 0.0
  %395 = vmatpush2.xpose.msra.mxu0 0.0
  %396 = vmatprep.subr.mxu0 0.0
  %397 = vmatpush2.xpose.msra.mxu0 0.0
  %398 = vmatprep.subr.mxu0 0.0
  %399 = vmatpush2.xpose.msra.mxu0 0.0
  %400 = vmatprep.subr.mxu0 0.0
  %401 = vmatpush2.xpose.msra.mxu0 0.0
  %402 = vmatprep.subr.mxu0 0.0
  %403 = vmatpush2.xpose.msra.mxu0 0.0
  %404 = vmatprep.subr.mxu0 0.0
  %405 = vmatpush2.xpose.msra.mxu0 0.0
  %406 = vmatprep.subr.mxu0 0.0
  %407 = vmatpush2.xpose.msra.mxu0 0.0
  %408 = vmatprep.subr.mxu0 0.0
  %409 = vmatpush2.xpose.msra.mxu0 0.0
  %410 = vmatprep.subr.mxu0 0.0
  %411 = vmatpush2.xpose.msra.mxu0 0.0
  %412 = vmatprep.subr.mxu0 0.0
  %413 = vmatpush2.xpose.msra.mxu0 0.0
  %414 = vmatprep.subr.mxu0 0.0
  %415 = vmatpush2.xpose.msra.mxu0 0.0
  %416 = vmatprep.subr.mxu0 0.0
  %417 = vmatpush2.xpose.msra.mxu0 0.0
  %418 = vmatprep.subr.mxu0 0.0
  %419 = vmatpush2.xpose.msra.mxu0 0.0
  %420 = vmatprep.mubr.f32.mxu0 0.0
  %421 = vmatmul.mubr.f32.gmra.mxu0 %v345
  %v422 = vpop.f32.mrf.mxu0
  %v423 = vadd.f32 0.0, %v422
  %v424 = vpop.f32.mrf.mxu0
  %425 = vmatprep.mubr.f32.mxu0 0.0
  %426 = vmatmul.mubr.f32.gmra.mxu0 %v348
  %v427 = vpop.f32.mrf.mxu0
  %v428 = vadd.f32 0.0, %v427
  %v429 = vpop.f32.mrf.mxu0
  %430 = vdwg.mxu0
  %v432 = vsel %vm256, %v68, 0
  %v435 = vsel %vm256, %v69, 0
  %v438 = vsel %vm256, %v132, 0
  %v441 = vsel %vm256, %v133, 0
  %443 = vmatprep.subr.mxu0 0.0
  %444 = vmatpush1.xpose.msra.mxu0 0.0
  %445 = vmatprep.subr.mxu0 0.0
  %446 = vmatpush1.xpose.msra.mxu0 0.0
  %447 = vmatprep.subr.mxu0 0.0
  %448 = vmatpush1.xpose.msra.mxu0 0.0
  %449 = vmatprep.subr.mxu0 0.0
  %450 = vmatpush1.xpose.msra.mxu0 0.0
  %451 = vmatprep.subr.mxu0 0.0
  %452 = vmatpush1.xpose.msra.mxu0 0.0
  %453 = vmatprep.subr.mxu0 0.0
  %454 = vmatpush1.xpose.msra.mxu0 0.0
  %455 = vmatprep.subr.mxu0 0.0
  %456 = vmatpush1.xpose.msra.mxu0 0.0
  %457 = vmatprep.subr.mxu0 0.0
  %458 = vmatpush1.xpose.msra.mxu0 0.0
  %459 = vmatprep.subr.mxu0 0.0
  %460 = vmatpush1.xpose.msra.mxu0 0.0
  %461 = vmatprep.subr.mxu0 0.0
  %462 = vmatpush1.xpose.msra.mxu0 0.0
  %463 = vmatprep.subr.mxu0 0.0
  %464 = vmatpush1.xpose.msra.mxu0 0.0
  %465 = vmatprep.subr.mxu0 0.0
  %466 = vmatpush1.xpose.msra.mxu0 0.0
  %467 = vmatprep.subr.mxu0 0.0
  %468 = vmatpush1.xpose.msra.mxu0 0.0
  %469 = vmatprep.subr.mxu0 0.0
  %470 = vmatpush1.xpose.msra.mxu0 0.0
  %471 = vmatprep.subr.mxu0 0.0
  %472 = vmatpush1.xpose.msra.mxu0 %v441
  %473 = vmatprep.subr.mxu0 0.0
  %474 = vmatpush1.xpose.msra.mxu0 %v438
  %475 = vmatprep.subr.mxu0 0.0
  %476 = vmatpush2.xpose.msra.mxu0 0.0
  %477 = vmatprep.subr.mxu0 0.0
  %478 = vmatpush2.xpose.msra.mxu0 0.0
  %479 = vmatprep.subr.mxu0 0.0
  %480 = vmatpush2.xpose.msra.mxu0 0.0
  %481 = vmatprep.subr.mxu0 0.0
  %482 = vmatpush2.xpose.msra.mxu0 0.0
  %483 = vmatprep.subr.mxu0 0.0
  %484 = vmatpush2.xpose.msra.mxu0 0.0
  %485 = vmatprep.subr.mxu0 0.0
  %486 = vmatpush2.xpose.msra.mxu0 0.0
  %487 = vmatprep.subr.mxu0 0.0
  %488 = vmatpush2.xpose.msra.mxu0 0.0
  %489 = vmatprep.subr.mxu0 0.0
  %490 = vmatpush2.xpose.msra.mxu0 0.0
  %491 = vmatprep.subr.mxu0 0.0
  %492 = vmatpush2.xpose.msra.mxu0 0.0
  %493 = vmatprep.subr.mxu0 0.0
  %494 = vmatpush2.xpose.msra.mxu0 0.0
  %495 = vmatprep.subr.mxu0 0.0
  %496 = vmatpush2.xpose.msra.mxu0 0.0
  %497 = vmatprep.subr.mxu0 0.0
  %498 = vmatpush2.xpose.msra.mxu0 0.0
  %499 = vmatprep.subr.mxu0 0.0
  %500 = vmatpush2.xpose.msra.mxu0 0.0
  %501 = vmatprep.subr.mxu0 0.0
  %502 = vmatpush2.xpose.msra.mxu0 0.0
  %503 = vmatprep.subr.mxu0 0.0
  %504 = vmatpush2.xpose.msra.mxu0 0.0
  %505 = vmatprep.subr.mxu0 0.0
  %506 = vmatpush2.xpose.msra.mxu0 0.0
  %507 = vmatprep.mubr.f32.mxu0 0.0
  %508 = vmatmul.mubr.f32.gmra.mxu0 %v432
  %v509 = vpop.f32.mrf.mxu0
  %v510 = vadd.f32 0.0, %v509
  %v511 = vpop.f32.mrf.mxu0
  %512 = vmatprep.mubr.f32.mxu0 0.0
  %513 = vmatmul.mubr.f32.gmra.mxu0 %v435
  %v514 = vpop.f32.mrf.mxu0
  %v515 = vadd.f32 0.0, %v514
  %v516 = vpop.f32.mrf.mxu0
  %517 = vdwg.mxu0
  %v519 = vsel %vm256, %v70, 0
  %v522 = vsel %vm256, %v71, 0
  %v525 = vsel %vm256, %v134, 0
  %v528 = vsel %vm256, %v135, 0
  %530 = vmatprep.subr.mxu0 0.0
  %531 = vmatpush1.xpose.msra.mxu0 0.0
  %532 = vmatprep.subr.mxu0 0.0
  %533 = vmatpush1.xpose.msra.mxu0 0.0
  %534 = vmatprep.subr.mxu0 0.0
  %535 = vmatpush1.xpose.msra.mxu0 0.0
  %536 = vmatprep.subr.mxu0 0.0
  %537 = vmatpush1.xpose.msra.mxu0 0.0
  %538 = vmatprep.subr.mxu0 0.0
  %539 = vmatpush1.xpose.msra.mxu0 0.0
  %540 = vmatprep.subr.mxu0 0.0
  %541 = vmatpush1.xpose.msra.mxu0 0.0
  %542 = vmatprep.subr.mxu0 0.0
  %543 = vmatpush1.xpose.msra.mxu0 0.0
  %544 = vmatprep.subr.mxu0 0.0
  %545 = vmatpush1.xpose.msra.mxu0 0.0
  %546 = vmatprep.subr.mxu0 0.0
  %547 = vmatpush1.xpose.msra.mxu0 0.0
  %548 = vmatprep.subr.mxu0 0.0
  %549 = vmatpush1.xpose.msra.mxu0 0.0
  %550 = vmatprep.subr.mxu0 0.0
  %551 = vmatpush1.xpose.msra.mxu0 0.0
  %552 = vmatprep.subr.mxu0 0.0
  %553 = vmatpush1.xpose.msra.mxu0 0.0
  %554 = vmatprep.subr.mxu0 0.0
  %555 = vmatpush1.xpose.msra.mxu0 0.0
  %556 = vmatprep.subr.mxu0 0.0
  %557 = vmatpush1.xpose.msra.mxu0 0.0
  %558 = vmatprep.subr.mxu0 0.0
  %559 = vmatpush1.xpose.msra.mxu0 %v528
  %560 = vmatprep.subr.mxu0 0.0
  %561 = vmatpush1.xpose.msra.mxu0 %v525
  %562 = vmatprep.subr.mxu0 0.0
  %563 = vmatpush2.xpose.msra.mxu0 0.0
  %564 = vmatprep.subr.mxu0 0.0
  %565 = vmatpush2.xpose.msra.mxu0 0.0
  %566 = vmatprep.subr.mxu0 0.0
  %567 = vmatpush2.xpose.msra.mxu0 0.0
  %568 = vmatprep.subr.mxu0 0.0
  %569 = vmatpush2.xpose.msra.mxu0 0.0
  %570 = vmatprep.subr.mxu0 0.0
  %571 = vmatpush2.xpose.msra.mxu0 0.0
  %572 = vmatprep.subr.mxu0 0.0
  %573 = vmatpush2.xpose.msra.mxu0 0.0
  %574 = vmatprep.subr.mxu0 0.0
  %575 = vmatpush2.xpose.msra.mxu0 0.0
  %576 = vmatprep.subr.mxu0 0.0
  %577 = vmatpush2.xpose.msra.mxu0 0.0
  %578 = vmatprep.subr.mxu0 0.0
  %579 = vmatpush2.xpose.msra.mxu0 0.0
  %580 = vmatprep.subr.mxu0 0.0
  %581 = vmatpush2.xpose.msra.mxu0 0.0
  %582 = vmatprep.subr.mxu0 0.0
  %583 = vmatpush2.xpose.msra.mxu0 0.0
  %584 = vmatprep.subr.mxu0 0.0
  %585 = vmatpush2.xpose.msra.mxu0 0.0
  %586 = vmatprep.subr.mxu0 0.0
  %587 = vmatpush2.xpose.msra.mxu0 0.0
  %588 = vmatprep.subr.mxu0 0.0
  %589 = vmatpush2.xpose.msra.mxu0 0.0
  %590 = vmatprep.subr.mxu0 0.0
  %591 = vmatpush2.xpose.msra.mxu0 0.0
  %592 = vmatprep.subr.mxu0 0.0
  %593 = vmatpush2.xpose.msra.mxu0 0.0
  %594 = vmatprep.mubr.f32.mxu0 0.0
  %595 = vmatmul.mubr.f32.gmra.mxu0 %v519
  %v596 = vpop.f32.mrf.mxu0
  %v597 = vadd.f32 0.0, %v596
  %v598 = vpop.f32.mrf.mxu0
  %599 = vmatprep.mubr.f32.mxu0 0.0
  %600 = vmatmul.mubr.f32.gmra.mxu0 %v522
  %v601 = vpop.f32.mrf.mxu0
  %v602 = vadd.f32 0.0, %v601
  %v603 = vpop.f32.mrf.mxu0
  %604 = vdwg.mxu0
  %v606 = vsel %vm256, %v72, 0
  %v609 = vsel %vm256, %v73, 0
  %v612 = vsel %vm256, %v136, 0
  %v615 = vsel %vm256, %v137, 0
  %617 = vmatprep.subr.mxu0 0.0
  %618 = vmatpush1.xpose.msra.mxu0 0.0
  %619 = vmatprep.subr.mxu0 0.0
  %620 = vmatpush1.xpose.msra.mxu0 0.0
  %621 = vmatprep.subr.mxu0 0.0
  %622 = vmatpush1.xpose.msra.mxu0 0.0
  %623 = vmatprep.subr.mxu0 0.0
  %624 = vmatpush1.xpose.msra.mxu0 0.0
  %625 = vmatprep.subr.mxu0 0.0
  %626 = vmatpush1.xpose.msra.mxu0 0.0
  %627 = vmatprep.subr.mxu0 0.0
  %628 = vmatpush1.xpose.msra.mxu0 0.0
  %629 = vmatprep.subr.mxu0 0.0
  %630 = vmatpush1.xpose.msra.mxu0 0.0
  %631 = vmatprep.subr.mxu0 0.0
  %632 = vmatpush1.xpose.msra.mxu0 0.0
  %633 = vmatprep.subr.mxu0 0.0
  %634 = vmatpush1.xpose.msra.mxu0 0.0
  %635 = vmatprep.subr.mxu0 0.0
  %636 = vmatpush1.xpose.msra.mxu0 0.0
  %637 = vmatprep.subr.mxu0 0.0
  %638 = vmatpush1.xpose.msra.mxu0 0.0
  %639 = vmatprep.subr.mxu0 0.0
  %640 = vmatpush1.xpose.msra.mxu0 0.0
  %641 = vmatprep.subr.mxu0 0.0
  %642 = vmatpush1.xpose.msra.mxu0 0.0
  %643 = vmatprep.subr.mxu0 0.0
  %644 = vmatpush1.xpose.msra.mxu0 0.0
  %645 = vmatprep.subr.mxu0 0.0
  %646 = vmatpush1.xpose.msra.mxu0 %v615
  %647 = vmatprep.subr.mxu0 0.0
  %648 = vmatpush1.xpose.msra.mxu0 %v612
  %649 = vmatprep.subr.mxu0 0.0
  %650 = vmatpush2.xpose.msra.mxu0 0.0
  %651 = vmatprep.subr.mxu0 0.0
  %652 = vmatpush2.xpose.msra.mxu0 0.0
  %653 = vmatprep.subr.mxu0 0.0
  %654 = vmatpush2.xpose.msra.mxu0 0.0
  %655 = vmatprep.subr.mxu0 0.0
  %656 = vmatpush2.xpose.msra.mxu0 0.0
  %657 = vmatprep.subr.mxu0 0.0
  %658 = vmatpush2.xpose.msra.mxu0 0.0
  %659 = vmatprep.subr.mxu0 0.0
  %660 = vmatpush2.xpose.msra.mxu0 0.0
  %661 = vmatprep.subr.mxu0 0.0
  %662 = vmatpush2.xpose.msra.mxu0 0.0
  %663 = vmatprep.subr.mxu0 0.0
  %664 = vmatpush2.xpose.msra.mxu0 0.0
  %665 = vmatprep.subr.mxu0 0.0
  %666 = vmatpush2.xpose.msra.mxu0 0.0
  %667 = vmatprep.subr.mxu0 0.0
  %668 = vmatpush2.xpose.msra.mxu0 0.0
  %669 = vmatprep.subr.mxu0 0.0
  %670 = vmatpush2.xpose.msra.mxu0 0.0
  %671 = vmatprep.subr.mxu0 0.0
  %672 = vmatpush2.xpose.msra.mxu0 0.0
  %673 = vmatprep.subr.mxu0 0.0
  %674 = vmatpush2.xpose.msra.mxu0 0.0
  %675 = vmatprep.subr.mxu0 0.0
  %676 = vmatpush2.xpose.msra.mxu0 0.0
  %677 = vmatprep.subr.mxu0 0.0
  %678 = vmatpush2.xpose.msra.mxu0 0.0
  %679 = vmatprep.subr.mxu0 0.0
  %680 = vmatpush2.xpose.msra.mxu0 0.0
  %681 = vmatprep.mubr.f32.mxu0 0.0
  %682 = vmatmul.mubr.f32.gmra.mxu0 %v606
  %v683 = vpop.f32.mrf.mxu0
  %v684 = vadd.f32 0.0, %v683
  %v685 = vpop.f32.mrf.mxu0
  %686 = vmatprep.mubr.f32.mxu0 0.0
  %687 = vmatmul.mubr.f32.gmra.mxu0 %v609
  %v688 = vpop.f32.mrf.mxu0
  %v689 = vadd.f32 0.0, %v688
  %v690 = vpop.f32.mrf.mxu0
  %691 = vdwg.mxu0
  %v693 = vsel %vm256, %v74, 0
  %v696 = vsel %vm256, %v75, 0
  %v699 = vsel %vm256, %v138, 0
  %v702 = vsel %vm256, %v139, 0
  %704 = vmatprep.subr.mxu0 0.0
  %705 = vmatpush1.xpose.msra.mxu0 0.0
  %706 = vmatprep.subr.mxu0 0.0
  %707 = vmatpush1.xpose.msra.mxu0 0.0
  %708 = vmatprep.subr.mxu0 0.0
  %709 = vmatpush1.xpose.msra.mxu0 0.0
  %710 = vmatprep.subr.mxu0 0.0
  %711 = vmatpush1.xpose.msra.mxu0 0.0
  %712 = vmatprep.subr.mxu0 0.0
  %713 = vmatpush1.xpose.msra.mxu0 0.0
  %714 = vmatprep.subr.mxu0 0.0
  %715 = vmatpush1.xpose.msra.mxu0 0.0
  %716 = vmatprep.subr.mxu0 0.0
  %717 = vmatpush1.xpose.msra.mxu0 0.0
  %718 = vmatprep.subr.mxu0 0.0
  %719 = vmatpush1.xpose.msra.mxu0 0.0
  %720 = vmatprep.subr.mxu0 0.0
  %721 = vmatpush1.xpose.msra.mxu0 0.0
  %722 = vmatprep.subr.mxu0 0.0
  %723 = vmatpush1.xpose.msra.mxu0 0.0
  %724 = vmatprep.subr.mxu0 0.0
  %725 = vmatpush1.xpose.msra.mxu0 0.0
  %726 = vmatprep.subr.mxu0 0.0
  %727 = vmatpush1.xpose.msra.mxu0 0.0
  %728 = vmatprep.subr.mxu0 0.0
  %729 = vmatpush1.xpose.msra.mxu0 0.0
  %730 = vmatprep.subr.mxu0 0.0
  %731 = vmatpush1.xpose.msra.mxu0 0.0
  %732 = vmatprep.subr.mxu0 0.0
  %733 = vmatpush1.xpose.msra.mxu0 %v702
  %734 = vmatprep.subr.mxu0 0.0
  %735 = vmatpush1.xpose.msra.mxu0 %v699
  %736 = vmatprep.subr.mxu0 0.0
  %737 = vmatpush2.xpose.msra.mxu0 0.0
  %738 = vmatprep.subr.mxu0 0.0
  %739 = vmatpush2.xpose.msra.mxu0 0.0
  %740 = vmatprep.subr.mxu0 0.0
  %741 = vmatpush2.xpose.msra.mxu0 0.0
  %742 = vmatprep.subr.mxu0 0.0
  %743 = vmatpush2.xpose.msra.mxu0 0.0
  %744 = vmatprep.subr.mxu0 0.0
  %745 = vmatpush2.xpose.msra.mxu0 0.0
  %746 = vmatprep.subr.mxu0 0.0
  %747 = vmatpush2.xpose.msra.mxu0 0.0
  %748 = vmatprep.subr.mxu0 0.0
  %749 = vmatpush2.xpose.msra.mxu0 0.0
  %750 = vmatprep.subr.mxu0 0.0
  %751 = vmatpush2.xpose.msra.mxu0 0.0
  %752 = vmatprep.subr.mxu0 0.0
  %753 = vmatpush2.xpose.msra.mxu0 0.0
  %754 = vmatprep.subr.mxu0 0.0
  %755 = vmatpush2.xpose.msra.mxu0 0.0
  %756 = vmatprep.subr.mxu0 0.0
  %757 = vmatpush2.xpose.msra.mxu0 0.0
  %758 = vmatprep.subr.mxu0 0.0
  %759 = vmatpush2.xpose.msra.mxu0 0.0
  %760 = vmatprep.subr.mxu0 0.0
  %761 = vmatpush2.xpose.msra.mxu0 0.0
  %762 = vmatprep.subr.mxu0 0.0
  %763 = vmatpush2.xpose.msra.mxu0 0.0
  %764 = vmatprep.subr.mxu0 0.0
  %765 = vmatpush2.xpose.msra.mxu0 0.0
  %766 = vmatprep.subr.mxu0 0.0
  %767 = vmatpush2.xpose.msra.mxu0 0.0
  %768 = vmatprep.mubr.f32.mxu0 0.0
  %769 = vmatmul.mubr.f32.gmra.mxu0 %v693
  %v770 = vpop.f32.mrf.mxu0
  %v771 = vadd.f32 0.0, %v770
  %v772 = vpop.f32.mrf.mxu0
  %773 = vmatprep.mubr.f32.mxu0 0.0
  %774 = vmatmul.mubr.f32.gmra.mxu0 %v696
  %v775 = vpop.f32.mrf.mxu0
  %v776 = vadd.f32 0.0, %v775
  %v777 = vpop.f32.mrf.mxu0
  %778 = vdwg.mxu0
  %v780 = vsel %vm256, %v76, 0
  %v783 = vsel %vm256, %v77, 0
  %v786 = vsel %vm256, %v140, 0
  %v789 = vsel %vm256, %v141, 0
  %791 = vmatprep.subr.mxu0 0.0
  %792 = vmatpush1.xpose.msra.mxu0 0.0
  %793 = vmatprep.subr.mxu0 0.0
  %794 = vmatpush1.xpose.msra.mxu0 0.0
  %795 = vmatprep.subr.mxu0 0.0
  %796 = vmatpush1.xpose.msra.mxu0 0.0
  %797 = vmatprep.subr.mxu0 0.0
  %798 = vmatpush1.xpose.msra.mxu0 0.0
  %799 = vmatprep.subr.mxu0 0.0
  %800 = vmatpush1.xpose.msra.mxu0 0.0
  %801 = vmatprep.subr.mxu0 0.0
  %802 = vmatpush1.xpose.msra.mxu0 0.0
  %803 = vmatprep.subr.mxu0 0.0
  %804 = vmatpush1.xpose.msra.mxu0 0.0
  %805 = vmatprep.subr.mxu0 0.0
  %806 = vmatpush1.xpose.msra.mxu0 0.0
  %807 = vmatprep.subr.mxu0 0.0
  %808 = vmatpush1.xpose.msra.mxu0 0.0
  %809 = vmatprep.subr.mxu0 0.0
  %810 = vmatpush1.xpose.msra.mxu0 0.0
  %811 = vmatprep.subr.mxu0 0.0
  %812 = vmatpush1.xpose.msra.mxu0 0.0
  %813 = vmatprep.subr.mxu0 0.0
  %814 = vmatpush1.xpose.msra.mxu0 0.0
  %815 = vmatprep.subr.mxu0 0.0
  %816 = vmatpush1.xpose.msra.mxu0 0.0
  %817 = vmatprep.subr.mxu0 0.0
  %818 = vmatpush1.xpose.msra.mxu0 0.0
  %819 = vmatprep.subr.mxu0 0.0
  %820 = vmatpush1.xpose.msra.mxu0 %v789
  %821 = vmatprep.subr.mxu0 0.0
  %822 = vmatpush1.xpose.msra.mxu0 %v786
  %823 = vmatprep.subr.mxu0 0.0
  %824 = vmatpush2.xpose.msra.mxu0 0.0
  %825 = vmatprep.subr.mxu0 0.0
  %826 = vmatpush2.xpose.msra.mxu0 0.0
  %827 = vmatprep.subr.mxu0 0.0
  %828 = vmatpush2.xpose.msra.mxu0 0.0
  %829 = vmatprep.subr.mxu0 0.0
  %830 = vmatpush2.xpose.msra.mxu0 0.0
  %831 = vmatprep.subr.mxu0 0.0
  %832 = vmatpush2.xpose.msra.mxu0 0.0
  %833 = vmatprep.subr.mxu0 0.0
  %834 = vmatpush2.xpose.msra.mxu0 0.0
  %835 = vmatprep.subr.mxu0 0.0
  %836 = vmatpush2.xpose.msra.mxu0 0.0
  %837 = vmatprep.subr.mxu0 0.0
  %838 = vmatpush2.xpose.msra.mxu0 0.0
  %839 = vmatprep.subr.mxu0 0.0
  %840 = vmatpush2.xpose.msra.mxu0 0.0
  %841 = vmatprep.subr.mxu0 0.0
  %842 = vmatpush2.xpose.msra.mxu0 0.0
  %843 = vmatprep.subr.mxu0 0.0
  %844 = vmatpush2.xpose.msra.mxu0 0.0
  %845 = vmatprep.subr.mxu0 0.0
  %846 = vmatpush2.xpose.msra.mxu0 0.0
  %847 = vmatprep.subr.mxu0 0.0
  %848 = vmatpush2.xpose.msra.mxu0 0.0
  %849 = vmatprep.subr.mxu0 0.0
  %850 = vmatpush2.xpose.msra.mxu0 0.0
  %851 = vmatprep.subr.mxu0 0.0
  %852 = vmatpush2.xpose.msra.mxu0 0.0
  %853 = vmatprep.subr.mxu0 0.0
  %854 = vmatpush2.xpose.msra.mxu0 0.0
  %855 = vmatprep.mubr.f32.mxu0 0.0
  %856 = vmatmul.mubr.f32.gmra.mxu0 %v780
  %v857 = vpop.f32.mrf.mxu0
  %v858 = vadd.f32 0.0, %v857
  %v859 = vpop.f32.mrf.mxu0
  %860 = vmatprep.mubr.f32.mxu0 0.0
  %861 = vmatmul.mubr.f32.gmra.mxu0 %v783
  %v862 = vpop.f32.mrf.mxu0
  %v863 = vadd.f32 0.0, %v862
  %v864 = vpop.f32.mrf.mxu0
  %865 = vdwg.mxu0
  %v867 = vsel %vm256, %v78, 0
  %v870 = vsel %vm256, %v79, 0
  %v873 = vsel %vm256, %v142, 0
  %v876 = vsel %vm256, %v143, 0
  %878 = vmatprep.subr.mxu0 0.0
  %879 = vmatpush1.xpose.msra.mxu0 0.0
  %880 = vmatprep.subr.mxu0 0.0
  %881 = vmatpush1.xpose.msra.mxu0 0.0
  %882 = vmatprep.subr.mxu0 0.0
  %883 = vmatpush1.xpose.msra.mxu0 0.0
  %884 = vmatprep.subr.mxu0 0.0
  %885 = vmatpush1.xpose.msra.mxu0 0.0
  %886 = vmatprep.subr.mxu0 0.0
  %887 = vmatpush1.xpose.msra.mxu0 0.0
  %888 = vmatprep.subr.mxu0 0.0
  %889 = vmatpush1.xpose.msra.mxu0 0.0
  %890 = vmatprep.subr.mxu0 0.0
  %891 = vmatpush1.xpose.msra.mxu0 0.0
  %892 = vmatprep.subr.mxu0 0.0
  %893 = vmatpush1.xpose.msra.mxu0 0.0
  %894 = vmatprep.subr.mxu0 0.0
  %895 = vmatpush1.xpose.msra.mxu0 0.0
  %896 = vmatprep.subr.mxu0 0.0
  %897 = vmatpush1.xpose.msra.mxu0 0.0
  %898 = vmatprep.subr.mxu0 0.0
  %899 = vmatpush1.xpose.msra.mxu0 0.0
  %900 = vmatprep.subr.mxu0 0.0
  %901 = vmatpush1.xpose.msra.mxu0 0.0
  %902 = vmatprep.subr.mxu0 0.0
  %903 = vmatpush1.xpose.msra.mxu0 0.0
  %904 = vmatprep.subr.mxu0 0.0
  %905 = vmatpush1.xpose.msra.mxu0 0.0
  %906 = vmatprep.subr.mxu0 0.0
  %907 = vmatpush1.xpose.msra.mxu0 %v876
  %908 = vmatprep.subr.mxu0 0.0
  %909 = vmatpush1.xpose.msra.mxu0 %v873
  %910 = vmatprep.subr.mxu0 0.0
  %911 = vmatpush2.xpose.msra.mxu0 0.0
  %912 = vmatprep.subr.mxu0 0.0
  %913 = vmatpush2.xpose.msra.mxu0 0.0
  %914 = vmatprep.subr.mxu0 0.0
  %915 = vmatpush2.xpose.msra.mxu0 0.0
  %916 = vmatprep.subr.mxu0 0.0
  %917 = vmatpush2.xpose.msra.mxu0 0.0
  %918 = vmatprep.subr.mxu0 0.0
  %919 = vmatpush2.xpose.msra.mxu0 0.0
  %920 = vmatprep.subr.mxu0 0.0
  %921 = vmatpush2.xpose.msra.mxu0 0.0
  %922 = vmatprep.subr.mxu0 0.0
  %923 = vmatpush2.xpose.msra.mxu0 0.0
  %924 = vmatprep.subr.mxu0 0.0
  %925 = vmatpush2.xpose.msra.mxu0 0.0
  %926 = vmatprep.subr.mxu0 0.0
  %927 = vmatpush2.xpose.msra.mxu0 0.0
  %928 = vmatprep.subr.mxu0 0.0
  %929 = vmatpush2.xpose.msra.mxu0 0.0
  %930 = vmatprep.subr.mxu0 0.0
  %931 = vmatpush2.xpose.msra.mxu0 0.0
  %932 = vmatprep.subr.mxu0 0.0
  %933 = vmatpush2.xpose.msra.mxu0 0.0
  %934 = vmatprep.subr.mxu0 0.0
  %935 = vmatpush2.xpose.msra.mxu0 0.0
  %936 = vmatprep.subr.mxu0 0.0
  %937 = vmatpush2.xpose.msra.mxu0 0.0
  %938 = vmatprep.subr.mxu0 0.0
  %939 = vmatpush2.xpose.msra.mxu0 0.0
  %940 = vmatprep.subr.mxu0 0.0
  %941 = vmatpush2.xpose.msra.mxu0 0.0
  %942 = vmatprep.mubr.f32.mxu0 0.0
  %943 = vmatmul.mubr.f32.gmra.mxu0 %v867
  %v944 = vpop.f32.mrf.mxu0
  %v945 = vadd.f32 0.0, %v944
  %v946 = vpop.f32.mrf.mxu0
  %947 = vmatprep.mubr.f32.mxu0 0.0
  %948 = vmatmul.mubr.f32.gmra.mxu0 %v870
  %v949 = vpop.f32.mrf.mxu0
  %v950 = vadd.f32 0.0, %v949
  %v951 = vpop.f32.mrf.mxu0
  %952 = vdwg.mxu0
  %v954 = vsel %vm256, %v80, 0
  %v957 = vsel %vm256, %v81, 0
  %v960 = vsel %vm256, %v144, 0
  %v963 = vsel %vm256, %v145, 0
  %965 = vmatprep.subr.mxu0 0.0
  %966 = vmatpush1.xpose.msra.mxu0 0.0
  %967 = vmatprep.subr.mxu0 0.0
  %968 = vmatpush1.xpose.msra.mxu0 0.0
  %969 = vmatprep.subr.mxu0 0.0
  %970 = vmatpush1.xpose.msra.mxu0 0.0
  %971 = vmatprep.subr.mxu0 0.0
  %972 = vmatpush1.xpose.msra.mxu0 0.0
  %973 = vmatprep.subr.mxu0 0.0
  %974 = vmatpush1.xpose.msra.mxu0 0.0
  %975 = vmatprep.subr.mxu0 0.0
  %976 = vmatpush1.xpose.msra.mxu0 0.0
  %977 = vmatprep.subr.mxu0 0.0
  %978 = vmatpush1.xpose.msra.mxu0 0.0
  %979 = vmatprep.subr.mxu0 0.0
  %980 = vmatpush1.xpose.msra.mxu0 0.0
  %981 = vmatprep.subr.mxu0 0.0
  %982 = vmatpush1.xpose.msra.mxu0 0.0
  %983 = vmatprep.subr.mxu0 0.0
  %984 = vmatpush1.xpose.msra.mxu0 0.0
  %985 = vmatprep.subr.mxu0 0.0
  %986 = vmatpush1.xpose.msra.mxu0 0.0
  %987 = vmatprep.subr.mxu0 0.0
  %988 = vmatpush1.xpose.msra.mxu0 0.0
  %989 = vmatprep.subr.mxu0 0.0
  %990 = vmatpush1.xpose.msra.mxu0 0.0
  %991 = vmatprep.subr.mxu0 0.0
  %992 = vmatpush1.xpose.msra.mxu0 0.0
  %993 = vmatprep.subr.mxu0 0.0
  %994 = vmatpush1.xpose.msra.mxu0 %v963
  %995 = vmatprep.subr.mxu0 0.0
  %996 = vmatpush1.xpose.msra.mxu0 %v960
  %997 = vmatprep.subr.mxu0 0.0
  %998 = vmatpush2.xpose.msra.mxu0 0.0
  %999 = vmatprep.subr.mxu0 0.0
  %1000 = vmatpush2.xpose.msra.mxu0 0.0
  %1001 = vmatprep.subr.mxu0 0.0
  %1002 = vmatpush2.xpose.msra.mxu0 0.0
  %1003 = vmatprep.subr.mxu0 0.0
  %1004 = vmatpush2.xpose.msra.mxu0 0.0
  %1005 = vmatprep.subr.mxu0 0.0
  %1006 = vmatpush2.xpose.msra.mxu0 0.0
  %1007 = vmatprep.subr.mxu0 0.0
  %1008 = vmatpush2.xpose.msra.mxu0 0.0
  %1009 = vmatprep.subr.mxu0 0.0
  %1010 = vmatpush2.xpose.msra.mxu0 0.0
  %1011 = vmatprep.subr.mxu0 0.0
  %1012 = vmatpush2.xpose.msra.mxu0 0.0
  %1013 = vmatprep.subr.mxu0 0.0
  %1014 = vmatpush2.xpose.msra.mxu0 0.0
  %1015 = vmatprep.subr.mxu0 0.0
  %1016 = vmatpush2.xpose.msra.mxu0 0.0
  %1017 = vmatprep.subr.mxu0 0.0
  %1018 = vmatpush2.xpose.msra.mxu0 0.0
  %1019 = vmatprep.subr.mxu0 0.0
  %1020 = vmatpush2.xpose.msra.mxu0 0.0
  %1021 = vmatprep.subr.mxu0 0.0
  %1022 = vmatpush2.xpose.msra.mxu0 0.0
  %1023 = vmatprep.subr.mxu0 0.0
  %1024 = vmatpush2.xpose.msra.mxu0 0.0
  %1025 = vmatprep.subr.mxu0 0.0
  %1026 = vmatpush2.xpose.msra.mxu0 0.0
  %1027 = vmatprep.subr.mxu0 0.0
  %1028 = vmatpush2.xpose.msra.mxu0 0.0
  %1029 = vmatprep.mubr.f32.mxu0 0.0
  %1030 = vmatmul.mubr.f32.gmra.mxu0 %v954
  %v1031 = vpop.f32.mrf.mxu0
  %v1032 = vadd.f32 0.0, %v1031
  %v1033 = vpop.f32.mrf.mxu0
  %1034 = vmatprep.mubr.f32.mxu0 0.0
  %1035 = vmatmul.mubr.f32.gmra.mxu0 %v957
  %v1036 = vpop.f32.mrf.mxu0
  %v1037 = vadd.f32 0.0, %v1036
  %v1038 = vpop.f32.mrf.mxu0
  %1039 = vdwg.mxu0
  %v1041 = vsel %vm256, %v82, 0
  %v1044 = vsel %vm256, %v83, 0
  %v1047 = vsel %vm256, %v146, 0
  %v1050 = vsel %vm256, %v147, 0
  %1052 = vmatprep.subr.mxu0 0.0
  %1053 = vmatpush1.xpose.msra.mxu0 0.0
  %1054 = vmatprep.subr.mxu0 0.0
  %1055 = vmatpush1.xpose.msra.mxu0 0.0
  %1056 = vmatprep.subr.mxu0 0.0
  %1057 = vmatpush1.xpose.msra.mxu0 0.0
  %1058 = vmatprep.subr.mxu0 0.0
  %1059 = vmatpush1.xpose.msra.mxu0 0.0
  %1060 = vmatprep.subr.mxu0 0.0
  %1061 = vmatpush1.xpose.msra.mxu0 0.0
  %1062 = vmatprep.subr.mxu0 0.0
  %1063 = vmatpush1.xpose.msra.mxu0 0.0
  %1064 = vmatprep.subr.mxu0 0.0
  %1065 = vmatpush1.xpose.msra.mxu0 0.0
  %1066 = vmatprep.subr.mxu0 0.0
  %1067 = vmatpush1.xpose.msra.mxu0 0.0
  %1068 = vmatprep.subr.mxu0 0.0
  %1069 = vmatpush1.xpose.msra.mxu0 0.0
  %1070 = vmatprep.subr.mxu0 0.0
  %1071 = vmatpush1.xpose.msra.mxu0 0.0
  %1072 = vmatprep.subr.mxu0 0.0
  %1073 = vmatpush1.xpose.msra.mxu0 0.0
  %1074 = vmatprep.subr.mxu0 0.0
  %1075 = vmatpush1.xpose.msra.mxu0 0.0
  %1076 = vmatprep.subr.mxu0 0.0
  %1077 = vmatpush1.xpose.msra.mxu0 0.0
  %1078 = vmatprep.subr.mxu0 0.0
  %1079 = vmatpush1.xpose.msra.mxu0 0.0
  %1080 = vmatprep.subr.mxu0 0.0
  %1081 = vmatpush1.xpose.msra.mxu0 %v1050
  %1082 = vmatprep.subr.mxu0 0.0
  %1083 = vmatpush1.xpose.msra.mxu0 %v1047
  %1084 = vmatprep.subr.mxu0 0.0
  %1085 = vmatpush2.xpose.msra.mxu0 0.0
  %1086 = vmatprep.subr.mxu0 0.0
  %1087 = vmatpush2.xpose.msra.mxu0 0.0
  %1088 = vmatprep.subr.mxu0 0.0
  %1089 = vmatpush2.xpose.msra.mxu0 0.0
  %1090 = vmatprep.subr.mxu0 0.0
  %1091 = vmatpush2.xpose.msra.mxu0 0.0
  %1092 = vmatprep.subr.mxu0 0.0
  %1093 = vmatpush2.xpose.msra.mxu0 0.0
  %1094 = vmatprep.subr.mxu0 0.0
  %1095 = vmatpush2.xpose.msra.mxu0 0.0
  %1096 = vmatprep.subr.mxu0 0.0
  %1097 = vmatpush2.xpose.msra.mxu0 0.0
  %1098 = vmatprep.subr.mxu0 0.0
  %1099 = vmatpush2.xpose.msra.mxu0 0.0
  %1100 = vmatprep.subr.mxu0 0.0
  %1101 = vmatpush2.xpose.msra.mxu0 0.0
  %1102 = vmatprep.subr.mxu0 0.0
  %1103 = vmatpush2.xpose.msra.mxu0 0.0
  %1104 = vmatprep.subr.mxu0 0.0
  %1105 = vmatpush2.xpose.msra.mxu0 0.0
  %1106 = vmatprep.subr.mxu0 0.0
  %1107 = vmatpush2.xpose.msra.mxu0 0.0
  %1108 = vmatprep.subr.mxu0 0.0
  %1109 = vmatpush2.xpose.msra.mxu0 0.0
  %1110 = vmatprep.subr.mxu0 0.0
  %1111 = vmatpush2.xpose.msra.mxu0 0.0
  %1112 = vmatprep.subr.mxu0 0.0
  %1113 = vmatpush2.xpose.msra.mxu0 0.0
  %1114 = vmatprep.subr.mxu0 0.0
  %1115 = vmatpush2.xpose.msra.mxu0 0.0
  %1116 = vmatprep.mubr.f32.mxu0 0.0
  %1117 = vmatmul.mubr.f32.gmra.mxu0 %v1041
  %v1118 = vpop.f32.mrf.mxu0
  %v1119 = vadd.f32 0.0, %v1118
  %v1120 = vpop.f32.mrf.mxu0
  %1121 = vmatprep.mubr.f32.mxu0 0.0
  %1122 = vmatmul.mubr.f32.gmra.mxu0 %v1044
  %v1123 = vpop.f32.mrf.mxu0
  %v1124 = vadd.f32 0.0, %v1123
  %v1125 = vpop.f32.mrf.mxu0
  %1126 = vdwg.mxu0
  %v1128 = vsel %vm256, %v84, 0
  %v1131 = vsel %vm256, %v85, 0
  %v1134 = vsel %vm256, %v148, 0
  %v1137 = vsel %vm256, %v149, 0
  %1139 = vmatprep.subr.mxu0 0.0
  %1140 = vmatpush1.xpose.msra.mxu0 0.0
  %1141 = vmatprep.subr.mxu0 0.0
  %1142 = vmatpush1.xpose.msra.mxu0 0.0
  %1143 = vmatprep.subr.mxu0 0.0
  %1144 = vmatpush1.xpose.msra.mxu0 0.0
  %1145 = vmatprep.subr.mxu0 0.0
  %1146 = vmatpush1.xpose.msra.mxu0 0.0
  %1147 = vmatprep.subr.mxu0 0.0
  %1148 = vmatpush1.xpose.msra.mxu0 0.0
  %1149 = vmatprep.subr.mxu0 0.0
  %1150 = vmatpush1.xpose.msra.mxu0 0.0
  %1151 = vmatprep.subr.mxu0 0.0
  %1152 = vmatpush1.xpose.msra.mxu0 0.0
  %1153 = vmatprep.subr.mxu0 0.0
  %1154 = vmatpush1.xpose.msra.mxu0 0.0
  %1155 = vmatprep.subr.mxu0 0.0
  %1156 = vmatpush1.xpose.msra.mxu0 0.0
  %1157 = vmatprep.subr.mxu0 0.0
  %1158 = vmatpush1.xpose.msra.mxu0 0.0
  %1159 = vmatprep.subr.mxu0 0.0
  %1160 = vmatpush1.xpose.msra.mxu0 0.0
  %1161 = vmatprep.subr.mxu0 0.0
  %1162 = vmatpush1.xpose.msra.mxu0 0.0
  %1163 = vmatprep.subr.mxu0 0.0
  %1164 = vmatpush1.xpose.msra.mxu0 0.0
  %1165 = vmatprep.subr.mxu0 0.0
  %1166 = vmatpush1.xpose.msra.mxu0 0.0
  %1167 = vmatprep.subr.mxu0 0.0
  %1168 = vmatpush1.xpose.msra.mxu0 %v1137
  %1169 = vmatprep.subr.mxu0 0.0
  %1170 = vmatpush1.xpose.msra.mxu0 %v1134
  %1171 = vmatprep.subr.mxu0 0.0
  %1172 = vmatpush2.xpose.msra.mxu0 0.0
  %1173 = vmatprep.subr.mxu0 0.0
  %1174 = vmatpush2.xpose.msra.mxu0 0.0
  %1175 = vmatprep.subr.mxu0 0.0
  %1176 = vmatpush2.xpose.msra.mxu0 0.0
  %1177 = vmatprep.subr.mxu0 0.0
  %1178 = vmatpush2.xpose.msra.mxu0 0.0
  %1179 = vmatprep.subr.mxu0 0.0
  %1180 = vmatpush2.xpose.msra.mxu0 0.0
  %1181 = vmatprep.subr.mxu0 0.0
  %1182 = vmatpush2.xpose.msra.mxu0 0.0
  %1183 = vmatprep.subr.mxu0 0.0
  %1184 = vmatpush2.xpose.msra.mxu0 0.0
  %1185 = vmatprep.subr.mxu0 0.0
  %1186 = vmatpush2.xpose.msra.mxu0 0.0
  %1187 = vmatprep.subr.mxu0 0.0
  %1188 = vmatpush2.xpose.msra.mxu0 0.0
  %1189 = vmatprep.subr.mxu0 0.0
  %1190 = vmatpush2.xpose.msra.mxu0 0.0
  %1191 = vmatprep.subr.mxu0 0.0
  %1192 = vmatpush2.xpose.msra.mxu0 0.0
  %1193 = vmatprep.subr.mxu0 0.0
  %1194 = vmatpush2.xpose.msra.mxu0 0.0
  %1195 = vmatprep.subr.mxu0 0.0
  %1196 = vmatpush2.xpose.msra.mxu0 0.0
  %1197 = vmatprep.subr.mxu0 0.0
  %1198 = vmatpush2.xpose.msra.mxu0 0.0
  %1199 = vmatprep.subr.mxu0 0.0
  %1200 = vmatpush2.xpose.msra.mxu0 0.0
  %1201 = vmatprep.subr.mxu0 0.0
  %1202 = vmatpush2.xpose.msra.mxu0 0.0
  %1203 = vmatprep.mubr.f32.mxu0 0.0
  %1204 = vmatmul.mubr.f32.gmra.mxu0 %v1128
  %v1205 = vpop.f32.mrf.mxu0
  %v1206 = vadd.f32 0.0, %v1205
  %v1207 = vpop.f32.mrf.mxu0
  %1208 = vmatprep.mubr.f32.mxu0 0.0
  %1209 = vmatmul.mubr.f32.gmra.mxu0 %v1131
  %v1210 = vpop.f32.mrf.mxu0
  %v1211 = vadd.f32 0.0, %v1210
  %v1212 = vpop.f32.mrf.mxu0
  %1213 = vdwg.mxu0
  %v1215 = vsel %vm256, %v86, 0
  %v1218 = vsel %vm256, %v87, 0
  %v1221 = vsel %vm256, %v150, 0
  %v1224 = vsel %vm256, %v151, 0
  %1226 = vmatprep.subr.mxu0 0.0
  %1227 = vmatpush1.xpose.msra.mxu0 0.0
  %1228 = vmatprep.subr.mxu0 0.0
  %1229 = vmatpush1.xpose.msra.mxu0 0.0
  %1230 = vmatprep.subr.mxu0 0.0
  %1231 = vmatpush1.xpose.msra.mxu0 0.0
  %1232 = vmatprep.subr.mxu0 0.0
  %1233 = vmatpush1.xpose.msra.mxu0 0.0
  %1234 = vmatprep.subr.mxu0 0.0
  %1235 = vmatpush1.xpose.msra.mxu0 0.0
  %1236 = vmatprep.subr.mxu0 0.0
  %1237 = vmatpush1.xpose.msra.mxu0 0.0
  %1238 = vmatprep.subr.mxu0 0.0
  %1239 = vmatpush1.xpose.msra.mxu0 0.0
  %1240 = vmatprep.subr.mxu0 0.0
  %1241 = vmatpush1.xpose.msra.mxu0 0.0
  %1242 = vmatprep.subr.mxu0 0.0
  %1243 = vmatpush1.xpose.msra.mxu0 0.0
  %1244 = vmatprep.subr.mxu0 0.0
  %1245 = vmatpush1.xpose.msra.mxu0 0.0
  %1246 = vmatprep.subr.mxu0 0.0
  %1247 = vmatpush1.xpose.msra.mxu0 0.0
  %1248 = vmatprep.subr.mxu0 0.0
  %1249 = vmatpush1.xpose.msra.mxu0 0.0
  %1250 = vmatprep.subr.mxu0 0.0
  %1251 = vmatpush1.xpose.msra.mxu0 0.0
  %1252 = vmatprep.subr.mxu0 0.0
  %1253 = vmatpush1.xpose.msra.mxu0 0.0
  %1254 = vmatprep.subr.mxu0 0.0
  %1255 = vmatpush1.xpose.msra.mxu0 %v1224
  %1256 = vmatprep.subr.mxu0 0.0
  %1257 = vmatpush1.xpose.msra.mxu0 %v1221
  %1258 = vmatprep.subr.mxu0 0.0
  %1259 = vmatpush2.xpose.msra.mxu0 0.0
  %1260 = vmatprep.subr.mxu0 0.0
  %1261 = vmatpush2.xpose.msra.mxu0 0.0
  %1262 = vmatprep.subr.mxu0 0.0
  %1263 = vmatpush2.xpose.msra.mxu0 0.0
  %1264 = vmatprep.subr.mxu0 0.0
  %1265 = vmatpush2.xpose.msra.mxu0 0.0
  %1266 = vmatprep.subr.mxu0 0.0
  %1267 = vmatpush2.xpose.msra.mxu0 0.0
  %1268 = vmatprep.subr.mxu0 0.0
  %1269 = vmatpush2.xpose.msra.mxu0 0.0
  %1270 = vmatprep.subr.mxu0 0.0
  %1271 = vmatpush2.xpose.msra.mxu0 0.0
  %1272 = vmatprep.subr.mxu0 0.0
  %1273 = vmatpush2.xpose.msra.mxu0 0.0
  %1274 = vmatprep.subr.mxu0 0.0
  %1275 = vmatpush2.xpose.msra.mxu0 0.0
  %1276 = vmatprep.subr.mxu0 0.0
  %1277 = vmatpush2.xpose.msra.mxu0 0.0
  %1278 = vmatprep.subr.mxu0 0.0
  %1279 = vmatpush2.xpose.msra.mxu0 0.0
  %1280 = vmatprep.subr.mxu0 0.0
  %1281 = vmatpush2.xpose.msra.mxu0 0.0
  %1282 = vmatprep.subr.mxu0 0.0
  %1283 = vmatpush2.xpose.msra.mxu0 0.0
  %1284 = vmatprep.subr.mxu0 0.0
  %1285 = vmatpush2.xpose.msra.mxu0 0.0
  %1286 = vmatprep.subr.mxu0 0.0
  %1287 = vmatpush2.xpose.msra.mxu0 0.0
  %1288 = vmatprep.subr.mxu0 0.0
  %1289 = vmatpush2.xpose.msra.mxu0 0.0
  %1290 = vmatprep.mubr.f32.mxu0 0.0
  %1291 = vmatmul.mubr.f32.gmra.mxu0 %v1215
  %v1292 = vpop.f32.mrf.mxu0
  %v1293 = vadd.f32 0.0, %v1292
  %v1294 = vpop.f32.mrf.mxu0
  %1295 = vmatprep.mubr.f32.mxu0 0.0
  %1296 = vmatmul.mubr.f32.gmra.mxu0 %v1218
  %v1297 = vpop.f32.mrf.mxu0
  %v1298 = vadd.f32 0.0, %v1297
  %v1299 = vpop.f32.mrf.mxu0
  %1300 = vdwg.mxu0
  %v1302 = vsel %vm256, %v88, 0
  %v1305 = vsel %vm256, %v89, 0
  %v1308 = vsel %vm256, %v152, 0
  %v1311 = vsel %vm256, %v153, 0
  %1313 = vmatprep.subr.mxu0 0.0
  %1314 = vmatpush1.xpose.msra.mxu0 0.0
  %1315 = vmatprep.subr.mxu0 0.0
  %1316 = vmatpush1.xpose.msra.mxu0 0.0
  %1317 = vmatprep.subr.mxu0 0.0
  %1318 = vmatpush1.xpose.msra.mxu0 0.0
  %1319 = vmatprep.subr.mxu0 0.0
  %1320 = vmatpush1.xpose.msra.mxu0 0.0
  %1321 = vmatprep.subr.mxu0 0.0
  %1322 = vmatpush1.xpose.msra.mxu0 0.0
  %1323 = vmatprep.subr.mxu0 0.0
  %1324 = vmatpush1.xpose.msra.mxu0 0.0
  %1325 = vmatprep.subr.mxu0 0.0
  %1326 = vmatpush1.xpose.msra.mxu0 0.0
  %1327 = vmatprep.subr.mxu0 0.0
  %1328 = vmatpush1.xpose.msra.mxu0 0.0
  %1329 = vmatprep.subr.mxu0 0.0
  %1330 = vmatpush1.xpose.msra.mxu0 0.0
  %1331 = vmatprep.subr.mxu0 0.0
  %1332 = vmatpush1.xpose.msra.mxu0 0.0
  %1333 = vmatprep.subr.mxu0 0.0
  %1334 = vmatpush1.xpose.msra.mxu0 0.0
  %1335 = vmatprep.subr.mxu0 0.0
  %1336 = vmatpush1.xpose.msra.mxu0 0.0
  %1337 = vmatprep.subr.mxu0 0.0
  %1338 = vmatpush1.xpose.msra.mxu0 0.0
  %1339 = vmatprep.subr.mxu0 0.0
  %1340 = vmatpush1.xpose.msra.mxu0 0.0
  %1341 = vmatprep.subr.mxu0 0.0
  %1342 = vmatpush1.xpose.msra.mxu0 %v1311
  %1343 = vmatprep.subr.mxu0 0.0
  %1344 = vmatpush1.xpose.msra.mxu0 %v1308
  %1345 = vmatprep.subr.mxu0 0.0
  %1346 = vmatpush2.xpose.msra.mxu0 0.0
  %1347 = vmatprep.subr.mxu0 0.0
  %1348 = vmatpush2.xpose.msra.mxu0 0.0
  %1349 = vmatprep.subr.mxu0 0.0
  %1350 = vmatpush2.xpose.msra.mxu0 0.0
  %1351 = vmatprep.subr.mxu0 0.0
  %1352 = vmatpush2.xpose.msra.mxu0 0.0
  %1353 = vmatprep.subr.mxu0 0.0
  %1354 = vmatpush2.xpose.msra.mxu0 0.0
  %1355 = vmatprep.subr.mxu0 0.0
  %1356 = vmatpush2.xpose.msra.mxu0 0.0
  %1357 = vmatprep.subr.mxu0 0.0
  %1358 = vmatpush2.xpose.msra.mxu0 0.0
  %1359 = vmatprep.subr.mxu0 0.0
  %1360 = vmatpush2.xpose.msra.mxu0 0.0
  %1361 = vmatprep.subr.mxu0 0.0
  %1362 = vmatpush2.xpose.msra.mxu0 0.0
  %1363 = vmatprep.subr.mxu0 0.0
  %1364 = vmatpush2.xpose.msra.mxu0 0.0
  %1365 = vmatprep.subr.mxu0 0.0
  %1366 = vmatpush2.xpose.msra.mxu0 0.0
  %1367 = vmatprep.subr.mxu0 0.0
  %1368 = vmatpush2.xpose.msra.mxu0 0.0
  %1369 = vmatprep.subr.mxu0 0.0
  %1370 = vmatpush2.xpose.msra.mxu0 0.0
  %1371 = vmatprep.subr.mxu0 0.0
  %1372 = vmatpush2.xpose.msra.mxu0 0.0
  %1373 = vmatprep.subr.mxu0 0.0
  %1374 = vmatpush2.xpose.msra.mxu0 0.0
  %1375 = vmatprep.subr.mxu0 0.0
  %1376 = vmatpush2.xpose.msra.mxu0 0.0
  %1377 = vmatprep.mubr.f32.mxu0 0.0
  %1378 = vmatmul.mubr.f32.gmra.mxu0 %v1302
  %v1379 = vpop.f32.mrf.mxu0
  %v1380 = vadd.f32 0.0, %v1379
  %v1381 = vpop.f32.mrf.mxu0
  %1382 = vmatprep.mubr.f32.mxu0 0.0
  %1383 = vmatmul.mubr.f32.gmra.mxu0 %v1305
  %v1384 = vpop.f32.mrf.mxu0
  %v1385 = vadd.f32 0.0, %v1384
  %v1386 = vpop.f32.mrf.mxu0
  %1387 = vdwg.mxu0
  %v1389 = vsel %vm256, %v90, 0
  %v1392 = vsel %vm256, %v91, 0
  %v1395 = vsel %vm256, %v154, 0
  %v1398 = vsel %vm256, %v155, 0
  %1400 = vmatprep.subr.mxu0 0.0
  %1401 = vmatpush1.xpose.msra.mxu0 0.0
  %1402 = vmatprep.subr.mxu0 0.0
  %1403 = vmatpush1.xpose.msra.mxu0 0.0
  %1404 = vmatprep.subr.mxu0 0.0
  %1405 = vmatpush1.xpose.msra.mxu0 0.0
  %1406 = vmatprep.subr.mxu0 0.0
  %1407 = vmatpush1.xpose.msra.mxu0 0.0
  %1408 = vmatprep.subr.mxu0 0.0
  %1409 = vmatpush1.xpose.msra.mxu0 0.0
  %1410 = vmatprep.subr.mxu0 0.0
  %1411 = vmatpush1.xpose.msra.mxu0 0.0
  %1412 = vmatprep.subr.mxu0 0.0
  %1413 = vmatpush1.xpose.msra.mxu0 0.0
  %1414 = vmatprep.subr.mxu0 0.0
  %1415 = vmatpush1.xpose.msra.mxu0 0.0
  %1416 = vmatprep.subr.mxu0 0.0
  %1417 = vmatpush1.xpose.msra.mxu0 0.0
  %1418 = vmatprep.subr.mxu0 0.0
  %1419 = vmatpush1.xpose.msra.mxu0 0.0
  %1420 = vmatprep.subr.mxu0 0.0
  %1421 = vmatpush1.xpose.msra.mxu0 0.0
  %1422 = vmatprep.subr.mxu0 0.0
  %1423 = vmatpush1.xpose.msra.mxu0 0.0
  %1424 = vmatprep.subr.mxu0 0.0
  %1425 = vmatpush1.xpose.msra.mxu0 0.0
  %1426 = vmatprep.subr.mxu0 0.0
  %1427 = vmatpush1.xpose.msra.mxu0 0.0
  %1428 = vmatprep.subr.mxu0 0.0
  %1429 = vmatpush1.xpose.msra.mxu0 %v1398
  %1430 = vmatprep.subr.mxu0 0.0
  %1431 = vmatpush1.xpose.msra.mxu0 %v1395
  %1432 = vmatprep.subr.mxu0 0.0
  %1433 = vmatpush2.xpose.msra.mxu0 0.0
  %1434 = vmatprep.subr.mxu0 0.0
  %1435 = vmatpush2.xpose.msra.mxu0 0.0
  %1436 = vmatprep.subr.mxu0 0.0
  %1437 = vmatpush2.xpose.msra.mxu0 0.0
  %1438 = vmatprep.subr.mxu0 0.0
  %1439 = vmatpush2.xpose.msra.mxu0 0.0
  %1440 = vmatprep.subr.mxu0 0.0
  %1441 = vmatpush2.xpose.msra.mxu0 0.0
  %1442 = vmatprep.subr.mxu0 0.0
  %1443 = vmatpush2.xpose.msra.mxu0 0.0
  %1444 = vmatprep.subr.mxu0 0.0
  %1445 = vmatpush2.xpose.msra.mxu0 0.0
  %1446 = vmatprep.subr.mxu0 0.0
  %1447 = vmatpush2.xpose.msra.mxu0 0.0
  %1448 = vmatprep.subr.mxu0 0.0
  %1449 = vmatpush2.xpose.msra.mxu0 0.0
  %1450 = vmatprep.subr.mxu0 0.0
  %1451 = vmatpush2.xpose.msra.mxu0 0.0
  %1452 = vmatprep.subr.mxu0 0.0
  %1453 = vmatpush2.xpose.msra.mxu0 0.0
  %1454 = vmatprep.subr.mxu0 0.0
  %1455 = vmatpush2.xpose.msra.mxu0 0.0
  %1456 = vmatprep.subr.mxu0 0.0
  %1457 = vmatpush2.xpose.msra.mxu0 0.0
  %1458 = vmatprep.subr.mxu0 0.0
  %1459 = vmatpush2.xpose.msra.mxu0 0.0
  %1460 = vmatprep.subr.mxu0 0.0
  %1461 = vmatpush2.xpose.msra.mxu0 0.0
  %1462 = vmatprep.subr.mxu0 0.0
  %1463 = vmatpush2.xpose.msra.mxu0 0.0
  %1464 = vmatprep.mubr.f32.mxu0 0.0
  %1465 = vmatmul.mubr.f32.gmra.mxu0 %v1389
  %v1466 = vpop.f32.mrf.mxu0
  %v1467 = vadd.f32 0.0, %v1466
  %v1468 = vpop.f32.mrf.mxu0
  %1469 = vmatprep.mubr.f32.mxu0 0.0
  %1470 = vmatmul.mubr.f32.gmra.mxu0 %v1392
  %v1471 = vpop.f32.mrf.mxu0
  %v1472 = vadd.f32 0.0, %v1471
  %v1473 = vpop.f32.mrf.mxu0
  %1474 = vdwg.mxu0
  %v1476 = vsel %vm256, %v92, 0
  %v1479 = vsel %vm256, %v93, 0
  %v1482 = vsel %vm256, %v156, 0
  %v1485 = vsel %vm256, %v157, 0
  %1487 = vmatprep.subr.mxu0 0.0
  %1488 = vmatpush1.xpose.msra.mxu0 0.0
  %1489 = vmatprep.subr.mxu0 0.0
  %1490 = vmatpush1.xpose.msra.mxu0 0.0
  %1491 = vmatprep.subr.mxu0 0.0
  %1492 = vmatpush1.xpose.msra.mxu0 0.0
  %1493 = vmatprep.subr.mxu0 0.0
  %1494 = vmatpush1.xpose.msra.mxu0 0.0
  %1495 = vmatprep.subr.mxu0 0.0
  %1496 = vmatpush1.xpose.msra.mxu0 0.0
  %1497 = vmatprep.subr.mxu0 0.0
  %1498 = vmatpush1.xpose.msra.mxu0 0.0
  %1499 = vmatprep.subr.mxu0 0.0
  %1500 = vmatpush1.xpose.msra.mxu0 0.0
  %1501 = vmatprep.subr.mxu0 0.0
  %1502 = vmatpush1.xpose.msra.mxu0 0.0
  %1503 = vmatprep.subr.mxu0 0.0
  %1504 = vmatpush1.xpose.msra.mxu0 0.0
  %1505 = vmatprep.subr.mxu0 0.0
  %1506 = vmatpush1.xpose.msra.mxu0 0.0
  %1507 = vmatprep.subr.mxu0 0.0
  %1508 = vmatpush1.xpose.msra.mxu0 0.0
  %1509 = vmatprep.subr.mxu0 0.0
  %1510 = vmatpush1.xpose.msra.mxu0 0.0
  %1511 = vmatprep.subr.mxu0 0.0
  %1512 = vmatpush1.xpose.msra.mxu0 0.0
  %1513 = vmatprep.subr.mxu0 0.0
  %1514 = vmatpush1.xpose.msra.mxu0 0.0
  %1515 = vmatprep.subr.mxu0 0.0
  %1516 = vmatpush1.xpose.msra.mxu0 %v1485
  %1517 = vmatprep.subr.mxu0 0.0
  %1518 = vmatpush1.xpose.msra.mxu0 %v1482
  %1519 = vmatprep.subr.mxu0 0.0
  %1520 = vmatpush2.xpose.msra.mxu0 0.0
  %1521 = vmatprep.subr.mxu0 0.0
  %1522 = vmatpush2.xpose.msra.mxu0 0.0
  %1523 = vmatprep.subr.mxu0 0.0
  %1524 = vmatpush2.xpose.msra.mxu0 0.0
  %1525 = vmatprep.subr.mxu0 0.0
  %1526 = vmatpush2.xpose.msra.mxu0 0.0
  %1527 = vmatprep.subr.mxu0 0.0
  %1528 = vmatpush2.xpose.msra.mxu0 0.0
  %1529 = vmatprep.subr.mxu0 0.0
  %1530 = vmatpush2.xpose.msra.mxu0 0.0
  %1531 = vmatprep.subr.mxu0 0.0
  %1532 = vmatpush2.xpose.msra.mxu0 0.0
  %1533 = vmatprep.subr.mxu0 0.0
  %1534 = vmatpush2.xpose.msra.mxu0 0.0
  %1535 = vmatprep.subr.mxu0 0.0
  %1536 = vmatpush2.xpose.msra.mxu0 0.0
  %1537 = vmatprep.subr.mxu0 0.0
  %1538 = vmatpush2.xpose.msra.mxu0 0.0
  %1539 = vmatprep.subr.mxu0 0.0
  %1540 = vmatpush2.xpose.msra.mxu0 0.0
  %1541 = vmatprep.subr.mxu0 0.0
  %1542 = vmatpush2.xpose.msra.mxu0 0.0
  %1543 = vmatprep.subr.mxu0 0.0
  %1544 = vmatpush2.xpose.msra.mxu0 0.0
  %1545 = vmatprep.subr.mxu0 0.0
  %1546 = vmatpush2.xpose.msra.mxu0 0.0
  %1547 = vmatprep.subr.mxu0 0.0
  %1548 = vmatpush2.xpose.msra.mxu0 0.0
  %1549 = vmatprep.subr.mxu0 0.0
  %1550 = vmatpush2.xpose.msra.mxu0 0.0
  %1551 = vmatprep.mubr.f32.mxu0 0.0
  %1552 = vmatmul.mubr.f32.gmra.mxu0 %v1476
  %v1553 = vpop.f32.mrf.mxu0
  %v1554 = vadd.f32 0.0, %v1553
  %v1555 = vpop.f32.mrf.mxu0
  %1556 = vmatprep.mubr.f32.mxu0 0.0
  %1557 = vmatmul.mubr.f32.gmra.mxu0 %v1479
  %v1558 = vpop.f32.mrf.mxu0
  %v1559 = vadd.f32 0.0, %v1558
  %v1560 = vpop.f32.mrf.mxu0
  %1561 = vdwg.mxu0
  %v1563 = vsel %vm256, %v94, 0
  %v1566 = vsel %vm256, %v95, 0
  %v1569 = vsel %vm256, %v158, 0
  %v1572 = vsel %vm256, %v159, 0
  %1574 = vmatprep.subr.mxu0 0.0
  %1575 = vmatpush1.xpose.msra.mxu0 0.0
  %1576 = vmatprep.subr.mxu0 0.0
  %1577 = vmatpush1.xpose.msra.mxu0 0.0
  %1578 = vmatprep.subr.mxu0 0.0
  %1579 = vmatpush1.xpose.msra.mxu0 0.0
  %1580 = vmatprep.subr.mxu0 0.0
  %1581 = vmatpush1.xpose.msra.mxu0 0.0
  %1582 = vmatprep.subr.mxu0 0.0
  %1583 = vmatpush1.xpose.msra.mxu0 0.0
  %1584 = vmatprep.subr.mxu0 0.0
  %1585 = vmatpush1.xpose.msra.mxu0 0.0
  %1586 = vmatprep.subr.mxu0 0.0
  %1587 = vmatpush1.xpose.msra.mxu0 0.0
  %1588 = vmatprep.subr.mxu0 0.0
  %1589 = vmatpush1.xpose.msra.mxu0 0.0
  %1590 = vmatprep.subr.mxu0 0.0
  %1591 = vmatpush1.xpose.msra.mxu0 0.0
  %1592 = vmatprep.subr.mxu0 0.0
  %1593 = vmatpush1.xpose.msra.mxu0 0.0
  %1594 = vmatprep.subr.mxu0 0.0
  %1595 = vmatpush1.xpose.msra.mxu0 0.0
  %1596 = vmatprep.subr.mxu0 0.0
  %1597 = vmatpush1.xpose.msra.mxu0 0.0
  %1598 = vmatprep.subr.mxu0 0.0
  %1599 = vmatpush1.xpose.msra.mxu0 0.0
  %1600 = vmatprep.subr.mxu0 0.0
  %1601 = vmatpush1.xpose.msra.mxu0 0.0
  %1602 = vmatprep.subr.mxu0 0.0
  %1603 = vmatpush1.xpose.msra.mxu0 %v1572
  %1604 = vmatprep.subr.mxu0 0.0
  %1605 = vmatpush1.xpose.msra.mxu0 %v1569
  %1606 = vmatprep.subr.mxu0 0.0
  %1607 = vmatpush2.xpose.msra.mxu0 0.0
  %1608 = vmatprep.subr.mxu0 0.0
  %1609 = vmatpush2.xpose.msra.mxu0 0.0
  %1610 = vmatprep.subr.mxu0 0.0
  %1611 = vmatpush2.xpose.msra.mxu0 0.0
  %1612 = vmatprep.subr.mxu0 0.0
  %1613 = vmatpush2.xpose.msra.mxu0 0.0
  %1614 = vmatprep.subr.mxu0 0.0
  %1615 = vmatpush2.xpose.msra.mxu0 0.0
  %1616 = vmatprep.subr.mxu0 0.0
  %1617 = vmatpush2.xpose.msra.mxu0 0.0
  %1618 = vmatprep.subr.mxu0 0.0
  %1619 = vmatpush2.xpose.msra.mxu0 0.0
  %1620 = vmatprep.subr.mxu0 0.0
  %1621 = vmatpush2.xpose.msra.mxu0 0.0
  %1622 = vmatprep.subr.mxu0 0.0
  %1623 = vmatpush2.xpose.msra.mxu0 0.0
  %1624 = vmatprep.subr.mxu0 0.0
  %1625 = vmatpush2.xpose.msra.mxu0 0.0
  %1626 = vmatprep.subr.mxu0 0.0
  %1627 = vmatpush2.xpose.msra.mxu0 0.0
  %1628 = vmatprep.subr.mxu0 0.0
  %1629 = vmatpush2.xpose.msra.mxu0 0.0
  %1630 = vmatprep.subr.mxu0 0.0
  %1631 = vmatpush2.xpose.msra.mxu0 0.0
  %1632 = vmatprep.subr.mxu0 0.0
  %1633 = vmatpush2.xpose.msra.mxu0 0.0
  %1634 = vmatprep.subr.mxu0 0.0
  %1635 = vmatpush2.xpose.msra.mxu0 0.0
  %1636 = vmatprep.subr.mxu0 0.0
  %1637 = vmatpush2.xpose.msra.mxu0 0.0
  %1638 = vmatprep.mubr.f32.mxu0 0.0
  %1639 = vmatmul.mubr.f32.gmra.mxu0 %v1563
  %v1640 = vpop.f32.mrf.mxu0
  %v1641 = vadd.f32 0.0, %v1640
  %v1642 = vpop.f32.mrf.mxu0
  %1643 = vmatprep.mubr.f32.mxu0 0.0
  %1644 = vmatmul.mubr.f32.gmra.mxu0 %v1566
  %v1645 = vpop.f32.mrf.mxu0
  %v1646 = vadd.f32 0.0, %v1645
  %v1647 = vpop.f32.mrf.mxu0
  %1648 = vdwg.mxu0
  %v1650 = vsel %vm256, %v96, 0
  %v1653 = vsel %vm256, %v97, 0
  %v1656 = vsel %vm256, %v160, 0
  %v1659 = vsel %vm256, %v161, 0
  %1661 = vmatprep.subr.mxu0 0.0
  %1662 = vmatpush1.xpose.msra.mxu0 0.0
  %1663 = vmatprep.subr.mxu0 0.0
  %1664 = vmatpush1.xpose.msra.mxu0 0.0
  %1665 = vmatprep.subr.mxu0 0.0
  %1666 = vmatpush1.xpose.msra.mxu0 0.0
  %1667 = vmatprep.subr.mxu0 0.0
  %1668 = vmatpush1.xpose.msra.mxu0 0.0
  %1669 = vmatprep.subr.mxu0 0.0
  %1670 = vmatpush1.xpose.msra.mxu0 0.0
  %1671 = vmatprep.subr.mxu0 0.0
  %1672 = vmatpush1.xpose.msra.mxu0 0.0
  %1673 = vmatprep.subr.mxu0 0.0
  %1674 = vmatpush1.xpose.msra.mxu0 0.0
  %1675 = vmatprep.subr.mxu0 0.0
  %1676 = vmatpush1.xpose.msra.mxu0 0.0
  %1677 = vmatprep.subr.mxu0 0.0
  %1678 = vmatpush1.xpose.msra.mxu0 0.0
  %1679 = vmatprep.subr.mxu0 0.0
  %1680 = vmatpush1.xpose.msra.mxu0 0.0
  %1681 = vmatprep.subr.mxu0 0.0
  %1682 = vmatpush1.xpose.msra.mxu0 0.0
  %1683 = vmatprep.subr.mxu0 0.0
  %1684 = vmatpush1.xpose.msra.mxu0 0.0
  %1685 = vmatprep.subr.mxu0 0.0
  %1686 = vmatpush1.xpose.msra.mxu0 0.0
  %1687 = vmatprep.subr.mxu0 0.0
  %1688 = vmatpush1.xpose.msra.mxu0 0.0
  %1689 = vmatprep.subr.mxu0 0.0
  %1690 = vmatpush1.xpose.msra.mxu0 %v1659
  %1691 = vmatprep.subr.mxu0 0.0
  %1692 = vmatpush1.xpose.msra.mxu0 %v1656
  %1693 = vmatprep.subr.mxu0 0.0
  %1694 = vmatpush2.xpose.msra.mxu0 0.0
  %1695 = vmatprep.subr.mxu0 0.0
  %1696 = vmatpush2.xpose.msra.mxu0 0.0
  %1697 = vmatprep.subr.mxu0 0.0
  %1698 = vmatpush2.xpose.msra.mxu0 0.0
  %1699 = vmatprep.subr.mxu0 0.0
  %1700 = vmatpush2.xpose.msra.mxu0 0.0
  %1701 = vmatprep.subr.mxu0 0.0
  %1702 = vmatpush2.xpose.msra.mxu0 0.0
  %1703 = vmatprep.subr.mxu0 0.0
  %1704 = vmatpush2.xpose.msra.mxu0 0.0
  %1705 = vmatprep.subr.mxu0 0.0
  %1706 = vmatpush2.xpose.msra.mxu0 0.0
  %1707 = vmatprep.subr.mxu0 0.0
  %1708 = vmatpush2.xpose.msra.mxu0 0.0
  %1709 = vmatprep.subr.mxu0 0.0
  %1710 = vmatpush2.xpose.msra.mxu0 0.0
  %1711 = vmatprep.subr.mxu0 0.0
  %1712 = vmatpush2.xpose.msra.mxu0 0.0
  %1713 = vmatprep.subr.mxu0 0.0
  %1714 = vmatpush2.xpose.msra.mxu0 0.0
  %1715 = vmatprep.subr.mxu0 0.0
  %1716 = vmatpush2.xpose.msra.mxu0 0.0
  %1717 = vmatprep.subr.mxu0 0.0
  %1718 = vmatpush2.xpose.msra.mxu0 0.0
  %1719 = vmatprep.subr.mxu0 0.0
  %1720 = vmatpush2.xpose.msra.mxu0 0.0
  %1721 = vmatprep.subr.mxu0 0.0
  %1722 = vmatpush2.xpose.msra.mxu0 0.0
  %1723 = vmatprep.subr.mxu0 0.0
  %1724 = vmatpush2.xpose.msra.mxu0 0.0
  %1725 = vmatprep.mubr.f32.mxu0 0.0
  %1726 = vmatmul.mubr.f32.gmra.mxu0 %v1650
  %v1727 = vpop.f32.mrf.mxu0
  %v1728 = vadd.f32 0.0, %v1727
  %v1729 = vpop.f32.mrf.mxu0
  %1730 = vmatprep.mubr.f32.mxu0 0.0
  %1731 = vmatmul.mubr.f32.gmra.mxu0 %v1653
  %v1732 = vpop.f32.mrf.mxu0
  %v1733 = vadd.f32 0.0, %v1732
  %v1734 = vpop.f32.mrf.mxu0
  %1735 = vdwg.mxu0
  %v1737 = vsel %vm256, %v98, 0
  %v1740 = vsel %vm256, %v99, 0
  %v1743 = vsel %vm256, %v162, 0
  %v1746 = vsel %vm256, %v163, 0
  %1748 = vmatprep.subr.mxu0 0.0
  %1749 = vmatpush1.xpose.msra.mxu0 0.0
  %1750 = vmatprep.subr.mxu0 0.0
  %1751 = vmatpush1.xpose.msra.mxu0 0.0
  %1752 = vmatprep.subr.mxu0 0.0
  %1753 = vmatpush1.xpose.msra.mxu0 0.0
  %1754 = vmatprep.subr.mxu0 0.0
  %1755 = vmatpush1.xpose.msra.mxu0 0.0
  %1756 = vmatprep.subr.mxu0 0.0
  %1757 = vmatpush1.xpose.msra.mxu0 0.0
  %1758 = vmatprep.subr.mxu0 0.0
  %1759 = vmatpush1.xpose.msra.mxu0 0.0
  %1760 = vmatprep.subr.mxu0 0.0
  %1761 = vmatpush1.xpose.msra.mxu0 0.0
  %1762 = vmatprep.subr.mxu0 0.0
  %1763 = vmatpush1.xpose.msra.mxu0 0.0
  %1764 = vmatprep.subr.mxu0 0.0
  %1765 = vmatpush1.xpose.msra.mxu0 0.0
  %1766 = vmatprep.subr.mxu0 0.0
  %1767 = vmatpush1.xpose.msra.mxu0 0.0
  %1768 = vmatprep.subr.mxu0 0.0
  %1769 = vmatpush1.xpose.msra.mxu0 0.0
  %1770 = vmatprep.subr.mxu0 0.0
  %1771 = vmatpush1.xpose.msra.mxu0 0.0
  %1772 = vmatprep.subr.mxu0 0.0
  %1773 = vmatpush1.xpose.msra.mxu0 0.0
  %1774 = vmatprep.subr.mxu0 0.0
  %1775 = vmatpush1.xpose.msra.mxu0 0.0
  %1776 = vmatprep.subr.mxu0 0.0
  %1777 = vmatpush1.xpose.msra.mxu0 %v1746
  %1778 = vmatprep.subr.mxu0 0.0
  %1779 = vmatpush1.xpose.msra.mxu0 %v1743
  %1780 = vmatprep.subr.mxu0 0.0
  %1781 = vmatpush2.xpose.msra.mxu0 0.0
  %1782 = vmatprep.subr.mxu0 0.0
  %1783 = vmatpush2.xpose.msra.mxu0 0.0
  %1784 = vmatprep.subr.mxu0 0.0
  %1785 = vmatpush2.xpose.msra.mxu0 0.0
  %1786 = vmatprep.subr.mxu0 0.0
  %1787 = vmatpush2.xpose.msra.mxu0 0.0
  %1788 = vmatprep.subr.mxu0 0.0
  %1789 = vmatpush2.xpose.msra.mxu0 0.0
  %1790 = vmatprep.subr.mxu0 0.0
  %1791 = vmatpush2.xpose.msra.mxu0 0.0
  %1792 = vmatprep.subr.mxu0 0.0
  %1793 = vmatpush2.xpose.msra.mxu0 0.0
  %1794 = vmatprep.subr.mxu0 0.0
  %1795 = vmatpush2.xpose.msra.mxu0 0.0
  %1796 = vmatprep.subr.mxu0 0.0
  %1797 = vmatpush2.xpose.msra.mxu0 0.0
  %1798 = vmatprep.subr.mxu0 0.0
  %1799 = vmatpush2.xpose.msra.mxu0 0.0
  %1800 = vmatprep.subr.mxu0 0.0
  %1801 = vmatpush2.xpose.msra.mxu0 0.0
  %1802 = vmatprep.subr.mxu0 0.0
  %1803 = vmatpush2.xpose.msra.mxu0 0.0
  %1804 = vmatprep.subr.mxu0 0.0
  %1805 = vmatpush2.xpose.msra.mxu0 0.0
  %1806 = vmatprep.subr.mxu0 0.0
  %1807 = vmatpush2.xpose.msra.mxu0 0.0
  %1808 = vmatprep.subr.mxu0 0.0
  %1809 = vmatpush2.xpose.msra.mxu0 0.0
  %1810 = vmatprep.subr.mxu0 0.0
  %1811 = vmatpush2.xpose.msra.mxu0 0.0
  %1812 = vmatprep.mubr.f32.mxu0 0.0
  %1813 = vmatmul.mubr.f32.gmra.mxu0 %v1737
  %v1814 = vpop.f32.mrf.mxu0
  %v1815 = vadd.f32 0.0, %v1814
  %v1816 = vpop.f32.mrf.mxu0
  %1817 = vmatprep.mubr.f32.mxu0 0.0
  %1818 = vmatmul.mubr.f32.gmra.mxu0 %v1740
  %v1819 = vpop.f32.mrf.mxu0
  %v1820 = vadd.f32 0.0, %v1819
  %v1821 = vpop.f32.mrf.mxu0
  %1822 = vdwg.mxu0
  %v1824 = vsel %vm256, %v100, 0
  %v1827 = vsel %vm256, %v101, 0
  %v1830 = vsel %vm256, %v164, 0
  %v1833 = vsel %vm256, %v165, 0
  %1835 = vmatprep.subr.mxu0 0.0
  %1836 = vmatpush1.xpose.msra.mxu0 0.0
  %1837 = vmatprep.subr.mxu0 0.0
  %1838 = vmatpush1.xpose.msra.mxu0 0.0
  %1839 = vmatprep.subr.mxu0 0.0
  %1840 = vmatpush1.xpose.msra.mxu0 0.0
  %1841 = vmatprep.subr.mxu0 0.0
  %1842 = vmatpush1.xpose.msra.mxu0 0.0
  %1843 = vmatprep.subr.mxu0 0.0
  %1844 = vmatpush1.xpose.msra.mxu0 0.0
  %1845 = vmatprep.subr.mxu0 0.0
  %1846 = vmatpush1.xpose.msra.mxu0 0.0
  %1847 = vmatprep.subr.mxu0 0.0
  %1848 = vmatpush1.xpose.msra.mxu0 0.0
  %1849 = vmatprep.subr.mxu0 0.0
  %1850 = vmatpush1.xpose.msra.mxu0 0.0
  %1851 = vmatprep.subr.mxu0 0.0
  %1852 = vmatpush1.xpose.msra.mxu0 0.0
  %1853 = vmatprep.subr.mxu0 0.0
  %1854 = vmatpush1.xpose.msra.mxu0 0.0
  %1855 = vmatprep.subr.mxu0 0.0
  %1856 = vmatpush1.xpose.msra.mxu0 0.0
  %1857 = vmatprep.subr.mxu0 0.0
  %1858 = vmatpush1.xpose.msra.mxu0 0.0
  %1859 = vmatprep.subr.mxu0 0.0
  %1860 = vmatpush1.xpose.msra.mxu0 0.0
  %1861 = vmatprep.subr.mxu0 0.0
  %1862 = vmatpush1.xpose.msra.mxu0 0.0
  %1863 = vmatprep.subr.mxu0 0.0
  %1864 = vmatpush1.xpose.msra.mxu0 %v1833
  %1865 = vmatprep.subr.mxu0 0.0
  %1866 = vmatpush1.xpose.msra.mxu0 %v1830
  %1867 = vmatprep.subr.mxu0 0.0
  %1868 = vmatpush2.xpose.msra.mxu0 0.0
  %1869 = vmatprep.subr.mxu0 0.0
  %1870 = vmatpush2.xpose.msra.mxu0 0.0
  %1871 = vmatprep.subr.mxu0 0.0
  %1872 = vmatpush2.xpose.msra.mxu0 0.0
  %1873 = vmatprep.subr.mxu0 0.0
  %1874 = vmatpush2.xpose.msra.mxu0 0.0
  %1875 = vmatprep.subr.mxu0 0.0
  %1876 = vmatpush2.xpose.msra.mxu0 0.0
  %1877 = vmatprep.subr.mxu0 0.0
  %1878 = vmatpush2.xpose.msra.mxu0 0.0
  %1879 = vmatprep.subr.mxu0 0.0
  %1880 = vmatpush2.xpose.msra.mxu0 0.0
  %1881 = vmatprep.subr.mxu0 0.0
  %1882 = vmatpush2.xpose.msra.mxu0 0.0
  %1883 = vmatprep.subr.mxu0 0.0
  %1884 = vmatpush2.xpose.msra.mxu0 0.0
  %1885 = vmatprep.subr.mxu0 0.0
  %1886 = vmatpush2.xpose.msra.mxu0 0.0
  %1887 = vmatprep.subr.mxu0 0.0
  %1888 = vmatpush2.xpose.msra.mxu0 0.0
  %1889 = vmatprep.subr.mxu0 0.0
  %1890 = vmatpush2.xpose.msra.mxu0 0.0
  %1891 = vmatprep.subr.mxu0 0.0
  %1892 = vmatpush2.xpose.msra.mxu0 0.0
  %1893 = vmatprep.subr.mxu0 0.0
  %1894 = vmatpush2.xpose.msra.mxu0 0.0
  %1895 = vmatprep.subr.mxu0 0.0
  %1896 = vmatpush2.xpose.msra.mxu0 0.0
  %1897 = vmatprep.subr.mxu0 0.0
  %1898 = vmatpush2.xpose.msra.mxu0 0.0
  %1899 = vmatprep.mubr.f32.mxu0 0.0
  %1900 = vmatmul.mubr.f32.gmra.mxu0 %v1824
  %v1901 = vpop.f32.mrf.mxu0
  %v1902 = vadd.f32 0.0, %v1901
  %v1903 = vpop.f32.mrf.mxu0
  %1904 = vmatprep.mubr.f32.mxu0 0.0
  %1905 = vmatmul.mubr.f32.gmra.mxu0 %v1827
  %v1906 = vpop.f32.mrf.mxu0
  %v1907 = vadd.f32 0.0, %v1906
  %v1908 = vpop.f32.mrf.mxu0
  %1909 = vdwg.mxu0
  %v1911 = vsel %vm256, %v102, 0
  %v1914 = vsel %vm256, %v103, 0
  %v1917 = vsel %vm256, %v166, 0
  %v1920 = vsel %vm256, %v167, 0
  %1922 = vmatprep.subr.mxu0 0.0
  %1923 = vmatpush1.xpose.msra.mxu0 0.0
  %1924 = vmatprep.subr.mxu0 0.0
  %1925 = vmatpush1.xpose.msra.mxu0 0.0
  %1926 = vmatprep.subr.mxu0 0.0
  %1927 = vmatpush1.xpose.msra.mxu0 0.0
  %1928 = vmatprep.subr.mxu0 0.0
  %1929 = vmatpush1.xpose.msra.mxu0 0.0
  %1930 = vmatprep.subr.mxu0 0.0
  %1931 = vmatpush1.xpose.msra.mxu0 0.0
  %1932 = vmatprep.subr.mxu0 0.0
  %1933 = vmatpush1.xpose.msra.mxu0 0.0
  %1934 = vmatprep.subr.mxu0 0.0
  %1935 = vmatpush1.xpose.msra.mxu0 0.0
  %1936 = vmatprep.subr.mxu0 0.0
  %1937 = vmatpush1.xpose.msra.mxu0 0.0
  %1938 = vmatprep.subr.mxu0 0.0
  %1939 = vmatpush1.xpose.msra.mxu0 0.0
  %1940 = vmatprep.subr.mxu0 0.0
  %1941 = vmatpush1.xpose.msra.mxu0 0.0
  %1942 = vmatprep.subr.mxu0 0.0
  %1943 = vmatpush1.xpose.msra.mxu0 0.0
  %1944 = vmatprep.subr.mxu0 0.0
  %1945 = vmatpush1.xpose.msra.mxu0 0.0
  %1946 = vmatprep.subr.mxu0 0.0
  %1947 = vmatpush1.xpose.msra.mxu0 0.0
  %1948 = vmatprep.subr.mxu0 0.0
  %1949 = vmatpush1.xpose.msra.mxu0 0.0
  %1950 = vmatprep.subr.mxu0 0.0
  %1951 = vmatpush1.xpose.msra.mxu0 %v1920
  %1952 = vmatprep.subr.mxu0 0.0
  %1953 = vmatpush1.xpose.msra.mxu0 %v1917
  %1954 = vmatprep.subr.mxu0 0.0
  %1955 = vmatpush2.xpose.msra.mxu0 0.0
  %1956 = vmatprep.subr.mxu0 0.0
  %1957 = vmatpush2.xpose.msra.mxu0 0.0
  %1958 = vmatprep.subr.mxu0 0.0
  %1959 = vmatpush2.xpose.msra.mxu0 0.0
  %1960 = vmatprep.subr.mxu0 0.0
  %1961 = vmatpush2.xpose.msra.mxu0 0.0
  %1962 = vmatprep.subr.mxu0 0.0
  %1963 = vmatpush2.xpose.msra.mxu0 0.0
  %1964 = vmatprep.subr.mxu0 0.0
  %1965 = vmatpush2.xpose.msra.mxu0 0.0
  %1966 = vmatprep.subr.mxu0 0.0
  %1967 = vmatpush2.xpose.msra.mxu0 0.0
  %1968 = vmatprep.subr.mxu0 0.0
  %1969 = vmatpush2.xpose.msra.mxu0 0.0
  %1970 = vmatprep.subr.mxu0 0.0
  %1971 = vmatpush2.xpose.msra.mxu0 0.0
  %1972 = vmatprep.subr.mxu0 0.0
  %1973 = vmatpush2.xpose.msra.mxu0 0.0
  %1974 = vmatprep.subr.mxu0 0.0
  %1975 = vmatpush2.xpose.msra.mxu0 0.0
  %1976 = vmatprep.subr.mxu0 0.0
  %1977 = vmatpush2.xpose.msra.mxu0 0.0
  %1978 = vmatprep.subr.mxu0 0.0
  %1979 = vmatpush2.xpose.msra.mxu0 0.0
  %1980 = vmatprep.subr.mxu0 0.0
  %1981 = vmatpush2.xpose.msra.mxu0 0.0
  %1982 = vmatprep.subr.mxu0 0.0
  %1983 = vmatpush2.xpose.msra.mxu0 0.0
  %1984 = vmatprep.subr.mxu0 0.0
  %1985 = vmatpush2.xpose.msra.mxu0 0.0
  %1986 = vmatprep.mubr.f32.mxu0 0.0
  %1987 = vmatmul.mubr.f32.gmra.mxu0 %v1911
  %v1988 = vpop.f32.mrf.mxu0
  %v1989 = vadd.f32 0.0, %v1988
  %v1990 = vpop.f32.mrf.mxu0
  %1991 = vmatprep.mubr.f32.mxu0 0.0
  %1992 = vmatmul.mubr.f32.gmra.mxu0 %v1914
  %v1993 = vpop.f32.mrf.mxu0
  %v1994 = vadd.f32 0.0, %v1993
  %v1995 = vpop.f32.mrf.mxu0
  %1996 = vdwg.mxu0
  %v1998 = vsel %vm256, %v104, 0
  %v2001 = vsel %vm256, %v105, 0
  %v2004 = vsel %vm256, %v168, 0
  %v2007 = vsel %vm256, %v169, 0
  %2009 = vmatprep.subr.mxu0 0.0
  %2010 = vmatpush1.xpose.msra.mxu0 0.0
  %2011 = vmatprep.subr.mxu0 0.0
  %2012 = vmatpush1.xpose.msra.mxu0 0.0
  %2013 = vmatprep.subr.mxu0 0.0
  %2014 = vmatpush1.xpose.msra.mxu0 0.0
  %2015 = vmatprep.subr.mxu0 0.0
  %2016 = vmatpush1.xpose.msra.mxu0 0.0
  %2017 = vmatprep.subr.mxu0 0.0
  %2018 = vmatpush1.xpose.msra.mxu0 0.0
  %2019 = vmatprep.subr.mxu0 0.0
  %2020 = vmatpush1.xpose.msra.mxu0 0.0
  %2021 = vmatprep.subr.mxu0 0.0
  %2022 = vmatpush1.xpose.msra.mxu0 0.0
  %2023 = vmatprep.subr.mxu0 0.0
  %2024 = vmatpush1.xpose.msra.mxu0 0.0
  %2025 = vmatprep.subr.mxu0 0.0
  %2026 = vmatpush1.xpose.msra.mxu0 0.0
  %2027 = vmatprep.subr.mxu0 0.0
  %2028 = vmatpush1.xpose.msra.mxu0 0.0
  %2029 = vmatprep.subr.mxu0 0.0
  %2030 = vmatpush1.xpose.msra.mxu0 0.0
  %2031 = vmatprep.subr.mxu0 0.0
  %2032 = vmatpush1.xpose.msra.mxu0 0.0
  %2033 = vmatprep.subr.mxu0 0.0
  %2034 = vmatpush1.xpose.msra.mxu0 0.0
  %2035 = vmatprep.subr.mxu0 0.0
  %2036 = vmatpush1.xpose.msra.mxu0 0.0
  %2037 = vmatprep.subr.mxu0 0.0
  %2038 = vmatpush1.xpose.msra.mxu0 %v2007
  %2039 = vmatprep.subr.mxu0 0.0
  %2040 = vmatpush1.xpose.msra.mxu0 %v2004
  %2041 = vmatprep.subr.mxu0 0.0
  %2042 = vmatpush2.xpose.msra.mxu0 0.0
  %2043 = vmatprep.subr.mxu0 0.0
  %2044 = vmatpush2.xpose.msra.mxu0 0.0
  %2045 = vmatprep.subr.mxu0 0.0
  %2046 = vmatpush2.xpose.msra.mxu0 0.0
  %2047 = vmatprep.subr.mxu0 0.0
  %2048 = vmatpush2.xpose.msra.mxu0 0.0
  %2049 = vmatprep.subr.mxu0 0.0
  %2050 = vmatpush2.xpose.msra.mxu0 0.0
  %2051 = vmatprep.subr.mxu0 0.0
  %2052 = vmatpush2.xpose.msra.mxu0 0.0
  %2053 = vmatprep.subr.mxu0 0.0
  %2054 = vmatpush2.xpose.msra.mxu0 0.0
  %2055 = vmatprep.subr.mxu0 0.0
  %2056 = vmatpush2.xpose.msra.mxu0 0.0
  %2057 = vmatprep.subr.mxu0 0.0
  %2058 = vmatpush2.xpose.msra.mxu0 0.0
  %2059 = vmatprep.subr.mxu0 0.0
  %2060 = vmatpush2.xpose.msra.mxu0 0.0
  %2061 = vmatprep.subr.mxu0 0.0
  %2062 = vmatpush2.xpose.msra.mxu0 0.0
  %2063 = vmatprep.subr.mxu0 0.0
  %2064 = vmatpush2.xpose.msra.mxu0 0.0
  %2065 = vmatprep.subr.mxu0 0.0
  %2066 = vmatpush2.xpose.msra.mxu0 0.0
  %2067 = vmatprep.subr.mxu0 0.0
  %2068 = vmatpush2.xpose.msra.mxu0 0.0
  %2069 = vmatprep.subr.mxu0 0.0
  %2070 = vmatpush2.xpose.msra.mxu0 0.0
  %2071 = vmatprep.subr.mxu0 0.0
  %2072 = vmatpush2.xpose.msra.mxu0 0.0
  %2073 = vmatprep.mubr.f32.mxu0 0.0
  %2074 = vmatmul.mubr.f32.gmra.mxu0 %v1998
  %v2075 = vpop.f32.mrf.mxu0
  %v2076 = vadd.f32 0.0, %v2075
  %v2077 = vpop.f32.mrf.mxu0
  %2078 = vmatprep.mubr.f32.mxu0 0.0
  %2079 = vmatmul.mubr.f32.gmra.mxu0 %v2001
  %v2080 = vpop.f32.mrf.mxu0
  %v2081 = vadd.f32 0.0, %v2080
  %v2082 = vpop.f32.mrf.mxu0
  %2083 = vdwg.mxu0
  %v2085 = vsel %vm256, %v106, 0
  %v2088 = vsel %vm256, %v107, 0
  %v2091 = vsel %vm256, %v170, 0
  %v2094 = vsel %vm256, %v171, 0
  %2096 = vmatprep.subr.mxu0 0.0
  %2097 = vmatpush1.xpose.msra.mxu0 0.0
  %2098 = vmatprep.subr.mxu0 0.0
  %2099 = vmatpush1.xpose.msra.mxu0 0.0
  %2100 = vmatprep.subr.mxu0 0.0
  %2101 = vmatpush1.xpose.msra.mxu0 0.0
  %2102 = vmatprep.subr.mxu0 0.0
  %2103 = vmatpush1.xpose.msra.mxu0 0.0
  %2104 = vmatprep.subr.mxu0 0.0
  %2105 = vmatpush1.xpose.msra.mxu0 0.0
  %2106 = vmatprep.subr.mxu0 0.0
  %2107 = vmatpush1.xpose.msra.mxu0 0.0
  %2108 = vmatprep.subr.mxu0 0.0
  %2109 = vmatpush1.xpose.msra.mxu0 0.0
  %2110 = vmatprep.subr.mxu0 0.0
  %2111 = vmatpush1.xpose.msra.mxu0 0.0
  %2112 = vmatprep.subr.mxu0 0.0
  %2113 = vmatpush1.xpose.msra.mxu0 0.0
  %2114 = vmatprep.subr.mxu0 0.0
  %2115 = vmatpush1.xpose.msra.mxu0 0.0
  %2116 = vmatprep.subr.mxu0 0.0
  %2117 = vmatpush1.xpose.msra.mxu0 0.0
  %2118 = vmatprep.subr.mxu0 0.0
  %2119 = vmatpush1.xpose.msra.mxu0 0.0
  %2120 = vmatprep.subr.mxu0 0.0
  %2121 = vmatpush1.xpose.msra.mxu0 0.0
  %2122 = vmatprep.subr.mxu0 0.0
  %2123 = vmatpush1.xpose.msra.mxu0 0.0
  %2124 = vmatprep.subr.mxu0 0.0
  %2125 = vmatpush1.xpose.msra.mxu0 %v2094
  %2126 = vmatprep.subr.mxu0 0.0
  %2127 = vmatpush1.xpose.msra.mxu0 %v2091
  %2128 = vmatprep.subr.mxu0 0.0
  %2129 = vmatpush2.xpose.msra.mxu0 0.0
  %2130 = vmatprep.subr.mxu0 0.0
  %2131 = vmatpush2.xpose.msra.mxu0 0.0
  %2132 = vmatprep.subr.mxu0 0.0
  %2133 = vmatpush2.xpose.msra.mxu0 0.0
  %2134 = vmatprep.subr.mxu0 0.0
  %2135 = vmatpush2.xpose.msra.mxu0 0.0
  %2136 = vmatprep.subr.mxu0 0.0
  %2137 = vmatpush2.xpose.msra.mxu0 0.0
  %2138 = vmatprep.subr.mxu0 0.0
  %2139 = vmatpush2.xpose.msra.mxu0 0.0
  %2140 = vmatprep.subr.mxu0 0.0
  %2141 = vmatpush2.xpose.msra.mxu0 0.0
  %2142 = vmatprep.subr.mxu0 0.0
  %2143 = vmatpush2.xpose.msra.mxu0 0.0
  %2144 = vmatprep.subr.mxu0 0.0
  %2145 = vmatpush2.xpose.msra.mxu0 0.0
  %2146 = vmatprep.subr.mxu0 0.0
  %2147 = vmatpush2.xpose.msra.mxu0 0.0
  %2148 = vmatprep.subr.mxu0 0.0
  %2149 = vmatpush2.xpose.msra.mxu0 0.0
  %2150 = vmatprep.subr.mxu0 0.0
  %2151 = vmatpush2.xpose.msra.mxu0 0.0
  %2152 = vmatprep.subr.mxu0 0.0
  %2153 = vmatpush2.xpose.msra.mxu0 0.0
  %2154 = vmatprep.subr.mxu0 0.0
  %2155 = vmatpush2.xpose.msra.mxu0 0.0
  %2156 = vmatprep.subr.mxu0 0.0
  %2157 = vmatpush2.xpose.msra.mxu0 0.0
  %2158 = vmatprep.subr.mxu0 0.0
  %2159 = vmatpush2.xpose.msra.mxu0 0.0
  %2160 = vmatprep.mubr.f32.mxu0 0.0
  %2161 = vmatmul.mubr.f32.gmra.mxu0 %v2085
  %v2162 = vpop.f32.mrf.mxu0
  %v2163 = vadd.f32 0.0, %v2162
  %v2164 = vpop.f32.mrf.mxu0
  %2165 = vmatprep.mubr.f32.mxu0 0.0
  %2166 = vmatmul.mubr.f32.gmra.mxu0 %v2088
  %v2167 = vpop.f32.mrf.mxu0
  %v2168 = vadd.f32 0.0, %v2167
  %v2169 = vpop.f32.mrf.mxu0
  %2170 = vdwg.mxu0
  %v2172 = vsel %vm256, %v108, 0
  %v2175 = vsel %vm256, %v109, 0
  %v2178 = vsel %vm256, %v172, 0
  %v2181 = vsel %vm256, %v173, 0
  %2183 = vmatprep.subr.mxu0 0.0
  %2184 = vmatpush1.xpose.msra.mxu0 0.0
  %2185 = vmatprep.subr.mxu0 0.0
  %2186 = vmatpush1.xpose.msra.mxu0 0.0
  %2187 = vmatprep.subr.mxu0 0.0
  %2188 = vmatpush1.xpose.msra.mxu0 0.0
  %2189 = vmatprep.subr.mxu0 0.0
  %2190 = vmatpush1.xpose.msra.mxu0 0.0
  %2191 = vmatprep.subr.mxu0 0.0
  %2192 = vmatpush1.xpose.msra.mxu0 0.0
  %2193 = vmatprep.subr.mxu0 0.0
  %2194 = vmatpush1.xpose.msra.mxu0 0.0
  %2195 = vmatprep.subr.mxu0 0.0
  %2196 = vmatpush1.xpose.msra.mxu0 0.0
  %2197 = vmatprep.subr.mxu0 0.0
  %2198 = vmatpush1.xpose.msra.mxu0 0.0
  %2199 = vmatprep.subr.mxu0 0.0
  %2200 = vmatpush1.xpose.msra.mxu0 0.0
  %2201 = vmatprep.subr.mxu0 0.0
  %2202 = vmatpush1.xpose.msra.mxu0 0.0
  %2203 = vmatprep.subr.mxu0 0.0
  %2204 = vmatpush1.xpose.msra.mxu0 0.0
  %2205 = vmatprep.subr.mxu0 0.0
  %2206 = vmatpush1.xpose.msra.mxu0 0.0
  %2207 = vmatprep.subr.mxu0 0.0
  %2208 = vmatpush1.xpose.msra.mxu0 0.0
  %2209 = vmatprep.subr.mxu0 0.0
  %2210 = vmatpush1.xpose.msra.mxu0 0.0
  %2211 = vmatprep.subr.mxu0 0.0
  %2212 = vmatpush1.xpose.msra.mxu0 %v2181
  %2213 = vmatprep.subr.mxu0 0.0
  %2214 = vmatpush1.xpose.msra.mxu0 %v2178
  %2215 = vmatprep.subr.mxu0 0.0
  %2216 = vmatpush2.xpose.msra.mxu0 0.0
  %2217 = vmatprep.subr.mxu0 0.0
  %2218 = vmatpush2.xpose.msra.mxu0 0.0
  %2219 = vmatprep.subr.mxu0 0.0
  %2220 = vmatpush2.xpose.msra.mxu0 0.0
  %2221 = vmatprep.subr.mxu0 0.0
  %2222 = vmatpush2.xpose.msra.mxu0 0.0
  %2223 = vmatprep.subr.mxu0 0.0
  %2224 = vmatpush2.xpose.msra.mxu0 0.0
  %2225 = vmatprep.subr.mxu0 0.0
  %2226 = vmatpush2.xpose.msra.mxu0 0.0
  %2227 = vmatprep.subr.mxu0 0.0
  %2228 = vmatpush2.xpose.msra.mxu0 0.0
  %2229 = vmatprep.subr.mxu0 0.0
  %2230 = vmatpush2.xpose.msra.mxu0 0.0
  %2231 = vmatprep.subr.mxu0 0.0
  %2232 = vmatpush2.xpose.msra.mxu0 0.0
  %2233 = vmatprep.subr.mxu0 0.0
  %2234 = vmatpush2.xpose.msra.mxu0 0.0
  %2235 = vmatprep.subr.mxu0 0.0
  %2236 = vmatpush2.xpose.msra.mxu0 0.0
  %2237 = vmatprep.subr.mxu0 0.0
  %2238 = vmatpush2.xpose.msra.mxu0 0.0
  %2239 = vmatprep.subr.mxu0 0.0
  %2240 = vmatpush2.xpose.msra.mxu0 0.0
  %2241 = vmatprep.subr.mxu0 0.0
  %2242 = vmatpush2.xpose.msra.mxu0 0.0
  %2243 = vmatprep.subr.mxu0 0.0
  %2244 = vmatpush2.xpose.msra.mxu0 0.0
  %2245 = vmatprep.subr.mxu0 0.0
  %2246 = vmatpush2.xpose.msra.mxu0 0.0
  %2247 = vmatprep.mubr.f32.mxu0 0.0
  %2248 = vmatmul.mubr.f32.gmra.mxu0 %v2172
  %v2249 = vpop.f32.mrf.mxu0
  %v2250 = vadd.f32 0.0, %v2249
  %v2251 = vpop.f32.mrf.mxu0
  %2252 = vmatprep.mubr.f32.mxu0 0.0
  %2253 = vmatmul.mubr.f32.gmra.mxu0 %v2175
  %v2254 = vpop.f32.mrf.mxu0
  %v2255 = vadd.f32 0.0, %v2254
  %v2256 = vpop.f32.mrf.mxu0
  %2257 = vdwg.mxu0
  %v2259 = vsel %vm256, %v110, 0
  %v2262 = vsel %vm256, %v111, 0
  %v2265 = vsel %vm256, %v174, 0
  %v2268 = vsel %vm256, %v175, 0
  %2270 = vmatprep.subr.mxu0 0.0
  %2271 = vmatpush1.xpose.msra.mxu0 0.0
  %2272 = vmatprep.subr.mxu0 0.0
  %2273 = vmatpush1.xpose.msra.mxu0 0.0
  %2274 = vmatprep.subr.mxu0 0.0
  %2275 = vmatpush1.xpose.msra.mxu0 0.0
  %2276 = vmatprep.subr.mxu0 0.0
  %2277 = vmatpush1.xpose.msra.mxu0 0.0
  %2278 = vmatprep.subr.mxu0 0.0
  %2279 = vmatpush1.xpose.msra.mxu0 0.0
  %2280 = vmatprep.subr.mxu0 0.0
  %2281 = vmatpush1.xpose.msra.mxu0 0.0
  %2282 = vmatprep.subr.mxu0 0.0
  %2283 = vmatpush1.xpose.msra.mxu0 0.0
  %2284 = vmatprep.subr.mxu0 0.0
  %2285 = vmatpush1.xpose.msra.mxu0 0.0
  %2286 = vmatprep.subr.mxu0 0.0
  %2287 = vmatpush1.xpose.msra.mxu0 0.0
  %2288 = vmatprep.subr.mxu0 0.0
  %2289 = vmatpush1.xpose.msra.mxu0 0.0
  %2290 = vmatprep.subr.mxu0 0.0
  %2291 = vmatpush1.xpose.msra.mxu0 0.0
  %2292 = vmatprep.subr.mxu0 0.0
  %2293 = vmatpush1.xpose.msra.mxu0 0.0
  %2294 = vmatprep.subr.mxu0 0.0
  %2295 = vmatpush1.xpose.msra.mxu0 0.0
  %2296 = vmatprep.subr.mxu0 0.0
  %2297 = vmatpush1.xpose.msra.mxu0 0.0
  %2298 = vmatprep.subr.mxu0 0.0
  %2299 = vmatpush1.xpose.msra.mxu0 %v2268
  %2300 = vmatprep.subr.mxu0 0.0
  %2301 = vmatpush1.xpose.msra.mxu0 %v2265
  %2302 = vmatprep.subr.mxu0 0.0
  %2303 = vmatpush2.xpose.msra.mxu0 0.0
  %2304 = vmatprep.subr.mxu0 0.0
  %2305 = vmatpush2.xpose.msra.mxu0 0.0
  %2306 = vmatprep.subr.mxu0 0.0
  %2307 = vmatpush2.xpose.msra.mxu0 0.0
  %2308 = vmatprep.subr.mxu0 0.0
  %2309 = vmatpush2.xpose.msra.mxu0 0.0
  %2310 = vmatprep.subr.mxu0 0.0
  %2311 = vmatpush2.xpose.msra.mxu0 0.0
  %2312 = vmatprep.subr.mxu0 0.0
  %2313 = vmatpush2.xpose.msra.mxu0 0.0
  %2314 = vmatprep.subr.mxu0 0.0
  %2315 = vmatpush2.xpose.msra.mxu0 0.0
  %2316 = vmatprep.subr.mxu0 0.0
  %2317 = vmatpush2.xpose.msra.mxu0 0.0
  %2318 = vmatprep.subr.mxu0 0.0
  %2319 = vmatpush2.xpose.msra.mxu0 0.0
  %2320 = vmatprep.subr.mxu0 0.0
  %2321 = vmatpush2.xpose.msra.mxu0 0.0
  %2322 = vmatprep.subr.mxu0 0.0
  %2323 = vmatpush2.xpose.msra.mxu0 0.0
  %2324 = vmatprep.subr.mxu0 0.0
  %2325 = vmatpush2.xpose.msra.mxu0 0.0
  %2326 = vmatprep.subr.mxu0 0.0
  %2327 = vmatpush2.xpose.msra.mxu0 0.0
  %2328 = vmatprep.subr.mxu0 0.0
  %2329 = vmatpush2.xpose.msra.mxu0 0.0
  %2330 = vmatprep.subr.mxu0 0.0
  %2331 = vmatpush2.xpose.msra.mxu0 0.0
  %2332 = vmatprep.subr.mxu0 0.0
  %2333 = vmatpush2.xpose.msra.mxu0 0.0
  %2334 = vmatprep.mubr.f32.mxu0 0.0
  %2335 = vmatmul.mubr.f32.gmra.mxu0 %v2259
  %v2336 = vpop.f32.mrf.mxu0
  %v2337 = vadd.f32 0.0, %v2336
  %v2338 = vpop.f32.mrf.mxu0
  %2339 = vmatprep.mubr.f32.mxu0 0.0
  %2340 = vmatmul.mubr.f32.gmra.mxu0 %v2262
  %v2341 = vpop.f32.mrf.mxu0
  %v2342 = vadd.f32 0.0, %v2341
  %v2343 = vpop.f32.mrf.mxu0
  %2344 = vdwg.mxu0
  %v2346 = vsel %vm256, %v112, 0
  %v2349 = vsel %vm256, %v113, 0
  %v2352 = vsel %vm256, %v176, 0
  %v2355 = vsel %vm256, %v177, 0
  %2357 = vmatprep.subr.mxu0 0.0
  %2358 = vmatpush1.xpose.msra.mxu0 0.0
  %2359 = vmatprep.subr.mxu0 0.0
  %2360 = vmatpush1.xpose.msra.mxu0 0.0
  %2361 = vmatprep.subr.mxu0 0.0
  %2362 = vmatpush1.xpose.msra.mxu0 0.0
  %2363 = vmatprep.subr.mxu0 0.0
  %2364 = vmatpush1.xpose.msra.mxu0 0.0
  %2365 = vmatprep.subr.mxu0 0.0
  %2366 = vmatpush1.xpose.msra.mxu0 0.0
  %2367 = vmatprep.subr.mxu0 0.0
  %2368 = vmatpush1.xpose.msra.mxu0 0.0
  %2369 = vmatprep.subr.mxu0 0.0
  %2370 = vmatpush1.xpose.msra.mxu0 0.0
  %2371 = vmatprep.subr.mxu0 0.0
  %2372 = vmatpush1.xpose.msra.mxu0 0.0
  %2373 = vmatprep.subr.mxu0 0.0
  %2374 = vmatpush1.xpose.msra.mxu0 0.0
  %2375 = vmatprep.subr.mxu0 0.0
  %2376 = vmatpush1.xpose.msra.mxu0 0.0
  %2377 = vmatprep.subr.mxu0 0.0
  %2378 = vmatpush1.xpose.msra.mxu0 0.0
  %2379 = vmatprep.subr.mxu0 0.0
  %2380 = vmatpush1.xpose.msra.mxu0 0.0
  %2381 = vmatprep.subr.mxu0 0.0
  %2382 = vmatpush1.xpose.msra.mxu0 0.0
  %2383 = vmatprep.subr.mxu0 0.0
  %2384 = vmatpush1.xpose.msra.mxu0 0.0
  %2385 = vmatprep.subr.mxu0 0.0
  %2386 = vmatpush1.xpose.msra.mxu0 %v2355
  %2387 = vmatprep.subr.mxu0 0.0
  %2388 = vmatpush1.xpose.msra.mxu0 %v2352
  %2389 = vmatprep.subr.mxu0 0.0
  %2390 = vmatpush2.xpose.msra.mxu0 0.0
  %2391 = vmatprep.subr.mxu0 0.0
  %2392 = vmatpush2.xpose.msra.mxu0 0.0
  %2393 = vmatprep.subr.mxu0 0.0
  %2394 = vmatpush2.xpose.msra.mxu0 0.0
  %2395 = vmatprep.subr.mxu0 0.0
  %2396 = vmatpush2.xpose.msra.mxu0 0.0
  %2397 = vmatprep.subr.mxu0 0.0
  %2398 = vmatpush2.xpose.msra.mxu0 0.0
  %2399 = vmatprep.subr.mxu0 0.0
  %2400 = vmatpush2.xpose.msra.mxu0 0.0
  %2401 = vmatprep.subr.mxu0 0.0
  %2402 = vmatpush2.xpose.msra.mxu0 0.0
  %2403 = vmatprep.subr.mxu0 0.0
  %2404 = vmatpush2.xpose.msra.mxu0 0.0
  %2405 = vmatprep.subr.mxu0 0.0
  %2406 = vmatpush2.xpose.msra.mxu0 0.0
  %2407 = vmatprep.subr.mxu0 0.0
  %2408 = vmatpush2.xpose.msra.mxu0 0.0
  %2409 = vmatprep.subr.mxu0 0.0
  %2410 = vmatpush2.xpose.msra.mxu0 0.0
  %2411 = vmatprep.subr.mxu0 0.0
  %2412 = vmatpush2.xpose.msra.mxu0 0.0
  %2413 = vmatprep.subr.mxu0 0.0
  %2414 = vmatpush2.xpose.msra.mxu0 0.0
  %2415 = vmatprep.subr.mxu0 0.0
  %2416 = vmatpush2.xpose.msra.mxu0 0.0
  %2417 = vmatprep.subr.mxu0 0.0
  %2418 = vmatpush2.xpose.msra.mxu0 0.0
  %2419 = vmatprep.subr.mxu0 0.0
  %2420 = vmatpush2.xpose.msra.mxu0 0.0
  %2421 = vmatprep.mubr.f32.mxu0 0.0
  %2422 = vmatmul.mubr.f32.gmra.mxu0 %v2346
  %v2423 = vpop.f32.mrf.mxu0
  %v2424 = vadd.f32 0.0, %v2423
  %v2425 = vpop.f32.mrf.mxu0
  %2426 = vmatprep.mubr.f32.mxu0 0.0
  %2427 = vmatmul.mubr.f32.gmra.mxu0 %v2349
  %v2428 = vpop.f32.mrf.mxu0
  %v2429 = vadd.f32 0.0, %v2428
  %v2430 = vpop.f32.mrf.mxu0
  %2431 = vdwg.mxu0
  %v2433 = vsel %vm256, %v114, 0
  %v2436 = vsel %vm256, %v115, 0
  %v2439 = vsel %vm256, %v178, 0
  %v2442 = vsel %vm256, %v179, 0
  %2444 = vmatprep.subr.mxu0 0.0
  %2445 = vmatpush1.xpose.msra.mxu0 0.0
  %2446 = vmatprep.subr.mxu0 0.0
  %2447 = vmatpush1.xpose.msra.mxu0 0.0
  %2448 = vmatprep.subr.mxu0 0.0
  %2449 = vmatpush1.xpose.msra.mxu0 0.0
  %2450 = vmatprep.subr.mxu0 0.0
  %2451 = vmatpush1.xpose.msra.mxu0 0.0
  %2452 = vmatprep.subr.mxu0 0.0
  %2453 = vmatpush1.xpose.msra.mxu0 0.0
  %2454 = vmatprep.subr.mxu0 0.0
  %2455 = vmatpush1.xpose.msra.mxu0 0.0
  %2456 = vmatprep.subr.mxu0 0.0
  %2457 = vmatpush1.xpose.msra.mxu0 0.0
  %2458 = vmatprep.subr.mxu0 0.0
  %2459 = vmatpush1.xpose.msra.mxu0 0.0
  %2460 = vmatprep.subr.mxu0 0.0
  %2461 = vmatpush1.xpose.msra.mxu0 0.0
  %2462 = vmatprep.subr.mxu0 0.0
  %2463 = vmatpush1.xpose.msra.mxu0 0.0
  %2464 = vmatprep.subr.mxu0 0.0
  %2465 = vmatpush1.xpose.msra.mxu0 0.0
  %2466 = vmatprep.subr.mxu0 0.0
  %2467 = vmatpush1.xpose.msra.mxu0 0.0
  %2468 = vmatprep.subr.mxu0 0.0
  %2469 = vmatpush1.xpose.msra.mxu0 0.0
  %2470 = vmatprep.subr.mxu0 0.0
  %2471 = vmatpush1.xpose.msra.mxu0 0.0
  %2472 = vmatprep.subr.mxu0 0.0
  %2473 = vmatpush1.xpose.msra.mxu0 %v2442
  %2474 = vmatprep.subr.mxu0 0.0
  %2475 = vmatpush1.xpose.msra.mxu0 %v2439
  %2476 = vmatprep.subr.mxu0 0.0
  %2477 = vmatpush2.xpose.msra.mxu0 0.0
  %2478 = vmatprep.subr.mxu0 0.0
  %2479 = vmatpush2.xpose.msra.mxu0 0.0
  %2480 = vmatprep.subr.mxu0 0.0
  %2481 = vmatpush2.xpose.msra.mxu0 0.0
  %2482 = vmatprep.subr.mxu0 0.0
  %2483 = vmatpush2.xpose.msra.mxu0 0.0
  %2484 = vmatprep.subr.mxu0 0.0
  %2485 = vmatpush2.xpose.msra.mxu0 0.0
  %2486 = vmatprep.subr.mxu0 0.0
  %2487 = vmatpush2.xpose.msra.mxu0 0.0
  %2488 = vmatprep.subr.mxu0 0.0
  %2489 = vmatpush2.xpose.msra.mxu0 0.0
  %2490 = vmatprep.subr.mxu0 0.0
  %2491 = vmatpush2.xpose.msra.mxu0 0.0
  %2492 = vmatprep.subr.mxu0 0.0
  %2493 = vmatpush2.xpose.msra.mxu0 0.0
  %2494 = vmatprep.subr.mxu0 0.0
  %2495 = vmatpush2.xpose.msra.mxu0 0.0
  %2496 = vmatprep.subr.mxu0 0.0
  %2497 = vmatpush2.xpose.msra.mxu0 0.0
  %2498 = vmatprep.subr.mxu0 0.0
  %2499 = vmatpush2.xpose.msra.mxu0 0.0
  %2500 = vmatprep.subr.mxu0 0.0
  %2501 = vmatpush2.xpose.msra.mxu0 0.0
  %2502 = vmatprep.subr.mxu0 0.0
  %2503 = vmatpush2.xpose.msra.mxu0 0.0
  %2504 = vmatprep.subr.mxu0 0.0
  %2505 = vmatpush2.xpose.msra.mxu0 0.0
  %2506 = vmatprep.subr.mxu0 0.0
  %2507 = vmatpush2.xpose.msra.mxu0 0.0
  %2508 = vmatprep.mubr.f32.mxu0 0.0
  %2509 = vmatmul.mubr.f32.gmra.mxu0 %v2433
  %v2510 = vpop.f32.mrf.mxu0
  %v2511 = vadd.f32 0.0, %v2510
  %v2512 = vpop.f32.mrf.mxu0
  %2513 = vmatprep.mubr.f32.mxu0 0.0
  %2514 = vmatmul.mubr.f32.gmra.mxu0 %v2436
  %v2515 = vpop.f32.mrf.mxu0
  %v2516 = vadd.f32 0.0, %v2515
  %v2517 = vpop.f32.mrf.mxu0
  %2518 = vdwg.mxu0
  %v2520 = vsel %vm256, %v116, 0
  %v2523 = vsel %vm256, %v117, 0
  %v2526 = vsel %vm256, %v180, 0
  %v2529 = vsel %vm256, %v181, 0
  %2531 = vmatprep.subr.mxu0 0.0
  %2532 = vmatpush1.xpose.msra.mxu0 0.0
  %2533 = vmatprep.subr.mxu0 0.0
  %2534 = vmatpush1.xpose.msra.mxu0 0.0
  %2535 = vmatprep.subr.mxu0 0.0
  %2536 = vmatpush1.xpose.msra.mxu0 0.0
  %2537 = vmatprep.subr.mxu0 0.0
  %2538 = vmatpush1.xpose.msra.mxu0 0.0
  %2539 = vmatprep.subr.mxu0 0.0
  %2540 = vmatpush1.xpose.msra.mxu0 0.0
  %2541 = vmatprep.subr.mxu0 0.0
  %2542 = vmatpush1.xpose.msra.mxu0 0.0
  %2543 = vmatprep.subr.mxu0 0.0
  %2544 = vmatpush1.xpose.msra.mxu0 0.0
  %2545 = vmatprep.subr.mxu0 0.0
  %2546 = vmatpush1.xpose.msra.mxu0 0.0
  %2547 = vmatprep.subr.mxu0 0.0
  %2548 = vmatpush1.xpose.msra.mxu0 0.0
  %2549 = vmatprep.subr.mxu0 0.0
  %2550 = vmatpush1.xpose.msra.mxu0 0.0
  %2551 = vmatprep.subr.mxu0 0.0
  %2552 = vmatpush1.xpose.msra.mxu0 0.0
  %2553 = vmatprep.subr.mxu0 0.0
  %2554 = vmatpush1.xpose.msra.mxu0 0.0
  %2555 = vmatprep.subr.mxu0 0.0
  %2556 = vmatpush1.xpose.msra.mxu0 0.0
  %2557 = vmatprep.subr.mxu0 0.0
  %2558 = vmatpush1.xpose.msra.mxu0 0.0
  %2559 = vmatprep.subr.mxu0 0.0
  %2560 = vmatpush1.xpose.msra.mxu0 %v2529
  %2561 = vmatprep.subr.mxu0 0.0
  %2562 = vmatpush1.xpose.msra.mxu0 %v2526
  %2563 = vmatprep.subr.mxu0 0.0
  %2564 = vmatpush2.xpose.msra.mxu0 0.0
  %2565 = vmatprep.subr.mxu0 0.0
  %2566 = vmatpush2.xpose.msra.mxu0 0.0
  %2567 = vmatprep.subr.mxu0 0.0
  %2568 = vmatpush2.xpose.msra.mxu0 0.0
  %2569 = vmatprep.subr.mxu0 0.0
  %2570 = vmatpush2.xpose.msra.mxu0 0.0
  %2571 = vmatprep.subr.mxu0 0.0
  %2572 = vmatpush2.xpose.msra.mxu0 0.0
  %2573 = vmatprep.subr.mxu0 0.0
  %2574 = vmatpush2.xpose.msra.mxu0 0.0
  %2575 = vmatprep.subr.mxu0 0.0
  %2576 = vmatpush2.xpose.msra.mxu0 0.0
  %2577 = vmatprep.subr.mxu0 0.0
  %2578 = vmatpush2.xpose.msra.mxu0 0.0
  %2579 = vmatprep.subr.mxu0 0.0
  %2580 = vmatpush2.xpose.msra.mxu0 0.0
  %2581 = vmatprep.subr.mxu0 0.0
  %2582 = vmatpush2.xpose.msra.mxu0 0.0
  %2583 = vmatprep.subr.mxu0 0.0
  %2584 = vmatpush2.xpose.msra.mxu0 0.0
  %2585 = vmatprep.subr.mxu0 0.0
  %2586 = vmatpush2.xpose.msra.mxu0 0.0
  %2587 = vmatprep.subr.mxu0 0.0
  %2588 = vmatpush2.xpose.msra.mxu0 0.0
  %2589 = vmatprep.subr.mxu0 0.0
  %2590 = vmatpush2.xpose.msra.mxu0 0.0
  %2591 = vmatprep.subr.mxu0 0.0
  %2592 = vmatpush2.xpose.msra.mxu0 0.0
  %2593 = vmatprep.subr.mxu0 0.0
  %2594 = vmatpush2.xpose.msra.mxu0 0.0
  %2595 = vmatprep.mubr.f32.mxu0 0.0
  %2596 = vmatmul.mubr.f32.gmra.mxu0 %v2520
  %v2597 = vpop.f32.mrf.mxu0
  %v2598 = vadd.f32 0.0, %v2597
  %v2599 = vpop.f32.mrf.mxu0
  %2600 = vmatprep.mubr.f32.mxu0 0.0
  %2601 = vmatmul.mubr.f32.gmra.mxu0 %v2523
  %v2602 = vpop.f32.mrf.mxu0
  %v2603 = vadd.f32 0.0, %v2602
  %v2604 = vpop.f32.mrf.mxu0
  %2605 = vdwg.mxu0
  %v2607 = vsel %vm256, %v118, 0
  %v2610 = vsel %vm256, %v119, 0
  %v2613 = vsel %vm256, %v182, 0
  %v2616 = vsel %vm256, %v183, 0
  %2618 = vmatprep.subr.mxu0 0.0
  %2619 = vmatpush1.xpose.msra.mxu0 0.0
  %2620 = vmatprep.subr.mxu0 0.0
  %2621 = vmatpush1.xpose.msra.mxu0 0.0
  %2622 = vmatprep.subr.mxu0 0.0
  %2623 = vmatpush1.xpose.msra.mxu0 0.0
  %2624 = vmatprep.subr.mxu0 0.0
  %2625 = vmatpush1.xpose.msra.mxu0 0.0
  %2626 = vmatprep.subr.mxu0 0.0
  %2627 = vmatpush1.xpose.msra.mxu0 0.0
  %2628 = vmatprep.subr.mxu0 0.0
  %2629 = vmatpush1.xpose.msra.mxu0 0.0
  %2630 = vmatprep.subr.mxu0 0.0
  %2631 = vmatpush1.xpose.msra.mxu0 0.0
  %2632 = vmatprep.subr.mxu0 0.0
  %2633 = vmatpush1.xpose.msra.mxu0 0.0
  %2634 = vmatprep.subr.mxu0 0.0
  %2635 = vmatpush1.xpose.msra.mxu0 0.0
  %2636 = vmatprep.subr.mxu0 0.0
  %2637 = vmatpush1.xpose.msra.mxu0 0.0
  %2638 = vmatprep.subr.mxu0 0.0
  %2639 = vmatpush1.xpose.msra.mxu0 0.0
  %2640 = vmatprep.subr.mxu0 0.0
  %2641 = vmatpush1.xpose.msra.mxu0 0.0
  %2642 = vmatprep.subr.mxu0 0.0
  %2643 = vmatpush1.xpose.msra.mxu0 0.0
  %2644 = vmatprep.subr.mxu0 0.0
  %2645 = vmatpush1.xpose.msra.mxu0 0.0
  %2646 = vmatprep.subr.mxu0 0.0
  %2647 = vmatpush1.xpose.msra.mxu0 %v2616
  %2648 = vmatprep.subr.mxu0 0.0
  %2649 = vmatpush1.xpose.msra.mxu0 %v2613
  %2650 = vmatprep.subr.mxu0 0.0
  %2651 = vmatpush2.xpose.msra.mxu0 0.0
  %2652 = vmatprep.subr.mxu0 0.0
  %2653 = vmatpush2.xpose.msra.mxu0 0.0
  %2654 = vmatprep.subr.mxu0 0.0
  %2655 = vmatpush2.xpose.msra.mxu0 0.0
  %2656 = vmatprep.subr.mxu0 0.0
  %2657 = vmatpush2.xpose.msra.mxu0 0.0
  %2658 = vmatprep.subr.mxu0 0.0
  %2659 = vmatpush2.xpose.msra.mxu0 0.0
  %2660 = vmatprep.subr.mxu0 0.0
  %2661 = vmatpush2.xpose.msra.mxu0 0.0
  %2662 = vmatprep.subr.mxu0 0.0
  %2663 = vmatpush2.xpose.msra.mxu0 0.0
  %2664 = vmatprep.subr.mxu0 0.0
  %2665 = vmatpush2.xpose.msra.mxu0 0.0
  %2666 = vmatprep.subr.mxu0 0.0
  %2667 = vmatpush2.xpose.msra.mxu0 0.0
  %2668 = vmatprep.subr.mxu0 0.0
  %2669 = vmatpush2.xpose.msra.mxu0 0.0
  %2670 = vmatprep.subr.mxu0 0.0
  %2671 = vmatpush2.xpose.msra.mxu0 0.0
  %2672 = vmatprep.subr.mxu0 0.0
  %2673 = vmatpush2.xpose.msra.mxu0 0.0
  %2674 = vmatprep.subr.mxu0 0.0
  %2675 = vmatpush2.xpose.msra.mxu0 0.0
  %2676 = vmatprep.subr.mxu0 0.0
  %2677 = vmatpush2.xpose.msra.mxu0 0.0
  %2678 = vmatprep.subr.mxu0 0.0
  %2679 = vmatpush2.xpose.msra.mxu0 0.0
  %2680 = vmatprep.subr.mxu0 0.0
  %2681 = vmatpush2.xpose.msra.mxu0 0.0
  %2682 = vmatprep.mubr.f32.mxu0 0.0
  %2683 = vmatmul.mubr.f32.gmra.mxu0 %v2607
  %v2684 = vpop.f32.mrf.mxu0
  %v2685 = vadd.f32 0.0, %v2684
  %v2686 = vpop.f32.mrf.mxu0
  %2687 = vmatprep.mubr.f32.mxu0 0.0
  %2688 = vmatmul.mubr.f32.gmra.mxu0 %v2610
  %v2689 = vpop.f32.mrf.mxu0
  %v2690 = vadd.f32 0.0, %v2689
  %v2691 = vpop.f32.mrf.mxu0
  %2692 = vdwg.mxu0
  %v2694 = vsel %vm256, %v120, 0
  %v2697 = vsel %vm256, %v121, 0
  %v2700 = vsel %vm256, %v184, 0
  %v2703 = vsel %vm256, %v185, 0
  %2705 = vmatprep.subr.mxu0 0.0
  %2706 = vmatpush1.xpose.msra.mxu0 0.0
  %2707 = vmatprep.subr.mxu0 0.0
  %2708 = vmatpush1.xpose.msra.mxu0 0.0
  %2709 = vmatprep.subr.mxu0 0.0
  %2710 = vmatpush1.xpose.msra.mxu0 0.0
  %2711 = vmatprep.subr.mxu0 0.0
  %2712 = vmatpush1.xpose.msra.mxu0 0.0
  %2713 = vmatprep.subr.mxu0 0.0
  %2714 = vmatpush1.xpose.msra.mxu0 0.0
  %2715 = vmatprep.subr.mxu0 0.0
  %2716 = vmatpush1.xpose.msra.mxu0 0.0
  %2717 = vmatprep.subr.mxu0 0.0
  %2718 = vmatpush1.xpose.msra.mxu0 0.0
  %2719 = vmatprep.subr.mxu0 0.0
  %2720 = vmatpush1.xpose.msra.mxu0 0.0
  %2721 = vmatprep.subr.mxu0 0.0
  %2722 = vmatpush1.xpose.msra.mxu0 0.0
  %2723 = vmatprep.subr.mxu0 0.0
  %2724 = vmatpush1.xpose.msra.mxu0 0.0
  %2725 = vmatprep.subr.mxu0 0.0
  %2726 = vmatpush1.xpose.msra.mxu0 0.0
  %2727 = vmatprep.subr.mxu0 0.0
  %2728 = vmatpush1.xpose.msra.mxu0 0.0
  %2729 = vmatprep.subr.mxu0 0.0
  %2730 = vmatpush1.xpose.msra.mxu0 0.0
  %2731 = vmatprep.subr.mxu0 0.0
  %2732 = vmatpush1.xpose.msra.mxu0 0.0
  %2733 = vmatprep.subr.mxu0 0.0
  %2734 = vmatpush1.xpose.msra.mxu0 %v2703
  %2735 = vmatprep.subr.mxu0 0.0
  %2736 = vmatpush1.xpose.msra.mxu0 %v2700
  %2737 = vmatprep.subr.mxu0 0.0
  %2738 = vmatpush2.xpose.msra.mxu0 0.0
  %2739 = vmatprep.subr.mxu0 0.0
  %2740 = vmatpush2.xpose.msra.mxu0 0.0
  %2741 = vmatprep.subr.mxu0 0.0
  %2742 = vmatpush2.xpose.msra.mxu0 0.0
  %2743 = vmatprep.subr.mxu0 0.0
  %2744 = vmatpush2.xpose.msra.mxu0 0.0
  %2745 = vmatprep.subr.mxu0 0.0
  %2746 = vmatpush2.xpose.msra.mxu0 0.0
  %2747 = vmatprep.subr.mxu0 0.0
  %2748 = vmatpush2.xpose.msra.mxu0 0.0
  %2749 = vmatprep.subr.mxu0 0.0
  %2750 = vmatpush2.xpose.msra.mxu0 0.0
  %2751 = vmatprep.subr.mxu0 0.0
  %2752 = vmatpush2.xpose.msra.mxu0 0.0
  %2753 = vmatprep.subr.mxu0 0.0
  %2754 = vmatpush2.xpose.msra.mxu0 0.0
  %2755 = vmatprep.subr.mxu0 0.0
  %2756 = vmatpush2.xpose.msra.mxu0 0.0
  %2757 = vmatprep.subr.mxu0 0.0
  %2758 = vmatpush2.xpose.msra.mxu0 0.0
  %2759 = vmatprep.subr.mxu0 0.0
  %2760 = vmatpush2.xpose.msra.mxu0 0.0
  %2761 = vmatprep.subr.mxu0 0.0
  %2762 = vmatpush2.xpose.msra.mxu0 0.0
  %2763 = vmatprep.subr.mxu0 0.0
  %2764 = vmatpush2.xpose.msra.mxu0 0.0
  %2765 = vmatprep.subr.mxu0 0.0
  %2766 = vmatpush2.xpose.msra.mxu0 0.0
  %2767 = vmatprep.subr.mxu0 0.0
  %2768 = vmatpush2.xpose.msra.mxu0 0.0
  %2769 = vmatprep.mubr.f32.mxu0 0.0
  %2770 = vmatmul.mubr.f32.gmra.mxu0 %v2694
  %v2771 = vpop.f32.mrf.mxu0
  %v2772 = vadd.f32 0.0, %v2771
  %v2773 = vpop.f32.mrf.mxu0
  %2774 = vmatprep.mubr.f32.mxu0 0.0
  %2775 = vmatmul.mubr.f32.gmra.mxu0 %v2697
  %v2776 = vpop.f32.mrf.mxu0
  %v2777 = vadd.f32 0.0, %v2776
  %v2778 = vpop.f32.mrf.mxu0
  %2779 = vdwg.mxu0
  %v2781 = vsel %vm256, %v122, 0
  %v2784 = vsel %vm256, %v123, 0
  %v2787 = vsel %vm256, %v186, 0
  %v2790 = vsel %vm256, %v187, 0
  %2792 = vmatprep.subr.mxu0 0.0
  %2793 = vmatpush1.xpose.msra.mxu0 0.0
  %2794 = vmatprep.subr.mxu0 0.0
  %2795 = vmatpush1.xpose.msra.mxu0 0.0
  %2796 = vmatprep.subr.mxu0 0.0
  %2797 = vmatpush1.xpose.msra.mxu0 0.0
  %2798 = vmatprep.subr.mxu0 0.0
  %2799 = vmatpush1.xpose.msra.mxu0 0.0
  %2800 = vmatprep.subr.mxu0 0.0
  %2801 = vmatpush1.xpose.msra.mxu0 0.0
  %2802 = vmatprep.subr.mxu0 0.0
  %2803 = vmatpush1.xpose.msra.mxu0 0.0
  %2804 = vmatprep.subr.mxu0 0.0
  %2805 = vmatpush1.xpose.msra.mxu0 0.0
  %2806 = vmatprep.subr.mxu0 0.0
  %2807 = vmatpush1.xpose.msra.mxu0 0.0
  %2808 = vmatprep.subr.mxu0 0.0
  %2809 = vmatpush1.xpose.msra.mxu0 0.0
  %2810 = vmatprep.subr.mxu0 0.0
  %2811 = vmatpush1.xpose.msra.mxu0 0.0
  %2812 = vmatprep.subr.mxu0 0.0
  %2813 = vmatpush1.xpose.msra.mxu0 0.0
  %2814 = vmatprep.subr.mxu0 0.0
  %2815 = vmatpush1.xpose.msra.mxu0 0.0
  %2816 = vmatprep.subr.mxu0 0.0
  %2817 = vmatpush1.xpose.msra.mxu0 0.0
  %2818 = vmatprep.subr.mxu0 0.0
  %2819 = vmatpush1.xpose.msra.mxu0 0.0
  %2820 = vmatprep.subr.mxu0 0.0
  %2821 = vmatpush1.xpose.msra.mxu0 %v2790
  %2822 = vmatprep.subr.mxu0 0.0
  %2823 = vmatpush1.xpose.msra.mxu0 %v2787
  %2824 = vmatprep.subr.mxu0 0.0
  %2825 = vmatpush2.xpose.msra.mxu0 0.0
  %2826 = vmatprep.subr.mxu0 0.0
  %2827 = vmatpush2.xpose.msra.mxu0 0.0
  %2828 = vmatprep.subr.mxu0 0.0
  %2829 = vmatpush2.xpose.msra.mxu0 0.0
  %2830 = vmatprep.subr.mxu0 0.0
  %2831 = vmatpush2.xpose.msra.mxu0 0.0
  %2832 = vmatprep.subr.mxu0 0.0
  %2833 = vmatpush2.xpose.msra.mxu0 0.0
  %2834 = vmatprep.subr.mxu0 0.0
  %2835 = vmatpush2.xpose.msra.mxu0 0.0
  %2836 = vmatprep.subr.mxu0 0.0
  %2837 = vmatpush2.xpose.msra.mxu0 0.0
  %2838 = vmatprep.subr.mxu0 0.0
  %2839 = vmatpush2.xpose.msra.mxu0 0.0
  %2840 = vmatprep.subr.mxu0 0.0
  %2841 = vmatpush2.xpose.msra.mxu0 0.0
  %2842 = vmatprep.subr.mxu0 0.0
  %2843 = vmatpush2.xpose.msra.mxu0 0.0
  %2844 = vmatprep.subr.mxu0 0.0
  %2845 = vmatpush2.xpose.msra.mxu0 0.0
  %2846 = vmatprep.subr.mxu0 0.0
  %2847 = vmatpush2.xpose.msra.mxu0 0.0
  %2848 = vmatprep.subr.mxu0 0.0
  %2849 = vmatpush2.xpose.msra.mxu0 0.0
  %2850 = vmatprep.subr.mxu0 0.0
  %2851 = vmatpush2.xpose.msra.mxu0 0.0
  %2852 = vmatprep.subr.mxu0 0.0
  %2853 = vmatpush2.xpose.msra.mxu0 0.0
  %2854 = vmatprep.subr.mxu0 0.0
  %2855 = vmatpush2.xpose.msra.mxu0 0.0
  %2856 = vmatprep.mubr.f32.mxu0 0.0
  %2857 = vmatmul.mubr.f32.gmra.mxu0 %v2781
  %v2858 = vpop.f32.mrf.mxu0
  %v2859 = vadd.f32 0.0, %v2858
  %v2860 = vpop.f32.mrf.mxu0
  %2861 = vmatprep.mubr.f32.mxu0 0.0
  %2862 = vmatmul.mubr.f32.gmra.mxu0 %v2784
  %v2863 = vpop.f32.mrf.mxu0
  %v2864 = vadd.f32 0.0, %v2863
  %v2865 = vpop.f32.mrf.mxu0
  %2866 = vdwg.mxu0
  %v2868 = vsel %vm256, %v124, 0
  %v2871 = vsel %vm256, %v125, 0
  %v2874 = vsel %vm256, %v188, 0
  %v2877 = vsel %vm256, %v189, 0
  %2879 = vmatprep.subr.mxu0 0.0
  %2880 = vmatpush1.xpose.msra.mxu0 0.0
  %2881 = vmatprep.subr.mxu0 0.0
  %2882 = vmatpush1.xpose.msra.mxu0 0.0
  %2883 = vmatprep.subr.mxu0 0.0
  %2884 = vmatpush1.xpose.msra.mxu0 0.0
  %2885 = vmatprep.subr.mxu0 0.0
  %2886 = vmatpush1.xpose.msra.mxu0 0.0
  %2887 = vmatprep.subr.mxu0 0.0
  %2888 = vmatpush1.xpose.msra.mxu0 0.0
  %2889 = vmatprep.subr.mxu0 0.0
  %2890 = vmatpush1.xpose.msra.mxu0 0.0
  %2891 = vmatprep.subr.mxu0 0.0
  %2892 = vmatpush1.xpose.msra.mxu0 0.0
  %2893 = vmatprep.subr.mxu0 0.0
  %2894 = vmatpush1.xpose.msra.mxu0 0.0
  %2895 = vmatprep.subr.mxu0 0.0
  %2896 = vmatpush1.xpose.msra.mxu0 0.0
  %2897 = vmatprep.subr.mxu0 0.0
  %2898 = vmatpush1.xpose.msra.mxu0 0.0
  %2899 = vmatprep.subr.mxu0 0.0
  %2900 = vmatpush1.xpose.msra.mxu0 0.0
  %2901 = vmatprep.subr.mxu0 0.0
  %2902 = vmatpush1.xpose.msra.mxu0 0.0
  %2903 = vmatprep.subr.mxu0 0.0
  %2904 = vmatpush1.xpose.msra.mxu0 0.0
  %2905 = vmatprep.subr.mxu0 0.0
  %2906 = vmatpush1.xpose.msra.mxu0 0.0
  %2907 = vmatprep.subr.mxu0 0.0
  %2908 = vmatpush1.xpose.msra.mxu0 %v2877
  %2909 = vmatprep.subr.mxu0 0.0
  %2910 = vmatpush1.xpose.msra.mxu0 %v2874
  %2911 = vmatprep.subr.mxu0 0.0
  %2912 = vmatpush2.xpose.msra.mxu0 0.0
  %2913 = vmatprep.subr.mxu0 0.0
  %2914 = vmatpush2.xpose.msra.mxu0 0.0
  %2915 = vmatprep.subr.mxu0 0.0
  %2916 = vmatpush2.xpose.msra.mxu0 0.0
  %2917 = vmatprep.subr.mxu0 0.0
  %2918 = vmatpush2.xpose.msra.mxu0 0.0
  %2919 = vmatprep.subr.mxu0 0.0
  %2920 = vmatpush2.xpose.msra.mxu0 0.0
  %2921 = vmatprep.subr.mxu0 0.0
  %2922 = vmatpush2.xpose.msra.mxu0 0.0
  %2923 = vmatprep.subr.mxu0 0.0
  %2924 = vmatpush2.xpose.msra.mxu0 0.0
  %2925 = vmatprep.subr.mxu0 0.0
  %2926 = vmatpush2.xpose.msra.mxu0 0.0
  %2927 = vmatprep.subr.mxu0 0.0
  %2928 = vmatpush2.xpose.msra.mxu0 0.0
  %2929 = vmatprep.subr.mxu0 0.0
  %2930 = vmatpush2.xpose.msra.mxu0 0.0
  %2931 = vmatprep.subr.mxu0 0.0
  %2932 = vmatpush2.xpose.msra.mxu0 0.0
  %2933 = vmatprep.subr.mxu0 0.0
  %2934 = vmatpush2.xpose.msra.mxu0 0.0
  %2935 = vmatprep.subr.mxu0 0.0
  %2936 = vmatpush2.xpose.msra.mxu0 0.0
  %2937 = vmatprep.subr.mxu0 0.0
  %2938 = vmatpush2.xpose.msra.mxu0 0.0
  %2939 = vmatprep.subr.mxu0 0.0
  %2940 = vmatpush2.xpose.msra.mxu0 0.0
  %2941 = vmatprep.subr.mxu0 0.0
  %2942 = vmatpush2.xpose.msra.mxu0 0.0
  %2943 = vmatprep.mubr.f32.mxu0 0.0
  %2944 = vmatmul.mubr.f32.gmra.mxu0 %v2868
  %v2945 = vpop.f32.mrf.mxu0
  %v2946 = vadd.f32 0.0, %v2945
  %v2947 = vpop.f32.mrf.mxu0
  %2948 = vmatprep.mubr.f32.mxu0 0.0
  %2949 = vmatmul.mubr.f32.gmra.mxu0 %v2871
  %v2950 = vpop.f32.mrf.mxu0
  %v2951 = vadd.f32 0.0, %v2950
  %v2952 = vpop.f32.mrf.mxu0
  %2953 = vdwg.mxu0
  %v2955 = vsel %vm256, %v126, 0
  %v2958 = vsel %vm256, %v127, 0
  %v2961 = vsel %vm256, %v190, 0
  %v2964 = vsel %vm256, %v191, 0
  %2966 = vmatprep.subr.mxu0 0.0
  %2967 = vmatpush1.xpose.msra.mxu0 0.0
  %2968 = vmatprep.subr.mxu0 0.0
  %2969 = vmatpush1.xpose.msra.mxu0 0.0
  %2970 = vmatprep.subr.mxu0 0.0
  %2971 = vmatpush1.xpose.msra.mxu0 0.0
  %2972 = vmatprep.subr.mxu0 0.0
  %2973 = vmatpush1.xpose.msra.mxu0 0.0
  %2974 = vmatprep.subr.mxu0 0.0
  %2975 = vmatpush1.xpose.msra.mxu0 0.0
  %2976 = vmatprep.subr.mxu0 0.0
  %2977 = vmatpush1.xpose.msra.mxu0 0.0
  %2978 = vmatprep.subr.mxu0 0.0
  %2979 = vmatpush1.xpose.msra.mxu0 0.0
  %2980 = vmatprep.subr.mxu0 0.0
  %2981 = vmatpush1.xpose.msra.mxu0 0.0
  %2982 = vmatprep.subr.mxu0 0.0
  %2983 = vmatpush1.xpose.msra.mxu0 0.0
  %2984 = vmatprep.subr.mxu0 0.0
  %2985 = vmatpush1.xpose.msra.mxu0 0.0
  %2986 = vmatprep.subr.mxu0 0.0
  %2987 = vmatpush1.xpose.msra.mxu0 0.0
  %2988 = vmatprep.subr.mxu0 0.0
  %2989 = vmatpush1.xpose.msra.mxu0 0.0
  %2990 = vmatprep.subr.mxu0 0.0
  %2991 = vmatpush1.xpose.msra.mxu0 0.0
  %2992 = vmatprep.subr.mxu0 0.0
  %2993 = vmatpush1.xpose.msra.mxu0 0.0
  %2994 = vmatprep.subr.mxu0 0.0
  %2995 = vmatpush1.xpose.msra.mxu0 %v2964
  %2996 = vmatprep.subr.mxu0 0.0
  %2997 = vmatpush1.xpose.msra.mxu0 %v2961
  %2998 = vmatprep.subr.mxu0 0.0
  %2999 = vmatpush2.xpose.msra.mxu0 0.0
  %3000 = vmatprep.subr.mxu0 0.0
  %3001 = vmatpush2.xpose.msra.mxu0 0.0
  %3002 = vmatprep.subr.mxu0 0.0
  %3003 = vmatpush2.xpose.msra.mxu0 0.0
  %3004 = vmatprep.subr.mxu0 0.0
  %3005 = vmatpush2.xpose.msra.mxu0 0.0
  %3006 = vmatprep.subr.mxu0 0.0
  %3007 = vmatpush2.xpose.msra.mxu0 0.0
  %3008 = vmatprep.subr.mxu0 0.0
  %3009 = vmatpush2.xpose.msra.mxu0 0.0
  %3010 = vmatprep.subr.mxu0 0.0
  %3011 = vmatpush2.xpose.msra.mxu0 0.0
  %3012 = vmatprep.subr.mxu0 0.0
  %3013 = vmatpush2.xpose.msra.mxu0 0.0
  %3014 = vmatprep.subr.mxu0 0.0
  %3015 = vmatpush2.xpose.msra.mxu0 0.0
  %3016 = vmatprep.subr.mxu0 0.0
  %3017 = vmatpush2.xpose.msra.mxu0 0.0
  %3018 = vmatprep.subr.mxu0 0.0
  %3019 = vmatpush2.xpose.msra.mxu0 0.0
  %3020 = vmatprep.subr.mxu0 0.0
  %3021 = vmatpush2.xpose.msra.mxu0 0.0
  %3022 = vmatprep.subr.mxu0 0.0
  %3023 = vmatpush2.xpose.msra.mxu0 0.0
  %3024 = vmatprep.subr.mxu0 0.0
  %3025 = vmatpush2.xpose.msra.mxu0 0.0
  %3026 = vmatprep.subr.mxu0 0.0
  %3027 = vmatpush2.xpose.msra.mxu0 0.0
  %3028 = vmatprep.subr.mxu0 0.0
  %3029 = vmatpush2.xpose.msra.mxu0 0.0
  %3030 = vmatprep.mubr.f32.mxu0 0.0
  %3031 = vmatmul.mubr.f32.gmra.mxu0 %v2955
  %v3032 = vpop.f32.mrf.mxu0
  %v3033 = vadd.f32 0.0, %v3032
  %v3034 = vpop.f32.mrf.mxu0
  %3035 = vmatprep.mubr.f32.mxu0 0.0
  %3036 = vmatmul.mubr.f32.gmra.mxu0 %v2958
  %v3037 = vpop.f32.mrf.mxu0
  %v3038 = vadd.f32 0.0, %v3037
  %v3039 = vpop.f32.mrf.mxu0
  %3040 = vdwg.mxu0
  %v3041 = vmul.f32 %v336, 0.5
  %v3042 = vmul.f32 %v341, 0.5
  %v3043 = vmul.f32 %v423, 0.5
  %v3044 = vmul.f32 %v428, 0.5
  %v3045 = vmul.f32 %v510, 0.5
  %v3046 = vmul.f32 %v515, 0.5
  %v3047 = vmul.f32 %v597, 0.5
  %v3048 = vmul.f32 %v602, 0.5
  %v3049 = vmul.f32 %v684, 0.5
  %v3050 = vmul.f32 %v689, 0.5
  %v3051 = vmul.f32 %v771, 0.5
  %v3052 = vmul.f32 %v776, 0.5
  %v3053 = vmul.f32 %v858, 0.5
  %v3054 = vmul.f32 %v863, 0.5
  %v3055 = vmul.f32 %v945, 0.5
  %v3056 = vmul.f32 %v950, 0.5
  %v3057 = vmul.f32 %v1032, 0.5
  %v3058 = vmul.f32 %v1037, 0.5
  %v3059 = vmul.f32 %v1119, 0.5
  %v3060 = vmul.f32 %v1124, 0.5
  %v3061 = vmul.f32 %v1206, 0.5
  %v3062 = vmul.f32 %v1211, 0.5
  %v3063 = vmul.f32 %v1293, 0.5
  %v3064 = vmul.f32 %v1298, 0.5
  %v3065 = vmul.f32 %v1380, 0.5
  %v3066 = vmul.f32 %v1385, 0.5
  %v3067 = vmul.f32 %v1467, 0.5
  %v3068 = vmul.f32 %v1472, 0.5
  %v3069 = vmul.f32 %v1554, 0.5
  %v3070 = vmul.f32 %v1559, 0.5
  %v3071 = vmul.f32 %v1641, 0.5
  %v3072 = vmul.f32 %v1646, 0.5
  %v3073 = vmul.f32 %v1728, 0.5
  %v3074 = vmul.f32 %v1733, 0.5
  %v3075 = vmul.f32 %v1815, 0.5
  %v3076 = vmul.f32 %v1820, 0.5
  %v3077 = vmul.f32 %v1902, 0.5
  %v3078 = vmul.f32 %v1907, 0.5
  %v3079 = vmul.f32 %v1989, 0.5
  %v3080 = vmul.f32 %v1994, 0.5
  %v3081 = vmul.f32 %v2076, 0.5
  %v3082 = vmul.f32 %v2081, 0.5
  %v3083 = vmul.f32 %v2163, 0.5
  %v3084 = vmul.f32 %v2168, 0.5
  %v3085 = vmul.f32 %v2250, 0.5
  %v3086 = vmul.f32 %v2255, 0.5
  %v3087 = vmul.f32 %v2337, 0.5
  %v3088 = vmul.f32 %v2342, 0.5
  %v3089 = vmul.f32 %v2424, 0.5
  %v3090 = vmul.f32 %v2429, 0.5
  %v3091 = vmul.f32 %v2511, 0.5
  %v3092 = vmul.f32 %v2516, 0.5
  %v3093 = vmul.f32 %v2598, 0.5
  %v3094 = vmul.f32 %v2603, 0.5
  %v3095 = vmul.f32 %v2685, 0.5
  %v3096 = vmul.f32 %v2690, 0.5
  %v3097 = vmul.f32 %v2772, 0.5
  %v3098 = vmul.f32 %v2777, 0.5
  %v3099 = vmul.f32 %v2859, 0.5
  %v3100 = vmul.f32 %v2864, 0.5
  %v3101 = vmul.f32 %v2946, 0.5
  %v3102 = vmul.f32 %v2951, 0.5
  %v3103 = vmul.f32 %v3033, 0.5
  %v3104 = vmul.f32 %v3038, 0.5
  %v3105 = vsel %vm256, %v3041, -inf
  %v3106 = vsel %vm256, %v3045, -inf
  %v3107 = vmax.f32 %v3105, %v3106
  %v3108 = vsel %vm256, %v3042, -inf
  %v3109 = vsel %vm256, %v3046, -inf
  %v3110 = vmax.f32 %v3108, %v3109
  %v3111 = vsel %vm256, %v3043, -inf
  %v3112 = vsel %vm256, %v3047, -inf
  %v3113 = vmax.f32 %v3111, %v3112
  %v3114 = vsel %vm256, %v3044, -inf
  %v3115 = vsel %vm256, %v3048, -inf
  %v3116 = vmax.f32 %v3114, %v3115
  %v3117 = vsel %vm256, %v3049, -inf
  %v3118 = vsel %vm256, %v3053, -inf
  %v3119 = vmax.f32 %v3117, %v3118
  %v3120 = vsel %vm256, %v3050, -inf
  %v3121 = vsel %vm256, %v3054, -inf
  %v3122 = vmax.f32 %v3120, %v3121
  %v3123 = vsel %vm256, %v3051, -inf
  %v3124 = vsel %vm256, %v3055, -inf
  %v3125 = vmax.f32 %v3123, %v3124
  %v3126 = vsel %vm256, %v3052, -inf
  %v3127 = vsel %vm256, %v3056, -inf
  %v3128 = vmax.f32 %v3126, %v3127
  %v3129 = vsel %vm256, %v3057, -inf
  %v3130 = vsel %vm256, %v3061, -inf
  %v3131 = vmax.f32 %v3129, %v3130
  %v3132 = vsel %vm256, %v3058, -inf
  %v3133 = vsel %vm256, %v3062, -inf
  %v3134 = vmax.f32 %v3132, %v3133
  %v3135 = vsel %vm256, %v3059, -inf
  %v3136 = vsel %vm256, %v3063, -inf
  %v3137 = vmax.f32 %v3135, %v3136
  %v3138 = vsel %vm256, %v3060, -inf
  %v3139 = vsel %vm256, %v3064, -inf
  %v3140 = vmax.f32 %v3138, %v3139
  %v3141 = vsel %vm256, %v3065, -inf
  %v3142 = vsel %vm256, %v3069, -inf
  %v3143 = vmax.f32 %v3141, %v3142
  %v3144 = vsel %vm256, %v3066, -inf
  %v3145 = vsel %vm256, %v3070, -inf
  %v3146 = vmax.f32 %v3144, %v3145
  %v3147 = vsel %vm256, %v3067, -inf
  %v3148 = vsel %vm256, %v3071, -inf
  %v3149 = vmax.f32 %v3147, %v3148
  %v3150 = vsel %vm256, %v3068, -inf
  %v3151 = vsel %vm256, %v3072, -inf
  %v3152 = vmax.f32 %v3150, %v3151
  %v3153 = vsel %vm256, %v3073, -inf
  %v3154 = vsel %vm256, %v3077, -inf
  %v3155 = vmax.f32 %v3153, %v3154
  %v3156 = vsel %vm256, %v3074, -inf
  %v3157 = vsel %vm256, %v3078, -inf
  %v3158 = vmax.f32 %v3156, %v3157
  %v3159 = vsel %vm256, %v3075, -inf
  %v3160 = vsel %vm256, %v3079, -inf
  %v3161 = vmax.f32 %v3159, %v3160
  %v3162 = vsel %vm256, %v3076, -inf
  %v3163 = vsel %vm256, %v3080, -inf
  %v3164 = vmax.f32 %v3162, %v3163
  %v3165 = vsel %vm256, %v3081, -inf
  %v3166 = vsel %vm256, %v3085, -inf
  %v3167 = vmax.f32 %v3165, %v3166
  %v3168 = vsel %vm256, %v3082, -inf
  %v3169 = vsel %vm256, %v3086, -inf
  %v3170 = vmax.f32 %v3168, %v3169
  %v3171 = vsel %vm256, %v3083, -inf
  %v3172 = vsel %vm256, %v3087, -inf
  %v3173 = vmax.f32 %v3171, %v3172
  %v3174 = vsel %vm256, %v3084, -inf
  %v3175 = vsel %vm256, %v3088, -inf
  %v3176 = vmax.f32 %v3174, %v3175
  %v3177 = vsel %vm256, %v3089, -inf
  %v3178 = vsel %vm256, %v3093, -inf
  %v3179 = vmax.f32 %v3177, %v3178
  %v3180 = vsel %vm256, %v3090, -inf
  %v3181 = vsel %vm256, %v3094, -inf
  %v3182 = vmax.f32 %v3180, %v3181
  %v3183 = vsel %vm256, %v3091, -inf
  %v3184 = vsel %vm256, %v3095, -inf
  %v3185 = vmax.f32 %v3183, %v3184
  %v3186 = vsel %vm256, %v3092, -inf
  %v3187 = vsel %vm256, %v3096, -inf
  %v3188 = vmax.f32 %v3186, %v3187
  %v3189 = vsel %vm256, %v3097, -inf
  %v3190 = vsel %vm256, %v3101, -inf
  %v3191 = vmax.f32 %v3189, %v3190
  %v3192 = vsel %vm256, %v3098, -inf
  %v3193 = vsel %vm256, %v3102, -inf
  %v3194 = vmax.f32 %v3192, %v3193
  %v3195 = vsel %vm256, %v3099, -inf
  %v3196 = vsel %vm256, %v3103, -inf
  %v3197 = vmax.f32 %v3195, %v3196
  %v3198 = vsel %vm256, %v3100, -inf
  %v3199 = vsel %vm256, %v3104, -inf
  %v3200 = vmax.f32 %v3198, %v3199
  %v3201 = vsub.f32 %v3041, %v3107
  %v3202 = vsub.f32 %v3042, %v3110
  %v3203 = vsub.f32 %v3043, %v3113
  %v3204 = vsub.f32 %v3044, %v3116
  %v3205 = vsub.f32 %v3045, %v3107
  %v3206 = vsub.f32 %v3046, %v3110
  %v3207 = vsub.f32 %v3047, %v3113
  %v3208 = vsub.f32 %v3048, %v3116
  %v3209 = vsub.f32 %v3049, %v3119
  %v3210 = vsub.f32 %v3050, %v3122
  %v3211 = vsub.f32 %v3051, %v3125
  %v3212 = vsub.f32 %v3052, %v3128
  %v3213 = vsub.f32 %v3053, %v3119
  %v3214 = vsub.f32 %v3054, %v3122
  %v3215 = vsub.f32 %v3055, %v3125
  %v3216 = vsub.f32 %v3056, %v3128
  %v3217 = vsub.f32 %v3057, %v3131
  %v3218 = vsub.f32 %v3058, %v3134
  %v3219 = vsub.f32 %v3059, %v3137
  %v3220 = vsub.f32 %v3060, %v3140
  %v3221 = vsub.f32 %v3061, %v3131
  %v3222 = vsub.f32 %v3062, %v3134
  %v3223 = vsub.f32 %v3063, %v3137
  %v3224 = vsub.f32 %v3064, %v3140
  %v3225 = vsub.f32 %v3065, %v3143
  %v3226 = vsub.f32 %v3066, %v3146
  %v3227 = vsub.f32 %v3067, %v3149
  %v3228 = vsub.f32 %v3068, %v3152
  %v3229 = vsub.f32 %v3069, %v3143
  %v3230 = vsub.f32 %v3070, %v3146
  %v3231 = vsub.f32 %v3071, %v3149
  %v3232 = vsub.f32 %v3072, %v3152
  %v3233 = vsub.f32 %v3073, %v3155
  %v3234 = vsub.f32 %v3074, %v3158
  %v3235 = vsub.f32 %v3075, %v3161
  %v3236 = vsub.f32 %v3076, %v3164
  %v3237 = vsub.f32 %v3077, %v3155
  %v3238 = vsub.f32 %v3078, %v3158
  %v3239 = vsub.f32 %v3079, %v3161
  %v3240 = vsub.f32 %v3080, %v3164
  %v3241 = vsub.f32 %v3081, %v3167
  %v3242 = vsub.f32 %v3082, %v3170
  %v3243 = vsub.f32 %v3083, %v3173
  %v3244 = vsub.f32 %v3084, %v3176
  %v3245 = vsub.f32 %v3085, %v3167
  %v3246 = vsub.f32 %v3086, %v3170
  %v3247 = vsub.f32 %v3087, %v3173
  %v3248 = vsub.f32 %v3088, %v3176
  %v3249 = vsub.f32 %v3089, %v3179
  %v3250 = vsub.f32 %v3090, %v3182
  %v3251 = vsub.f32 %v3091, %v3185
  %v3252 = vsub.f32 %v3092, %v3188
  %v3253 = vsub.f32 %v3093, %v3179
  %v3254 = vsub.f32 %v3094, %v3182
  %v3255 = vsub.f32 %v3095, %v3185
  %v3256 = vsub.f32 %v3096, %v3188
  %v3257 = vsub.f32 %v3097, %v3191
  %v3258 = vsub.f32 %v3098, %v3194
  %v3259 = vsub.f32 %v3099, %v3197
  %v3260 = vsub.f32 %v3100, %v3200
  %v3261 = vsub.f32 %v3101, %v3191
  %v3262 = vsub.f32 %v3102, %v3194
  %v3263 = vsub.f32 %v3103, %v3197
  %v3264 = vsub.f32 %v3104, %v3200
  %v3265 = vmul.f32 %v3201, 1.442695
  %v3266 = vpow.pop %v3265
  %v3267 = vmul.f32 %v3202, 1.442695
  %v3268 = vpow.pop %v3267
  %v3269 = vmul.f32 %v3203, 1.442695
  %v3270 = vpow.pop %v3269
  %v3271 = vmul.f32 %v3204, 1.442695
  %v3272 = vpow.pop %v3271
  %v3273 = vmul.f32 %v3205, 1.442695
  %v3274 = vpow.pop %v3273
  %v3275 = vmul.f32 %v3206, 1.442695
  %v3276 = vpow.pop %v3275
  %v3277 = vmul.f32 %v3207, 1.442695
  %v3278 = vpow.pop %v3277
  %v3279 = vmul.f32 %v3208, 1.442695
  %v3280 = vpow.pop %v3279
  %v3281 = vmul.f32 %v3209, 1.442695
  %v3282 = vpow.pop %v3281
  %v3283 = vmul.f32 %v3210, 1.442695
  %v3284 = vpow.pop %v3283
  %v3285 = vmul.f32 %v3211, 1.442695
  %v3286 = vpow.pop %v3285
  %v3287 = vmul.f32 %v3212, 1.442695
  %v3288 = vpow.pop %v3287
  %v3289 = vmul.f32 %v3213, 1.442695
  %v3290 = vpow.pop %v3289
  %v3291 = vmul.f32 %v3214, 1.442695
  %v3292 = vpow.pop %v3291
  %v3293 = vmul.f32 %v3215, 1.442695
  %v3294 = vpow.pop %v3293
  %v3295 = vmul.f32 %v3216, 1.442695
  %v3296 = vpow.pop %v3295
  %v3297 = vmul.f32 %v3217, 1.442695
  %v3298 = vpow.pop %v3297
  %v3299 = vmul.f32 %v3218, 1.442695
  %v3300 = vpow.pop %v3299
  %v3301 = vmul.f32 %v3219, 1.442695
  %v3302 = vpow.pop %v3301
  %v3303 = vmul.f32 %v3220, 1.442695
  %v3304 = vpow.pop %v3303
  %v3305 = vmul.f32 %v3221, 1.442695
  %v3306 = vpow.pop %v3305
  %v3307 = vmul.f32 %v3222, 1.442695
  %v3308 = vpow.pop %v3307
  %v3309 = vmul.f32 %v3223, 1.442695
  %v3310 = vpow.pop %v3309
  %v3311 = vmul.f32 %v3224, 1.442695
  %v3312 = vpow.pop %v3311
  %v3313 = vmul.f32 %v3225, 1.442695
  %v3314 = vpow.pop %v3313
  %v3315 = vmul.f32 %v3226, 1.442695
  %v3316 = vpow.pop %v3315
  %v3317 = vmul.f32 %v3227, 1.442695
  %v3318 = vpow.pop %v3317
  %v3319 = vmul.f32 %v3228, 1.442695
  %v3320 = vpow.pop %v3319
  %v3321 = vmul.f32 %v3229, 1.442695
  %v3322 = vpow.pop %v3321
  %v3323 = vmul.f32 %v3230, 1.442695
  %v3324 = vpow.pop %v3323
  %v3325 = vmul.f32 %v3231, 1.442695
  %v3326 = vpow.pop %v3325
  %v3327 = vmul.f32 %v3232, 1.442695
  %v3328 = vpow.pop %v3327
  %v3329 = vmul.f32 %v3233, 1.442695
  %v3330 = vpow.pop %v3329
  %v3331 = vmul.f32 %v3234, 1.442695
  %v3332 = vpow.pop %v3331
  %v3333 = vmul.f32 %v3235, 1.442695
  %v3334 = vpow.pop %v3333
  %v3335 = vmul.f32 %v3236, 1.442695
  %v3336 = vpow.pop %v3335
  %v3337 = vmul.f32 %v3237, 1.442695
  %v3338 = vpow.pop %v3337
  %v3339 = vmul.f32 %v3238, 1.442695
  %v3340 = vpow.pop %v3339
  %v3341 = vmul.f32 %v3239, 1.442695
  %v3342 = vpow.pop %v3341
  %v3343 = vmul.f32 %v3240, 1.442695
  %v3344 = vpow.pop %v3343
  %v3345 = vmul.f32 %v3241, 1.442695
  %v3346 = vpow.pop %v3345
  %v3347 = vmul.f32 %v3242, 1.442695
  %v3348 = vpow.pop %v3347
  %v3349 = vmul.f32 %v3243, 1.442695
  %v3350 = vpow.pop %v3349
  %v3351 = vmul.f32 %v3244, 1.442695
  %v3352 = vpow.pop %v3351
  %v3353 = vmul.f32 %v3245, 1.442695
  %v3354 = vpow.pop %v3353
  %v3355 = vmul.f32 %v3246, 1.442695
  %v3356 = vpow.pop %v3355
  %v3357 = vmul.f32 %v3247, 1.442695
  %v3358 = vpow.pop %v3357
  %v3359 = vmul.f32 %v3248, 1.442695
  %v3360 = vpow.pop %v3359
  %v3361 = vmul.f32 %v3249, 1.442695
  %v3362 = vpow.pop %v3361
  %v3363 = vmul.f32 %v3250, 1.442695
  %v3364 = vpow.pop %v3363
  %v3365 = vmul.f32 %v3251, 1.442695
  %v3366 = vpow.pop %v3365
  %v3367 = vmul.f32 %v3252, 1.442695
  %v3368 = vpow.pop %v3367
  %v3369 = vmul.f32 %v3253, 1.442695
  %v3370 = vpow.pop %v3369
  %v3371 = vmul.f32 %v3254, 1.442695
  %v3372 = vpow.pop %v3371
  %v3373 = vmul.f32 %v3255, 1.442695
  %v3374 = vpow.pop %v3373
  %v3375 = vmul.f32 %v3256, 1.442695
  %v3376 = vpow.pop %v3375
  %v3377 = vmul.f32 %v3257, 1.442695
  %v3378 = vpow.pop %v3377
  %v3379 = vmul.f32 %v3258, 1.442695
  %v3380 = vpow.pop %v3379
  %v3381 = vmul.f32 %v3259, 1.442695
  %v3382 = vpow.pop %v3381
  %v3383 = vmul.f32 %v3260, 1.442695
  %v3384 = vpow.pop %v3383
  %v3385 = vmul.f32 %v3261, 1.442695
  %v3386 = vpow.pop %v3385
  %v3387 = vmul.f32 %v3262, 1.442695
  %v3388 = vpow.pop %v3387
  %v3389 = vmul.f32 %v3263, 1.442695
  %v3390 = vpow.pop %v3389
  %v3391 = vmul.f32 %v3264, 1.442695
  %v3392 = vpow.pop %v3391
  %v3393 = vsel %vm256, %v3266, 0.0
  %v3394 = vsel %vm256, %v3274, 0.0
  %v3395 = vadd.f32 %v3393, %v3394
  %v3396 = vsel %vm256, %v3268, 0.0
  %v3397 = vsel %vm256, %v3276, 0.0
  %v3398 = vadd.f32 %v3396, %v3397
  %v3399 = vsel %vm256, %v3270, 0.0
  %v3400 = vsel %vm256, %v3278, 0.0
  %v3401 = vadd.f32 %v3399, %v3400
  %v3402 = vsel %vm256, %v3272, 0.0
  %v3403 = vsel %vm256, %v3280, 0.0
  %v3404 = vadd.f32 %v3402, %v3403
  %v3405 = vsel %vm256, %v3282, 0.0
  %v3406 = vsel %vm256, %v3290, 0.0
  %v3407 = vadd.f32 %v3405, %v3406
  %v3408 = vsel %vm256, %v3284, 0.0
  %v3409 = vsel %vm256, %v3292, 0.0
  %v3410 = vadd.f32 %v3408, %v3409
  %v3411 = vsel %vm256, %v3286, 0.0
  %v3412 = vsel %vm256, %v3294, 0.0
  %v3413 = vadd.f32 %v3411, %v3412
  %v3414 = vsel %vm256, %v3288, 0.0
  %v3415 = vsel %vm256, %v3296, 0.0
  %v3416 = vadd.f32 %v3414, %v3415
  %v3417 = vsel %vm256, %v3298, 0.0
  %v3418 = vsel %vm256, %v3306, 0.0
  %v3419 = vadd.f32 %v3417, %v3418
  %v3420 = vsel %vm256, %v3300, 0.0
  %v3421 = vsel %vm256, %v3308, 0.0
  %v3422 = vadd.f32 %v3420, %v3421
  %v3423 = vsel %vm256, %v3302, 0.0
  %v3424 = vsel %vm256, %v3310, 0.0
  %v3425 = vadd.f32 %v3423, %v3424
  %v3426 = vsel %vm256, %v3304, 0.0
  %v3427 = vsel %vm256, %v3312, 0.0
  %v3428 = vadd.f32 %v3426, %v3427
  %v3429 = vsel %vm256, %v3314, 0.0
  %v3430 = vsel %vm256, %v3322, 0.0
  %v3431 = vadd.f32 %v3429, %v3430
  %v3432 = vsel %vm256, %v3316, 0.0
  %v3433 = vsel %vm256, %v3324, 0.0
  %v3434 = vadd.f32 %v3432, %v3433
  %v3435 = vsel %vm256, %v3318, 0.0
  %v3436 = vsel %vm256, %v3326, 0.0
  %v3437 = vadd.f32 %v3435, %v3436
  %v3438 = vsel %vm256, %v3320, 0.0
  %v3439 = vsel %vm256, %v3328, 0.0
  %v3440 = vadd.f32 %v3438, %v3439
  %v3441 = vsel %vm256, %v3330, 0.0
  %v3442 = vsel %vm256, %v3338, 0.0
  %v3443 = vadd.f32 %v3441, %v3442
  %v3444 = vsel %vm256, %v3332, 0.0
  %v3445 = vsel %vm256, %v3340, 0.0
  %v3446 = vadd.f32 %v3444, %v3445
  %v3447 = vsel %vm256, %v3334, 0.0
  %v3448 = vsel %vm256, %v3342, 0.0
  %v3449 = vadd.f32 %v3447, %v3448
  %v3450 = vsel %vm256, %v3336, 0.0
  %v3451 = vsel %vm256, %v3344, 0.0
  %v3452 = vadd.f32 %v3450, %v3451
  %v3453 = vsel %vm256, %v3346, 0.0
  %v3454 = vsel %vm256, %v3354, 0.0
  %v3455 = vadd.f32 %v3453, %v3454
  %v3456 = vsel %vm256, %v3348, 0.0
  %v3457 = vsel %vm256, %v3356, 0.0
  %v3458 = vadd.f32 %v3456, %v3457
  %v3459 = vsel %vm256, %v3350, 0.0
  %v3460 = vsel %vm256, %v3358, 0.0
  %v3461 = vadd.f32 %v3459, %v3460
  %v3462 = vsel %vm256, %v3352, 0.0
  %v3463 = vsel %vm256, %v3360, 0.0
  %v3464 = vadd.f32 %v3462, %v3463
  %v3465 = vsel %vm256, %v3362, 0.0
  %v3466 = vsel %vm256, %v3370, 0.0
  %v3467 = vadd.f32 %v3465, %v3466
  %v3468 = vsel %vm256, %v3364, 0.0
  %v3469 = vsel %vm256, %v3372, 0.0
  %v3470 = vadd.f32 %v3468, %v3469
  %v3471 = vsel %vm256, %v3366, 0.0
  %v3472 = vsel %vm256, %v3374, 0.0
  %v3473 = vadd.f32 %v3471, %v3472
  %v3474 = vsel %vm256, %v3368, 0.0
  %v3475 = vsel %vm256, %v3376, 0.0
  %v3476 = vadd.f32 %v3474, %v3475
  %v3477 = vsel %vm256, %v3378, 0.0
  %v3478 = vsel %vm256, %v3386, 0.0
  %v3479 = vadd.f32 %v3477, %v3478
  %v3480 = vsel %vm256, %v3380, 0.0
  %v3481 = vsel %vm256, %v3388, 0.0
  %v3482 = vadd.f32 %v3480, %v3481
  %v3483 = vsel %vm256, %v3382, 0.0
  %v3484 = vsel %vm256, %v3390, 0.0
  %v3485 = vadd.f32 %v3483, %v3484
  %v3486 = vsel %vm256, %v3384, 0.0
  %v3487 = vsel %vm256, %v3392, 0.0
  %v3488 = vadd.f32 %v3486, %v3487
  %v3489 = vrcp.pop %v3395
  %v3490 = vrcp.pop %v3398
  %v3491 = vrcp.pop %v3401
  %v3492 = vrcp.pop %v3404
  %v3493 = vrcp.pop %v3407
  %v3494 = vrcp.pop %v3410
  %v3495 = vrcp.pop %v3413
  %v3496 = vrcp.pop %v3416
  %v3497 = vrcp.pop %v3419
  %v3498 = vrcp.pop %v3422
  %v3499 = vrcp.pop %v3425
  %v3500 = vrcp.pop %v3428
  %v3501 = vrcp.pop %v3431
  %v3502 = vrcp.pop %v3434
  %v3503 = vrcp.pop %v3437
  %v3504 = vrcp.pop %v3440
  %v3505 = vrcp.pop %v3443
  %v3506 = vrcp.pop %v3446
  %v3507 = vrcp.pop %v3449
  %v3508 = vrcp.pop %v3452
  %v3509 = vrcp.pop %v3455
  %v3510 = vrcp.pop %v3458
  %v3511 = vrcp.pop %v3461
  %v3512 = vrcp.pop %v3464
  %v3513 = vrcp.pop %v3467
  %v3514 = vrcp.pop %v3470
  %v3515 = vrcp.pop %v3473
  %v3516 = vrcp.pop %v3476
  %v3517 = vrcp.pop %v3479
  %v3518 = vrcp.pop %v3482
  %v3519 = vrcp.pop %v3485
  %v3520 = vrcp.pop %v3488
  %v3521 = vmul.f32 %v3266, %v3489
  %v3522 = vmul.f32 %v3268, %v3490
  %v3523 = vmul.f32 %v3270, %v3491
  %v3524 = vmul.f32 %v3272, %v3492
  %v3525 = vmul.f32 %v3274, %v3489
  %v3526 = vmul.f32 %v3276, %v3490
  %v3527 = vmul.f32 %v3278, %v3491
  %v3528 = vmul.f32 %v3280, %v3492
  %v3529 = vmul.f32 %v3282, %v3493
  %v3530 = vmul.f32 %v3284, %v3494
  %v3531 = vmul.f32 %v3286, %v3495
  %v3532 = vmul.f32 %v3288, %v3496
  %v3533 = vmul.f32 %v3290, %v3493
  %v3534 = vmul.f32 %v3292, %v3494
  %v3535 = vmul.f32 %v3294, %v3495
  %v3536 = vmul.f32 %v3296, %v3496
  %v3537 = vmul.f32 %v3298, %v3497
  %v3538 = vmul.f32 %v3300, %v3498
  %v3539 = vmul.f32 %v3302, %v3499
  %v3540 = vmul.f32 %v3304, %v3500
  %v3541 = vmul.f32 %v3306, %v3497
  %v3542 = vmul.f32 %v3308, %v3498
  %v3543 = vmul.f32 %v3310, %v3499
  %v3544 = vmul.f32 %v3312, %v3500
  %v3545 = vmul.f32 %v3314, %v3501
  %v3546 = vmul.f32 %v3316, %v3502
  %v3547 = vmul.f32 %v3318, %v3503
  %v3548 = vmul.f32 %v3320, %v3504
  %v3549 = vmul.f32 %v3322, %v3501
  %v3550 = vmul.f32 %v3324, %v3502
  %v3551 = vmul.f32 %v3326, %v3503
  %v3552 = vmul.f32 %v3328, %v3504
  %v3553 = vmul.f32 %v3330, %v3505
  %v3554 = vmul.f32 %v3332, %v3506
  %v3555 = vmul.f32 %v3334, %v3507
  %v3556 = vmul.f32 %v3336, %v3508
  %v3557 = vmul.f32 %v3338, %v3505
  %v3558 = vmul.f32 %v3340, %v3506
  %v3559 = vmul.f32 %v3342, %v3507
  %v3560 = vmul.f32 %v3344, %v3508
  %v3561 = vmul.f32 %v3346, %v3509
  %v3562 = vmul.f32 %v3348, %v3510
  %v3563 = vmul.f32 %v3350, %v3511
  %v3564 = vmul.f32 %v3352, %v3512
  %v3565 = vmul.f32 %v3354, %v3509
  %v3566 = vmul.f32 %v3356, %v3510
  %v3567 = vmul.f32 %v3358, %v3511
  %v3568 = vmul.f32 %v3360, %v3512
  %v3569 = vmul.f32 %v3362, %v3513
  %v3570 = vmul.f32 %v3364, %v3514
  %v3571 = vmul.f32 %v3366, %v3515
  %v3572 = vmul.f32 %v3368, %v3516
  %v3573 = vmul.f32 %v3370, %v3513
  %v3574 = vmul.f32 %v3372, %v3514
  %v3575 = vmul.f32 %v3374, %v3515
  %v3576 = vmul.f32 %v3376, %v3516
  %v3577 = vmul.f32 %v3378, %v3517
  %v3578 = vmul.f32 %v3380, %v3518
  %v3579 = vmul.f32 %v3382, %v3519
  %v3580 = vmul.f32 %v3384, %v3520
  %v3581 = vmul.f32 %v3386, %v3517
  %v3582 = vmul.f32 %v3388, %v3518
  %v3583 = vmul.f32 %v3390, %v3519
  %v3584 = vmul.f32 %v3392, %v3520
  %v3586 = vsel %vm256, %v3521, 0
  %v3589 = vsel %vm256, %v3522, 0
  %3591 = vmatprep.subr.mxu0 0.0
  %3592 = vmatpush1.msra.mxu0 0.0
  %3593 = vmatprep.subr.mxu0 0.0
  %3594 = vmatpush1.msra.mxu0 0.0
  %3595 = vmatprep.subr.mxu0 0.0
  %3596 = vmatpush1.msra.mxu0 0.0
  %3597 = vmatprep.subr.mxu0 0.0
  %3598 = vmatpush1.msra.mxu0 0.0
  %3599 = vmatprep.subr.mxu0 0.0
  %3600 = vmatpush1.msra.mxu0 0.0
  %3601 = vmatprep.subr.mxu0 0.0
  %3602 = vmatpush1.msra.mxu0 0.0
  %3603 = vmatprep.subr.mxu0 0.0
  %3604 = vmatpush1.msra.mxu0 0.0
  %3605 = vmatprep.subr.mxu0 0.0
  %3606 = vmatpush1.msra.mxu0 0.0
  %3607 = vmatprep.subr.mxu0 0.0
  %3608 = vmatpush1.msra.mxu0 0.0
  %3609 = vmatprep.subr.mxu0 0.0
  %3610 = vmatpush1.msra.mxu0 0.0
  %3611 = vmatprep.subr.mxu0 0.0
  %3612 = vmatpush1.msra.mxu0 0.0
  %3613 = vmatprep.subr.mxu0 0.0
  %3614 = vmatpush1.msra.mxu0 0.0
  %3615 = vmatprep.subr.mxu0 0.0
  %3616 = vmatpush1.msra.mxu0 0.0
  %3617 = vmatprep.subr.mxu0 0.0
  %3618 = vmatpush1.msra.mxu0 0.0
  %3619 = vmatprep.subr.mxu0 0.0
  %3620 = vmatpush1.msra.mxu0 %v193
  %3621 = vmatprep.subr.mxu0 0.0
  %3622 = vmatpush1.msra.mxu0 %v192
  %3623 = vmatprep.subr.mxu0 0.0
  %3624 = vmatpush2.msra.mxu0 0.0
  %3625 = vmatprep.subr.mxu0 0.0
  %3626 = vmatpush2.msra.mxu0 0.0
  %3627 = vmatprep.subr.mxu0 0.0
  %3628 = vmatpush2.msra.mxu0 0.0
  %3629 = vmatprep.subr.mxu0 0.0
  %3630 = vmatpush2.msra.mxu0 0.0
  %3631 = vmatprep.subr.mxu0 0.0
  %3632 = vmatpush2.msra.mxu0 0.0
  %3633 = vmatprep.subr.mxu0 0.0
  %3634 = vmatpush2.msra.mxu0 0.0
  %3635 = vmatprep.subr.mxu0 0.0
  %3636 = vmatpush2.msra.mxu0 0.0
  %3637 = vmatprep.subr.mxu0 0.0
  %3638 = vmatpush2.msra.mxu0 0.0
  %3639 = vmatprep.subr.mxu0 0.0
  %3640 = vmatpush2.msra.mxu0 0.0
  %3641 = vmatprep.subr.mxu0 0.0
  %3642 = vmatpush2.msra.mxu0 0.0
  %3643 = vmatprep.subr.mxu0 0.0
  %3644 = vmatpush2.msra.mxu0 0.0
  %3645 = vmatprep.subr.mxu0 0.0
  %3646 = vmatpush2.msra.mxu0 0.0
  %3647 = vmatprep.subr.mxu0 0.0
  %3648 = vmatpush2.msra.mxu0 0.0
  %3649 = vmatprep.subr.mxu0 0.0
  %3650 = vmatpush2.msra.mxu0 0.0
  %3651 = vmatprep.subr.mxu0 0.0
  %3652 = vmatpush2.msra.mxu0 0.0
  %3653 = vmatprep.subr.mxu0 0.0
  %3654 = vmatpush2.msra.mxu0 0.0
  %3655 = vmatprep.mubr.f32.mxu0 0.0
  %3656 = vmatmul.mubr.f32.gmra.mxu0 %v3586
  %v3657 = vpop.f32.mrf.mxu0
  %v3658 = vadd.f32 0.0, %v3657
  %v3659 = vpop.f32.mrf.mxu0
  %3660 = vmatprep.mubr.f32.mxu0 0.0
  %3661 = vmatmul.mubr.f32.gmra.mxu0 %v3589
  %v3662 = vpop.f32.mrf.mxu0
  %v3663 = vadd.f32 0.0, %v3662
  %v3664 = vpop.f32.mrf.mxu0
  %3665 = vdwg.mxu0
  %v3667 = vsel %vm256, %v3523, 0
  %v3670 = vsel %vm256, %v3524, 0
  %3672 = vmatprep.subr.mxu0 0.0
  %3673 = vmatpush1.msra.mxu0 0.0
  %3674 = vmatprep.subr.mxu0 0.0
  %3675 = vmatpush1.msra.mxu0 0.0
  %3676 = vmatprep.subr.mxu0 0.0
  %3677 = vmatpush1.msra.mxu0 0.0
  %3678 = vmatprep.subr.mxu0 0.0
  %3679 = vmatpush1.msra.mxu0 0.0
  %3680 = vmatprep.subr.mxu0 0.0
  %3681 = vmatpush1.msra.mxu0 0.0
  %3682 = vmatprep.subr.mxu0 0.0
  %3683 = vmatpush1.msra.mxu0 0.0
  %3684 = vmatprep.subr.mxu0 0.0
  %3685 = vmatpush1.msra.mxu0 0.0
  %3686 = vmatprep.subr.mxu0 0.0
  %3687 = vmatpush1.msra.mxu0 0.0
  %3688 = vmatprep.subr.mxu0 0.0
  %3689 = vmatpush1.msra.mxu0 0.0
  %3690 = vmatprep.subr.mxu0 0.0
  %3691 = vmatpush1.msra.mxu0 0.0
  %3692 = vmatprep.subr.mxu0 0.0
  %3693 = vmatpush1.msra.mxu0 0.0
  %3694 = vmatprep.subr.mxu0 0.0
  %3695 = vmatpush1.msra.mxu0 0.0
  %3696 = vmatprep.subr.mxu0 0.0
  %3697 = vmatpush1.msra.mxu0 0.0
  %3698 = vmatprep.subr.mxu0 0.0
  %3699 = vmatpush1.msra.mxu0 0.0
  %3700 = vmatprep.subr.mxu0 0.0
  %3701 = vmatpush1.msra.mxu0 %v195
  %3702 = vmatprep.subr.mxu0 0.0
  %3703 = vmatpush1.msra.mxu0 %v194
  %3704 = vmatprep.subr.mxu0 0.0
  %3705 = vmatpush2.msra.mxu0 0.0
  %3706 = vmatprep.subr.mxu0 0.0
  %3707 = vmatpush2.msra.mxu0 0.0
  %3708 = vmatprep.subr.mxu0 0.0
  %3709 = vmatpush2.msra.mxu0 0.0
  %3710 = vmatprep.subr.mxu0 0.0
  %3711 = vmatpush2.msra.mxu0 0.0
  %3712 = vmatprep.subr.mxu0 0.0
  %3713 = vmatpush2.msra.mxu0 0.0
  %3714 = vmatprep.subr.mxu0 0.0
  %3715 = vmatpush2.msra.mxu0 0.0
  %3716 = vmatprep.subr.mxu0 0.0
  %3717 = vmatpush2.msra.mxu0 0.0
  %3718 = vmatprep.subr.mxu0 0.0
  %3719 = vmatpush2.msra.mxu0 0.0
  %3720 = vmatprep.subr.mxu0 0.0
  %3721 = vmatpush2.msra.mxu0 0.0
  %3722 = vmatprep.subr.mxu0 0.0
  %3723 = vmatpush2.msra.mxu0 0.0
  %3724 = vmatprep.subr.mxu0 0.0
  %3725 = vmatpush2.msra.mxu0 0.0
  %3726 = vmatprep.subr.mxu0 0.0
  %3727 = vmatpush2.msra.mxu0 0.0
  %3728 = vmatprep.subr.mxu0 0.0
  %3729 = vmatpush2.msra.mxu0 0.0
  %3730 = vmatprep.subr.mxu0 0.0
  %3731 = vmatpush2.msra.mxu0 0.0
  %3732 = vmatprep.subr.mxu0 0.0
  %3733 = vmatpush2.msra.mxu0 0.0
  %3734 = vmatprep.subr.mxu0 0.0
  %3735 = vmatpush2.msra.mxu0 0.0
  %3736 = vmatprep.mubr.f32.mxu0 0.0
  %3737 = vmatmul.mubr.f32.gmra.mxu0 %v3667
  %v3738 = vpop.f32.mrf.mxu0
  %v3739 = vadd.f32 0.0, %v3738
  %v3740 = vpop.f32.mrf.mxu0
  %3741 = vmatprep.mubr.f32.mxu0 0.0
  %3742 = vmatmul.mubr.f32.gmra.mxu0 %v3670
  %v3743 = vpop.f32.mrf.mxu0
  %v3744 = vadd.f32 0.0, %v3743
  %v3745 = vpop.f32.mrf.mxu0
  %3746 = vdwg.mxu0
  %v3748 = vsel %vm256, %v3525, 0
  %v3751 = vsel %vm256, %v3526, 0
  %3753 = vmatprep.subr.mxu0 0.0
  %3754 = vmatpush1.msra.mxu0 0.0
  %3755 = vmatprep.subr.mxu0 0.0
  %3756 = vmatpush1.msra.mxu0 0.0
  %3757 = vmatprep.subr.mxu0 0.0
  %3758 = vmatpush1.msra.mxu0 0.0
  %3759 = vmatprep.subr.mxu0 0.0
  %3760 = vmatpush1.msra.mxu0 0.0
  %3761 = vmatprep.subr.mxu0 0.0
  %3762 = vmatpush1.msra.mxu0 0.0
  %3763 = vmatprep.subr.mxu0 0.0
  %3764 = vmatpush1.msra.mxu0 0.0
  %3765 = vmatprep.subr.mxu0 0.0
  %3766 = vmatpush1.msra.mxu0 0.0
  %3767 = vmatprep.subr.mxu0 0.0
  %3768 = vmatpush1.msra.mxu0 0.0
  %3769 = vmatprep.subr.mxu0 0.0
  %3770 = vmatpush1.msra.mxu0 0.0
  %3771 = vmatprep.subr.mxu0 0.0
  %3772 = vmatpush1.msra.mxu0 0.0
  %3773 = vmatprep.subr.mxu0 0.0
  %3774 = vmatpush1.msra.mxu0 0.0
  %3775 = vmatprep.subr.mxu0 0.0
  %3776 = vmatpush1.msra.mxu0 0.0
  %3777 = vmatprep.subr.mxu0 0.0
  %3778 = vmatpush1.msra.mxu0 0.0
  %3779 = vmatprep.subr.mxu0 0.0
  %3780 = vmatpush1.msra.mxu0 0.0
  %3781 = vmatprep.subr.mxu0 0.0
  %3782 = vmatpush1.msra.mxu0 %v197
  %3783 = vmatprep.subr.mxu0 0.0
  %3784 = vmatpush1.msra.mxu0 %v196
  %3785 = vmatprep.subr.mxu0 0.0
  %3786 = vmatpush2.msra.mxu0 0.0
  %3787 = vmatprep.subr.mxu0 0.0
  %3788 = vmatpush2.msra.mxu0 0.0
  %3789 = vmatprep.subr.mxu0 0.0
  %3790 = vmatpush2.msra.mxu0 0.0
  %3791 = vmatprep.subr.mxu0 0.0
  %3792 = vmatpush2.msra.mxu0 0.0
  %3793 = vmatprep.subr.mxu0 0.0
  %3794 = vmatpush2.msra.mxu0 0.0
  %3795 = vmatprep.subr.mxu0 0.0
  %3796 = vmatpush2.msra.mxu0 0.0
  %3797 = vmatprep.subr.mxu0 0.0
  %3798 = vmatpush2.msra.mxu0 0.0
  %3799 = vmatprep.subr.mxu0 0.0
  %3800 = vmatpush2.msra.mxu0 0.0
  %3801 = vmatprep.subr.mxu0 0.0
  %3802 = vmatpush2.msra.mxu0 0.0
  %3803 = vmatprep.subr.mxu0 0.0
  %3804 = vmatpush2.msra.mxu0 0.0
  %3805 = vmatprep.subr.mxu0 0.0
  %3806 = vmatpush2.msra.mxu0 0.0
  %3807 = vmatprep.subr.mxu0 0.0
  %3808 = vmatpush2.msra.mxu0 0.0
  %3809 = vmatprep.subr.mxu0 0.0
  %3810 = vmatpush2.msra.mxu0 0.0
  %3811 = vmatprep.subr.mxu0 0.0
  %3812 = vmatpush2.msra.mxu0 0.0
  %3813 = vmatprep.subr.mxu0 0.0
  %3814 = vmatpush2.msra.mxu0 0.0
  %3815 = vmatprep.subr.mxu0 0.0
  %3816 = vmatpush2.msra.mxu0 0.0
  %3817 = vmatprep.mubr.f32.mxu0 0.0
  %3818 = vmatmul.mubr.f32.gmra.mxu0 %v3748
  %v3819 = vpop.f32.mrf.mxu0
  %v3820 = vadd.f32 0.0, %v3819
  %v3821 = vpop.f32.mrf.mxu0
  %3822 = vmatprep.mubr.f32.mxu0 0.0
  %3823 = vmatmul.mubr.f32.gmra.mxu0 %v3751
  %v3824 = vpop.f32.mrf.mxu0
  %v3825 = vadd.f32 0.0, %v3824
  %v3826 = vpop.f32.mrf.mxu0
  %3827 = vdwg.mxu0
  %v3829 = vsel %vm256, %v3527, 0
  %v3832 = vsel %vm256, %v3528, 0
  %3834 = vmatprep.subr.mxu0 0.0
  %3835 = vmatpush1.msra.mxu0 0.0
  %3836 = vmatprep.subr.mxu0 0.0
  %3837 = vmatpush1.msra.mxu0 0.0
  %3838 = vmatprep.subr.mxu0 0.0
  %3839 = vmatpush1.msra.mxu0 0.0
  %3840 = vmatprep.subr.mxu0 0.0
  %3841 = vmatpush1.msra.mxu0 0.0
  %3842 = vmatprep.subr.mxu0 0.0
  %3843 = vmatpush1.msra.mxu0 0.0
  %3844 = vmatprep.subr.mxu0 0.0
  %3845 = vmatpush1.msra.mxu0 0.0
  %3846 = vmatprep.subr.mxu0 0.0
  %3847 = vmatpush1.msra.mxu0 0.0
  %3848 = vmatprep.subr.mxu0 0.0
  %3849 = vmatpush1.msra.mxu0 0.0
  %3850 = vmatprep.subr.mxu0 0.0
  %3851 = vmatpush1.msra.mxu0 0.0
  %3852 = vmatprep.subr.mxu0 0.0
  %3853 = vmatpush1.msra.mxu0 0.0
  %3854 = vmatprep.subr.mxu0 0.0
  %3855 = vmatpush1.msra.mxu0 0.0
  %3856 = vmatprep.subr.mxu0 0.0
  %3857 = vmatpush1.msra.mxu0 0.0
  %3858 = vmatprep.subr.mxu0 0.0
  %3859 = vmatpush1.msra.mxu0 0.0
  %3860 = vmatprep.subr.mxu0 0.0
  %3861 = vmatpush1.msra.mxu0 0.0
  %3862 = vmatprep.subr.mxu0 0.0
  %3863 = vmatpush1.msra.mxu0 %v199
  %3864 = vmatprep.subr.mxu0 0.0
  %3865 = vmatpush1.msra.mxu0 %v198
  %3866 = vmatprep.subr.mxu0 0.0
  %3867 = vmatpush2.msra.mxu0 0.0
  %3868 = vmatprep.subr.mxu0 0.0
  %3869 = vmatpush2.msra.mxu0 0.0
  %3870 = vmatprep.subr.mxu0 0.0
  %3871 = vmatpush2.msra.mxu0 0.0
  %3872 = vmatprep.subr.mxu0 0.0
  %3873 = vmatpush2.msra.mxu0 0.0
  %3874 = vmatprep.subr.mxu0 0.0
  %3875 = vmatpush2.msra.mxu0 0.0
  %3876 = vmatprep.subr.mxu0 0.0
  %3877 = vmatpush2.msra.mxu0 0.0
  %3878 = vmatprep.subr.mxu0 0.0
  %3879 = vmatpush2.msra.mxu0 0.0
  %3880 = vmatprep.subr.mxu0 0.0
  %3881 = vmatpush2.msra.mxu0 0.0
  %3882 = vmatprep.subr.mxu0 0.0
  %3883 = vmatpush2.msra.mxu0 0.0
  %3884 = vmatprep.subr.mxu0 0.0
  %3885 = vmatpush2.msra.mxu0 0.0
  %3886 = vmatprep.subr.mxu0 0.0
  %3887 = vmatpush2.msra.mxu0 0.0
  %3888 = vmatprep.subr.mxu0 0.0
  %3889 = vmatpush2.msra.mxu0 0.0
  %3890 = vmatprep.subr.mxu0 0.0
  %3891 = vmatpush2.msra.mxu0 0.0
  %3892 = vmatprep.subr.mxu0 0.0
  %3893 = vmatpush2.msra.mxu0 0.0
  %3894 = vmatprep.subr.mxu0 0.0
  %3895 = vmatpush2.msra.mxu0 0.0
  %3896 = vmatprep.subr.mxu0 0.0
  %3897 = vmatpush2.msra.mxu0 0.0
  %3898 = vmatprep.mubr.f32.mxu0 0.0
  %3899 = vmatmul.mubr.f32.gmra.mxu0 %v3829
  %v3900 = vpop.f32.mrf.mxu0
  %v3901 = vadd.f32 0.0, %v3900
  %v3902 = vpop.f32.mrf.mxu0
  %3903 = vmatprep.mubr.f32.mxu0 0.0
  %3904 = vmatmul.mubr.f32.gmra.mxu0 %v3832
  %v3905 = vpop.f32.mrf.mxu0
  %v3906 = vadd.f32 0.0, %v3905
  %v3907 = vpop.f32.mrf.mxu0
  %3908 = vdwg.mxu0
  %v3910 = vsel %vm256, %v3529, 0
  %v3913 = vsel %vm256, %v3530, 0
  %3915 = vmatprep.subr.mxu0 0.0
  %3916 = vmatpush1.msra.mxu0 0.0
  %3917 = vmatprep.subr.mxu0 0.0
  %3918 = vmatpush1.msra.mxu0 0.0
  %3919 = vmatprep.subr.mxu0 0.0
  %3920 = vmatpush1.msra.mxu0 0.0
  %3921 = vmatprep.subr.mxu0 0.0
  %3922 = vmatpush1.msra.mxu0 0.0
  %3923 = vmatprep.subr.mxu0 0.0
  %3924 = vmatpush1.msra.mxu0 0.0
  %3925 = vmatprep.subr.mxu0 0.0
  %3926 = vmatpush1.msra.mxu0 0.0
  %3927 = vmatprep.subr.mxu0 0.0
  %3928 = vmatpush1.msra.mxu0 0.0
  %3929 = vmatprep.subr.mxu0 0.0
  %3930 = vmatpush1.msra.mxu0 0.0
  %3931 = vmatprep.subr.mxu0 0.0
  %3932 = vmatpush1.msra.mxu0 0.0
  %3933 = vmatprep.subr.mxu0 0.0
  %3934 = vmatpush1.msra.mxu0 0.0
  %3935 = vmatprep.subr.mxu0 0.0
  %3936 = vmatpush1.msra.mxu0 0.0
  %3937 = vmatprep.subr.mxu0 0.0
  %3938 = vmatpush1.msra.mxu0 0.0
  %3939 = vmatprep.subr.mxu0 0.0
  %3940 = vmatpush1.msra.mxu0 0.0
  %3941 = vmatprep.subr.mxu0 0.0
  %3942 = vmatpush1.msra.mxu0 0.0
  %3943 = vmatprep.subr.mxu0 0.0
  %3944 = vmatpush1.msra.mxu0 %v201
  %3945 = vmatprep.subr.mxu0 0.0
  %3946 = vmatpush1.msra.mxu0 %v200
  %3947 = vmatprep.subr.mxu0 0.0
  %3948 = vmatpush2.msra.mxu0 0.0
  %3949 = vmatprep.subr.mxu0 0.0
  %3950 = vmatpush2.msra.mxu0 0.0
  %3951 = vmatprep.subr.mxu0 0.0
  %3952 = vmatpush2.msra.mxu0 0.0
  %3953 = vmatprep.subr.mxu0 0.0
  %3954 = vmatpush2.msra.mxu0 0.0
  %3955 = vmatprep.subr.mxu0 0.0
  %3956 = vmatpush2.msra.mxu0 0.0
  %3957 = vmatprep.subr.mxu0 0.0
  %3958 = vmatpush2.msra.mxu0 0.0
  %3959 = vmatprep.subr.mxu0 0.0
  %3960 = vmatpush2.msra.mxu0 0.0
  %3961 = vmatprep.subr.mxu0 0.0
  %3962 = vmatpush2.msra.mxu0 0.0
  %3963 = vmatprep.subr.mxu0 0.0
  %3964 = vmatpush2.msra.mxu0 0.0
  %3965 = vmatprep.subr.mxu0 0.0
  %3966 = vmatpush2.msra.mxu0 0.0
  %3967 = vmatprep.subr.mxu0 0.0
  %3968 = vmatpush2.msra.mxu0 0.0
  %3969 = vmatprep.subr.mxu0 0.0
  %3970 = vmatpush2.msra.mxu0 0.0
  %3971 = vmatprep.subr.mxu0 0.0
  %3972 = vmatpush2.msra.mxu0 0.0
  %3973 = vmatprep.subr.mxu0 0.0
  %3974 = vmatpush2.msra.mxu0 0.0
  %3975 = vmatprep.subr.mxu0 0.0
  %3976 = vmatpush2.msra.mxu0 0.0
  %3977 = vmatprep.subr.mxu0 0.0
  %3978 = vmatpush2.msra.mxu0 0.0
  %3979 = vmatprep.mubr.f32.mxu0 0.0
  %3980 = vmatmul.mubr.f32.gmra.mxu0 %v3910
  %v3981 = vpop.f32.mrf.mxu0
  %v3982 = vadd.f32 0.0, %v3981
  %v3983 = vpop.f32.mrf.mxu0
  %3984 = vmatprep.mubr.f32.mxu0 0.0
  %3985 = vmatmul.mubr.f32.gmra.mxu0 %v3913
  %v3986 = vpop.f32.mrf.mxu0
  %v3987 = vadd.f32 0.0, %v3986
  %v3988 = vpop.f32.mrf.mxu0
  %3989 = vdwg.mxu0
  %v3991 = vsel %vm256, %v3531, 0
  %v3994 = vsel %vm256, %v3532, 0
  %3996 = vmatprep.subr.mxu0 0.0
  %3997 = vmatpush1.msra.mxu0 0.0
  %3998 = vmatprep.subr.mxu0 0.0
  %3999 = vmatpush1.msra.mxu0 0.0
  %4000 = vmatprep.subr.mxu0 0.0
  %4001 = vmatpush1.msra.mxu0 0.0
  %4002 = vmatprep.subr.mxu0 0.0
  %4003 = vmatpush1.msra.mxu0 0.0
  %4004 = vmatprep.subr.mxu0 0.0
  %4005 = vmatpush1.msra.mxu0 0.0
  %4006 = vmatprep.subr.mxu0 0.0
  %4007 = vmatpush1.msra.mxu0 0.0
  %4008 = vmatprep.subr.mxu0 0.0
  %4009 = vmatpush1.msra.mxu0 0.0
  %4010 = vmatprep.subr.mxu0 0.0
  %4011 = vmatpush1.msra.mxu0 0.0
  %4012 = vmatprep.subr.mxu0 0.0
  %4013 = vmatpush1.msra.mxu0 0.0
  %4014 = vmatprep.subr.mxu0 0.0
  %4015 = vmatpush1.msra.mxu0 0.0
  %4016 = vmatprep.subr.mxu0 0.0
  %4017 = vmatpush1.msra.mxu0 0.0
  %4018 = vmatprep.subr.mxu0 0.0
  %4019 = vmatpush1.msra.mxu0 0.0
  %4020 = vmatprep.subr.mxu0 0.0
  %4021 = vmatpush1.msra.mxu0 0.0
  %4022 = vmatprep.subr.mxu0 0.0
  %4023 = vmatpush1.msra.mxu0 0.0
  %4024 = vmatprep.subr.mxu0 0.0
  %4025 = vmatpush1.msra.mxu0 %v203
  %4026 = vmatprep.subr.mxu0 0.0
  %4027 = vmatpush1.msra.mxu0 %v202
  %4028 = vmatprep.subr.mxu0 0.0
  %4029 = vmatpush2.msra.mxu0 0.0
  %4030 = vmatprep.subr.mxu0 0.0
  %4031 = vmatpush2.msra.mxu0 0.0
  %4032 = vmatprep.subr.mxu0 0.0
  %4033 = vmatpush2.msra.mxu0 0.0
  %4034 = vmatprep.subr.mxu0 0.0
  %4035 = vmatpush2.msra.mxu0 0.0
  %4036 = vmatprep.subr.mxu0 0.0
  %4037 = vmatpush2.msra.mxu0 0.0
  %4038 = vmatprep.subr.mxu0 0.0
  %4039 = vmatpush2.msra.mxu0 0.0
  %4040 = vmatprep.subr.mxu0 0.0
  %4041 = vmatpush2.msra.mxu0 0.0
  %4042 = vmatprep.subr.mxu0 0.0
  %4043 = vmatpush2.msra.mxu0 0.0
  %4044 = vmatprep.subr.mxu0 0.0
  %4045 = vmatpush2.msra.mxu0 0.0
  %4046 = vmatprep.subr.mxu0 0.0
  %4047 = vmatpush2.msra.mxu0 0.0
  %4048 = vmatprep.subr.mxu0 0.0
  %4049 = vmatpush2.msra.mxu0 0.0
  %4050 = vmatprep.subr.mxu0 0.0
  %4051 = vmatpush2.msra.mxu0 0.0
  %4052 = vmatprep.subr.mxu0 0.0
  %4053 = vmatpush2.msra.mxu0 0.0
  %4054 = vmatprep.subr.mxu0 0.0
  %4055 = vmatpush2.msra.mxu0 0.0
  %4056 = vmatprep.subr.mxu0 0.0
  %4057 = vmatpush2.msra.mxu0 0.0
  %4058 = vmatprep.subr.mxu0 0.0
  %4059 = vmatpush2.msra.mxu0 0.0
  %4060 = vmatprep.mubr.f32.mxu0 0.0
  %4061 = vmatmul.mubr.f32.gmra.mxu0 %v3991
  %v4062 = vpop.f32.mrf.mxu0
  %v4063 = vadd.f32 0.0, %v4062
  %v4064 = vpop.f32.mrf.mxu0
  %4065 = vmatprep.mubr.f32.mxu0 0.0
  %4066 = vmatmul.mubr.f32.gmra.mxu0 %v3994
  %v4067 = vpop.f32.mrf.mxu0
  %v4068 = vadd.f32 0.0, %v4067
  %v4069 = vpop.f32.mrf.mxu0
  %4070 = vdwg.mxu0
  %v4072 = vsel %vm256, %v3533, 0
  %v4075 = vsel %vm256, %v3534, 0
  %4077 = vmatprep.subr.mxu0 0.0
  %4078 = vmatpush1.msra.mxu0 0.0
  %4079 = vmatprep.subr.mxu0 0.0
  %4080 = vmatpush1.msra.mxu0 0.0
  %4081 = vmatprep.subr.mxu0 0.0
  %4082 = vmatpush1.msra.mxu0 0.0
  %4083 = vmatprep.subr.mxu0 0.0
  %4084 = vmatpush1.msra.mxu0 0.0
  %4085 = vmatprep.subr.mxu0 0.0
  %4086 = vmatpush1.msra.mxu0 0.0
  %4087 = vmatprep.subr.mxu0 0.0
  %4088 = vmatpush1.msra.mxu0 0.0
  %4089 = vmatprep.subr.mxu0 0.0
  %4090 = vmatpush1.msra.mxu0 0.0
  %4091 = vmatprep.subr.mxu0 0.0
  %4092 = vmatpush1.msra.mxu0 0.0
  %4093 = vmatprep.subr.mxu0 0.0
  %4094 = vmatpush1.msra.mxu0 0.0
  %4095 = vmatprep.subr.mxu0 0.0
  %4096 = vmatpush1.msra.mxu0 0.0
  %4097 = vmatprep.subr.mxu0 0.0
  %4098 = vmatpush1.msra.mxu0 0.0
  %4099 = vmatprep.subr.mxu0 0.0
  %4100 = vmatpush1.msra.mxu0 0.0
  %4101 = vmatprep.subr.mxu0 0.0
  %4102 = vmatpush1.msra.mxu0 0.0
  %4103 = vmatprep.subr.mxu0 0.0
  %4104 = vmatpush1.msra.mxu0 0.0
  %4105 = vmatprep.subr.mxu0 0.0
  %4106 = vmatpush1.msra.mxu0 %v205
  %4107 = vmatprep.subr.mxu0 0.0
  %4108 = vmatpush1.msra.mxu0 %v204
  %4109 = vmatprep.subr.mxu0 0.0
  %4110 = vmatpush2.msra.mxu0 0.0
  %4111 = vmatprep.subr.mxu0 0.0
  %4112 = vmatpush2.msra.mxu0 0.0
  %4113 = vmatprep.subr.mxu0 0.0
  %4114 = vmatpush2.msra.mxu0 0.0
  %4115 = vmatprep.subr.mxu0 0.0
  %4116 = vmatpush2.msra.mxu0 0.0
  %4117 = vmatprep.subr.mxu0 0.0
  %4118 = vmatpush2.msra.mxu0 0.0
  %4119 = vmatprep.subr.mxu0 0.0
  %4120 = vmatpush2.msra.mxu0 0.0
  %4121 = vmatprep.subr.mxu0 0.0
  %4122 = vmatpush2.msra.mxu0 0.0
  %4123 = vmatprep.subr.mxu0 0.0
  %4124 = vmatpush2.msra.mxu0 0.0
  %4125 = vmatprep.subr.mxu0 0.0
  %4126 = vmatpush2.msra.mxu0 0.0
  %4127 = vmatprep.subr.mxu0 0.0
  %4128 = vmatpush2.msra.mxu0 0.0
  %4129 = vmatprep.subr.mxu0 0.0
  %4130 = vmatpush2.msra.mxu0 0.0
  %4131 = vmatprep.subr.mxu0 0.0
  %4132 = vmatpush2.msra.mxu0 0.0
  %4133 = vmatprep.subr.mxu0 0.0
  %4134 = vmatpush2.msra.mxu0 0.0
  %4135 = vmatprep.subr.mxu0 0.0
  %4136 = vmatpush2.msra.mxu0 0.0
  %4137 = vmatprep.subr.mxu0 0.0
  %4138 = vmatpush2.msra.mxu0 0.0
  %4139 = vmatprep.subr.mxu0 0.0
  %4140 = vmatpush2.msra.mxu0 0.0
  %4141 = vmatprep.mubr.f32.mxu0 0.0
  %4142 = vmatmul.mubr.f32.gmra.mxu0 %v4072
  %v4143 = vpop.f32.mrf.mxu0
  %v4144 = vadd.f32 0.0, %v4143
  %v4145 = vpop.f32.mrf.mxu0
  %4146 = vmatprep.mubr.f32.mxu0 0.0
  %4147 = vmatmul.mubr.f32.gmra.mxu0 %v4075
  %v4148 = vpop.f32.mrf.mxu0
  %v4149 = vadd.f32 0.0, %v4148
  %v4150 = vpop.f32.mrf.mxu0
  %4151 = vdwg.mxu0
  %v4153 = vsel %vm256, %v3535, 0
  %v4156 = vsel %vm256, %v3536, 0
  %4158 = vmatprep.subr.mxu0 0.0
  %4159 = vmatpush1.msra.mxu0 0.0
  %4160 = vmatprep.subr.mxu0 0.0
  %4161 = vmatpush1.msra.mxu0 0.0
  %4162 = vmatprep.subr.mxu0 0.0
  %4163 = vmatpush1.msra.mxu0 0.0
  %4164 = vmatprep.subr.mxu0 0.0
  %4165 = vmatpush1.msra.mxu0 0.0
  %4166 = vmatprep.subr.mxu0 0.0
  %4167 = vmatpush1.msra.mxu0 0.0
  %4168 = vmatprep.subr.mxu0 0.0
  %4169 = vmatpush1.msra.mxu0 0.0
  %4170 = vmatprep.subr.mxu0 0.0
  %4171 = vmatpush1.msra.mxu0 0.0
  %4172 = vmatprep.subr.mxu0 0.0
  %4173 = vmatpush1.msra.mxu0 0.0
  %4174 = vmatprep.subr.mxu0 0.0
  %4175 = vmatpush1.msra.mxu0 0.0
  %4176 = vmatprep.subr.mxu0 0.0
  %4177 = vmatpush1.msra.mxu0 0.0
  %4178 = vmatprep.subr.mxu0 0.0
  %4179 = vmatpush1.msra.mxu0 0.0
  %4180 = vmatprep.subr.mxu0 0.0
  %4181 = vmatpush1.msra.mxu0 0.0
  %4182 = vmatprep.subr.mxu0 0.0
  %4183 = vmatpush1.msra.mxu0 0.0
  %4184 = vmatprep.subr.mxu0 0.0
  %4185 = vmatpush1.msra.mxu0 0.0
  %4186 = vmatprep.subr.mxu0 0.0
  %4187 = vmatpush1.msra.mxu0 %v207
  %4188 = vmatprep.subr.mxu0 0.0
  %4189 = vmatpush1.msra.mxu0 %v206
  %4190 = vmatprep.subr.mxu0 0.0
  %4191 = vmatpush2.msra.mxu0 0.0
  %4192 = vmatprep.subr.mxu0 0.0
  %4193 = vmatpush2.msra.mxu0 0.0
  %4194 = vmatprep.subr.mxu0 0.0
  %4195 = vmatpush2.msra.mxu0 0.0
  %4196 = vmatprep.subr.mxu0 0.0
  %4197 = vmatpush2.msra.mxu0 0.0
  %4198 = vmatprep.subr.mxu0 0.0
  %4199 = vmatpush2.msra.mxu0 0.0
  %4200 = vmatprep.subr.mxu0 0.0
  %4201 = vmatpush2.msra.mxu0 0.0
  %4202 = vmatprep.subr.mxu0 0.0
  %4203 = vmatpush2.msra.mxu0 0.0
  %4204 = vmatprep.subr.mxu0 0.0
  %4205 = vmatpush2.msra.mxu0 0.0
  %4206 = vmatprep.subr.mxu0 0.0
  %4207 = vmatpush2.msra.mxu0 0.0
  %4208 = vmatprep.subr.mxu0 0.0
  %4209 = vmatpush2.msra.mxu0 0.0
  %4210 = vmatprep.subr.mxu0 0.0
  %4211 = vmatpush2.msra.mxu0 0.0
  %4212 = vmatprep.subr.mxu0 0.0
  %4213 = vmatpush2.msra.mxu0 0.0
  %4214 = vmatprep.subr.mxu0 0.0
  %4215 = vmatpush2.msra.mxu0 0.0
  %4216 = vmatprep.subr.mxu0 0.0
  %4217 = vmatpush2.msra.mxu0 0.0
  %4218 = vmatprep.subr.mxu0 0.0
  %4219 = vmatpush2.msra.mxu0 0.0
  %4220 = vmatprep.subr.mxu0 0.0
  %4221 = vmatpush2.msra.mxu0 0.0
  %4222 = vmatprep.mubr.f32.mxu0 0.0
  %4223 = vmatmul.mubr.f32.gmra.mxu0 %v4153
  %v4224 = vpop.f32.mrf.mxu0
  %v4225 = vadd.f32 0.0, %v4224
  %v4226 = vpop.f32.mrf.mxu0
  %4227 = vmatprep.mubr.f32.mxu0 0.0
  %4228 = vmatmul.mubr.f32.gmra.mxu0 %v4156
  %v4229 = vpop.f32.mrf.mxu0
  %v4230 = vadd.f32 0.0, %v4229
  %v4231 = vpop.f32.mrf.mxu0
  %4232 = vdwg.mxu0
  %v4234 = vsel %vm256, %v3537, 0
  %v4237 = vsel %vm256, %v3538, 0
  %4239 = vmatprep.subr.mxu0 0.0
  %4240 = vmatpush1.msra.mxu0 0.0
  %4241 = vmatprep.subr.mxu0 0.0
  %4242 = vmatpush1.msra.mxu0 0.0
  %4243 = vmatprep.subr.mxu0 0.0
  %4244 = vmatpush1.msra.mxu0 0.0
  %4245 = vmatprep.subr.mxu0 0.0
  %4246 = vmatpush1.msra.mxu0 0.0
  %4247 = vmatprep.subr.mxu0 0.0
  %4248 = vmatpush1.msra.mxu0 0.0
  %4249 = vmatprep.subr.mxu0 0.0
  %4250 = vmatpush1.msra.mxu0 0.0
  %4251 = vmatprep.subr.mxu0 0.0
  %4252 = vmatpush1.msra.mxu0 0.0
  %4253 = vmatprep.subr.mxu0 0.0
  %4254 = vmatpush1.msra.mxu0 0.0
  %4255 = vmatprep.subr.mxu0 0.0
  %4256 = vmatpush1.msra.mxu0 0.0
  %4257 = vmatprep.subr.mxu0 0.0
  %4258 = vmatpush1.msra.mxu0 0.0
  %4259 = vmatprep.subr.mxu0 0.0
  %4260 = vmatpush1.msra.mxu0 0.0
  %4261 = vmatprep.subr.mxu0 0.0
  %4262 = vmatpush1.msra.mxu0 0.0
  %4263 = vmatprep.subr.mxu0 0.0
  %4264 = vmatpush1.msra.mxu0 0.0
  %4265 = vmatprep.subr.mxu0 0.0
  %4266 = vmatpush1.msra.mxu0 0.0
  %4267 = vmatprep.subr.mxu0 0.0
  %4268 = vmatpush1.msra.mxu0 %v209
  %4269 = vmatprep.subr.mxu0 0.0
  %4270 = vmatpush1.msra.mxu0 %v208
  %4271 = vmatprep.subr.mxu0 0.0
  %4272 = vmatpush2.msra.mxu0 0.0
  %4273 = vmatprep.subr.mxu0 0.0
  %4274 = vmatpush2.msra.mxu0 0.0
  %4275 = vmatprep.subr.mxu0 0.0
  %4276 = vmatpush2.msra.mxu0 0.0
  %4277 = vmatprep.subr.mxu0 0.0
  %4278 = vmatpush2.msra.mxu0 0.0
  %4279 = vmatprep.subr.mxu0 0.0
  %4280 = vmatpush2.msra.mxu0 0.0
  %4281 = vmatprep.subr.mxu0 0.0
  %4282 = vmatpush2.msra.mxu0 0.0
  %4283 = vmatprep.subr.mxu0 0.0
  %4284 = vmatpush2.msra.mxu0 0.0
  %4285 = vmatprep.subr.mxu0 0.0
  %4286 = vmatpush2.msra.mxu0 0.0
  %4287 = vmatprep.subr.mxu0 0.0
  %4288 = vmatpush2.msra.mxu0 0.0
  %4289 = vmatprep.subr.mxu0 0.0
  %4290 = vmatpush2.msra.mxu0 0.0
  %4291 = vmatprep.subr.mxu0 0.0
  %4292 = vmatpush2.msra.mxu0 0.0
  %4293 = vmatprep.subr.mxu0 0.0
  %4294 = vmatpush2.msra.mxu0 0.0
  %4295 = vmatprep.subr.mxu0 0.0
  %4296 = vmatpush2.msra.mxu0 0.0
  %4297 = vmatprep.subr.mxu0 0.0
  %4298 = vmatpush2.msra.mxu0 0.0
  %4299 = vmatprep.subr.mxu0 0.0
  %4300 = vmatpush2.msra.mxu0 0.0
  %4301 = vmatprep.subr.mxu0 0.0
  %4302 = vmatpush2.msra.mxu0 0.0
  %4303 = vmatprep.mubr.f32.mxu0 0.0
  %4304 = vmatmul.mubr.f32.gmra.mxu0 %v4234
  %v4305 = vpop.f32.mrf.mxu0
  %v4306 = vadd.f32 0.0, %v4305
  %v4307 = vpop.f32.mrf.mxu0
  %4308 = vmatprep.mubr.f32.mxu0 0.0
  %4309 = vmatmul.mubr.f32.gmra.mxu0 %v4237
  %v4310 = vpop.f32.mrf.mxu0
  %v4311 = vadd.f32 0.0, %v4310
  %v4312 = vpop.f32.mrf.mxu0
  %4313 = vdwg.mxu0
  %v4315 = vsel %vm256, %v3539, 0
  %v4318 = vsel %vm256, %v3540, 0
  %4320 = vmatprep.subr.mxu0 0.0
  %4321 = vmatpush1.msra.mxu0 0.0
  %4322 = vmatprep.subr.mxu0 0.0
  %4323 = vmatpush1.msra.mxu0 0.0
  %4324 = vmatprep.subr.mxu0 0.0
  %4325 = vmatpush1.msra.mxu0 0.0
  %4326 = vmatprep.subr.mxu0 0.0
  %4327 = vmatpush1.msra.mxu0 0.0
  %4328 = vmatprep.subr.mxu0 0.0
  %4329 = vmatpush1.msra.mxu0 0.0
  %4330 = vmatprep.subr.mxu0 0.0
  %4331 = vmatpush1.msra.mxu0 0.0
  %4332 = vmatprep.subr.mxu0 0.0
  %4333 = vmatpush1.msra.mxu0 0.0
  %4334 = vmatprep.subr.mxu0 0.0
  %4335 = vmatpush1.msra.mxu0 0.0
  %4336 = vmatprep.subr.mxu0 0.0
  %4337 = vmatpush1.msra.mxu0 0.0
  %4338 = vmatprep.subr.mxu0 0.0
  %4339 = vmatpush1.msra.mxu0 0.0
  %4340 = vmatprep.subr.mxu0 0.0
  %4341 = vmatpush1.msra.mxu0 0.0
  %4342 = vmatprep.subr.mxu0 0.0
  %4343 = vmatpush1.msra.mxu0 0.0
  %4344 = vmatprep.subr.mxu0 0.0
  %4345 = vmatpush1.msra.mxu0 0.0
  %4346 = vmatprep.subr.mxu0 0.0
  %4347 = vmatpush1.msra.mxu0 0.0
  %4348 = vmatprep.subr.mxu0 0.0
  %4349 = vmatpush1.msra.mxu0 %v211
  %4350 = vmatprep.subr.mxu0 0.0
  %4351 = vmatpush1.msra.mxu0 %v210
  %4352 = vmatprep.subr.mxu0 0.0
  %4353 = vmatpush2.msra.mxu0 0.0
  %4354 = vmatprep.subr.mxu0 0.0
  %4355 = vmatpush2.msra.mxu0 0.0
  %4356 = vmatprep.subr.mxu0 0.0
  %4357 = vmatpush2.msra.mxu0 0.0
  %4358 = vmatprep.subr.mxu0 0.0
  %4359 = vmatpush2.msra.mxu0 0.0
  %4360 = vmatprep.subr.mxu0 0.0
  %4361 = vmatpush2.msra.mxu0 0.0
  %4362 = vmatprep.subr.mxu0 0.0
  %4363 = vmatpush2.msra.mxu0 0.0
  %4364 = vmatprep.subr.mxu0 0.0
  %4365 = vmatpush2.msra.mxu0 0.0
  %4366 = vmatprep.subr.mxu0 0.0
  %4367 = vmatpush2.msra.mxu0 0.0
  %4368 = vmatprep.subr.mxu0 0.0
  %4369 = vmatpush2.msra.mxu0 0.0
  %4370 = vmatprep.subr.mxu0 0.0
  %4371 = vmatpush2.msra.mxu0 0.0
  %4372 = vmatprep.subr.mxu0 0.0
  %4373 = vmatpush2.msra.mxu0 0.0
  %4374 = vmatprep.subr.mxu0 0.0
  %4375 = vmatpush2.msra.mxu0 0.0
  %4376 = vmatprep.subr.mxu0 0.0
  %4377 = vmatpush2.msra.mxu0 0.0
  %4378 = vmatprep.subr.mxu0 0.0
  %4379 = vmatpush2.msra.mxu0 0.0
  %4380 = vmatprep.subr.mxu0 0.0
  %4381 = vmatpush2.msra.mxu0 0.0
  %4382 = vmatprep.subr.mxu0 0.0
  %4383 = vmatpush2.msra.mxu0 0.0
  %4384 = vmatprep.mubr.f32.mxu0 0.0
  %4385 = vmatmul.mubr.f32.gmra.mxu0 %v4315
  %v4386 = vpop.f32.mrf.mxu0
  %v4387 = vadd.f32 0.0, %v4386
  %v4388 = vpop.f32.mrf.mxu0
  %4389 = vmatprep.mubr.f32.mxu0 0.0
  %4390 = vmatmul.mubr.f32.gmra.mxu0 %v4318
  %v4391 = vpop.f32.mrf.mxu0
  %v4392 = vadd.f32 0.0, %v4391
  %v4393 = vpop.f32.mrf.mxu0
  %4394 = vdwg.mxu0
  %v4396 = vsel %vm256, %v3541, 0
  %v4399 = vsel %vm256, %v3542, 0
  %4401 = vmatprep.subr.mxu0 0.0
  %4402 = vmatpush1.msra.mxu0 0.0
  %4403 = vmatprep.subr.mxu0 0.0
  %4404 = vmatpush1.msra.mxu0 0.0
  %4405 = vmatprep.subr.mxu0 0.0
  %4406 = vmatpush1.msra.mxu0 0.0
  %4407 = vmatprep.subr.mxu0 0.0
  %4408 = vmatpush1.msra.mxu0 0.0
  %4409 = vmatprep.subr.mxu0 0.0
  %4410 = vmatpush1.msra.mxu0 0.0
  %4411 = vmatprep.subr.mxu0 0.0
  %4412 = vmatpush1.msra.mxu0 0.0
  %4413 = vmatprep.subr.mxu0 0.0
  %4414 = vmatpush1.msra.mxu0 0.0
  %4415 = vmatprep.subr.mxu0 0.0
  %4416 = vmatpush1.msra.mxu0 0.0
  %4417 = vmatprep.subr.mxu0 0.0
  %4418 = vmatpush1.msra.mxu0 0.0
  %4419 = vmatprep.subr.mxu0 0.0
  %4420 = vmatpush1.msra.mxu0 0.0
  %4421 = vmatprep.subr.mxu0 0.0
  %4422 = vmatpush1.msra.mxu0 0.0
  %4423 = vmatprep.subr.mxu0 0.0
  %4424 = vmatpush1.msra.mxu0 0.0
  %4425 = vmatprep.subr.mxu0 0.0
  %4426 = vmatpush1.msra.mxu0 0.0
  %4427 = vmatprep.subr.mxu0 0.0
  %4428 = vmatpush1.msra.mxu0 0.0
  %4429 = vmatprep.subr.mxu0 0.0
  %4430 = vmatpush1.msra.mxu0 %v213
  %4431 = vmatprep.subr.mxu0 0.0
  %4432 = vmatpush1.msra.mxu0 %v212
  %4433 = vmatprep.subr.mxu0 0.0
  %4434 = vmatpush2.msra.mxu0 0.0
  %4435 = vmatprep.subr.mxu0 0.0
  %4436 = vmatpush2.msra.mxu0 0.0
  %4437 = vmatprep.subr.mxu0 0.0
  %4438 = vmatpush2.msra.mxu0 0.0
  %4439 = vmatprep.subr.mxu0 0.0
  %4440 = vmatpush2.msra.mxu0 0.0
  %4441 = vmatprep.subr.mxu0 0.0
  %4442 = vmatpush2.msra.mxu0 0.0
  %4443 = vmatprep.subr.mxu0 0.0
  %4444 = vmatpush2.msra.mxu0 0.0
  %4445 = vmatprep.subr.mxu0 0.0
  %4446 = vmatpush2.msra.mxu0 0.0
  %4447 = vmatprep.subr.mxu0 0.0
  %4448 = vmatpush2.msra.mxu0 0.0
  %4449 = vmatprep.subr.mxu0 0.0
  %4450 = vmatpush2.msra.mxu0 0.0
  %4451 = vmatprep.subr.mxu0 0.0
  %4452 = vmatpush2.msra.mxu0 0.0
  %4453 = vmatprep.subr.mxu0 0.0
  %4454 = vmatpush2.msra.mxu0 0.0
  %4455 = vmatprep.subr.mxu0 0.0
  %4456 = vmatpush2.msra.mxu0 0.0
  %4457 = vmatprep.subr.mxu0 0.0
  %4458 = vmatpush2.msra.mxu0 0.0
  %4459 = vmatprep.subr.mxu0 0.0
  %4460 = vmatpush2.msra.mxu0 0.0
  %4461 = vmatprep.subr.mxu0 0.0
  %4462 = vmatpush2.msra.mxu0 0.0
  %4463 = vmatprep.subr.mxu0 0.0
  %4464 = vmatpush2.msra.mxu0 0.0
  %4465 = vmatprep.mubr.f32.mxu0 0.0
  %4466 = vmatmul.mubr.f32.gmra.mxu0 %v4396
  %v4467 = vpop.f32.mrf.mxu0
  %v4468 = vadd.f32 0.0, %v4467
  %v4469 = vpop.f32.mrf.mxu0
  %4470 = vmatprep.mubr.f32.mxu0 0.0
  %4471 = vmatmul.mubr.f32.gmra.mxu0 %v4399
  %v4472 = vpop.f32.mrf.mxu0
  %v4473 = vadd.f32 0.0, %v4472
  %v4474 = vpop.f32.mrf.mxu0
  %4475 = vdwg.mxu0
  %v4477 = vsel %vm256, %v3543, 0
  %v4480 = vsel %vm256, %v3544, 0
  %4482 = vmatprep.subr.mxu0 0.0
  %4483 = vmatpush1.msra.mxu0 0.0
  %4484 = vmatprep.subr.mxu0 0.0
  %4485 = vmatpush1.msra.mxu0 0.0
  %4486 = vmatprep.subr.mxu0 0.0
  %4487 = vmatpush1.msra.mxu0 0.0
  %4488 = vmatprep.subr.mxu0 0.0
  %4489 = vmatpush1.msra.mxu0 0.0
  %4490 = vmatprep.subr.mxu0 0.0
  %4491 = vmatpush1.msra.mxu0 0.0
  %4492 = vmatprep.subr.mxu0 0.0
  %4493 = vmatpush1.msra.mxu0 0.0
  %4494 = vmatprep.subr.mxu0 0.0
  %4495 = vmatpush1.msra.mxu0 0.0
  %4496 = vmatprep.subr.mxu0 0.0
  %4497 = vmatpush1.msra.mxu0 0.0
  %4498 = vmatprep.subr.mxu0 0.0
  %4499 = vmatpush1.msra.mxu0 0.0
  %4500 = vmatprep.subr.mxu0 0.0
  %4501 = vmatpush1.msra.mxu0 0.0
  %4502 = vmatprep.subr.mxu0 0.0
  %4503 = vmatpush1.msra.mxu0 0.0
  %4504 = vmatprep.subr.mxu0 0.0
  %4505 = vmatpush1.msra.mxu0 0.0
  %4506 = vmatprep.subr.mxu0 0.0
  %4507 = vmatpush1.msra.mxu0 0.0
  %4508 = vmatprep.subr.mxu0 0.0
  %4509 = vmatpush1.msra.mxu0 0.0
  %4510 = vmatprep.subr.mxu0 0.0
  %4511 = vmatpush1.msra.mxu0 %v215
  %4512 = vmatprep.subr.mxu0 0.0
  %4513 = vmatpush1.msra.mxu0 %v214
  %4514 = vmatprep.subr.mxu0 0.0
  %4515 = vmatpush2.msra.mxu0 0.0
  %4516 = vmatprep.subr.mxu0 0.0
  %4517 = vmatpush2.msra.mxu0 0.0
  %4518 = vmatprep.subr.mxu0 0.0
  %4519 = vmatpush2.msra.mxu0 0.0
  %4520 = vmatprep.subr.mxu0 0.0
  %4521 = vmatpush2.msra.mxu0 0.0
  %4522 = vmatprep.subr.mxu0 0.0
  %4523 = vmatpush2.msra.mxu0 0.0
  %4524 = vmatprep.subr.mxu0 0.0
  %4525 = vmatpush2.msra.mxu0 0.0
  %4526 = vmatprep.subr.mxu0 0.0
  %4527 = vmatpush2.msra.mxu0 0.0
  %4528 = vmatprep.subr.mxu0 0.0
  %4529 = vmatpush2.msra.mxu0 0.0
  %4530 = vmatprep.subr.mxu0 0.0
  %4531 = vmatpush2.msra.mxu0 0.0
  %4532 = vmatprep.subr.mxu0 0.0
  %4533 = vmatpush2.msra.mxu0 0.0
  %4534 = vmatprep.subr.mxu0 0.0
  %4535 = vmatpush2.msra.mxu0 0.0
  %4536 = vmatprep.subr.mxu0 0.0
  %4537 = vmatpush2.msra.mxu0 0.0
  %4538 = vmatprep.subr.mxu0 0.0
  %4539 = vmatpush2.msra.mxu0 0.0
  %4540 = vmatprep.subr.mxu0 0.0
  %4541 = vmatpush2.msra.mxu0 0.0
  %4542 = vmatprep.subr.mxu0 0.0
  %4543 = vmatpush2.msra.mxu0 0.0
  %4544 = vmatprep.subr.mxu0 0.0
  %4545 = vmatpush2.msra.mxu0 0.0
  %4546 = vmatprep.mubr.f32.mxu0 0.0
  %4547 = vmatmul.mubr.f32.gmra.mxu0 %v4477
  %v4548 = vpop.f32.mrf.mxu0
  %v4549 = vadd.f32 0.0, %v4548
  %v4550 = vpop.f32.mrf.mxu0
  %4551 = vmatprep.mubr.f32.mxu0 0.0
  %4552 = vmatmul.mubr.f32.gmra.mxu0 %v4480
  %v4553 = vpop.f32.mrf.mxu0
  %v4554 = vadd.f32 0.0, %v4553
  %v4555 = vpop.f32.mrf.mxu0
  %4556 = vdwg.mxu0
  %v4558 = vsel %vm256, %v3545, 0
  %v4561 = vsel %vm256, %v3546, 0
  %4563 = vmatprep.subr.mxu0 0.0
  %4564 = vmatpush1.msra.mxu0 0.0
  %4565 = vmatprep.subr.mxu0 0.0
  %4566 = vmatpush1.msra.mxu0 0.0
  %4567 = vmatprep.subr.mxu0 0.0
  %4568 = vmatpush1.msra.mxu0 0.0
  %4569 = vmatprep.subr.mxu0 0.0
  %4570 = vmatpush1.msra.mxu0 0.0
  %4571 = vmatprep.subr.mxu0 0.0
  %4572 = vmatpush1.msra.mxu0 0.0
  %4573 = vmatprep.subr.mxu0 0.0
  %4574 = vmatpush1.msra.mxu0 0.0
  %4575 = vmatprep.subr.mxu0 0.0
  %4576 = vmatpush1.msra.mxu0 0.0
  %4577 = vmatprep.subr.mxu0 0.0
  %4578 = vmatpush1.msra.mxu0 0.0
  %4579 = vmatprep.subr.mxu0 0.0
  %4580 = vmatpush1.msra.mxu0 0.0
  %4581 = vmatprep.subr.mxu0 0.0
  %4582 = vmatpush1.msra.mxu0 0.0
  %4583 = vmatprep.subr.mxu0 0.0
  %4584 = vmatpush1.msra.mxu0 0.0
  %4585 = vmatprep.subr.mxu0 0.0
  %4586 = vmatpush1.msra.mxu0 0.0
  %4587 = vmatprep.subr.mxu0 0.0
  %4588 = vmatpush1.msra.mxu0 0.0
  %4589 = vmatprep.subr.mxu0 0.0
  %4590 = vmatpush1.msra.mxu0 0.0
  %4591 = vmatprep.subr.mxu0 0.0
  %4592 = vmatpush1.msra.mxu0 %v217
  %4593 = vmatprep.subr.mxu0 0.0
  %4594 = vmatpush1.msra.mxu0 %v216
  %4595 = vmatprep.subr.mxu0 0.0
  %4596 = vmatpush2.msra.mxu0 0.0
  %4597 = vmatprep.subr.mxu0 0.0
  %4598 = vmatpush2.msra.mxu0 0.0
  %4599 = vmatprep.subr.mxu0 0.0
  %4600 = vmatpush2.msra.mxu0 0.0
  %4601 = vmatprep.subr.mxu0 0.0
  %4602 = vmatpush2.msra.mxu0 0.0
  %4603 = vmatprep.subr.mxu0 0.0
  %4604 = vmatpush2.msra.mxu0 0.0
  %4605 = vmatprep.subr.mxu0 0.0
  %4606 = vmatpush2.msra.mxu0 0.0
  %4607 = vmatprep.subr.mxu0 0.0
  %4608 = vmatpush2.msra.mxu0 0.0
  %4609 = vmatprep.subr.mxu0 0.0
  %4610 = vmatpush2.msra.mxu0 0.0
  %4611 = vmatprep.subr.mxu0 0.0
  %4612 = vmatpush2.msra.mxu0 0.0
  %4613 = vmatprep.subr.mxu0 0.0
  %4614 = vmatpush2.msra.mxu0 0.0
  %4615 = vmatprep.subr.mxu0 0.0
  %4616 = vmatpush2.msra.mxu0 0.0
  %4617 = vmatprep.subr.mxu0 0.0
  %4618 = vmatpush2.msra.mxu0 0.0
  %4619 = vmatprep.subr.mxu0 0.0
  %4620 = vmatpush2.msra.mxu0 0.0
  %4621 = vmatprep.subr.mxu0 0.0
  %4622 = vmatpush2.msra.mxu0 0.0
  %4623 = vmatprep.subr.mxu0 0.0
  %4624 = vmatpush2.msra.mxu0 0.0
  %4625 = vmatprep.subr.mxu0 0.0
  %4626 = vmatpush2.msra.mxu0 0.0
  %4627 = vmatprep.mubr.f32.mxu0 0.0
  %4628 = vmatmul.mubr.f32.gmra.mxu0 %v4558
  %v4629 = vpop.f32.mrf.mxu0
  %v4630 = vadd.f32 0.0, %v4629
  %v4631 = vpop.f32.mrf.mxu0
  %4632 = vmatprep.mubr.f32.mxu0 0.0
  %4633 = vmatmul.mubr.f32.gmra.mxu0 %v4561
  %v4634 = vpop.f32.mrf.mxu0
  %v4635 = vadd.f32 0.0, %v4634
  %v4636 = vpop.f32.mrf.mxu0
  %4637 = vdwg.mxu0
  %v4639 = vsel %vm256, %v3547, 0
  %v4642 = vsel %vm256, %v3548, 0
  %4644 = vmatprep.subr.mxu0 0.0
  %4645 = vmatpush1.msra.mxu0 0.0
  %4646 = vmatprep.subr.mxu0 0.0
  %4647 = vmatpush1.msra.mxu0 0.0
  %4648 = vmatprep.subr.mxu0 0.0
  %4649 = vmatpush1.msra.mxu0 0.0
  %4650 = vmatprep.subr.mxu0 0.0
  %4651 = vmatpush1.msra.mxu0 0.0
  %4652 = vmatprep.subr.mxu0 0.0
  %4653 = vmatpush1.msra.mxu0 0.0
  %4654 = vmatprep.subr.mxu0 0.0
  %4655 = vmatpush1.msra.mxu0 0.0
  %4656 = vmatprep.subr.mxu0 0.0
  %4657 = vmatpush1.msra.mxu0 0.0
  %4658 = vmatprep.subr.mxu0 0.0
  %4659 = vmatpush1.msra.mxu0 0.0
  %4660 = vmatprep.subr.mxu0 0.0
  %4661 = vmatpush1.msra.mxu0 0.0
  %4662 = vmatprep.subr.mxu0 0.0
  %4663 = vmatpush1.msra.mxu0 0.0
  %4664 = vmatprep.subr.mxu0 0.0
  %4665 = vmatpush1.msra.mxu0 0.0
  %4666 = vmatprep.subr.mxu0 0.0
  %4667 = vmatpush1.msra.mxu0 0.0
  %4668 = vmatprep.subr.mxu0 0.0
  %4669 = vmatpush1.msra.mxu0 0.0
  %4670 = vmatprep.subr.mxu0 0.0
  %4671 = vmatpush1.msra.mxu0 0.0
  %4672 = vmatprep.subr.mxu0 0.0
  %4673 = vmatpush1.msra.mxu0 %v219
  %4674 = vmatprep.subr.mxu0 0.0
  %4675 = vmatpush1.msra.mxu0 %v218
  %4676 = vmatprep.subr.mxu0 0.0
  %4677 = vmatpush2.msra.mxu0 0.0
  %4678 = vmatprep.subr.mxu0 0.0
  %4679 = vmatpush2.msra.mxu0 0.0
  %4680 = vmatprep.subr.mxu0 0.0
  %4681 = vmatpush2.msra.mxu0 0.0
  %4682 = vmatprep.subr.mxu0 0.0
  %4683 = vmatpush2.msra.mxu0 0.0
  %4684 = vmatprep.subr.mxu0 0.0
  %4685 = vmatpush2.msra.mxu0 0.0
  %4686 = vmatprep.subr.mxu0 0.0
  %4687 = vmatpush2.msra.mxu0 0.0
  %4688 = vmatprep.subr.mxu0 0.0
  %4689 = vmatpush2.msra.mxu0 0.0
  %4690 = vmatprep.subr.mxu0 0.0
  %4691 = vmatpush2.msra.mxu0 0.0
  %4692 = vmatprep.subr.mxu0 0.0
  %4693 = vmatpush2.msra.mxu0 0.0
  %4694 = vmatprep.subr.mxu0 0.0
  %4695 = vmatpush2.msra.mxu0 0.0
  %4696 = vmatprep.subr.mxu0 0.0
  %4697 = vmatpush2.msra.mxu0 0.0
  %4698 = vmatprep.subr.mxu0 0.0
  %4699 = vmatpush2.msra.mxu0 0.0
  %4700 = vmatprep.subr.mxu0 0.0
  %4701 = vmatpush2.msra.mxu0 0.0
  %4702 = vmatprep.subr.mxu0 0.0
  %4703 = vmatpush2.msra.mxu0 0.0
  %4704 = vmatprep.subr.mxu0 0.0
  %4705 = vmatpush2.msra.mxu0 0.0
  %4706 = vmatprep.subr.mxu0 0.0
  %4707 = vmatpush2.msra.mxu0 0.0
  %4708 = vmatprep.mubr.f32.mxu0 0.0
  %4709 = vmatmul.mubr.f32.gmra.mxu0 %v4639
  %v4710 = vpop.f32.mrf.mxu0
  %v4711 = vadd.f32 0.0, %v4710
  %v4712 = vpop.f32.mrf.mxu0
  %4713 = vmatprep.mubr.f32.mxu0 0.0
  %4714 = vmatmul.mubr.f32.gmra.mxu0 %v4642
  %v4715 = vpop.f32.mrf.mxu0
  %v4716 = vadd.f32 0.0, %v4715
  %v4717 = vpop.f32.mrf.mxu0
  %4718 = vdwg.mxu0
  %v4720 = vsel %vm256, %v3549, 0
  %v4723 = vsel %vm256, %v3550, 0
  %4725 = vmatprep.subr.mxu0 0.0
  %4726 = vmatpush1.msra.mxu0 0.0
  %4727 = vmatprep.subr.mxu0 0.0
  %4728 = vmatpush1.msra.mxu0 0.0
  %4729 = vmatprep.subr.mxu0 0.0
  %4730 = vmatpush1.msra.mxu0 0.0
  %4731 = vmatprep.subr.mxu0 0.0
  %4732 = vmatpush1.msra.mxu0 0.0
  %4733 = vmatprep.subr.mxu0 0.0
  %4734 = vmatpush1.msra.mxu0 0.0
  %4735 = vmatprep.subr.mxu0 0.0
  %4736 = vmatpush1.msra.mxu0 0.0
  %4737 = vmatprep.subr.mxu0 0.0
  %4738 = vmatpush1.msra.mxu0 0.0
  %4739 = vmatprep.subr.mxu0 0.0
  %4740 = vmatpush1.msra.mxu0 0.0
  %4741 = vmatprep.subr.mxu0 0.0
  %4742 = vmatpush1.msra.mxu0 0.0
  %4743 = vmatprep.subr.mxu0 0.0
  %4744 = vmatpush1.msra.mxu0 0.0
  %4745 = vmatprep.subr.mxu0 0.0
  %4746 = vmatpush1.msra.mxu0 0.0
  %4747 = vmatprep.subr.mxu0 0.0
  %4748 = vmatpush1.msra.mxu0 0.0
  %4749 = vmatprep.subr.mxu0 0.0
  %4750 = vmatpush1.msra.mxu0 0.0
  %4751 = vmatprep.subr.mxu0 0.0
  %4752 = vmatpush1.msra.mxu0 0.0
  %4753 = vmatprep.subr.mxu0 0.0
  %4754 = vmatpush1.msra.mxu0 %v221
  %4755 = vmatprep.subr.mxu0 0.0
  %4756 = vmatpush1.msra.mxu0 %v220
  %4757 = vmatprep.subr.mxu0 0.0
  %4758 = vmatpush2.msra.mxu0 0.0
  %4759 = vmatprep.subr.mxu0 0.0
  %4760 = vmatpush2.msra.mxu0 0.0
  %4761 = vmatprep.subr.mxu0 0.0
  %4762 = vmatpush2.msra.mxu0 0.0
  %4763 = vmatprep.subr.mxu0 0.0
  %4764 = vmatpush2.msra.mxu0 0.0
  %4765 = vmatprep.subr.mxu0 0.0
  %4766 = vmatpush2.msra.mxu0 0.0
  %4767 = vmatprep.subr.mxu0 0.0
  %4768 = vmatpush2.msra.mxu0 0.0
  %4769 = vmatprep.subr.mxu0 0.0
  %4770 = vmatpush2.msra.mxu0 0.0
  %4771 = vmatprep.subr.mxu0 0.0
  %4772 = vmatpush2.msra.mxu0 0.0
  %4773 = vmatprep.subr.mxu0 0.0
  %4774 = vmatpush2.msra.mxu0 0.0
  %4775 = vmatprep.subr.mxu0 0.0
  %4776 = vmatpush2.msra.mxu0 0.0
  %4777 = vmatprep.subr.mxu0 0.0
  %4778 = vmatpush2.msra.mxu0 0.0
  %4779 = vmatprep.subr.mxu0 0.0
  %4780 = vmatpush2.msra.mxu0 0.0
  %4781 = vmatprep.subr.mxu0 0.0
  %4782 = vmatpush2.msra.mxu0 0.0
  %4783 = vmatprep.subr.mxu0 0.0
  %4784 = vmatpush2.msra.mxu0 0.0
  %4785 = vmatprep.subr.mxu0 0.0
  %4786 = vmatpush2.msra.mxu0 0.0
  %4787 = vmatprep.subr.mxu0 0.0
  %4788 = vmatpush2.msra.mxu0 0.0
  %4789 = vmatprep.mubr.f32.mxu0 0.0
  %4790 = vmatmul.mubr.f32.gmra.mxu0 %v4720
  %v4791 = vpop.f32.mrf.mxu0
  %v4792 = vadd.f32 0.0, %v4791
  %v4793 = vpop.f32.mrf.mxu0
  %4794 = vmatprep.mubr.f32.mxu0 0.0
  %4795 = vmatmul.mubr.f32.gmra.mxu0 %v4723
  %v4796 = vpop.f32.mrf.mxu0
  %v4797 = vadd.f32 0.0, %v4796
  %v4798 = vpop.f32.mrf.mxu0
  %4799 = vdwg.mxu0
  %v4801 = vsel %vm256, %v3551, 0
  %v4804 = vsel %vm256, %v3552, 0
  %4806 = vmatprep.subr.mxu0 0.0
  %4807 = vmatpush1.msra.mxu0 0.0
  %4808 = vmatprep.subr.mxu0 0.0
  %4809 = vmatpush1.msra.mxu0 0.0
  %4810 = vmatprep.subr.mxu0 0.0
  %4811 = vmatpush1.msra.mxu0 0.0
  %4812 = vmatprep.subr.mxu0 0.0
  %4813 = vmatpush1.msra.mxu0 0.0
  %4814 = vmatprep.subr.mxu0 0.0
  %4815 = vmatpush1.msra.mxu0 0.0
  %4816 = vmatprep.subr.mxu0 0.0
  %4817 = vmatpush1.msra.mxu0 0.0
  %4818 = vmatprep.subr.mxu0 0.0
  %4819 = vmatpush1.msra.mxu0 0.0
  %4820 = vmatprep.subr.mxu0 0.0
  %4821 = vmatpush1.msra.mxu0 0.0
  %4822 = vmatprep.subr.mxu0 0.0
  %4823 = vmatpush1.msra.mxu0 0.0
  %4824 = vmatprep.subr.mxu0 0.0
  %4825 = vmatpush1.msra.mxu0 0.0
  %4826 = vmatprep.subr.mxu0 0.0
  %4827 = vmatpush1.msra.mxu0 0.0
  %4828 = vmatprep.subr.mxu0 0.0
  %4829 = vmatpush1.msra.mxu0 0.0
  %4830 = vmatprep.subr.mxu0 0.0
  %4831 = vmatpush1.msra.mxu0 0.0
  %4832 = vmatprep.subr.mxu0 0.0
  %4833 = vmatpush1.msra.mxu0 0.0
  %4834 = vmatprep.subr.mxu0 0.0
  %4835 = vmatpush1.msra.mxu0 %v223
  %4836 = vmatprep.subr.mxu0 0.0
  %4837 = vmatpush1.msra.mxu0 %v222
  %4838 = vmatprep.subr.mxu0 0.0
  %4839 = vmatpush2.msra.mxu0 0.0
  %4840 = vmatprep.subr.mxu0 0.0
  %4841 = vmatpush2.msra.mxu0 0.0
  %4842 = vmatprep.subr.mxu0 0.0
  %4843 = vmatpush2.msra.mxu0 0.0
  %4844 = vmatprep.subr.mxu0 0.0
  %4845 = vmatpush2.msra.mxu0 0.0
  %4846 = vmatprep.subr.mxu0 0.0
  %4847 = vmatpush2.msra.mxu0 0.0
  %4848 = vmatprep.subr.mxu0 0.0
  %4849 = vmatpush2.msra.mxu0 0.0
  %4850 = vmatprep.subr.mxu0 0.0
  %4851 = vmatpush2.msra.mxu0 0.0
  %4852 = vmatprep.subr.mxu0 0.0
  %4853 = vmatpush2.msra.mxu0 0.0
  %4854 = vmatprep.subr.mxu0 0.0
  %4855 = vmatpush2.msra.mxu0 0.0
  %4856 = vmatprep.subr.mxu0 0.0
  %4857 = vmatpush2.msra.mxu0 0.0
  %4858 = vmatprep.subr.mxu0 0.0
  %4859 = vmatpush2.msra.mxu0 0.0
  %4860 = vmatprep.subr.mxu0 0.0
  %4861 = vmatpush2.msra.mxu0 0.0
  %4862 = vmatprep.subr.mxu0 0.0
  %4863 = vmatpush2.msra.mxu0 0.0
  %4864 = vmatprep.subr.mxu0 0.0
  %4865 = vmatpush2.msra.mxu0 0.0
  %4866 = vmatprep.subr.mxu0 0.0
  %4867 = vmatpush2.msra.mxu0 0.0
  %4868 = vmatprep.subr.mxu0 0.0
  %4869 = vmatpush2.msra.mxu0 0.0
  %4870 = vmatprep.mubr.f32.mxu0 0.0
  %4871 = vmatmul.mubr.f32.gmra.mxu0 %v4801
  %v4872 = vpop.f32.mrf.mxu0
  %v4873 = vadd.f32 0.0, %v4872
  %v4874 = vpop.f32.mrf.mxu0
  %4875 = vmatprep.mubr.f32.mxu0 0.0
  %4876 = vmatmul.mubr.f32.gmra.mxu0 %v4804
  %v4877 = vpop.f32.mrf.mxu0
  %v4878 = vadd.f32 0.0, %v4877
  %v4879 = vpop.f32.mrf.mxu0
  %4880 = vdwg.mxu0
  %v4882 = vsel %vm256, %v3553, 0
  %v4885 = vsel %vm256, %v3554, 0
  %4887 = vmatprep.subr.mxu0 0.0
  %4888 = vmatpush1.msra.mxu0 0.0
  %4889 = vmatprep.subr.mxu0 0.0
  %4890 = vmatpush1.msra.mxu0 0.0
  %4891 = vmatprep.subr.mxu0 0.0
  %4892 = vmatpush1.msra.mxu0 0.0
  %4893 = vmatprep.subr.mxu0 0.0
  %4894 = vmatpush1.msra.mxu0 0.0
  %4895 = vmatprep.subr.mxu0 0.0
  %4896 = vmatpush1.msra.mxu0 0.0
  %4897 = vmatprep.subr.mxu0 0.0
  %4898 = vmatpush1.msra.mxu0 0.0
  %4899 = vmatprep.subr.mxu0 0.0
  %4900 = vmatpush1.msra.mxu0 0.0
  %4901 = vmatprep.subr.mxu0 0.0
  %4902 = vmatpush1.msra.mxu0 0.0
  %4903 = vmatprep.subr.mxu0 0.0
  %4904 = vmatpush1.msra.mxu0 0.0
  %4905 = vmatprep.subr.mxu0 0.0
  %4906 = vmatpush1.msra.mxu0 0.0
  %4907 = vmatprep.subr.mxu0 0.0
  %4908 = vmatpush1.msra.mxu0 0.0
  %4909 = vmatprep.subr.mxu0 0.0
  %4910 = vmatpush1.msra.mxu0 0.0
  %4911 = vmatprep.subr.mxu0 0.0
  %4912 = vmatpush1.msra.mxu0 0.0
  %4913 = vmatprep.subr.mxu0 0.0
  %4914 = vmatpush1.msra.mxu0 0.0
  %4915 = vmatprep.subr.mxu0 0.0
  %4916 = vmatpush1.msra.mxu0 %v225
  %4917 = vmatprep.subr.mxu0 0.0
  %4918 = vmatpush1.msra.mxu0 %v224
  %4919 = vmatprep.subr.mxu0 0.0
  %4920 = vmatpush2.msra.mxu0 0.0
  %4921 = vmatprep.subr.mxu0 0.0
  %4922 = vmatpush2.msra.mxu0 0.0
  %4923 = vmatprep.subr.mxu0 0.0
  %4924 = vmatpush2.msra.mxu0 0.0
  %4925 = vmatprep.subr.mxu0 0.0
  %4926 = vmatpush2.msra.mxu0 0.0
  %4927 = vmatprep.subr.mxu0 0.0
  %4928 = vmatpush2.msra.mxu0 0.0
  %4929 = vmatprep.subr.mxu0 0.0
  %4930 = vmatpush2.msra.mxu0 0.0
  %4931 = vmatprep.subr.mxu0 0.0
  %4932 = vmatpush2.msra.mxu0 0.0
  %4933 = vmatprep.subr.mxu0 0.0
  %4934 = vmatpush2.msra.mxu0 0.0
  %4935 = vmatprep.subr.mxu0 0.0
  %4936 = vmatpush2.msra.mxu0 0.0
  %4937 = vmatprep.subr.mxu0 0.0
  %4938 = vmatpush2.msra.mxu0 0.0
  %4939 = vmatprep.subr.mxu0 0.0
  %4940 = vmatpush2.msra.mxu0 0.0
  %4941 = vmatprep.subr.mxu0 0.0
  %4942 = vmatpush2.msra.mxu0 0.0
  %4943 = vmatprep.subr.mxu0 0.0
  %4944 = vmatpush2.msra.mxu0 0.0
  %4945 = vmatprep.subr.mxu0 0.0
  %4946 = vmatpush2.msra.mxu0 0.0
  %4947 = vmatprep.subr.mxu0 0.0
  %4948 = vmatpush2.msra.mxu0 0.0
  %4949 = vmatprep.subr.mxu0 0.0
  %4950 = vmatpush2.msra.mxu0 0.0
  %4951 = vmatprep.mubr.f32.mxu0 0.0
  %4952 = vmatmul.mubr.f32.gmra.mxu0 %v4882
  %v4953 = vpop.f32.mrf.mxu0
  %v4954 = vadd.f32 0.0, %v4953
  %v4955 = vpop.f32.mrf.mxu0
  %4956 = vmatprep.mubr.f32.mxu0 0.0
  %4957 = vmatmul.mubr.f32.gmra.mxu0 %v4885
  %v4958 = vpop.f32.mrf.mxu0
  %v4959 = vadd.f32 0.0, %v4958
  %v4960 = vpop.f32.mrf.mxu0
  %4961 = vdwg.mxu0
  %v4963 = vsel %vm256, %v3555, 0
  %v4966 = vsel %vm256, %v3556, 0
  %4968 = vmatprep.subr.mxu0 0.0
  %4969 = vmatpush1.msra.mxu0 0.0
  %4970 = vmatprep.subr.mxu0 0.0
  %4971 = vmatpush1.msra.mxu0 0.0
  %4972 = vmatprep.subr.mxu0 0.0
  %4973 = vmatpush1.msra.mxu0 0.0
  %4974 = vmatprep.subr.mxu0 0.0
  %4975 = vmatpush1.msra.mxu0 0.0
  %4976 = vmatprep.subr.mxu0 0.0
  %4977 = vmatpush1.msra.mxu0 0.0
  %4978 = vmatprep.subr.mxu0 0.0
  %4979 = vmatpush1.msra.mxu0 0.0
  %4980 = vmatprep.subr.mxu0 0.0
  %4981 = vmatpush1.msra.mxu0 0.0
  %4982 = vmatprep.subr.mxu0 0.0
  %4983 = vmatpush1.msra.mxu0 0.0
  %4984 = vmatprep.subr.mxu0 0.0
  %4985 = vmatpush1.msra.mxu0 0.0
  %4986 = vmatprep.subr.mxu0 0.0
  %4987 = vmatpush1.msra.mxu0 0.0
  %4988 = vmatprep.subr.mxu0 0.0
  %4989 = vmatpush1.msra.mxu0 0.0
  %4990 = vmatprep.subr.mxu0 0.0
  %4991 = vmatpush1.msra.mxu0 0.0
  %4992 = vmatprep.subr.mxu0 0.0
  %4993 = vmatpush1.msra.mxu0 0.0
  %4994 = vmatprep.subr.mxu0 0.0
  %4995 = vmatpush1.msra.mxu0 0.0
  %4996 = vmatprep.subr.mxu0 0.0
  %4997 = vmatpush1.msra.mxu0 %v227
  %4998 = vmatprep.subr.mxu0 0.0
  %4999 = vmatpush1.msra.mxu0 %v226
  %5000 = vmatprep.subr.mxu0 0.0
  %5001 = vmatpush2.msra.mxu0 0.0
  %5002 = vmatprep.subr.mxu0 0.0
  %5003 = vmatpush2.msra.mxu0 0.0
  %5004 = vmatprep.subr.mxu0 0.0
  %5005 = vmatpush2.msra.mxu0 0.0
  %5006 = vmatprep.subr.mxu0 0.0
  %5007 = vmatpush2.msra.mxu0 0.0
  %5008 = vmatprep.subr.mxu0 0.0
  %5009 = vmatpush2.msra.mxu0 0.0
  %5010 = vmatprep.subr.mxu0 0.0
  %5011 = vmatpush2.msra.mxu0 0.0
  %5012 = vmatprep.subr.mxu0 0.0
  %5013 = vmatpush2.msra.mxu0 0.0
  %5014 = vmatprep.subr.mxu0 0.0
  %5015 = vmatpush2.msra.mxu0 0.0
  %5016 = vmatprep.subr.mxu0 0.0
  %5017 = vmatpush2.msra.mxu0 0.0
  %5018 = vmatprep.subr.mxu0 0.0
  %5019 = vmatpush2.msra.mxu0 0.0
  %5020 = vmatprep.subr.mxu0 0.0
  %5021 = vmatpush2.msra.mxu0 0.0
  %5022 = vmatprep.subr.mxu0 0.0
  %5023 = vmatpush2.msra.mxu0 0.0
  %5024 = vmatprep.subr.mxu0 0.0
  %5025 = vmatpush2.msra.mxu0 0.0
  %5026 = vmatprep.subr.mxu0 0.0
  %5027 = vmatpush2.msra.mxu0 0.0
  %5028 = vmatprep.subr.mxu0 0.0
  %5029 = vmatpush2.msra.mxu0 0.0
  %5030 = vmatprep.subr.mxu0 0.0
  %5031 = vmatpush2.msra.mxu0 0.0
  %5032 = vmatprep.mubr.f32.mxu0 0.0
  %5033 = vmatmul.mubr.f32.gmra.mxu0 %v4963
  %v5034 = vpop.f32.mrf.mxu0
  %v5035 = vadd.f32 0.0, %v5034
  %v5036 = vpop.f32.mrf.mxu0
  %5037 = vmatprep.mubr.f32.mxu0 0.0
  %5038 = vmatmul.mubr.f32.gmra.mxu0 %v4966
  %v5039 = vpop.f32.mrf.mxu0
  %v5040 = vadd.f32 0.0, %v5039
  %v5041 = vpop.f32.mrf.mxu0
  %5042 = vdwg.mxu0
  %v5044 = vsel %vm256, %v3557, 0
  %v5047 = vsel %vm256, %v3558, 0
  %5049 = vmatprep.subr.mxu0 0.0
  %5050 = vmatpush1.msra.mxu0 0.0
  %5051 = vmatprep.subr.mxu0 0.0
  %5052 = vmatpush1.msra.mxu0 0.0
  %5053 = vmatprep.subr.mxu0 0.0
  %5054 = vmatpush1.msra.mxu0 0.0
  %5055 = vmatprep.subr.mxu0 0.0
  %5056 = vmatpush1.msra.mxu0 0.0
  %5057 = vmatprep.subr.mxu0 0.0
  %5058 = vmatpush1.msra.mxu0 0.0
  %5059 = vmatprep.subr.mxu0 0.0
  %5060 = vmatpush1.msra.mxu0 0.0
  %5061 = vmatprep.subr.mxu0 0.0
  %5062 = vmatpush1.msra.mxu0 0.0
  %5063 = vmatprep.subr.mxu0 0.0
  %5064 = vmatpush1.msra.mxu0 0.0
  %5065 = vmatprep.subr.mxu0 0.0
  %5066 = vmatpush1.msra.mxu0 0.0
  %5067 = vmatprep.subr.mxu0 0.0
  %5068 = vmatpush1.msra.mxu0 0.0
  %5069 = vmatprep.subr.mxu0 0.0
  %5070 = vmatpush1.msra.mxu0 0.0
  %5071 = vmatprep.subr.mxu0 0.0
  %5072 = vmatpush1.msra.mxu0 0.0
  %5073 = vmatprep.subr.mxu0 0.0
  %5074 = vmatpush1.msra.mxu0 0.0
  %5075 = vmatprep.subr.mxu0 0.0
  %5076 = vmatpush1.msra.mxu0 0.0
  %5077 = vmatprep.subr.mxu0 0.0
  %5078 = vmatpush1.msra.mxu0 %v229
  %5079 = vmatprep.subr.mxu0 0.0
  %5080 = vmatpush1.msra.mxu0 %v228
  %5081 = vmatprep.subr.mxu0 0.0
  %5082 = vmatpush2.msra.mxu0 0.0
  %5083 = vmatprep.subr.mxu0 0.0
  %5084 = vmatpush2.msra.mxu0 0.0
  %5085 = vmatprep.subr.mxu0 0.0
  %5086 = vmatpush2.msra.mxu0 0.0
  %5087 = vmatprep.subr.mxu0 0.0
  %5088 = vmatpush2.msra.mxu0 0.0
  %5089 = vmatprep.subr.mxu0 0.0
  %5090 = vmatpush2.msra.mxu0 0.0
  %5091 = vmatprep.subr.mxu0 0.0
  %5092 = vmatpush2.msra.mxu0 0.0
  %5093 = vmatprep.subr.mxu0 0.0
  %5094 = vmatpush2.msra.mxu0 0.0
  %5095 = vmatprep.subr.mxu0 0.0
  %5096 = vmatpush2.msra.mxu0 0.0
  %5097 = vmatprep.subr.mxu0 0.0
  %5098 = vmatpush2.msra.mxu0 0.0
  %5099 = vmatprep.subr.mxu0 0.0
  %5100 = vmatpush2.msra.mxu0 0.0
  %5101 = vmatprep.subr.mxu0 0.0
  %5102 = vmatpush2.msra.mxu0 0.0
  %5103 = vmatprep.subr.mxu0 0.0
  %5104 = vmatpush2.msra.mxu0 0.0
  %5105 = vmatprep.subr.mxu0 0.0
  %5106 = vmatpush2.msra.mxu0 0.0
  %5107 = vmatprep.subr.mxu0 0.0
  %5108 = vmatpush2.msra.mxu0 0.0
  %5109 = vmatprep.subr.mxu0 0.0
  %5110 = vmatpush2.msra.mxu0 0.0
  %5111 = vmatprep.subr.mxu0 0.0
  %5112 = vmatpush2.msra.mxu0 0.0
  %5113 = vmatprep.mubr.f32.mxu0 0.0
  %5114 = vmatmul.mubr.f32.gmra.mxu0 %v5044
  %v5115 = vpop.f32.mrf.mxu0
  %v5116 = vadd.f32 0.0, %v5115
  %v5117 = vpop.f32.mrf.mxu0
  %5118 = vmatprep.mubr.f32.mxu0 0.0
  %5119 = vmatmul.mubr.f32.gmra.mxu0 %v5047
  %v5120 = vpop.f32.mrf.mxu0
  %v5121 = vadd.f32 0.0, %v5120
  %v5122 = vpop.f32.mrf.mxu0
  %5123 = vdwg.mxu0
  %v5125 = vsel %vm256, %v3559, 0
  %v5128 = vsel %vm256, %v3560, 0
  %5130 = vmatprep.subr.mxu0 0.0
  %5131 = vmatpush1.msra.mxu0 0.0
  %5132 = vmatprep.subr.mxu0 0.0
  %5133 = vmatpush1.msra.mxu0 0.0
  %5134 = vmatprep.subr.mxu0 0.0
  %5135 = vmatpush1.msra.mxu0 0.0
  %5136 = vmatprep.subr.mxu0 0.0
  %5137 = vmatpush1.msra.mxu0 0.0
  %5138 = vmatprep.subr.mxu0 0.0
  %5139 = vmatpush1.msra.mxu0 0.0
  %5140 = vmatprep.subr.mxu0 0.0
  %5141 = vmatpush1.msra.mxu0 0.0
  %5142 = vmatprep.subr.mxu0 0.0
  %5143 = vmatpush1.msra.mxu0 0.0
  %5144 = vmatprep.subr.mxu0 0.0
  %5145 = vmatpush1.msra.mxu0 0.0
  %5146 = vmatprep.subr.mxu0 0.0
  %5147 = vmatpush1.msra.mxu0 0.0
  %5148 = vmatprep.subr.mxu0 0.0
  %5149 = vmatpush1.msra.mxu0 0.0
  %5150 = vmatprep.subr.mxu0 0.0
  %5151 = vmatpush1.msra.mxu0 0.0
  %5152 = vmatprep.subr.mxu0 0.0
  %5153 = vmatpush1.msra.mxu0 0.0
  %5154 = vmatprep.subr.mxu0 0.0
  %5155 = vmatpush1.msra.mxu0 0.0
  %5156 = vmatprep.subr.mxu0 0.0
  %5157 = vmatpush1.msra.mxu0 0.0
  %5158 = vmatprep.subr.mxu0 0.0
  %5159 = vmatpush1.msra.mxu0 %v231
  %5160 = vmatprep.subr.mxu0 0.0
  %5161 = vmatpush1.msra.mxu0 %v230
  %5162 = vmatprep.subr.mxu0 0.0
  %5163 = vmatpush2.msra.mxu0 0.0
  %5164 = vmatprep.subr.mxu0 0.0
  %5165 = vmatpush2.msra.mxu0 0.0
  %5166 = vmatprep.subr.mxu0 0.0
  %5167 = vmatpush2.msra.mxu0 0.0
  %5168 = vmatprep.subr.mxu0 0.0
  %5169 = vmatpush2.msra.mxu0 0.0
  %5170 = vmatprep.subr.mxu0 0.0
  %5171 = vmatpush2.msra.mxu0 0.0
  %5172 = vmatprep.subr.mxu0 0.0
  %5173 = vmatpush2.msra.mxu0 0.0
  %5174 = vmatprep.subr.mxu0 0.0
  %5175 = vmatpush2.msra.mxu0 0.0
  %5176 = vmatprep.subr.mxu0 0.0
  %5177 = vmatpush2.msra.mxu0 0.0
  %5178 = vmatprep.subr.mxu0 0.0
  %5179 = vmatpush2.msra.mxu0 0.0
  %5180 = vmatprep.subr.mxu0 0.0
  %5181 = vmatpush2.msra.mxu0 0.0
  %5182 = vmatprep.subr.mxu0 0.0
  %5183 = vmatpush2.msra.mxu0 0.0
  %5184 = vmatprep.subr.mxu0 0.0
  %5185 = vmatpush2.msra.mxu0 0.0
  %5186 = vmatprep.subr.mxu0 0.0
  %5187 = vmatpush2.msra.mxu0 0.0
  %5188 = vmatprep.subr.mxu0 0.0
  %5189 = vmatpush2.msra.mxu0 0.0
  %5190 = vmatprep.subr.mxu0 0.0
  %5191 = vmatpush2.msra.mxu0 0.0
  %5192 = vmatprep.subr.mxu0 0.0
  %5193 = vmatpush2.msra.mxu0 0.0
  %5194 = vmatprep.mubr.f32.mxu0 0.0
  %5195 = vmatmul.mubr.f32.gmra.mxu0 %v5125
  %v5196 = vpop.f32.mrf.mxu0
  %v5197 = vadd.f32 0.0, %v5196
  %v5198 = vpop.f32.mrf.mxu0
  %5199 = vmatprep.mubr.f32.mxu0 0.0
  %5200 = vmatmul.mubr.f32.gmra.mxu0 %v5128
  %v5201 = vpop.f32.mrf.mxu0
  %v5202 = vadd.f32 0.0, %v5201
  %v5203 = vpop.f32.mrf.mxu0
  %5204 = vdwg.mxu0
  %v5206 = vsel %vm256, %v3561, 0
  %v5209 = vsel %vm256, %v3562, 0
  %5211 = vmatprep.subr.mxu0 0.0
  %5212 = vmatpush1.msra.mxu0 0.0
  %5213 = vmatprep.subr.mxu0 0.0
  %5214 = vmatpush1.msra.mxu0 0.0
  %5215 = vmatprep.subr.mxu0 0.0
  %5216 = vmatpush1.msra.mxu0 0.0
  %5217 = vmatprep.subr.mxu0 0.0
  %5218 = vmatpush1.msra.mxu0 0.0
  %5219 = vmatprep.subr.mxu0 0.0
  %5220 = vmatpush1.msra.mxu0 0.0
  %5221 = vmatprep.subr.mxu0 0.0
  %5222 = vmatpush1.msra.mxu0 0.0
  %5223 = vmatprep.subr.mxu0 0.0
  %5224 = vmatpush1.msra.mxu0 0.0
  %5225 = vmatprep.subr.mxu0 0.0
  %5226 = vmatpush1.msra.mxu0 0.0
  %5227 = vmatprep.subr.mxu0 0.0
  %5228 = vmatpush1.msra.mxu0 0.0
  %5229 = vmatprep.subr.mxu0 0.0
  %5230 = vmatpush1.msra.mxu0 0.0
  %5231 = vmatprep.subr.mxu0 0.0
  %5232 = vmatpush1.msra.mxu0 0.0
  %5233 = vmatprep.subr.mxu0 0.0
  %5234 = vmatpush1.msra.mxu0 0.0
  %5235 = vmatprep.subr.mxu0 0.0
  %5236 = vmatpush1.msra.mxu0 0.0
  %5237 = vmatprep.subr.mxu0 0.0
  %5238 = vmatpush1.msra.mxu0 0.0
  %5239 = vmatprep.subr.mxu0 0.0
  %5240 = vmatpush1.msra.mxu0 %v233
  %5241 = vmatprep.subr.mxu0 0.0
  %5242 = vmatpush1.msra.mxu0 %v232
  %5243 = vmatprep.subr.mxu0 0.0
  %5244 = vmatpush2.msra.mxu0 0.0
  %5245 = vmatprep.subr.mxu0 0.0
  %5246 = vmatpush2.msra.mxu0 0.0
  %5247 = vmatprep.subr.mxu0 0.0
  %5248 = vmatpush2.msra.mxu0 0.0
  %5249 = vmatprep.subr.mxu0 0.0
  %5250 = vmatpush2.msra.mxu0 0.0
  %5251 = vmatprep.subr.mxu0 0.0
  %5252 = vmatpush2.msra.mxu0 0.0
  %5253 = vmatprep.subr.mxu0 0.0
  %5254 = vmatpush2.msra.mxu0 0.0
  %5255 = vmatprep.subr.mxu0 0.0
  %5256 = vmatpush2.msra.mxu0 0.0
  %5257 = vmatprep.subr.mxu0 0.0
  %5258 = vmatpush2.msra.mxu0 0.0
  %5259 = vmatprep.subr.mxu0 0.0
  %5260 = vmatpush2.msra.mxu0 0.0
  %5261 = vmatprep.subr.mxu0 0.0
  %5262 = vmatpush2.msra.mxu0 0.0
  %5263 = vmatprep.subr.mxu0 0.0
  %5264 = vmatpush2.msra.mxu0 0.0
  %5265 = vmatprep.subr.mxu0 0.0
  %5266 = vmatpush2.msra.mxu0 0.0
  %5267 = vmatprep.subr.mxu0 0.0
  %5268 = vmatpush2.msra.mxu0 0.0
  %5269 = vmatprep.subr.mxu0 0.0
  %5270 = vmatpush2.msra.mxu0 0.0
  %5271 = vmatprep.subr.mxu0 0.0
  %5272 = vmatpush2.msra.mxu0 0.0
  %5273 = vmatprep.subr.mxu0 0.0
  %5274 = vmatpush2.msra.mxu0 0.0
  %5275 = vmatprep.mubr.f32.mxu0 0.0
  %5276 = vmatmul.mubr.f32.gmra.mxu0 %v5206
  %v5277 = vpop.f32.mrf.mxu0
  %v5278 = vadd.f32 0.0, %v5277
  %v5279 = vpop.f32.mrf.mxu0
  %5280 = vmatprep.mubr.f32.mxu0 0.0
  %5281 = vmatmul.mubr.f32.gmra.mxu0 %v5209
  %v5282 = vpop.f32.mrf.mxu0
  %v5283 = vadd.f32 0.0, %v5282
  %v5284 = vpop.f32.mrf.mxu0
  %5285 = vdwg.mxu0
  %v5287 = vsel %vm256, %v3563, 0
  %v5290 = vsel %vm256, %v3564, 0
  %5292 = vmatprep.subr.mxu0 0.0
  %5293 = vmatpush1.msra.mxu0 0.0
  %5294 = vmatprep.subr.mxu0 0.0
  %5295 = vmatpush1.msra.mxu0 0.0
  %5296 = vmatprep.subr.mxu0 0.0
  %5297 = vmatpush1.msra.mxu0 0.0
  %5298 = vmatprep.subr.mxu0 0.0
  %5299 = vmatpush1.msra.mxu0 0.0
  %5300 = vmatprep.subr.mxu0 0.0
  %5301 = vmatpush1.msra.mxu0 0.0
  %5302 = vmatprep.subr.mxu0 0.0
  %5303 = vmatpush1.msra.mxu0 0.0
  %5304 = vmatprep.subr.mxu0 0.0
  %5305 = vmatpush1.msra.mxu0 0.0
  %5306 = vmatprep.subr.mxu0 0.0
  %5307 = vmatpush1.msra.mxu0 0.0
  %5308 = vmatprep.subr.mxu0 0.0
  %5309 = vmatpush1.msra.mxu0 0.0
  %5310 = vmatprep.subr.mxu0 0.0
  %5311 = vmatpush1.msra.mxu0 0.0
  %5312 = vmatprep.subr.mxu0 0.0
  %5313 = vmatpush1.msra.mxu0 0.0
  %5314 = vmatprep.subr.mxu0 0.0
  %5315 = vmatpush1.msra.mxu0 0.0
  %5316 = vmatprep.subr.mxu0 0.0
  %5317 = vmatpush1.msra.mxu0 0.0
  %5318 = vmatprep.subr.mxu0 0.0
  %5319 = vmatpush1.msra.mxu0 0.0
  %5320 = vmatprep.subr.mxu0 0.0
  %5321 = vmatpush1.msra.mxu0 %v235
  %5322 = vmatprep.subr.mxu0 0.0
  %5323 = vmatpush1.msra.mxu0 %v234
  %5324 = vmatprep.subr.mxu0 0.0
  %5325 = vmatpush2.msra.mxu0 0.0
  %5326 = vmatprep.subr.mxu0 0.0
  %5327 = vmatpush2.msra.mxu0 0.0
  %5328 = vmatprep.subr.mxu0 0.0
  %5329 = vmatpush2.msra.mxu0 0.0
  %5330 = vmatprep.subr.mxu0 0.0
  %5331 = vmatpush2.msra.mxu0 0.0
  %5332 = vmatprep.subr.mxu0 0.0
  %5333 = vmatpush2.msra.mxu0 0.0
  %5334 = vmatprep.subr.mxu0 0.0
  %5335 = vmatpush2.msra.mxu0 0.0
  %5336 = vmatprep.subr.mxu0 0.0
  %5337 = vmatpush2.msra.mxu0 0.0
  %5338 = vmatprep.subr.mxu0 0.0
  %5339 = vmatpush2.msra.mxu0 0.0
  %5340 = vmatprep.subr.mxu0 0.0
  %5341 = vmatpush2.msra.mxu0 0.0
  %5342 = vmatprep.subr.mxu0 0.0
  %5343 = vmatpush2.msra.mxu0 0.0
  %5344 = vmatprep.subr.mxu0 0.0
  %5345 = vmatpush2.msra.mxu0 0.0
  %5346 = vmatprep.subr.mxu0 0.0
  %5347 = vmatpush2.msra.mxu0 0.0
  %5348 = vmatprep.subr.mxu0 0.0
  %5349 = vmatpush2.msra.mxu0 0.0
  %5350 = vmatprep.subr.mxu0 0.0
  %5351 = vmatpush2.msra.mxu0 0.0
  %5352 = vmatprep.subr.mxu0 0.0
  %5353 = vmatpush2.msra.mxu0 0.0
  %5354 = vmatprep.subr.mxu0 0.0
  %5355 = vmatpush2.msra.mxu0 0.0
  %5356 = vmatprep.mubr.f32.mxu0 0.0
  %5357 = vmatmul.mubr.f32.gmra.mxu0 %v5287
  %v5358 = vpop.f32.mrf.mxu0
  %v5359 = vadd.f32 0.0, %v5358
  %v5360 = vpop.f32.mrf.mxu0
  %5361 = vmatprep.mubr.f32.mxu0 0.0
  %5362 = vmatmul.mubr.f32.gmra.mxu0 %v5290
  %v5363 = vpop.f32.mrf.mxu0
  %v5364 = vadd.f32 0.0, %v5363
  %v5365 = vpop.f32.mrf.mxu0
  %5366 = vdwg.mxu0
  %v5368 = vsel %vm256, %v3565, 0
  %v5371 = vsel %vm256, %v3566, 0
  %5373 = vmatprep.subr.mxu0 0.0
  %5374 = vmatpush1.msra.mxu0 0.0
  %5375 = vmatprep.subr.mxu0 0.0
  %5376 = vmatpush1.msra.mxu0 0.0
  %5377 = vmatprep.subr.mxu0 0.0
  %5378 = vmatpush1.msra.mxu0 0.0
  %5379 = vmatprep.subr.mxu0 0.0
  %5380 = vmatpush1.msra.mxu0 0.0
  %5381 = vmatprep.subr.mxu0 0.0
  %5382 = vmatpush1.msra.mxu0 0.0
  %5383 = vmatprep.subr.mxu0 0.0
  %5384 = vmatpush1.msra.mxu0 0.0
  %5385 = vmatprep.subr.mxu0 0.0
  %5386 = vmatpush1.msra.mxu0 0.0
  %5387 = vmatprep.subr.mxu0 0.0
  %5388 = vmatpush1.msra.mxu0 0.0
  %5389 = vmatprep.subr.mxu0 0.0
  %5390 = vmatpush1.msra.mxu0 0.0
  %5391 = vmatprep.subr.mxu0 0.0
  %5392 = vmatpush1.msra.mxu0 0.0
  %5393 = vmatprep.subr.mxu0 0.0
  %5394 = vmatpush1.msra.mxu0 0.0
  %5395 = vmatprep.subr.mxu0 0.0
  %5396 = vmatpush1.msra.mxu0 0.0
  %5397 = vmatprep.subr.mxu0 0.0
  %5398 = vmatpush1.msra.mxu0 0.0
  %5399 = vmatprep.subr.mxu0 0.0
  %5400 = vmatpush1.msra.mxu0 0.0
  %5401 = vmatprep.subr.mxu0 0.0
  %5402 = vmatpush1.msra.mxu0 %v237
  %5403 = vmatprep.subr.mxu0 0.0
  %5404 = vmatpush1.msra.mxu0 %v236
  %5405 = vmatprep.subr.mxu0 0.0
  %5406 = vmatpush2.msra.mxu0 0.0
  %5407 = vmatprep.subr.mxu0 0.0
  %5408 = vmatpush2.msra.mxu0 0.0
  %5409 = vmatprep.subr.mxu0 0.0
  %5410 = vmatpush2.msra.mxu0 0.0
  %5411 = vmatprep.subr.mxu0 0.0
  %5412 = vmatpush2.msra.mxu0 0.0
  %5413 = vmatprep.subr.mxu0 0.0
  %5414 = vmatpush2.msra.mxu0 0.0
  %5415 = vmatprep.subr.mxu0 0.0
  %5416 = vmatpush2.msra.mxu0 0.0
  %5417 = vmatprep.subr.mxu0 0.0
  %5418 = vmatpush2.msra.mxu0 0.0
  %5419 = vmatprep.subr.mxu0 0.0
  %5420 = vmatpush2.msra.mxu0 0.0
  %5421 = vmatprep.subr.mxu0 0.0
  %5422 = vmatpush2.msra.mxu0 0.0
  %5423 = vmatprep.subr.mxu0 0.0
  %5424 = vmatpush2.msra.mxu0 0.0
  %5425 = vmatprep.subr.mxu0 0.0
  %5426 = vmatpush2.msra.mxu0 0.0
  %5427 = vmatprep.subr.mxu0 0.0
  %5428 = vmatpush2.msra.mxu0 0.0
  %5429 = vmatprep.subr.mxu0 0.0
  %5430 = vmatpush2.msra.mxu0 0.0
  %5431 = vmatprep.subr.mxu0 0.0
  %5432 = vmatpush2.msra.mxu0 0.0
  %5433 = vmatprep.subr.mxu0 0.0
  %5434 = vmatpush2.msra.mxu0 0.0
  %5435 = vmatprep.subr.mxu0 0.0
  %5436 = vmatpush2.msra.mxu0 0.0
  %5437 = vmatprep.mubr.f32.mxu0 0.0
  %5438 = vmatmul.mubr.f32.gmra.mxu0 %v5368
  %v5439 = vpop.f32.mrf.mxu0
  %v5440 = vadd.f32 0.0, %v5439
  %v5441 = vpop.f32.mrf.mxu0
  %5442 = vmatprep.mubr.f32.mxu0 0.0
  %5443 = vmatmul.mubr.f32.gmra.mxu0 %v5371
  %v5444 = vpop.f32.mrf.mxu0
  %v5445 = vadd.f32 0.0, %v5444
  %v5446 = vpop.f32.mrf.mxu0
  %5447 = vdwg.mxu0
  %v5449 = vsel %vm256, %v3567, 0
  %v5452 = vsel %vm256, %v3568, 0
  %5454 = vmatprep.subr.mxu0 0.0
  %5455 = vmatpush1.msra.mxu0 0.0
  %5456 = vmatprep.subr.mxu0 0.0
  %5457 = vmatpush1.msra.mxu0 0.0
  %5458 = vmatprep.subr.mxu0 0.0
  %5459 = vmatpush1.msra.mxu0 0.0
  %5460 = vmatprep.subr.mxu0 0.0
  %5461 = vmatpush1.msra.mxu0 0.0
  %5462 = vmatprep.subr.mxu0 0.0
  %5463 = vmatpush1.msra.mxu0 0.0
  %5464 = vmatprep.subr.mxu0 0.0
  %5465 = vmatpush1.msra.mxu0 0.0
  %5466 = vmatprep.subr.mxu0 0.0
  %5467 = vmatpush1.msra.mxu0 0.0
  %5468 = vmatprep.subr.mxu0 0.0
  %5469 = vmatpush1.msra.mxu0 0.0
  %5470 = vmatprep.subr.mxu0 0.0
  %5471 = vmatpush1.msra.mxu0 0.0
  %5472 = vmatprep.subr.mxu0 0.0
  %5473 = vmatpush1.msra.mxu0 0.0
  %5474 = vmatprep.subr.mxu0 0.0
  %5475 = vmatpush1.msra.mxu0 0.0
  %5476 = vmatprep.subr.mxu0 0.0
  %5477 = vmatpush1.msra.mxu0 0.0
  %5478 = vmatprep.subr.mxu0 0.0
  %5479 = vmatpush1.msra.mxu0 0.0
  %5480 = vmatprep.subr.mxu0 0.0
  %5481 = vmatpush1.msra.mxu0 0.0
  %5482 = vmatprep.subr.mxu0 0.0
  %5483 = vmatpush1.msra.mxu0 %v239
  %5484 = vmatprep.subr.mxu0 0.0
  %5485 = vmatpush1.msra.mxu0 %v238
  %5486 = vmatprep.subr.mxu0 0.0
  %5487 = vmatpush2.msra.mxu0 0.0
  %5488 = vmatprep.subr.mxu0 0.0
  %5489 = vmatpush2.msra.mxu0 0.0
  %5490 = vmatprep.subr.mxu0 0.0
  %5491 = vmatpush2.msra.mxu0 0.0
  %5492 = vmatprep.subr.mxu0 0.0
  %5493 = vmatpush2.msra.mxu0 0.0
  %5494 = vmatprep.subr.mxu0 0.0
  %5495 = vmatpush2.msra.mxu0 0.0
  %5496 = vmatprep.subr.mxu0 0.0
  %5497 = vmatpush2.msra.mxu0 0.0
  %5498 = vmatprep.subr.mxu0 0.0
  %5499 = vmatpush2.msra.mxu0 0.0
  %5500 = vmatprep.subr.mxu0 0.0
  %5501 = vmatpush2.msra.mxu0 0.0
  %5502 = vmatprep.subr.mxu0 0.0
  %5503 = vmatpush2.msra.mxu0 0.0
  %5504 = vmatprep.subr.mxu0 0.0
  %5505 = vmatpush2.msra.mxu0 0.0
  %5506 = vmatprep.subr.mxu0 0.0
  %5507 = vmatpush2.msra.mxu0 0.0
  %5508 = vmatprep.subr.mxu0 0.0
  %5509 = vmatpush2.msra.mxu0 0.0
  %5510 = vmatprep.subr.mxu0 0.0
  %5511 = vmatpush2.msra.mxu0 0.0
  %5512 = vmatprep.subr.mxu0 0.0
  %5513 = vmatpush2.msra.mxu0 0.0
  %5514 = vmatprep.subr.mxu0 0.0
  %5515 = vmatpush2.msra.mxu0 0.0
  %5516 = vmatprep.subr.mxu0 0.0
  %5517 = vmatpush2.msra.mxu0 0.0
  %5518 = vmatprep.mubr.f32.mxu0 0.0
  %5519 = vmatmul.mubr.f32.gmra.mxu0 %v5449
  %v5520 = vpop.f32.mrf.mxu0
  %v5521 = vadd.f32 0.0, %v5520
  %v5522 = vpop.f32.mrf.mxu0
  %5523 = vmatprep.mubr.f32.mxu0 0.0
  %5524 = vmatmul.mubr.f32.gmra.mxu0 %v5452
  %v5525 = vpop.f32.mrf.mxu0
  %v5526 = vadd.f32 0.0, %v5525
  %v5527 = vpop.f32.mrf.mxu0
  %5528 = vdwg.mxu0
  %v5530 = vsel %vm256, %v3569, 0
  %v5533 = vsel %vm256, %v3570, 0
  %5535 = vmatprep.subr.mxu0 0.0
  %5536 = vmatpush1.msra.mxu0 0.0
  %5537 = vmatprep.subr.mxu0 0.0
  %5538 = vmatpush1.msra.mxu0 0.0
  %5539 = vmatprep.subr.mxu0 0.0
  %5540 = vmatpush1.msra.mxu0 0.0
  %5541 = vmatprep.subr.mxu0 0.0
  %5542 = vmatpush1.msra.mxu0 0.0
  %5543 = vmatprep.subr.mxu0 0.0
  %5544 = vmatpush1.msra.mxu0 0.0
  %5545 = vmatprep.subr.mxu0 0.0
  %5546 = vmatpush1.msra.mxu0 0.0
  %5547 = vmatprep.subr.mxu0 0.0
  %5548 = vmatpush1.msra.mxu0 0.0
  %5549 = vmatprep.subr.mxu0 0.0
  %5550 = vmatpush1.msra.mxu0 0.0
  %5551 = vmatprep.subr.mxu0 0.0
  %5552 = vmatpush1.msra.mxu0 0.0
  %5553 = vmatprep.subr.mxu0 0.0
  %5554 = vmatpush1.msra.mxu0 0.0
  %5555 = vmatprep.subr.mxu0 0.0
  %5556 = vmatpush1.msra.mxu0 0.0
  %5557 = vmatprep.subr.mxu0 0.0
  %5558 = vmatpush1.msra.mxu0 0.0
  %5559 = vmatprep.subr.mxu0 0.0
  %5560 = vmatpush1.msra.mxu0 0.0
  %5561 = vmatprep.subr.mxu0 0.0
  %5562 = vmatpush1.msra.mxu0 0.0
  %5563 = vmatprep.subr.mxu0 0.0
  %5564 = vmatpush1.msra.mxu0 %v241
  %5565 = vmatprep.subr.mxu0 0.0
  %5566 = vmatpush1.msra.mxu0 %v240
  %5567 = vmatprep.subr.mxu0 0.0
  %5568 = vmatpush2.msra.mxu0 0.0
  %5569 = vmatprep.subr.mxu0 0.0
  %5570 = vmatpush2.msra.mxu0 0.0
  %5571 = vmatprep.subr.mxu0 0.0
  %5572 = vmatpush2.msra.mxu0 0.0
  %5573 = vmatprep.subr.mxu0 0.0
  %5574 = vmatpush2.msra.mxu0 0.0
  %5575 = vmatprep.subr.mxu0 0.0
  %5576 = vmatpush2.msra.mxu0 0.0
  %5577 = vmatprep.subr.mxu0 0.0
  %5578 = vmatpush2.msra.mxu0 0.0
  %5579 = vmatprep.subr.mxu0 0.0
  %5580 = vmatpush2.msra.mxu0 0.0
  %5581 = vmatprep.subr.mxu0 0.0
  %5582 = vmatpush2.msra.mxu0 0.0
  %5583 = vmatprep.subr.mxu0 0.0
  %5584 = vmatpush2.msra.mxu0 0.0
  %5585 = vmatprep.subr.mxu0 0.0
  %5586 = vmatpush2.msra.mxu0 0.0
  %5587 = vmatprep.subr.mxu0 0.0
  %5588 = vmatpush2.msra.mxu0 0.0
  %5589 = vmatprep.subr.mxu0 0.0
  %5590 = vmatpush2.msra.mxu0 0.0
  %5591 = vmatprep.subr.mxu0 0.0
  %5592 = vmatpush2.msra.mxu0 0.0
  %5593 = vmatprep.subr.mxu0 0.0
  %5594 = vmatpush2.msra.mxu0 0.0
  %5595 = vmatprep.subr.mxu0 0.0
  %5596 = vmatpush2.msra.mxu0 0.0
  %5597 = vmatprep.subr.mxu0 0.0
  %5598 = vmatpush2.msra.mxu0 0.0
  %5599 = vmatprep.mubr.f32.mxu0 0.0
  %5600 = vmatmul.mubr.f32.gmra.mxu0 %v5530
  %v5601 = vpop.f32.mrf.mxu0
  %v5602 = vadd.f32 0.0, %v5601
  %v5603 = vpop.f32.mrf.mxu0
  %5604 = vmatprep.mubr.f32.mxu0 0.0
  %5605 = vmatmul.mubr.f32.gmra.mxu0 %v5533
  %v5606 = vpop.f32.mrf.mxu0
  %v5607 = vadd.f32 0.0, %v5606
  %v5608 = vpop.f32.mrf.mxu0
  %5609 = vdwg.mxu0
  %v5611 = vsel %vm256, %v3571, 0
  %v5614 = vsel %vm256, %v3572, 0
  %5616 = vmatprep.subr.mxu0 0.0
  %5617 = vmatpush1.msra.mxu0 0.0
  %5618 = vmatprep.subr.mxu0 0.0
  %5619 = vmatpush1.msra.mxu0 0.0
  %5620 = vmatprep.subr.mxu0 0.0
  %5621 = vmatpush1.msra.mxu0 0.0
  %5622 = vmatprep.subr.mxu0 0.0
  %5623 = vmatpush1.msra.mxu0 0.0
  %5624 = vmatprep.subr.mxu0 0.0
  %5625 = vmatpush1.msra.mxu0 0.0
  %5626 = vmatprep.subr.mxu0 0.0
  %5627 = vmatpush1.msra.mxu0 0.0
  %5628 = vmatprep.subr.mxu0 0.0
  %5629 = vmatpush1.msra.mxu0 0.0
  %5630 = vmatprep.subr.mxu0 0.0
  %5631 = vmatpush1.msra.mxu0 0.0
  %5632 = vmatprep.subr.mxu0 0.0
  %5633 = vmatpush1.msra.mxu0 0.0
  %5634 = vmatprep.subr.mxu0 0.0
  %5635 = vmatpush1.msra.mxu0 0.0
  %5636 = vmatprep.subr.mxu0 0.0
  %5637 = vmatpush1.msra.mxu0 0.0
  %5638 = vmatprep.subr.mxu0 0.0
  %5639 = vmatpush1.msra.mxu0 0.0
  %5640 = vmatprep.subr.mxu0 0.0
  %5641 = vmatpush1.msra.mxu0 0.0
  %5642 = vmatprep.subr.mxu0 0.0
  %5643 = vmatpush1.msra.mxu0 0.0
  %5644 = vmatprep.subr.mxu0 0.0
  %5645 = vmatpush1.msra.mxu0 %v243
  %5646 = vmatprep.subr.mxu0 0.0
  %5647 = vmatpush1.msra.mxu0 %v242
  %5648 = vmatprep.subr.mxu0 0.0
  %5649 = vmatpush2.msra.mxu0 0.0
  %5650 = vmatprep.subr.mxu0 0.0
  %5651 = vmatpush2.msra.mxu0 0.0
  %5652 = vmatprep.subr.mxu0 0.0
  %5653 = vmatpush2.msra.mxu0 0.0
  %5654 = vmatprep.subr.mxu0 0.0
  %5655 = vmatpush2.msra.mxu0 0.0
  %5656 = vmatprep.subr.mxu0 0.0
  %5657 = vmatpush2.msra.mxu0 0.0
  %5658 = vmatprep.subr.mxu0 0.0
  %5659 = vmatpush2.msra.mxu0 0.0
  %5660 = vmatprep.subr.mxu0 0.0
  %5661 = vmatpush2.msra.mxu0 0.0
  %5662 = vmatprep.subr.mxu0 0.0
  %5663 = vmatpush2.msra.mxu0 0.0
  %5664 = vmatprep.subr.mxu0 0.0
  %5665 = vmatpush2.msra.mxu0 0.0
  %5666 = vmatprep.subr.mxu0 0.0
  %5667 = vmatpush2.msra.mxu0 0.0
  %5668 = vmatprep.subr.mxu0 0.0
  %5669 = vmatpush2.msra.mxu0 0.0
  %5670 = vmatprep.subr.mxu0 0.0
  %5671 = vmatpush2.msra.mxu0 0.0
  %5672 = vmatprep.subr.mxu0 0.0
  %5673 = vmatpush2.msra.mxu0 0.0
  %5674 = vmatprep.subr.mxu0 0.0
  %5675 = vmatpush2.msra.mxu0 0.0
  %5676 = vmatprep.subr.mxu0 0.0
  %5677 = vmatpush2.msra.mxu0 0.0
  %5678 = vmatprep.subr.mxu0 0.0
  %5679 = vmatpush2.msra.mxu0 0.0
  %5680 = vmatprep.mubr.f32.mxu0 0.0
  %5681 = vmatmul.mubr.f32.gmra.mxu0 %v5611
  %v5682 = vpop.f32.mrf.mxu0
  %v5683 = vadd.f32 0.0, %v5682
  %v5684 = vpop.f32.mrf.mxu0
  %5685 = vmatprep.mubr.f32.mxu0 0.0
  %5686 = vmatmul.mubr.f32.gmra.mxu0 %v5614
  %v5687 = vpop.f32.mrf.mxu0
  %v5688 = vadd.f32 0.0, %v5687
  %v5689 = vpop.f32.mrf.mxu0
  %5690 = vdwg.mxu0
  %v5692 = vsel %vm256, %v3573, 0
  %v5695 = vsel %vm256, %v3574, 0
  %5697 = vmatprep.subr.mxu0 0.0
  %5698 = vmatpush1.msra.mxu0 0.0
  %5699 = vmatprep.subr.mxu0 0.0
  %5700 = vmatpush1.msra.mxu0 0.0
  %5701 = vmatprep.subr.mxu0 0.0
  %5702 = vmatpush1.msra.mxu0 0.0
  %5703 = vmatprep.subr.mxu0 0.0
  %5704 = vmatpush1.msra.mxu0 0.0
  %5705 = vmatprep.subr.mxu0 0.0
  %5706 = vmatpush1.msra.mxu0 0.0
  %5707 = vmatprep.subr.mxu0 0.0
  %5708 = vmatpush1.msra.mxu0 0.0
  %5709 = vmatprep.subr.mxu0 0.0
  %5710 = vmatpush1.msra.mxu0 0.0
  %5711 = vmatprep.subr.mxu0 0.0
  %5712 = vmatpush1.msra.mxu0 0.0
  %5713 = vmatprep.subr.mxu0 0.0
  %5714 = vmatpush1.msra.mxu0 0.0
  %5715 = vmatprep.subr.mxu0 0.0
  %5716 = vmatpush1.msra.mxu0 0.0
  %5717 = vmatprep.subr.mxu0 0.0
  %5718 = vmatpush1.msra.mxu0 0.0
  %5719 = vmatprep.subr.mxu0 0.0
  %5720 = vmatpush1.msra.mxu0 0.0
  %5721 = vmatprep.subr.mxu0 0.0
  %5722 = vmatpush1.msra.mxu0 0.0
  %5723 = vmatprep.subr.mxu0 0.0
  %5724 = vmatpush1.msra.mxu0 0.0
  %5725 = vmatprep.subr.mxu0 0.0
  %5726 = vmatpush1.msra.mxu0 %v245
  %5727 = vmatprep.subr.mxu0 0.0
  %5728 = vmatpush1.msra.mxu0 %v244
  %5729 = vmatprep.subr.mxu0 0.0
  %5730 = vmatpush2.msra.mxu0 0.0
  %5731 = vmatprep.subr.mxu0 0.0
  %5732 = vmatpush2.msra.mxu0 0.0
  %5733 = vmatprep.subr.mxu0 0.0
  %5734 = vmatpush2.msra.mxu0 0.0
  %5735 = vmatprep.subr.mxu0 0.0
  %5736 = vmatpush2.msra.mxu0 0.0
  %5737 = vmatprep.subr.mxu0 0.0
  %5738 = vmatpush2.msra.mxu0 0.0
  %5739 = vmatprep.subr.mxu0 0.0
  %5740 = vmatpush2.msra.mxu0 0.0
  %5741 = vmatprep.subr.mxu0 0.0
  %5742 = vmatpush2.msra.mxu0 0.0
  %5743 = vmatprep.subr.mxu0 0.0
  %5744 = vmatpush2.msra.mxu0 0.0
  %5745 = vmatprep.subr.mxu0 0.0
  %5746 = vmatpush2.msra.mxu0 0.0
  %5747 = vmatprep.subr.mxu0 0.0
  %5748 = vmatpush2.msra.mxu0 0.0
  %5749 = vmatprep.subr.mxu0 0.0
  %5750 = vmatpush2.msra.mxu0 0.0
  %5751 = vmatprep.subr.mxu0 0.0
  %5752 = vmatpush2.msra.mxu0 0.0
  %5753 = vmatprep.subr.mxu0 0.0
  %5754 = vmatpush2.msra.mxu0 0.0
  %5755 = vmatprep.subr.mxu0 0.0
  %5756 = vmatpush2.msra.mxu0 0.0
  %5757 = vmatprep.subr.mxu0 0.0
  %5758 = vmatpush2.msra.mxu0 0.0
  %5759 = vmatprep.subr.mxu0 0.0
  %5760 = vmatpush2.msra.mxu0 0.0
  %5761 = vmatprep.mubr.f32.mxu0 0.0
  %5762 = vmatmul.mubr.f32.gmra.mxu0 %v5692
  %v5763 = vpop.f32.mrf.mxu0
  %v5764 = vadd.f32 0.0, %v5763
  %v5765 = vpop.f32.mrf.mxu0
  %5766 = vmatprep.mubr.f32.mxu0 0.0
  %5767 = vmatmul.mubr.f32.gmra.mxu0 %v5695
  %v5768 = vpop.f32.mrf.mxu0
  %v5769 = vadd.f32 0.0, %v5768
  %v5770 = vpop.f32.mrf.mxu0
  %5771 = vdwg.mxu0
  %v5773 = vsel %vm256, %v3575, 0
  %v5776 = vsel %vm256, %v3576, 0
  %5778 = vmatprep.subr.mxu0 0.0
  %5779 = vmatpush1.msra.mxu0 0.0
  %5780 = vmatprep.subr.mxu0 0.0
  %5781 = vmatpush1.msra.mxu0 0.0
  %5782 = vmatprep.subr.mxu0 0.0
  %5783 = vmatpush1.msra.mxu0 0.0
  %5784 = vmatprep.subr.mxu0 0.0
  %5785 = vmatpush1.msra.mxu0 0.0
  %5786 = vmatprep.subr.mxu0 0.0
  %5787 = vmatpush1.msra.mxu0 0.0
  %5788 = vmatprep.subr.mxu0 0.0
  %5789 = vmatpush1.msra.mxu0 0.0
  %5790 = vmatprep.subr.mxu0 0.0
  %5791 = vmatpush1.msra.mxu0 0.0
  %5792 = vmatprep.subr.mxu0 0.0
  %5793 = vmatpush1.msra.mxu0 0.0
  %5794 = vmatprep.subr.mxu0 0.0
  %5795 = vmatpush1.msra.mxu0 0.0
  %5796 = vmatprep.subr.mxu0 0.0
  %5797 = vmatpush1.msra.mxu0 0.0
  %5798 = vmatprep.subr.mxu0 0.0
  %5799 = vmatpush1.msra.mxu0 0.0
  %5800 = vmatprep.subr.mxu0 0.0
  %5801 = vmatpush1.msra.mxu0 0.0
  %5802 = vmatprep.subr.mxu0 0.0
  %5803 = vmatpush1.msra.mxu0 0.0
  %5804 = vmatprep.subr.mxu0 0.0
  %5805 = vmatpush1.msra.mxu0 0.0
  %5806 = vmatprep.subr.mxu0 0.0
  %5807 = vmatpush1.msra.mxu0 %v247
  %5808 = vmatprep.subr.mxu0 0.0
  %5809 = vmatpush1.msra.mxu0 %v246
  %5810 = vmatprep.subr.mxu0 0.0
  %5811 = vmatpush2.msra.mxu0 0.0
  %5812 = vmatprep.subr.mxu0 0.0
  %5813 = vmatpush2.msra.mxu0 0.0
  %5814 = vmatprep.subr.mxu0 0.0
  %5815 = vmatpush2.msra.mxu0 0.0
  %5816 = vmatprep.subr.mxu0 0.0
  %5817 = vmatpush2.msra.mxu0 0.0
  %5818 = vmatprep.subr.mxu0 0.0
  %5819 = vmatpush2.msra.mxu0 0.0
  %5820 = vmatprep.subr.mxu0 0.0
  %5821 = vmatpush2.msra.mxu0 0.0
  %5822 = vmatprep.subr.mxu0 0.0
  %5823 = vmatpush2.msra.mxu0 0.0
  %5824 = vmatprep.subr.mxu0 0.0
  %5825 = vmatpush2.msra.mxu0 0.0
  %5826 = vmatprep.subr.mxu0 0.0
  %5827 = vmatpush2.msra.mxu0 0.0
  %5828 = vmatprep.subr.mxu0 0.0
  %5829 = vmatpush2.msra.mxu0 0.0
  %5830 = vmatprep.subr.mxu0 0.0
  %5831 = vmatpush2.msra.mxu0 0.0
  %5832 = vmatprep.subr.mxu0 0.0
  %5833 = vmatpush2.msra.mxu0 0.0
  %5834 = vmatprep.subr.mxu0 0.0
  %5835 = vmatpush2.msra.mxu0 0.0
  %5836 = vmatprep.subr.mxu0 0.0
  %5837 = vmatpush2.msra.mxu0 0.0
  %5838 = vmatprep.subr.mxu0 0.0
  %5839 = vmatpush2.msra.mxu0 0.0
  %5840 = vmatprep.subr.mxu0 0.0
  %5841 = vmatpush2.msra.mxu0 0.0
  %5842 = vmatprep.mubr.f32.mxu0 0.0
  %5843 = vmatmul.mubr.f32.gmra.mxu0 %v5773
  %v5844 = vpop.f32.mrf.mxu0
  %v5845 = vadd.f32 0.0, %v5844
  %v5846 = vpop.f32.mrf.mxu0
  %5847 = vmatprep.mubr.f32.mxu0 0.0
  %5848 = vmatmul.mubr.f32.gmra.mxu0 %v5776
  %v5849 = vpop.f32.mrf.mxu0
  %v5850 = vadd.f32 0.0, %v5849
  %v5851 = vpop.f32.mrf.mxu0
  %5852 = vdwg.mxu0
  %v5854 = vsel %vm256, %v3577, 0
  %v5857 = vsel %vm256, %v3578, 0
  %5859 = vmatprep.subr.mxu0 0.0
  %5860 = vmatpush1.msra.mxu0 0.0
  %5861 = vmatprep.subr.mxu0 0.0
  %5862 = vmatpush1.msra.mxu0 0.0
  %5863 = vmatprep.subr.mxu0 0.0
  %5864 = vmatpush1.msra.mxu0 0.0
  %5865 = vmatprep.subr.mxu0 0.0
  %5866 = vmatpush1.msra.mxu0 0.0
  %5867 = vmatprep.subr.mxu0 0.0
  %5868 = vmatpush1.msra.mxu0 0.0
  %5869 = vmatprep.subr.mxu0 0.0
  %5870 = vmatpush1.msra.mxu0 0.0
  %5871 = vmatprep.subr.mxu0 0.0
  %5872 = vmatpush1.msra.mxu0 0.0
  %5873 = vmatprep.subr.mxu0 0.0
  %5874 = vmatpush1.msra.mxu0 0.0
  %5875 = vmatprep.subr.mxu0 0.0
  %5876 = vmatpush1.msra.mxu0 0.0
  %5877 = vmatprep.subr.mxu0 0.0
  %5878 = vmatpush1.msra.mxu0 0.0
  %5879 = vmatprep.subr.mxu0 0.0
  %5880 = vmatpush1.msra.mxu0 0.0
  %5881 = vmatprep.subr.mxu0 0.0
  %5882 = vmatpush1.msra.mxu0 0.0
  %5883 = vmatprep.subr.mxu0 0.0
  %5884 = vmatpush1.msra.mxu0 0.0
  %5885 = vmatprep.subr.mxu0 0.0
  %5886 = vmatpush1.msra.mxu0 0.0
  %5887 = vmatprep.subr.mxu0 0.0
  %5888 = vmatpush1.msra.mxu0 %v249
  %5889 = vmatprep.subr.mxu0 0.0
  %5890 = vmatpush1.msra.mxu0 %v248
  %5891 = vmatprep.subr.mxu0 0.0
  %5892 = vmatpush2.msra.mxu0 0.0
  %5893 = vmatprep.subr.mxu0 0.0
  %5894 = vmatpush2.msra.mxu0 0.0
  %5895 = vmatprep.subr.mxu0 0.0
  %5896 = vmatpush2.msra.mxu0 0.0
  %5897 = vmatprep.subr.mxu0 0.0
  %5898 = vmatpush2.msra.mxu0 0.0
  %5899 = vmatprep.subr.mxu0 0.0
  %5900 = vmatpush2.msra.mxu0 0.0
  %5901 = vmatprep.subr.mxu0 0.0
  %5902 = vmatpush2.msra.mxu0 0.0
  %5903 = vmatprep.subr.mxu0 0.0
  %5904 = vmatpush2.msra.mxu0 0.0
  %5905 = vmatprep.subr.mxu0 0.0
  %5906 = vmatpush2.msra.mxu0 0.0
  %5907 = vmatprep.subr.mxu0 0.0
  %5908 = vmatpush2.msra.mxu0 0.0
  %5909 = vmatprep.subr.mxu0 0.0
  %5910 = vmatpush2.msra.mxu0 0.0
  %5911 = vmatprep.subr.mxu0 0.0
  %5912 = vmatpush2.msra.mxu0 0.0
  %5913 = vmatprep.subr.mxu0 0.0
  %5914 = vmatpush2.msra.mxu0 0.0
  %5915 = vmatprep.subr.mxu0 0.0
  %5916 = vmatpush2.msra.mxu0 0.0
  %5917 = vmatprep.subr.mxu0 0.0
  %5918 = vmatpush2.msra.mxu0 0.0
  %5919 = vmatprep.subr.mxu0 0.0
  %5920 = vmatpush2.msra.mxu0 0.0
  %5921 = vmatprep.subr.mxu0 0.0
  %5922 = vmatpush2.msra.mxu0 0.0
  %5923 = vmatprep.mubr.f32.mxu0 0.0
  %5924 = vmatmul.mubr.f32.gmra.mxu0 %v5854
  %v5925 = vpop.f32.mrf.mxu0
  %v5926 = vadd.f32 0.0, %v5925
  %v5927 = vpop.f32.mrf.mxu0
  %5928 = vmatprep.mubr.f32.mxu0 0.0
  %5929 = vmatmul.mubr.f32.gmra.mxu0 %v5857
  %v5930 = vpop.f32.mrf.mxu0
  %v5931 = vadd.f32 0.0, %v5930
  %v5932 = vpop.f32.mrf.mxu0
  %5933 = vdwg.mxu0
  %v5935 = vsel %vm256, %v3579, 0
  %v5938 = vsel %vm256, %v3580, 0
  %5940 = vmatprep.subr.mxu0 0.0
  %5941 = vmatpush1.msra.mxu0 0.0
  %5942 = vmatprep.subr.mxu0 0.0
  %5943 = vmatpush1.msra.mxu0 0.0
  %5944 = vmatprep.subr.mxu0 0.0
  %5945 = vmatpush1.msra.mxu0 0.0
  %5946 = vmatprep.subr.mxu0 0.0
  %5947 = vmatpush1.msra.mxu0 0.0
  %5948 = vmatprep.subr.mxu0 0.0
  %5949 = vmatpush1.msra.mxu0 0.0
  %5950 = vmatprep.subr.mxu0 0.0
  %5951 = vmatpush1.msra.mxu0 0.0
  %5952 = vmatprep.subr.mxu0 0.0
  %5953 = vmatpush1.msra.mxu0 0.0
  %5954 = vmatprep.subr.mxu0 0.0
  %5955 = vmatpush1.msra.mxu0 0.0
  %5956 = vmatprep.subr.mxu0 0.0
  %5957 = vmatpush1.msra.mxu0 0.0
  %5958 = vmatprep.subr.mxu0 0.0
  %5959 = vmatpush1.msra.mxu0 0.0
  %5960 = vmatprep.subr.mxu0 0.0
  %5961 = vmatpush1.msra.mxu0 0.0
  %5962 = vmatprep.subr.mxu0 0.0
  %5963 = vmatpush1.msra.mxu0 0.0
  %5964 = vmatprep.subr.mxu0 0.0
  %5965 = vmatpush1.msra.mxu0 0.0
  %5966 = vmatprep.subr.mxu0 0.0
  %5967 = vmatpush1.msra.mxu0 0.0
  %5968 = vmatprep.subr.mxu0 0.0
  %5969 = vmatpush1.msra.mxu0 %v251
  %5970 = vmatprep.subr.mxu0 0.0
  %5971 = vmatpush1.msra.mxu0 %v250
  %5972 = vmatprep.subr.mxu0 0.0
  %5973 = vmatpush2.msra.mxu0 0.0
  %5974 = vmatprep.subr.mxu0 0.0
  %5975 = vmatpush2.msra.mxu0 0.0
  %5976 = vmatprep.subr.mxu0 0.0
  %5977 = vmatpush2.msra.mxu0 0.0
  %5978 = vmatprep.subr.mxu0 0.0
  %5979 = vmatpush2.msra.mxu0 0.0
  %5980 = vmatprep.subr.mxu0 0.0
  %5981 = vmatpush2.msra.mxu0 0.0
  %5982 = vmatprep.subr.mxu0 0.0
  %5983 = vmatpush2.msra.mxu0 0.0
  %5984 = vmatprep.subr.mxu0 0.0
  %5985 = vmatpush2.msra.mxu0 0.0
  %5986 = vmatprep.subr.mxu0 0.0
  %5987 = vmatpush2.msra.mxu0 0.0
  %5988 = vmatprep.subr.mxu0 0.0
  %5989 = vmatpush2.msra.mxu0 0.0
  %5990 = vmatprep.subr.mxu0 0.0
  %5991 = vmatpush2.msra.mxu0 0.0
  %5992 = vmatprep.subr.mxu0 0.0
  %5993 = vmatpush2.msra.mxu0 0.0
  %5994 = vmatprep.subr.mxu0 0.0
  %5995 = vmatpush2.msra.mxu0 0.0
  %5996 = vmatprep.subr.mxu0 0.0
  %5997 = vmatpush2.msra.mxu0 0.0
  %5998 = vmatprep.subr.mxu0 0.0
  %5999 = vmatpush2.msra.mxu0 0.0
  %6000 = vmatprep.subr.mxu0 0.0
  %6001 = vmatpush2.msra.mxu0 0.0
  %6002 = vmatprep.subr.mxu0 0.0
  %6003 = vmatpush2.msra.mxu0 0.0
  %6004 = vmatprep.mubr.f32.mxu0 0.0
  %6005 = vmatmul.mubr.f32.gmra.mxu0 %v5935
  %v6006 = vpop.f32.mrf.mxu0
  %v6007 = vadd.f32 0.0, %v6006
  %v6008 = vpop.f32.mrf.mxu0
  %6009 = vmatprep.mubr.f32.mxu0 0.0
  %6010 = vmatmul.mubr.f32.gmra.mxu0 %v5938
  %v6011 = vpop.f32.mrf.mxu0
  %v6012 = vadd.f32 0.0, %v6011
  %v6013 = vpop.f32.mrf.mxu0
  %6014 = vdwg.mxu0
  %v6016 = vsel %vm256, %v3581, 0
  %v6019 = vsel %vm256, %v3582, 0
  %6021 = vmatprep.subr.mxu0 0.0
  %6022 = vmatpush1.msra.mxu0 0.0
  %6023 = vmatprep.subr.mxu0 0.0
  %6024 = vmatpush1.msra.mxu0 0.0
  %6025 = vmatprep.subr.mxu0 0.0
  %6026 = vmatpush1.msra.mxu0 0.0
  %6027 = vmatprep.subr.mxu0 0.0
  %6028 = vmatpush1.msra.mxu0 0.0
  %6029 = vmatprep.subr.mxu0 0.0
  %6030 = vmatpush1.msra.mxu0 0.0
  %6031 = vmatprep.subr.mxu0 0.0
  %6032 = vmatpush1.msra.mxu0 0.0
  %6033 = vmatprep.subr.mxu0 0.0
  %6034 = vmatpush1.msra.mxu0 0.0
  %6035 = vmatprep.subr.mxu0 0.0
  %6036 = vmatpush1.msra.mxu0 0.0
  %6037 = vmatprep.subr.mxu0 0.0
  %6038 = vmatpush1.msra.mxu0 0.0
  %6039 = vmatprep.subr.mxu0 0.0
  %6040 = vmatpush1.msra.mxu0 0.0
  %6041 = vmatprep.subr.mxu0 0.0
  %6042 = vmatpush1.msra.mxu0 0.0
  %6043 = vmatprep.subr.mxu0 0.0
  %6044 = vmatpush1.msra.mxu0 0.0
  %6045 = vmatprep.subr.mxu0 0.0
  %6046 = vmatpush1.msra.mxu0 0.0
  %6047 = vmatprep.subr.mxu0 0.0
  %6048 = vmatpush1.msra.mxu0 0.0
  %6049 = vmatprep.subr.mxu0 0.0
  %6050 = vmatpush1.msra.mxu0 %v253
  %6051 = vmatprep.subr.mxu0 0.0
  %6052 = vmatpush1.msra.mxu0 %v252
  %6053 = vmatprep.subr.mxu0 0.0
  %6054 = vmatpush2.msra.mxu0 0.0
  %6055 = vmatprep.subr.mxu0 0.0
  %6056 = vmatpush2.msra.mxu0 0.0
  %6057 = vmatprep.subr.mxu0 0.0
  %6058 = vmatpush2.msra.mxu0 0.0
  %6059 = vmatprep.subr.mxu0 0.0
  %6060 = vmatpush2.msra.mxu0 0.0
  %6061 = vmatprep.subr.mxu0 0.0
  %6062 = vmatpush2.msra.mxu0 0.0
  %6063 = vmatprep.subr.mxu0 0.0
  %6064 = vmatpush2.msra.mxu0 0.0
  %6065 = vmatprep.subr.mxu0 0.0
  %6066 = vmatpush2.msra.mxu0 0.0
  %6067 = vmatprep.subr.mxu0 0.0
  %6068 = vmatpush2.msra.mxu0 0.0
  %6069 = vmatprep.subr.mxu0 0.0
  %6070 = vmatpush2.msra.mxu0 0.0
  %6071 = vmatprep.subr.mxu0 0.0
  %6072 = vmatpush2.msra.mxu0 0.0
  %6073 = vmatprep.subr.mxu0 0.0
  %6074 = vmatpush2.msra.mxu0 0.0
  %6075 = vmatprep.subr.mxu0 0.0
  %6076 = vmatpush2.msra.mxu0 0.0
  %6077 = vmatprep.subr.mxu0 0.0
  %6078 = vmatpush2.msra.mxu0 0.0
  %6079 = vmatprep.subr.mxu0 0.0
  %6080 = vmatpush2.msra.mxu0 0.0
  %6081 = vmatprep.subr.mxu0 0.0
  %6082 = vmatpush2.msra.mxu0 0.0
  %6083 = vmatprep.subr.mxu0 0.0
  %6084 = vmatpush2.msra.mxu0 0.0
  %6085 = vmatprep.mubr.f32.mxu0 0.0
  %6086 = vmatmul.mubr.f32.gmra.mxu0 %v6016
  %v6087 = vpop.f32.mrf.mxu0
  %v6088 = vadd.f32 0.0, %v6087
  %v6089 = vpop.f32.mrf.mxu0
  %6090 = vmatprep.mubr.f32.mxu0 0.0
  %6091 = vmatmul.mubr.f32.gmra.mxu0 %v6019
  %v6092 = vpop.f32.mrf.mxu0
  %v6093 = vadd.f32 0.0, %v6092
  %v6094 = vpop.f32.mrf.mxu0
  %6095 = vdwg.mxu0
  %v6097 = vsel %vm256, %v3583, 0
  %v6100 = vsel %vm256, %v3584, 0
  %6102 = vmatprep.subr.mxu0 0.0
  %6103 = vmatpush1.msra.mxu0 0.0
  %6104 = vmatprep.subr.mxu0 0.0
  %6105 = vmatpush1.msra.mxu0 0.0
  %6106 = vmatprep.subr.mxu0 0.0
  %6107 = vmatpush1.msra.mxu0 0.0
  %6108 = vmatprep.subr.mxu0 0.0
  %6109 = vmatpush1.msra.mxu0 0.0
  %6110 = vmatprep.subr.mxu0 0.0
  %6111 = vmatpush1.msra.mxu0 0.0
  %6112 = vmatprep.subr.mxu0 0.0
  %6113 = vmatpush1.msra.mxu0 0.0
  %6114 = vmatprep.subr.mxu0 0.0
  %6115 = vmatpush1.msra.mxu0 0.0
  %6116 = vmatprep.subr.mxu0 0.0
  %6117 = vmatpush1.msra.mxu0 0.0
  %6118 = vmatprep.subr.mxu0 0.0
  %6119 = vmatpush1.msra.mxu0 0.0
  %6120 = vmatprep.subr.mxu0 0.0
  %6121 = vmatpush1.msra.mxu0 0.0
  %6122 = vmatprep.subr.mxu0 0.0
  %6123 = vmatpush1.msra.mxu0 0.0
  %6124 = vmatprep.subr.mxu0 0.0
  %6125 = vmatpush1.msra.mxu0 0.0
  %6126 = vmatprep.subr.mxu0 0.0
  %6127 = vmatpush1.msra.mxu0 0.0
  %6128 = vmatprep.subr.mxu0 0.0
  %6129 = vmatpush1.msra.mxu0 0.0
  %6130 = vmatprep.subr.mxu0 0.0
  %6131 = vmatpush1.msra.mxu0 %v255
  %6132 = vmatprep.subr.mxu0 0.0
  %6133 = vmatpush1.msra.mxu0 %v254
  %6134 = vmatprep.subr.mxu0 0.0
  %6135 = vmatpush2.msra.mxu0 0.0
  %6136 = vmatprep.subr.mxu0 0.0
  %6137 = vmatpush2.msra.mxu0 0.0
  %6138 = vmatprep.subr.mxu0 0.0
  %6139 = vmatpush2.msra.mxu0 0.0
  %6140 = vmatprep.subr.mxu0 0.0
  %6141 = vmatpush2.msra.mxu0 0.0
  %6142 = vmatprep.subr.mxu0 0.0
  %6143 = vmatpush2.msra.mxu0 0.0
  %6144 = vmatprep.subr.mxu0 0.0
  %6145 = vmatpush2.msra.mxu0 0.0
  %6146 = vmatprep.subr.mxu0 0.0
  %6147 = vmatpush2.msra.mxu0 0.0
  %6148 = vmatprep.subr.mxu0 0.0
  %6149 = vmatpush2.msra.mxu0 0.0
  %6150 = vmatprep.subr.mxu0 0.0
  %6151 = vmatpush2.msra.mxu0 0.0
  %6152 = vmatprep.subr.mxu0 0.0
  %6153 = vmatpush2.msra.mxu0 0.0
  %6154 = vmatprep.subr.mxu0 0.0
  %6155 = vmatpush2.msra.mxu0 0.0
  %6156 = vmatprep.subr.mxu0 0.0
  %6157 = vmatpush2.msra.mxu0 0.0
  %6158 = vmatprep.subr.mxu0 0.0
  %6159 = vmatpush2.msra.mxu0 0.0
  %6160 = vmatprep.subr.mxu0 0.0
  %6161 = vmatpush2.msra.mxu0 0.0
  %6162 = vmatprep.subr.mxu0 0.0
  %6163 = vmatpush2.msra.mxu0 0.0
  %6164 = vmatprep.subr.mxu0 0.0
  %6165 = vmatpush2.msra.mxu0 0.0
  %6166 = vmatprep.mubr.f32.mxu0 0.0
  %6167 = vmatmul.mubr.f32.gmra.mxu0 %v6097
  %v6168 = vpop.f32.mrf.mxu0
  %v6169 = vadd.f32 0.0, %v6168
  %v6170 = vpop.f32.mrf.mxu0
  %6171 = vmatprep.mubr.f32.mxu0 0.0
  %6172 = vmatmul.mubr.f32.gmra.mxu0 %v6100
  %v6173 = vpop.f32.mrf.mxu0
  %v6174 = vadd.f32 0.0, %v6173
  %v6175 = vpop.f32.mrf.mxu0
  %6176 = vdwg.mxu0
  %6177 = vst.msk [vmem:[%s3] sm:$0xff] %vm256, %v3658
  %6178 = vst.msk [vmem:[%s3 + $0x8] sm:$0xff] %vm256, %v3663
  %6179 = vst.msk [vmem:[%s3 + $0x10] sm:$0xff] %vm256, %v3739
  %6180 = vst.msk [vmem:[%s3 + $0x18] sm:$0xff] %vm256, %v3744
  %6181 = vst.msk [vmem:[%s3 + $0x20] sm:$0xff] %vm256, %v3820
  %6182 = vst.msk [vmem:[%s3 + $0x28] sm:$0xff] %vm256, %v3825
  %6183 = vst.msk [vmem:[%s3 + $0x30] sm:$0xff] %vm256, %v3901
  %6184 = vst.msk [vmem:[%s3 + $0x38] sm:$0xff] %vm256, %v3906
  %6185 = vst.msk [vmem:[%s3 + $0x40] sm:$0xff] %vm256, %v3982
  %6186 = vst.msk [vmem:[%s3 + $0x48] sm:$0xff] %vm256, %v3987
  %6187 = vst.msk [vmem:[%s3 + $0x50] sm:$0xff] %vm256, %v4063
  %6188 = vst.msk [vmem:[%s3 + $0x58] sm:$0xff] %vm256, %v4068
  %6189 = vst.msk [vmem:[%s3 + $0x60] sm:$0xff] %vm256, %v4144
  %6190 = vst.msk [vmem:[%s3 + $0x68] sm:$0xff] %vm256, %v4149
  %6191 = vst.msk [vmem:[%s3 + $0x70] sm:$0xff] %vm256, %v4225
  %6192 = vst.msk [vmem:[%s3 + $0x78] sm:$0xff] %vm256, %v4230
  %6193 = vst.msk [vmem:[%s3 + $0x80] sm:$0xff] %vm256, %v4306
  %6194 = vst.msk [vmem:[%s3 + $0x88] sm:$0xff] %vm256, %v4311
  %6195 = vst.msk [vmem:[%s3 + $0x90] sm:$0xff] %vm256, %v4387
  %6196 = vst.msk [vmem:[%s3 + $0x98] sm:$0xff] %vm256, %v4392
  %6197 = vst.msk [vmem:[%s3 + $0xa0] sm:$0xff] %vm256, %v4468
  %6198 = vst.msk [vmem:[%s3 + $0xa8] sm:$0xff] %vm256, %v4473
  %6199 = vst.msk [vmem:[%s3 + $0xb0] sm:$0xff] %vm256, %v4549
  %6200 = vst.msk [vmem:[%s3 + $0xb8] sm:$0xff] %vm256, %v4554
  %6201 = vst.msk [vmem:[%s3 + $0xc0] sm:$0xff] %vm256, %v4630
  %6202 = vst.msk [vmem:[%s3 + $0xc8] sm:$0xff] %vm256, %v4635
  %6203 = vst.msk [vmem:[%s3 + $0xd0] sm:$0xff] %vm256, %v4711
  %6204 = vst.msk [vmem:[%s3 + $0xd8] sm:$0xff] %vm256, %v4716
  %6205 = vst.msk [vmem:[%s3 + $0xe0] sm:$0xff] %vm256, %v4792
  %6206 = vst.msk [vmem:[%s3 + $0xe8] sm:$0xff] %vm256, %v4797
  %6207 = vst.msk [vmem:[%s3 + $0xf0] sm:$0xff] %vm256, %v4873
  %6208 = vst.msk [vmem:[%s3 + $0xf8] sm:$0xff] %vm256, %v4878
  %6209 = vst.msk [vmem:[%s3 + $0x100] sm:$0xff] %vm256, %v4954
  %6210 = vst.msk [vmem:[%s3 + $0x108] sm:$0xff] %vm256, %v4959
  %6211 = vst.msk [vmem:[%s3 + $0x110] sm:$0xff] %vm256, %v5035
  %6212 = vst.msk [vmem:[%s3 + $0x118] sm:$0xff] %vm256, %v5040
  %6213 = vst.msk [vmem:[%s3 + $0x120] sm:$0xff] %vm256, %v5116
  %6214 = vst.msk [vmem:[%s3 + $0x128] sm:$0xff] %vm256, %v5121
  %6215 = vst.msk [vmem:[%s3 + $0x130] sm:$0xff] %vm256, %v5197
  %6216 = vst.msk [vmem:[%s3 + $0x138] sm:$0xff] %vm256, %v5202
  %6217 = vst.msk [vmem:[%s3 + $0x140] sm:$0xff] %vm256, %v5278
  %6218 = vst.msk [vmem:[%s3 + $0x148] sm:$0xff] %vm256, %v5283
  %6219 = vst.msk [vmem:[%s3 + $0x150] sm:$0xff] %vm256, %v5359
  %6220 = vst.msk [vmem:[%s3 + $0x158] sm:$0xff] %vm256, %v5364
  %6221 = vst.msk [vmem:[%s3 + $0x160] sm:$0xff] %vm256, %v5440
  %6222 = vst.msk [vmem:[%s3 + $0x168] sm:$0xff] %vm256, %v5445
  %6223 = vst.msk [vmem:[%s3 + $0x170] sm:$0xff] %vm256, %v5521
  %6224 = vst.msk [vmem:[%s3 + $0x178] sm:$0xff] %vm256, %v5526
  %6225 = vst.msk [vmem:[%s3 + $0x180] sm:$0xff] %vm256, %v5602
  %6226 = vst.msk [vmem:[%s3 + $0x188] sm:$0xff] %vm256, %v5607
  %6227 = vst.msk [vmem:[%s3 + $0x190] sm:$0xff] %vm256, %v5683
  %6228 = vst.msk [vmem:[%s3 + $0x198] sm:$0xff] %vm256, %v5688
  %6229 = vst.msk [vmem:[%s3 + $0x1a0] sm:$0xff] %vm256, %v5764
  %6230 = vst.msk [vmem:[%s3 + $0x1a8] sm:$0xff] %vm256, %v5769
  %6231 = vst.msk [vmem:[%s3 + $0x1b0] sm:$0xff] %vm256, %v5845
  %6232 = vst.msk [vmem:[%s3 + $0x1b8] sm:$0xff] %vm256, %v5850
  %6233 = vst.msk [vmem:[%s3 + $0x1c0] sm:$0xff] %vm256, %v5926
  %6234 = vst.msk [vmem:[%s3 + $0x1c8] sm:$0xff] %vm256, %v5931
  %6235 = vst.msk [vmem:[%s3 + $0x1d0] sm:$0xff] %vm256, %v6007
  %6236 = vst.msk [vmem:[%s3 + $0x1d8] sm:$0xff] %vm256, %v6012
  %6237 = vst.msk [vmem:[%s3 + $0x1e0] sm:$0xff] %vm256, %v6088
  %6238 = vst.msk [vmem:[%s3 + $0x1e8] sm:$0xff] %vm256, %v6093
  %6239 = vst.msk [vmem:[%s3 + $0x1f0] sm:$0xff] %vm256, %v6169
  %6240 = vst.msk [vmem:[%s3 + $0x1f8] sm:$0xff] %vm256, %v6174
  // Predicated region
  $region14: #{st_attention_forward.4} parent=0 // pred_check
    _
  $region15: #{st_attention_forward.4} parent=0 // pred_check_branch
    %6242 = sbr.rel (0) target = $region17
  $region16: #{st_attention_forward.4} parent=0 // pred_region
    _
  $region17: #{st_attention_forward.4} parent=0 // pred_fallthru
    _
  // Predicated region
  $region18: #{st_attention_forward.4} parent=0 // pred_check
    _
  $region19: #{st_attention_forward.4} parent=0 // pred_check_branch
    %6244 = sbr.rel (0) target = $region21
  $region20: #{st_attention_forward.4} parent=0 // pred_region
    _
  $region21: #{st_attention_forward.4} parent=0 // pred_fallthru
    _

</llo_original>
